<compile_context>
chip_gen: v5e
topology: v5e:2x2
jax: 0.10.0
libtpu: 0.0.40
codegen_flags: <defaults>
</compile_context>

<pallas_src>
import functools
import math

import jax
import jax.numpy as jnp
from jax import lax
from jax.experimental import pallas as pl
from jax.experimental.pallas import tpu as pltpu

_MM_DTYPE = jnp.bfloat16  # matmul operand dtype (f32 accumulation on the MXU)

_COMPILER_PARAMS = pltpu.CompilerParams(
    dimension_semantics=("parallel",),
    vmem_limit_bytes=32 * 1024 * 1024,
)


def _full_spec(shape):
    """BlockSpec for a non-batched operand: full array, same block each step."""
    ndim = len(shape)
    return pl.BlockSpec(shape, lambda i, _n=ndim: (0,) * _n)


# ----------------------------------------------------------------------------
# In-kernel helpers (operate on VMEM values)
# ----------------------------------------------------------------------------
def _mm(a, b):
    """a @ b with bf16 operands and f32 accumulation."""
    return jnp.dot(a.astype(_MM_DTYPE), b.astype(_MM_DTYPE),
                   preferred_element_type=jnp.float32)


def _qkt(q, k):
    """q @ k^T (contract last dims) with bf16 operands, f32 accumulation."""
    return lax.dot_general(q.astype(_MM_DTYPE), k.astype(_MM_DTYPE),
                           (((1,), (1,)), ((), ())),
                           preferred_element_type=jnp.float32)


def _layernorm(h, g, b):
    """LayerNorm with eps=1e-5 (PyTorch default), f32 math."""
    mean = jnp.mean(h, axis=-1, keepdims=True)
    c = h - mean
    var = jnp.mean(c * c, axis=-1, keepdims=True)
    return c * lax.rsqrt(var + 1e-5) * g + b


def _mha(q, k, v, wo, bo, heads):
    """Multi-head attention + output projection, all in VMEM.

    q: (Nq, D), k/v: (Nk, D), wo: (D, D), bo: (1, D) -> (Nq, D).
    The per-head context o_h is folded straight into the output projection,
    avoiding an explicit head-concatenate.
    """
    Nq, D = q.shape
    dh = D // heads
    scale = 1.0 / math.sqrt(dh)
    acc = jnp.zeros((Nq, D), jnp.float32)
    for h in range(heads):  # static unrolled loop (heads is small)
        lo, hi = h * dh, (h + 1) * dh
        qh, kh, vh = q[:, lo:hi], k[:, lo:hi], v[:, lo:hi]
        s = _qkt(qh, kh) * scale                       # (Nq, Nk) f32
        m = jnp.max(s, axis=-1, keepdims=True)
        p = jnp.exp(s - m)
        p = p * pl.reciprocal(jnp.sum(p, axis=-1, keepdims=True), approx=True)
        oh = _mm(p, vh)                                # (Nq, dh)
        acc = acc + _mm(oh, wo[lo:hi, :])              # fold into out-proj
    return acc + bo


# ----------------------------------------------------------------------------
# Pallas kernels (one grid step == one batch element)
# ----------------------------------------------------------------------------
def _embed_kernel(p_ref, w_ref, b_ref, pos_ref, o_ref):
    """x = patches @ W + b + pos   (patch embedding + positional add)."""
    o_ref[0] = _mm(p_ref[0], w_ref[...]) + b_ref[...] + pos_ref[0]


def _encoder_layer_kernel(x_ref, wqkv_ref, bqkv_ref, wo_ref, bo_ref,
                          ln1g_ref, ln1b_ref,
                          w1_ref, b1_ref, w2_ref, b2_ref,
                          ln2g_ref, ln2b_ref, o_ref, *, heads):
    x = x_ref[0]                                       # (N, D)
    D = x.shape[-1]
    # --- self attention (fused QKV) + output projection ---
    qkv = _mm(x, wqkv_ref[...]) + bqkv_ref[...]        # (N, 3D)
    a = _mha(qkv[:, :D], qkv[:, D:2 * D], qkv[:, 2 * D:],
             wo_ref[...], bo_ref[...], heads)
    h1 = _layernorm(a + x, ln1g_ref[...], ln1b_ref[...])
    # --- FFN (ReLU) + residual LayerNorm, intermediate stays in VMEM ---
    f = jnp.maximum(_mm(h1, w1_ref[...]) + b1_ref[...], 0.0)
    f = _mm(f, w2_ref[...]) + b2_ref[...]
    o_ref[0] = _layernorm(f + h1, ln2g_ref[...], ln2b_ref[...])


def _decoder_layer_kernel(x_ref, mem_ref,
                          s_wqkv_ref, s_bqkv_ref, s_wo_ref, s_bo_ref,
                          ln1g_ref, ln1b_ref,
                          c_wq_ref, c_bq_ref, c_wkv_ref, c_bkv_ref,
                          c_wo_ref, c_bo_ref, ln2g_ref, ln2b_ref,
                          w1_ref, b1_ref, w2_ref, b2_ref,
                          ln3g_ref, ln3b_ref, o_ref, *, heads):
    x = x_ref[0]                                       # (N, D)
    mem = mem_ref[0]                                   # (Nk, D)
    D = x.shape[-1]
    # --- self attention ---
    qkv = _mm(x, s_wqkv_ref[...]) + s_bqkv_ref[...]
    a = _mha(qkv[:, :D], qkv[:, D:2 * D], qkv[:, 2 * D:],
             s_wo_ref[...], s_bo_ref[...], heads)
    h1 = _layernorm(a + x, ln1g_ref[...], ln1b_ref[...])
    # --- cross attention (Q from decoder, fused KV from encoder memory) ---
    q = _mm(h1, c_wq_ref[...]) + c_bq_ref[...]
    kv = _mm(mem, c_wkv_ref[...]) + c_bkv_ref[...]     # (Nk, 2D)
    c = _mha(q, kv[:, :D], kv[:, D:], c_wo_ref[...], c_bo_ref[...], heads)
    h2 = _layernorm(c + h1, ln2g_ref[...], ln2b_ref[...])
    # --- FFN ---
    f = jnp.maximum(_mm(h2, w1_ref[...]) + b1_ref[...], 0.0)
    f = _mm(f, w2_ref[...]) + b2_ref[...]
    o_ref[0] = _layernorm(f + h2, ln3g_ref[...], ln3b_ref[...])


def _head_kernel(x_ref, w_ref, b_ref, o_ref):
    """mlp_head: tanh(x @ W + b)."""
    o_ref[0] = jnp.tanh(_mm(x_ref[0], w_ref[...]) + b_ref[...])


# ----------------------------------------------------------------------------
# Wrappers (one pallas_call each, grid over batch)
# ----------------------------------------------------------------------------
def patchify(img, patch):
    # einops: 'b c (h p1) (w p2) -> b (h w) (p1 p2 c)'
    b, c, H, W = img.shape
    h, w = H // patch, W // patch
    x = img.reshape(b, c, h, patch, w, patch)
    x = jnp.transpose(x, (0, 2, 4, 3, 5, 1))  # b, h, w, p1, p2, c
    return x.reshape(b, h * w, patch * patch * c)


def patch_embed(img, params, patch_sz):
    patches = patchify(img, patch_sz)                  # (B, N, PD)
    B, N, PD = patches.shape
    D = params["patch_w"].shape[1]
    args = (patches, params["patch_w"], params["patch_b"].reshape(1, D),
            params["pos"])
    return pl.pallas_call(
        _embed_kernel,
        out_shape=jax.ShapeDtypeStruct((B, N, D), jnp.float32),
        grid=(B,),
        in_specs=[
            pl.BlockSpec((1, N, PD), lambda i: (i, 0, 0)),
            _full_spec((PD, D)),
            _full_spec((1, D)),
            pl.BlockSpec((1, N, D), lambda i: (0, 0, 0)),
        ],
        out_specs=pl.BlockSpec((1, N, D), lambda i: (i, 0, 0)),
        compiler_params=_COMPILER_PARAMS,
    )(*args)


def encoder_layer(x, p, heads):
    B, N, D = x.shape
    dff = p["lin1_w"].shape[1]
    sa = p["attn"]
    weights = (
        sa["wqkv"], sa["bqkv"].reshape(1, 3 * D),
        sa["wo"], sa["bo"].reshape(1, D),
        p["ln1"]["g"].reshape(1, D), p["ln1"]["b"].reshape(1, D),
        p["lin1_w"], p["lin1_b"].reshape(1, dff),
        p["lin2_w"], p["lin2_b"].reshape(1, D),
        p["ln2"]["g"].reshape(1, D), p["ln2"]["b"].reshape(1, D),
    )
    x_spec = pl.BlockSpec((1, N, D), lambda i: (i, 0, 0))
    return pl.pallas_call(
        functools.partial(_encoder_layer_kernel, heads=heads),
        out_shape=jax.ShapeDtypeStruct((B, N, D), jnp.float32),
        grid=(B,),
        in_specs=[x_spec] + [_full_spec(w.shape) for w in weights],
        out_specs=x_spec,
        compiler_params=_COMPILER_PARAMS,
    )(x, *weights)


def decoder_layer(x, memory, p, heads):
    B, N, D = x.shape
    Nk = memory.shape[1]
    dff = p["lin1_w"].shape[1]
    sa, ca = p["self_attn"], p["cross_attn"]
    weights = (
        sa["wqkv"], sa["bqkv"].reshape(1, 3 * D),
        sa["wo"], sa["bo"].reshape(1, D),
        p["ln1"]["g"].reshape(1, D), p["ln1"]["b"].reshape(1, D),
        ca["wq"], ca["bq"].reshape(1, D),
        ca["wkv"], ca["bkv"].reshape(1, 2 * D),
        ca["wo"], ca["bo"].reshape(1, D),
        p["ln2"]["g"].reshape(1, D), p["ln2"]["b"].reshape(1, D),
        p["lin1_w"], p["lin1_b"].reshape(1, dff),
        p["lin2_w"], p["lin2_b"].reshape(1, D),
        p["ln3"]["g"].reshape(1, D), p["ln3"]["b"].reshape(1, D),
    )
    x_spec = pl.BlockSpec((1, N, D), lambda i: (i, 0, 0))
    m_spec = pl.BlockSpec((1, Nk, D), lambda i: (i, 0, 0))
    return pl.pallas_call(
        functools.partial(_decoder_layer_kernel, heads=heads),
        out_shape=jax.ShapeDtypeStruct((B, N, D), jnp.float32),
        grid=(B,),
        in_specs=[x_spec, m_spec] + [_full_spec(w.shape) for w in weights],
        out_specs=x_spec,
        compiler_params=_COMPILER_PARAMS,
    )(x, memory, *weights)


def mlp_head(y, w, b):
    B, N, D = y.shape
    out_dim = w.shape[1]
    y_spec = pl.BlockSpec((1, N, D), lambda i: (i, 0, 0))
    return pl.pallas_call(
        _head_kernel,
        out_shape=jax.ShapeDtypeStruct((B, N, out_dim), jnp.float32),
        grid=(B,),
        in_specs=[y_spec, _full_spec((D, out_dim)), _full_spec((1, out_dim))],
        out_specs=pl.BlockSpec((1, N, out_dim), lambda i: (i, 0, 0)),
        compiler_params=_COMPILER_PARAMS,
    )(y, w, b.reshape(1, out_dim))


# ----------------------------------------------------------------------------
# ViT forward
# ----------------------------------------------------------------------------
def vit_forward(params, img_fix, img_mov, *, heads, img_sz, patch_sz):
    B = img_fix.shape[0]

    # patch embedding + positional-embedding add (fused)
    x_fix = patch_embed(img_fix, params, patch_sz)
    x_mov = patch_embed(img_mov, params, patch_sz)

    memory = x_fix
    for lp in params["enc"]:
        memory = encoder_layer(memory, lp, heads)

    y = x_mov
    for lp in params["dec"]:
        y = decoder_layer(y, memory, lp, heads)

    # mlp_head = Linear(dim, out_dim) + Tanh (fused)
    vf = mlp_head(y, params["head_w"], params["head_b"])  # (B, N, out_dim)

    g = img_sz // patch_sz
    vf = jnp.swapaxes(vf, -2, -1).reshape(B, 2, g, g)
    return vf


# ----------------------------------------------------------------------------
# Deterministic parameter init (shapes match nn.Module __init__; synthetic).
# QKV weights are stored fused (D, 3D) in PyTorch in_proj order [q; k; v].
# ----------------------------------------------------------------------------
def init_params(key, *, dim, depth, patch_dim, num_patches, out_dim, dff=2048):
    keys = iter(jax.random.split(key, 4096))

    def w(shape, scale=0.02):
        return jax.random.normal(next(keys), shape, jnp.float32) * scale

    def self_attn_p():
        return dict(
            wqkv=w((dim, 3 * dim)), bqkv=w((3 * dim,)),
            wo=w((dim, dim)), bo=w((dim,)),
        )

    def cross_attn_p():
        return dict(
            wq=w((dim, dim)), bq=w((dim,)),
            wkv=w((dim, 2 * dim)), bkv=w((2 * dim,)),
            wo=w((dim, dim)), bo=w((dim,)),
        )

    def ln_p():
        return dict(g=jnp.ones((dim,), jnp.float32),
                    b=jnp.zeros((dim,), jnp.float32))

    enc = [
        dict(
            attn=self_attn_p(), ln1=ln_p(),
            lin1_w=w((dim, dff)), lin1_b=w((dff,)),
            lin2_w=w((dff, dim)), lin2_b=w((dim,)),
            ln2=ln_p(),
        )
        for _ in range(depth)
    ]
    dec = [
        dict(
            self_attn=self_attn_p(), ln1=ln_p(),
            cross_attn=cross_attn_p(), ln2=ln_p(),
            lin1_w=w((dim, dff)), lin1_b=w((dff,)),
            lin2_w=w((dff, dim)), lin2_b=w((dim,)),
            ln3=ln_p(),
        )
        for _ in range(depth)
    ]
    return dict(
        patch_w=w((patch_dim, dim)), patch_b=w((dim,)),
        pos=w((1, num_patches, dim), scale=1.0),
        enc=enc, dec=dec,
        head_w=w((dim, out_dim)), head_b=w((out_dim,)),
    )


if __name__ == "__main__":
    # Small, self-consistent configuration.
    image_size, patch_size, channels = 16, 4, 1
    dim, depth, heads, out_dim = 32, 2, 4, 2  # out_dim must be 2 (final reshape)
    num_patches = (image_size // patch_size) ** 2  # 16
    patch_dim = channels * patch_size ** 2         # 16

    key = jax.random.PRNGKey(0)
    kp, kf, km = jax.random.split(key, 3)
    params = init_params(
        kp, dim=dim, depth=depth, patch_dim=patch_dim,
        num_patches=num_patches, out_dim=out_dim, dff=2048,
    )

    img_fix = jax.random.normal(kf, (2, channels, image_size, image_size), jnp.float32)
    img_mov = jax.random.normal(km, (2, channels, image_size, image_size), jnp.float32)

    fwd = jax.jit(functools.partial(
        vit_forward, heads=heads, img_sz=image_size, patch_sz=patch_size))
    out = fwd(params, img_fix, img_mov)
    jax.block_until_ready(out)
    assert out.shape == (2, 2, image_size // patch_size, image_size // patch_size)
    assert bool(jnp.all(jnp.isfinite(out)))
    print("KERNEL_OK")
</pallas_src>

<mosaic_0001>
module attributes {stable_mosaic.version = 11 : i64} {
  func.func @_embed_kernel(%arg0: i32, %arg1: memref<1x16x16xf32, #tpu.memory_space<vmem>>, %arg2: memref<16x32xf32, #tpu.memory_space<vmem>>, %arg3: memref<1x32xf32, #tpu.memory_space<vmem>>, %arg4: memref<1x16x32xf32, #tpu.memory_space<vmem>>, %arg5: memref<1x16x32xf32, #tpu.memory_space<vmem>>) attributes {dimension_semantics = [#tpu.dimension_semantics<parallel>], iteration_bounds = array<i64: 2>, scalar_prefetch = 0 : i64, scratch_operands = 0 : i64, tpu.core_type = #tpu.core_type<tc>, window_params = [{transform_indices = @transform_0, window_bounds = array<i64: 1, 16, 16>}, {pipeline_mode = #tpu.pipeline_mode<synchronous>, transform_indices = @transform_1, window_bounds = array<i64: 16, 32>}, {pipeline_mode = #tpu.pipeline_mode<synchronous>, transform_indices = @transform_2, window_bounds = array<i64: 1, 32>}, {pipeline_mode = #tpu.pipeline_mode<synchronous>, transform_indices = @transform_3, window_bounds = array<i64: 1, 16, 32>}, {transform_indices = @transform_4, window_bounds = array<i64: 1, 16, 32>}]} {
    %c0 = arith.constant 0 : index
    %c0_0 = arith.constant 0 : index
    %c0_1 = arith.constant 0 : index
    %0 = vector.load %arg1[%c0, %c0_0, %c0_1] : memref<1x16x16xf32, #tpu.memory_space<vmem>>, vector<1x16x16xf32>
    %1 = vector.shape_cast %0 : vector<1x16x16xf32> to vector<16x16xf32>
    %c0_2 = arith.constant 0 : index
    %c0_3 = arith.constant 0 : index
    %2 = vector.load %arg2[%c0_2, %c0_3] : memref<16x32xf32, #tpu.memory_space<vmem>>, vector<16x32xf32>
    %3 = arith.truncf %1 : vector<16x16xf32> to vector<16x16xbf16>
    %4 = arith.truncf %2 : vector<16x32xf32> to vector<16x32xbf16>
    %cst = arith.constant dense<0.000000e+00> : vector<16x32xf32>
    %5 = tpu.matmul %3, %4, %cst {dimension_numbers = #tpu.dot_dimension_numbers<[1], [0], [0], [1], [0, 0, 1, 1], [], []>} : vector<16x16xbf16>, vector<16x32xbf16>, vector<16x32xf32> -> vector<16x32xf32>
    %c0_4 = arith.constant 0 : index
    %c0_5 = arith.constant 0 : index
    %6 = vector.load %arg3[%c0_4, %c0_5] : memref<1x32xf32, #tpu.memory_space<vmem>>, vector<1x32xf32>
    %7 = vector.broadcast %6 : vector<1x32xf32> to vector<16x32xf32>
    %8 = arith.addf %5, %7 : vector<16x32xf32>
    %c0_6 = arith.constant 0 : index
    %c0_7 = arith.constant 0 : index
    %c0_8 = arith.constant 0 : index
    %9 = vector.load %arg4[%c0_6, %c0_7, %c0_8] : memref<1x16x32xf32, #tpu.memory_space<vmem>>, vector<1x16x32xf32>
    %10 = vector.shape_cast %9 : vector<1x16x32xf32> to vector<16x32xf32>
    %11 = arith.addf %8, %10 : vector<16x32xf32>
    %c0_9 = arith.constant 0 : index
    %c0_10 = arith.constant 0 : index
    %c0_11 = arith.constant 0 : index
    %12 = vector.load %arg5[%c0_9, %c0_10, %c0_11] : memref<1x16x32xf32, #tpu.memory_space<vmem>>, vector<1x16x32xf32>
    %13 = vector.shape_cast %12 : vector<1x16x32xf32> to vector<16x32xf32>
    %14 = vector.shape_cast %11 : vector<16x32xf32> to vector<1x16x32xf32>
    tpu.vector_store %arg5[%c0_9, %c0_10, %c0_11], %14 {strides = array<i32>} : memref<1x16x32xf32, #tpu.memory_space<vmem>>, vector<1x16x32xf32>,
    return
  }
  func.func @transform_0(%arg0: i32) -> (i32, i32, i32) {
    %c0_i32 = arith.constant 0 : i32
    %c0_i32_0 = arith.constant 0 : i32
    %c0_i32_1 = arith.constant 0 : i32
    return %arg0, %c0_i32, %c0_i32_0 : i32, i32, i32
  }
  func.func @transform_1(%arg0: i32) -> (i32, i32) {
    %c0_i32 = arith.constant 0 : i32
    %c0_i32_0 = arith.constant 0 : i32
    %c0_i32_1 = arith.constant 0 : i32
    return %c0_i32, %c0_i32_0 : i32, i32
  }
  func.func @transform_2(%arg0: i32) -> (i32, i32) {
    %c0_i32 = arith.constant 0 : i32
    %c0_i32_0 = arith.constant 0 : i32
    %c0_i32_1 = arith.constant 0 : i32
    return %c0_i32, %c0_i32_0 : i32, i32
  }
  func.func @transform_3(%arg0: i32) -> (i32, i32, i32) {
    %c0_i32 = arith.constant 0 : i32
    %c0_i32_0 = arith.constant 0 : i32
    %c0_i32_1 = arith.constant 0 : i32
    %c0_i32_2 = arith.constant 0 : i32
    return %c0_i32, %c0_i32_0, %c0_i32_1 : i32, i32, i32
  }
  func.func @transform_4(%arg0: i32) -> (i32, i32, i32) {
    %c0_i32 = arith.constant 0 : i32
    %c0_i32_0 = arith.constant 0 : i32
    %c0_i32_1 = arith.constant 0 : i32
    return %arg0, %c0_i32, %c0_i32_0 : i32, i32, i32
  }
}

module attributes {stable_mosaic.version = 11 : i64} {
  func.func @_encoder_layer_kernel(%arg0: i32, %arg1: memref<1x16x32xf32, #tpu.memory_space<vmem>>, %arg2: memref<32x96xf32, #tpu.memory_space<vmem>>, %arg3: memref<1x96xf32, #tpu.memory_space<vmem>>, %arg4: memref<32x32xf32, #tpu.memory_space<vmem>>, %arg5: memref<1x32xf32, #tpu.memory_space<vmem>>, %arg6: memref<1x32xf32, #tpu.memory_space<vmem>>, %arg7: memref<1x32xf32, #tpu.memory_space<vmem>>, %arg8: memref<32x2048xf32, #tpu.memory_space<vmem>>, %arg9: memref<1x2048xf32, #tpu.memory_space<vmem>>, %arg10: memref<2048x32xf32, #tpu.memory_space<vmem>>, %arg11: memref<1x32xf32, #tpu.memory_space<vmem>>, %arg12: memref<1x32xf32, #tpu.memory_space<vmem>>, %arg13: memref<1x32xf32, #tpu.memory_space<vmem>>, %arg14: memref<1x16x32xf32, #tpu.memory_space<vmem>>) attributes {dimension_semantics = [#tpu.dimension_semantics<parallel>], iteration_bounds = array<i64: 2>, scalar_prefetch = 0 : i64, scratch_operands = 0 : i64, tpu.core_type = #tpu.core_type<tc>, window_params = [{transform_indices = @transform_0, window_bounds = array<i64: 1, 16, 32>}, {pipeline_mode = #tpu.pipeline_mode<synchronous>, transform_indices = @transform_1, window_bounds = array<i64: 32, 96>}, {pipeline_mode = #tpu.pipeline_mode<synchronous>, transform_indices = @transform_2, window_bounds = array<i64: 1, 96>}, {pipeline_mode = #tpu.pipeline_mode<synchronous>, transform_indices = @transform_3, window_bounds = array<i64: 32, 32>}, {pipeline_mode = #tpu.pipeline_mode<synchronous>, transform_indices = @transform_4, window_bounds = array<i64: 1, 32>}, {pipeline_mode = #tpu.pipeline_mode<synchronous>, transform_indices = @transform_5, window_bounds = array<i64: 1, 32>}, {pipeline_mode = #tpu.pipeline_mode<synchronous>, transform_indices = @transform_6, window_bounds = array<i64: 1, 32>}, {pipeline_mode = #tpu.pipeline_mode<synchronous>, transform_indices = @transform_7, window_bounds = array<i64: 32, 2048>}, {pipeline_mode = #tpu.pipeline_mode<synchronous>, transform_indices = @transform_8, window_bounds = array<i64: 1, 2048>}, {pipeline_mode = #tpu.pipeline_mode<synchronous>, transform_indices = @transform_9, window_bounds = array<i64: 2048, 32>}, {pipeline_mode = #tpu.pipeline_mode<synchronous>, transform_indices = @transform_10, window_bounds = array<i64: 1, 32>}, {pipeline_mode = #tpu.pipeline_mode<synchronous>, transform_indices = @transform_11, window_bounds = array<i64: 1, 32>}, {pipeline_mode = #tpu.pipeline_mode<synchronous>, transform_indices = @transform_12, window_bounds = array<i64: 1, 32>}, {transform_indices = @transform_13, window_bounds = array<i64: 1, 16, 32>}]} {
    %c0 = arith.constant 0 : index
    %c0_0 = arith.constant 0 : index
    %c0_1 = arith.constant 0 : index
    %0 = vector.load %arg1[%c0, %c0_0, %c0_1] : memref<1x16x32xf32, #tpu.memory_space<vmem>>, vector<1x16x32xf32>
    %1 = vector.shape_cast %0 : vector<1x16x32xf32> to vector<16x32xf32>
    %c0_2 = arith.constant 0 : index
    %c0_3 = arith.constant 0 : index
    %2 = vector.load %arg2[%c0_2, %c0_3] : memref<32x96xf32, #tpu.memory_space<vmem>>, vector<32x96xf32>
    %3 = arith.truncf %1 : vector<16x32xf32> to vector<16x32xbf16>
    %4 = arith.truncf %2 : vector<32x96xf32> to vector<32x96xbf16>
    %cst = arith.constant dense<0.000000e+00> : vector<16x96xf32>
    %5 = tpu.matmul %3, %4, %cst {dimension_numbers = #tpu.dot_dimension_numbers<[1], [0], [0], [1], [0, 0, 1, 1], [], []>} : vector<16x32xbf16>, vector<32x96xbf16>, vector<16x96xf32> -> vector<16x96xf32>
    %c0_4 = arith.constant 0 : index
    %c0_5 = arith.constant 0 : index
    %6 = vector.load %arg3[%c0_4, %c0_5] : memref<1x96xf32, #tpu.memory_space<vmem>>, vector<1x96xf32>
    %7 = vector.broadcast %6 : vector<1x96xf32> to vector<16x96xf32>
    %8 = arith.addf %5, %7 : vector<16x96xf32>
    %9 = vector.extract_strided_slice %8 {offsets = [0, 0], sizes = [16, 32], strides = [1, 1]} : vector<16x96xf32> to vector<16x32xf32>
    %10 = vector.extract_strided_slice %8 {offsets = [0, 32], sizes = [16, 32], strides = [1, 1]} : vector<16x96xf32> to vector<16x32xf32>
    %11 = vector.extract_strided_slice %8 {offsets = [0, 64], sizes = [16, 32], strides = [1, 1]} : vector<16x96xf32> to vector<16x32xf32>
    %c0_6 = arith.constant 0 : index
    %c0_7 = arith.constant 0 : index
    %12 = vector.load %arg4[%c0_6, %c0_7] : memref<32x32xf32, #tpu.memory_space<vmem>>, vector<32x32xf32>
    %c0_8 = arith.constant 0 : index
    %c0_9 = arith.constant 0 : index
    %13 = vector.load %arg5[%c0_8, %c0_9] : memref<1x32xf32, #tpu.memory_space<vmem>>, vector<1x32xf32>
    %cst_10 = arith.constant 0.000000e+00 : f32
    %14 = vector.broadcast %cst_10 : f32 to vector<16x32xf32>
    %15 = vector.extract_strided_slice %9 {offsets = [0, 0], sizes = [16, 8], strides = [1, 1]} : vector<16x32xf32> to vector<16x8xf32>
    %16 = vector.extract_strided_slice %10 {offsets = [0, 0], sizes = [16, 8], strides = [1, 1]} : vector<16x32xf32> to vector<16x8xf32>
    %17 = vector.extract_strided_slice %11 {offsets = [0, 0], sizes = [16, 8], strides = [1, 1]} : vector<16x32xf32> to vector<16x8xf32>
    %18 = arith.truncf %15 : vector<16x8xf32> to vector<16x8xbf16>
    %19 = arith.truncf %16 : vector<16x8xf32> to vector<16x8xbf16>
    %cst_11 = arith.constant dense<0.000000e+00> : vector<16x16xf32>
    %20 = tpu.matmul %18, %19, %cst_11 {dimension_numbers = #tpu.dot_dimension_numbers<[1], [1], [0], [0], [0, 0, 1, 0], [], []>} : vector<16x8xbf16>, vector<16x8xbf16>, vector<16x16xf32> -> vector<16x16xf32>
    %cst_12 = arith.constant 0.353553385 : f32
    %21 = vector.broadcast %cst_12 : f32 to vector<16x16xf32>
    %22 = arith.mulf %20, %21 : vector<16x16xf32>
    %cst_13 = arith.constant dense<0xFF800000> : vector<16xf32>
    %23 = vector.multi_reduction <maximumf>, %22, %cst_13 [1] : vector<16x16xf32> to vector<16xf32>
    %24 = vector.shape_cast %23 : vector<16xf32> to vector<16x1xf32>
    %25 = vector.broadcast %24 : vector<16x1xf32> to vector<16x16xf32>
    %26 = arith.subf %22, %25 : vector<16x16xf32>
    %27 = math.exp %26 : vector<16x16xf32>
    %cst_14 = arith.constant dense<0.000000e+00> : vector<16xf32>
    %28 = vector.multi_reduction <add>, %27, %cst_14 [1] : vector<16x16xf32> to vector<16xf32>
    %29 = vector.shape_cast %28 : vector<16xf32> to vector<16x1xf32>
    %30 = tpu.reciprocal %29 {approx = true} : vector<16x1xf32> -> vector<16x1xf32>
    %31 = vector.broadcast %30 : vector<16x1xf32> to vector<16x16xf32>
    %32 = arith.mulf %27, %31 : vector<16x16xf32>
    %33 = arith.truncf %32 : vector<16x16xf32> to vector<16x16xbf16>
    %34 = arith.truncf %17 : vector<16x8xf32> to vector<16x8xbf16>
    %cst_15 = arith.constant dense<0.000000e+00> : vector<16x8xf32>
    %35 = tpu.matmul %33, %34, %cst_15 {dimension_numbers = #tpu.dot_dimension_numbers<[1], [0], [0], [1], [0, 0, 1, 1], [], []>} : vector<16x16xbf16>, vector<16x8xbf16>, vector<16x8xf32> -> vector<16x8xf32>
    %36 = vector.extract_strided_slice %12 {offsets = [0, 0], sizes = [8, 32], strides = [1, 1]} : vector<32x32xf32> to vector<8x32xf32>
    %37 = arith.truncf %35 : vector<16x8xf32> to vector<16x8xbf16>
    %38 = arith.truncf %36 : vector<8x32xf32> to vector<8x32xbf16>
    %cst_16 = arith.constant dense<0.000000e+00> : vector<16x32xf32>
    %39 = tpu.matmul %37, %38, %cst_16 {dimension_numbers = #tpu.dot_dimension_numbers<[1], [0], [0], [1], [0, 0, 1, 1], [], []>} : vector<16x8xbf16>, vector<8x32xbf16>, vector<16x32xf32> -> vector<16x32xf32>
    %40 = arith.addf %14, %39 : vector<16x32xf32>
    %41 = vector.extract_strided_slice %9 {offsets = [0, 8], sizes = [16, 8], strides = [1, 1]} : vector<16x32xf32> to vector<16x8xf32>
    %42 = vector.extract_strided_slice %10 {offsets = [0, 8], sizes = [16, 8], strides = [1, 1]} : vector<16x32xf32> to vector<16x8xf32>
    %43 = vector.extract_strided_slice %11 {offsets = [0, 8], sizes = [16, 8], strides = [1, 1]} : vector<16x32xf32> to vector<16x8xf32>
    %44 = arith.truncf %41 : vector<16x8xf32> to vector<16x8xbf16>
    %45 = arith.truncf %42 : vector<16x8xf32> to vector<16x8xbf16>
    %cst_17 = arith.constant dense<0.000000e+00> : vector<16x16xf32>
    %46 = tpu.matmul %44, %45, %cst_17 {dimension_numbers = #tpu.dot_dimension_numbers<[1], [1], [0], [0], [0, 0, 1, 0], [], []>} : vector<16x8xbf16>, vector<16x8xbf16>, vector<16x16xf32> -> vector<16x16xf32>
    %cst_18 = arith.constant 0.353553385 : f32
    %47 = vector.broadcast %cst_18 : f32 to vector<16x16xf32>
    %48 = arith.mulf %46, %47 : vector<16x16xf32>
    %cst_19 = arith.constant dense<0xFF800000> : vector<16xf32>
    %49 = vector.multi_reduction <maximumf>, %48, %cst_19 [1] : vector<16x16xf32> to vector<16xf32>
    %50 = vector.shape_cast %49 : vector<16xf32> to vector<16x1xf32>
    %51 = vector.broadcast %50 : vector<16x1xf32> to vector<16x16xf32>
    %52 = arith.subf %48, %51 : vector<16x16xf32>
    %53 = math.exp %52 : vector<16x16xf32>
    %cst_20 = arith.constant dense<0.000000e+00> : vector<16xf32>
    %54 = vector.multi_reduction <add>, %53, %cst_20 [1] : vector<16x16xf32> to vector<16xf32>
    %55 = vector.shape_cast %54 : vector<16xf32> to vector<16x1xf32>
    %56 = tpu.reciprocal %55 {approx = true} : vector<16x1xf32> -> vector<16x1xf32>
    %57 = vector.broadcast %56 : vector<16x1xf32> to vector<16x16xf32>
    %58 = arith.mulf %53, %57 : vector<16x16xf32>
    %59 = arith.truncf %58 : vector<16x16xf32> to vector<16x16xbf16>
    %60 = arith.truncf %43 : vector<16x8xf32> to vector<16x8xbf16>
    %cst_21 = arith.constant dense<0.000000e+00> : vector<16x8xf32>
    %61 = tpu.matmul %59, %60, %cst_21 {dimension_numbers = #tpu.dot_dimension_numbers<[1], [0], [0], [1], [0, 0, 1, 1], [], []>} : vector<16x16xbf16>, vector<16x8xbf16>, vector<16x8xf32> -> vector<16x8xf32>
    %62 = vector.extract_strided_slice %12 {offsets = [8, 0], sizes = [8, 32], strides = [1, 1]} : vector<32x32xf32> to vector<8x32xf32>
    %63 = arith.truncf %61 : vector<16x8xf32> to vector<16x8xbf16>
    %64 = arith.truncf %62 : vector<8x32xf32> to vector<8x32xbf16>
    %cst_22 = arith.constant dense<0.000000e+00> : vector<16x32xf32>
    %65 = tpu.matmul %63, %64, %cst_22 {dimension_numbers = #tpu.dot_dimension_numbers<[1], [0], [0], [1], [0, 0, 1, 1], [], []>} : vector<16x8xbf16>, vector<8x32xbf16>, vector<16x32xf32> -> vector<16x32xf32>
    %66 = arith.addf %40, %65 : vector<16x32xf32>
    %67 = vector.extract_strided_slice %9 {offsets = [0, 16], sizes = [16, 8], strides = [1, 1]} : vector<16x32xf32> to vector<16x8xf32>
    %68 = vector.extract_strided_slice %10 {offsets = [0, 16], sizes = [16, 8], strides = [1, 1]} : vector<16x32xf32> to vector<16x8xf32>
    %69 = vector.extract_strided_slice %11 {offsets = [0, 16], sizes = [16, 8], strides = [1, 1]} : vector<16x32xf32> to vector<16x8xf32>
    %70 = arith.truncf %67 : vector<16x8xf32> to vector<16x8xbf16>
    %71 = arith.truncf %68 : vector<16x8xf32> to vector<16x8xbf16>
    %cst_23 = arith.constant dense<0.000000e+00> : vector<16x16xf32>
    %72 = tpu.matmul %70, %71, %cst_23 {dimension_numbers = #tpu.dot_dimension_numbers<[1], [1], [0], [0], [0, 0, 1, 0], [], []>} : vector<16x8xbf16>, vector<16x8xbf16>, vector<16x16xf32> -> vector<16x16xf32>
    %cst_24 = arith.constant 0.353553385 : f32
    %73 = vector.broadcast %cst_24 : f32 to vector<16x16xf32>
    %74 = arith.mulf %72, %73 : vector<16x16xf32>
    %cst_25 = arith.constant dense<0xFF800000> : vector<16xf32>
    %75 = vector.multi_reduction <maximumf>, %74, %cst_25 [1] : vector<16x16xf32> to vector<16xf32>
    %76 = vector.shape_cast %75 : vector<16xf32> to vector<16x1xf32>
    %77 = vector.broadcast %76 : vector<16x1xf32> to vector<16x16xf32>
    %78 = arith.subf %74, %77 : vector<16x16xf32>
    %79 = math.exp %78 : vector<16x16xf32>
    %cst_26 = arith.constant dense<0.000000e+00> : vector<16xf32>
    %80 = vector.multi_reduction <add>, %79, %cst_26 [1] : vector<16x16xf32> to vector<16xf32>
    %81 = vector.shape_cast %80 : vector<16xf32> to vector<16x1xf32>
    %82 = tpu.reciprocal %81 {approx = true} : vector<16x1xf32> -> vector<16x1xf32>
    %83 = vector.broadcast %82 : vector<16x1xf32> to vector<16x16xf32>
    %84 = arith.mulf %79, %83 : vector<16x16xf32>
    %85 = arith.truncf %84 : vector<16x16xf32> to vector<16x16xbf16>
    %86 = arith.truncf %69 : vector<16x8xf32> to vector<16x8xbf16>
    %cst_27 = arith.constant dense<0.000000e+00> : vector<16x8xf32>
    %87 = tpu.matmul %85, %86, %cst_27 {dimension_numbers = #tpu.dot_dimension_numbers<[1], [0], [0], [1], [0, 0, 1, 1], [], []>} : vector<16x16xbf16>, vector<16x8xbf16>, vector<16x8xf32> -> vector<16x8xf32>
    %88 = vector.extract_strided_slice %12 {offsets = [16, 0], sizes = [8, 32], strides = [1, 1]} : vector<32x32xf32> to vector<8x32xf32>
    %89 = arith.truncf %87 : vector<16x8xf32> to vector<16x8xbf16>
    %90 = arith.truncf %88 : vector<8x32xf32> to vector<8x32xbf16>
    %cst_28 = arith.constant dense<0.000000e+00> : vector<16x32xf32>
    %91 = tpu.matmul %89, %90, %cst_28 {dimension_numbers = #tpu.dot_dimension_numbers<[1], [0], [0], [1], [0, 0, 1, 1], [], []>} : vector<16x8xbf16>, vector<8x32xbf16>, vector<16x32xf32> -> vector<16x32xf32>
    %92 = arith.addf %66, %91 : vector<16x32xf32>
    %93 = vector.extract_strided_slice %9 {offsets = [0, 24], sizes = [16, 8], strides = [1, 1]} : vector<16x32xf32> to vector<16x8xf32>
    %94 = vector.extract_strided_slice %10 {offsets = [0, 24], sizes = [16, 8], strides = [1, 1]} : vector<16x32xf32> to vector<16x8xf32>
    %95 = vector.extract_strided_slice %11 {offsets = [0, 24], sizes = [16, 8], strides = [1, 1]} : vector<16x32xf32> to vector<16x8xf32>
    %96 = arith.truncf %93 : vector<16x8xf32> to vector<16x8xbf16>
    %97 = arith.truncf %94 : vector<16x8xf32> to vector<16x8xbf16>
    %cst_29 = arith.constant dense<0.000000e+00> : vector<16x16xf32>
    %98 = tpu.matmul %96, %97, %cst_29 {dimension_numbers = #tpu.dot_dimension_numbers<[1], [1], [0], [0], [0, 0, 1, 0], [], []>} : vector<16x8xbf16>, vector<16x8xbf16>, vector<16x16xf32> -> vector<16x16xf32>
    %cst_30 = arith.constant 0.353553385 : f32
    %99 = vector.broadcast %cst_30 : f32 to vector<16x16xf32>
    %100 = arith.mulf %98, %99 : vector<16x16xf32>
    %cst_31 = arith.constant dense<0xFF800000> : vector<16xf32>
    %101 = vector.multi_reduction <maximumf>, %100, %cst_31 [1] : vector<16x16xf32> to vector<16xf32>
    %102 = vector.shape_cast %101 : vector<16xf32> to vector<16x1xf32>
    %103 = vector.broadcast %102 : vector<16x1xf32> to vector<16x16xf32>
    %104 = arith.subf %100, %103 : vector<16x16xf32>
    %105 = math.exp %104 : vector<16x16xf32>
    %cst_32 = arith.constant dense<0.000000e+00> : vector<16xf32>
    %106 = vector.multi_reduction <add>, %105, %cst_32 [1] : vector<16x16xf32> to vector<16xf32>
    %107 = vector.shape_cast %106 : vector<16xf32> to vector<16x1xf32>
    %108 = tpu.reciprocal %107 {approx = true} : vector<16x1xf32> -> vector<16x1xf32>
    %109 = vector.broadcast %108 : vector<16x1xf32> to vector<16x16xf32>
    %110 = arith.mulf %105, %109 : vector<16x16xf32>
    %111 = arith.truncf %110 : vector<16x16xf32> to vector<16x16xbf16>
    %112 = arith.truncf %95 : vector<16x8xf32> to vector<16x8xbf16>
    %cst_33 = arith.constant dense<0.000000e+00> : vector<16x8xf32>
    %113 = tpu.matmul %111, %112, %cst_33 {dimension_numbers = #tpu.dot_dimension_numbers<[1], [0], [0], [1], [0, 0, 1, 1], [], []>} : vector<16x16xbf16>, vector<16x8xbf16>, vector<16x8xf32> -> vector<16x8xf32>
    %114 = vector.extract_strided_slice %12 {offsets = [24, 0], sizes = [8, 32], strides = [1, 1]} : vector<32x32xf32> to vector<8x32xf32>
    %115 = arith.truncf %113 : vector<16x8xf32> to vector<16x8xbf16>
    %116 = arith.truncf %114 : vector<8x32xf32> to vector<8x32xbf16>
    %cst_34 = arith.constant dense<0.000000e+00> : vector<16x32xf32>
    %117 = tpu.matmul %115, %116, %cst_34 {dimension_numbers = #tpu.dot_dimension_numbers<[1], [0], [0], [1], [0, 0, 1, 1], [], []>} : vector<16x8xbf16>, vector<8x32xbf16>, vector<16x32xf32> -> vector<16x32xf32>
    %118 = arith.addf %92, %117 : vector<16x32xf32>
    %119 = vector.broadcast %13 : vector<1x32xf32> to vector<16x32xf32>
    %120 = arith.addf %118, %119 : vector<16x32xf32>
    %121 = arith.addf %120, %1 : vector<16x32xf32>
    %c0_35 = arith.constant 0 : index
    %c0_36 = arith.constant 0 : index
    %122 = vector.load %arg6[%c0_35, %c0_36] : memref<1x32xf32, #tpu.memory_space<vmem>>, vector<1x32xf32>
    %c0_37 = arith.constant 0 : index
    %c0_38 = arith.constant 0 : index
    %123 = vector.load %arg7[%c0_37, %c0_38] : memref<1x32xf32, #tpu.memory_space<vmem>>, vector<1x32xf32>
    %cst_39 = arith.constant dense<0.000000e+00> : vector<16xf32>
    %124 = vector.multi_reduction <add>, %121, %cst_39 [1] : vector<16x32xf32> to vector<16xf32>
    %125 = vector.shape_cast %124 : vector<16xf32> to vector<16x1xf32>
    %cst_40 = arith.constant 3.200000e+01 : f32
    %126 = vector.broadcast %cst_40 : f32 to vector<16x1xf32>
    %127 = arith.divf %125, %126 : vector<16x1xf32>
    %128 = vector.broadcast %127 : vector<16x1xf32> to vector<16x32xf32>
    %129 = arith.subf %121, %128 : vector<16x32xf32>
    %130 = arith.mulf %129, %129 : vector<16x32xf32>
    %cst_41 = arith.constant dense<0.000000e+00> : vector<16xf32>
    %131 = vector.multi_reduction <add>, %130, %cst_41 [1] : vector<16x32xf32> to vector<16xf32>
    %132 = vector.shape_cast %131 : vector<16xf32> to vector<16x1xf32>
    %cst_42 = arith.constant 3.200000e+01 : f32
    %133 = vector.broadcast %cst_42 : f32 to vector<16x1xf32>
    %134 = arith.divf %132, %133 : vector<16x1xf32>
    %cst_43 = arith.constant 9.99999974E-6 : f32
    %135 = vector.broadcast %cst_43 : f32 to vector<16x1xf32>
    %136 = arith.addf %134, %135 : vector<16x1xf32>
    %137 = math.rsqrt %136 : vector<16x1xf32>
    %138 = vector.broadcast %137 : vector<16x1xf32> to vector<16x32xf32>
    %139 = arith.mulf %129, %138 : vector<16x32xf32>
    %140 = vector.broadcast %122 : vector<1x32xf32> to vector<16x32xf32>
    %141 = arith.mulf %139, %140 : vector<16x32xf32>
    %142 = vector.broadcast %123 : vector<1x32xf32> to vector<16x32xf32>
    %143 = arith.addf %141, %142 : vector<16x32xf32>
    %c0_44 = arith.constant 0 : index
    %c0_45 = arith.constant 0 : index
    %144 = vector.load %arg8[%c0_44, %c0_45] : memref<32x2048xf32, #tpu.memory_space<vmem>>, vector<32x2048xf32>
    %145 = arith.truncf %143 : vector<16x32xf32> to vector<16x32xbf16>
    %146 = arith.truncf %144 : vector<32x2048xf32> to vector<32x2048xbf16>
    %cst_46 = arith.constant dense<0.000000e+00> : vector<16x2048xf32>
    %147 = tpu.matmul %145, %146, %cst_46 {dimension_numbers = #tpu.dot_dimension_numbers<[1], [0], [0], [1], [0, 0, 1, 1], [], []>} : vector<16x32xbf16>, vector<32x2048xbf16>, vector<16x2048xf32> -> vector<16x2048xf32>
    %c0_47 = arith.constant 0 : index
    %c0_48 = arith.constant 0 : index
    %148 = vector.load %arg9[%c0_47, %c0_48] : memref<1x2048xf32, #tpu.memory_space<vmem>>, vector<1x2048xf32>
    %149 = vector.broadcast %148 : vector<1x2048xf32> to vector<16x2048xf32>
    %150 = arith.addf %147, %149 : vector<16x2048xf32>
    %cst_49 = arith.constant 0.000000e+00 : f32
    %151 = vector.broadcast %cst_49 : f32 to vector<16x2048xf32>
    %152 = arith.maximumf %150, %151 : vector<16x2048xf32>
    %c0_50 = arith.constant 0 : index
    %c0_51 = arith.constant 0 : index
    %153 = vector.load %arg10[%c0_50, %c0_51] : memref<2048x32xf32, #tpu.memory_space<vmem>>, vector<2048x32xf32>
    %154 = arith.truncf %152 : vector<16x2048xf32> to vector<16x2048xbf16>
    %155 = arith.truncf %153 : vector<2048x32xf32> to vector<2048x32xbf16>
    %cst_52 = arith.constant dense<0.000000e+00> : vector<16x32xf32>
    %156 = tpu.matmul %154, %155, %cst_52 {dimension_numbers = #tpu.dot_dimension_numbers<[1], [0], [0], [1], [0, 0, 1, 1], [], []>} : vector<16x2048xbf16>, vector<2048x32xbf16>, vector<16x32xf32> -> vector<16x32xf32>
    %c0_53 = arith.constant 0 : index
    %c0_54 = arith.constant 0 : index
    %157 = vector.load %arg11[%c0_53, %c0_54] : memref<1x32xf32, #tpu.memory_space<vmem>>, vector<1x32xf32>
    %158 = vector.broadcast %157 : vector<1x32xf32> to vector<16x32xf32>
    %159 = arith.addf %156, %158 : vector<16x32xf32>
    %160 = arith.addf %159, %143 : vector<16x32xf32>
    %c0_55 = arith.constant 0 : index
    %c0_56 = arith.constant 0 : index
    %161 = vector.load %arg12[%c0_55, %c0_56] : memref<1x32xf32, #tpu.memory_space<vmem>>, vector<1x32xf32>
    %c0_57 = arith.constant 0 : index
    %c0_58 = arith.constant 0 : index
    %162 = vector.load %arg13[%c0_57, %c0_58] : memref<1x32xf32, #tpu.memory_space<vmem>>, vector<1x32xf32>
    %cst_59 = arith.constant dense<0.000000e+00> : vector<16xf32>
    %163 = vector.multi_reduction <add>, %160, %cst_59 [1] : vector<16x32xf32> to vector<16xf32>
    %164 = vector.shape_cast %163 : vector<16xf32> to vector<16x1xf32>
    %cst_60 = arith.constant 3.200000e+01 : f32
    %165 = vector.broadcast %cst_60 : f32 to vector<16x1xf32>
    %166 = arith.divf %164, %165 : vector<16x1xf32>
    %167 = vector.broadcast %166 : vector<16x1xf32> to vector<16x32xf32>
    %168 = arith.subf %160, %167 : vector<16x32xf32>
    %169 = arith.mulf %168, %168 : vector<16x32xf32>
    %cst_61 = arith.constant dense<0.000000e+00> : vector<16xf32>
    %170 = vector.multi_reduction <add>, %169, %cst_61 [1] : vector<16x32xf32> to vector<16xf32>
    %171 = vector.shape_cast %170 : vector<16xf32> to vector<16x1xf32>
    %cst_62 = arith.constant 3.200000e+01 : f32
    %172 = vector.broadcast %cst_62 : f32 to vector<16x1xf32>
    %173 = arith.divf %171, %172 : vector<16x1xf32>
    %cst_63 = arith.constant 9.99999974E-6 : f32
    %174 = vector.broadcast %cst_63 : f32 to vector<16x1xf32>
    %175 = arith.addf %173, %174 : vector<16x1xf32>
    %176 = math.rsqrt %175 : vector<16x1xf32>
    %177 = vector.broadcast %176 : vector<16x1xf32> to vector<16x32xf32>
    %178 = arith.mulf %168, %177 : vector<16x32xf32>
    %179 = vector.broadcast %161 : vector<1x32xf32> to vector<16x32xf32>
    %180 = arith.mulf %178, %179 : vector<16x32xf32>
    %181 = vector.broadcast %162 : vector<1x32xf32> to vector<16x32xf32>
    %182 = arith.addf %180, %181 : vector<16x32xf32>
    %c0_64 = arith.constant 0 : index
    %c0_65 = arith.constant 0 : index
    %c0_66 = arith.constant 0 : index
    %183 = vector.load %arg14[%c0_64, %c0_65, %c0_66] : memref<1x16x32xf32, #tpu.memory_space<vmem>>, vector<1x16x32xf32>
    %184 = vector.shape_cast %183 : vector<1x16x32xf32> to vector<16x32xf32>
    %185 = vector.shape_cast %182 : vector<16x32xf32> to vector<1x16x32xf32>
    tpu.vector_store %arg14[%c0_64, %c0_65, %c0_66], %185 {strides = array<i32>} : memref<1x16x32xf32, #tpu.memory_space<vmem>>, vector<1x16x32xf32>,
    return
  }
  func.func @transform_0(%arg0: i32) -> (i32, i32, i32) {
    %c0_i32 = arith.constant 0 : i32
    %c0_i32_0 = arith.constant 0 : i32
    %c0_i32_1 = arith.constant 0 : i32
    return %arg0, %c0_i32, %c0_i32_0 : i32, i32, i32
  }
  func.func @transform_1(%arg0: i32) -> (i32, i32) {
    %c0_i32 = arith.constant 0 : i32
    %c0_i32_0 = arith.constant 0 : i32
    %c0_i32_1 = arith.constant 0 : i32
    return %c0_i32, %c0_i32_0 : i32, i32
  }
  func.func @transform_2(%arg0: i32) -> (i32, i32) {
    %c0_i32 = arith.constant 0 : i32
    %c0_i32_0 = arith.constant 0 : i32
    %c0_i32_1 = arith.constant 0 : i32
    return %c0_i32, %c0_i32_0 : i32, i32
  }
  func.func @transform_3(%arg0: i32) -> (i32, i32) {
    %c0_i32 = arith.constant 0 : i32
    %c0_i32_0 = arith.constant 0 : i32
    %c0_i32_1 = arith.constant 0 : i32
    return %c0_i32, %c0_i32_0 : i32, i32
  }
  func.func @transform_4(%arg0: i32) -> (i32, i32) {
    %c0_i32 = arith.constant 0 : i32
    %c0_i32_0 = arith.constant 0 : i32
    %c0_i32_1 = arith.constant 0 : i32
    return %c0_i32, %c0_i32_0 : i32, i32
  }
  func.func @transform_5(%arg0: i32) -> (i32, i32) {
    %c0_i32 = arith.constant 0 : i32
    %c0_i32_0 = arith.constant 0 : i32
    %c0_i32_1 = arith.constant 0 : i32
    return %c0_i32, %c0_i32_0 : i32, i32
  }
  func.func @transform_6(%arg0: i32) -> (i32, i32) {
    %c0_i32 = arith.constant 0 : i32
    %c0_i32_0 = arith.constant 0 : i32
    %c0_i32_1 = arith.constant 0 : i32
    return %c0_i32, %c0_i32_0 : i32, i32
  }
  func.func @transform_7(%arg0: i32) -> (i32, i32) {
    %c0_i32 = arith.constant 0 : i32
    %c0_i32_0 = arith.constant 0 : i32
    %c0_i32_1 = arith.constant 0 : i32
    return %c0_i32, %c0_i32_0 : i32, i32
  }
  func.func @transform_8(%arg0: i32) -> (i32, i32) {
    %c0_i32 = arith.constant 0 : i32
    %c0_i32_0 = arith.constant 0 : i32
    %c0_i32_1 = arith.constant 0 : i32
    return %c0_i32, %c0_i32_0 : i32, i32
  }
  func.func @transform_9(%arg0: i32) -> (i32, i32) {
    %c0_i32 = arith.constant 0 : i32
    %c0_i32_0 = arith.constant 0 : i32
    %c0_i32_1 = arith.constant 0 : i32
    return %c0_i32, %c0_i32_0 : i32, i32
  }
  func.func @transform_10(%arg0: i32) -> (i32, i32) {
    %c0_i32 = arith.constant 0 : i32
    %c0_i32_0 = arith.constant 0 : i32
    %c0_i32_1 = arith.constant 0 : i32
    return %c0_i32, %c0_i32_0 : i32, i32
  }
  func.func @transform_11(%arg0: i32) -> (i32, i32) {
    %c0_i32 = arith.constant 0 : i32
    %c0_i32_0 = arith.constant 0 : i32
    %c0_i32_1 = arith.constant 0 : i32
    return %c0_i32, %c0_i32_0 : i32, i32
  }
  func.func @transform_12(%arg0: i32) -> (i32, i32) {
    %c0_i32 = arith.constant 0 : i32
    %c0_i32_0 = arith.constant 0 : i32
    %c0_i32_1 = arith.constant 0 : i32
    return %c0_i32, %c0_i32_0 : i32, i32
  }
  func.func @transform_13(%arg0: i32) -> (i32, i32, i32) {
    %c0_i32 = arith.constant 0 : i32
    %c0_i32_0 = arith.constant 0 : i32
    %c0_i32_1 = arith.constant 0 : i32
    return %arg0, %c0_i32, %c0_i32_0 : i32, i32, i32
  }
}

module attributes {stable_mosaic.version = 11 : i64} {
  func.func @_decoder_layer_kernel(%arg0: i32, %arg1: memref<1x16x32xf32, #tpu.memory_space<vmem>>, %arg2: memref<1x16x32xf32, #tpu.memory_space<vmem>>, %arg3: memref<32x96xf32, #tpu.memory_space<vmem>>, %arg4: memref<1x96xf32, #tpu.memory_space<vmem>>, %arg5: memref<32x32xf32, #tpu.memory_space<vmem>>, %arg6: memref<1x32xf32, #tpu.memory_space<vmem>>, %arg7: memref<1x32xf32, #tpu.memory_space<vmem>>, %arg8: memref<1x32xf32, #tpu.memory_space<vmem>>, %arg9: memref<32x32xf32, #tpu.memory_space<vmem>>, %arg10: memref<1x32xf32, #tpu.memory_space<vmem>>, %arg11: memref<32x64xf32, #tpu.memory_space<vmem>>, %arg12: memref<1x64xf32, #tpu.memory_space<vmem>>, %arg13: memref<32x32xf32, #tpu.memory_space<vmem>>, %arg14: memref<1x32xf32, #tpu.memory_space<vmem>>, %arg15: memref<1x32xf32, #tpu.memory_space<vmem>>, %arg16: memref<1x32xf32, #tpu.memory_space<vmem>>, %arg17: memref<32x2048xf32, #tpu.memory_space<vmem>>, %arg18: memref<1x2048xf32, #tpu.memory_space<vmem>>, %arg19: memref<2048x32xf32, #tpu.memory_space<vmem>>, %arg20: memref<1x32xf32, #tpu.memory_space<vmem>>, %arg21: memref<1x32xf32, #tpu.memory_space<vmem>>, %arg22: memref<1x32xf32, #tpu.memory_space<vmem>>, %arg23: memref<1x16x32xf32, #tpu.memory_space<vmem>>) attributes {dimension_semantics = [#tpu.dimension_semantics<parallel>], iteration_bounds = array<i64: 2>, scalar_prefetch = 0 : i64, scratch_operands = 0 : i64, tpu.core_type = #tpu.core_type<tc>, window_params = [{transform_indices = @transform_0, window_bounds = array<i64: 1, 16, 32>}, {transform_indices = @transform_1, window_bounds = array<i64: 1, 16, 32>}, {pipeline_mode = #tpu.pipeline_mode<synchronous>, transform_indices = @transform_2, window_bounds = array<i64: 32, 96>}, {pipeline_mode = #tpu.pipeline_mode<synchronous>, transform_indices = @transform_3, window_bounds = array<i64: 1, 96>}, {pipeline_mode = #tpu.pipeline_mode<synchronous>, transform_indices = @transform_4, window_bounds = array<i64: 32, 32>}, {pipeline_mode = #tpu.pipeline_mode<synchronous>, transform_indices = @transform_5, window_bounds = array<i64: 1, 32>}, {pipeline_mode = #tpu.pipeline_mode<synchronous>, transform_indices = @transform_6, window_bounds = array<i64: 1, 32>}, {pipeline_mode = #tpu.pipeline_mode<synchronous>, transform_indices = @transform_7, window_bounds = array<i64: 1, 32>}, {pipeline_mode = #tpu.pipeline_mode<synchronous>, transform_indices = @transform_8, window_bounds = array<i64: 32, 32>}, {pipeline_mode = #tpu.pipeline_mode<synchronous>, transform_indices = @transform_9, window_bounds = array<i64: 1, 32>}, {pipeline_mode = #tpu.pipeline_mode<synchronous>, transform_indices = @transform_10, window_bounds = array<i64: 32, 64>}, {pipeline_mode = #tpu.pipeline_mode<synchronous>, transform_indices = @transform_11, window_bounds = array<i64: 1, 64>}, {pipeline_mode = #tpu.pipeline_mode<synchronous>, transform_indices = @transform_12, window_bounds = array<i64: 32, 32>}, {pipeline_mode = #tpu.pipeline_mode<synchronous>, transform_indices = @transform_13, window_bounds = array<i64: 1, 32>}, {pipeline_mode = #tpu.pipeline_mode<synchronous>, transform_indices = @transform_14, window_bounds = array<i64: 1, 32>}, {pipeline_mode = #tpu.pipeline_mode<synchronous>, transform_indices = @transform_15, window_bounds = array<i64: 1, 32>}, {pipeline_mode = #tpu.pipeline_mode<synchronous>, transform_indices = @transform_16, window_bounds = array<i64: 32, 2048>}, {pipeline_mode = #tpu.pipeline_mode<synchronous>, transform_indices = @transform_17, window_bounds = array<i64: 1, 2048>}, {pipeline_mode = #tpu.pipeline_mode<synchronous>, transform_indices = @transform_18, window_bounds = array<i64: 2048, 32>}, {pipeline_mode = #tpu.pipeline_mode<synchronous>, transform_indices = @transform_19, window_bounds = array<i64: 1, 32>}, {pipeline_mode = #tpu.pipeline_mode<synchronous>, transform_indices = @transform_20, window_bounds = array<i64: 1, 32>}, {pipeline_mode = #tpu.pipeline_mode<synchronous>, transform_indices = @transform_21, window_bounds = array<i64: 1, 32>}, {transform_indices = @transform_22, window_bounds = array<i64: 1, 16, 32>}]} {
    %c0 = arith.constant 0 : index
    %c0_0 = arith.constant 0 : index
    %c0_1 = arith.constant 0 : index
    %0 = vector.load %arg1[%c0, %c0_0, %c0_1] : memref<1x16x32xf32, #tpu.memory_space<vmem>>, vector<1x16x32xf32>
    %1 = vector.shape_cast %0 : vector<1x16x32xf32> to vector<16x32xf32>
    %c0_2 = arith.constant 0 : index
    %c0_3 = arith.constant 0 : index
    %c0_4 = arith.constant 0 : index
    %2 = vector.load %arg2[%c0_2, %c0_3, %c0_4] : memref<1x16x32xf32, #tpu.memory_space<vmem>>, vector<1x16x32xf32>
    %3 = vector.shape_cast %2 : vector<1x16x32xf32> to vector<16x32xf32>
    %c0_5 = arith.constant 0 : index
    %c0_6 = arith.constant 0 : index
    %4 = vector.load %arg3[%c0_5, %c0_6] : memref<32x96xf32, #tpu.memory_space<vmem>>, vector<32x96xf32>
    %5 = arith.truncf %1 : vector<16x32xf32> to vector<16x32xbf16>
    %6 = arith.truncf %4 : vector<32x96xf32> to vector<32x96xbf16>
    %cst = arith.constant dense<0.000000e+00> : vector<16x96xf32>
    %7 = tpu.matmul %5, %6, %cst {dimension_numbers = #tpu.dot_dimension_numbers<[1], [0], [0], [1], [0, 0, 1, 1], [], []>} : vector<16x32xbf16>, vector<32x96xbf16>, vector<16x96xf32> -> vector<16x96xf32>
    %c0_7 = arith.constant 0 : index
    %c0_8 = arith.constant 0 : index
    %8 = vector.load %arg4[%c0_7, %c0_8] : memref<1x96xf32, #tpu.memory_space<vmem>>, vector<1x96xf32>
    %9 = vector.broadcast %8 : vector<1x96xf32> to vector<16x96xf32>
    %10 = arith.addf %7, %9 : vector<16x96xf32>
    %11 = vector.extract_strided_slice %10 {offsets = [0, 0], sizes = [16, 32], strides = [1, 1]} : vector<16x96xf32> to vector<16x32xf32>
    %12 = vector.extract_strided_slice %10 {offsets = [0, 32], sizes = [16, 32], strides = [1, 1]} : vector<16x96xf32> to vector<16x32xf32>
    %13 = vector.extract_strided_slice %10 {offsets = [0, 64], sizes = [16, 32], strides = [1, 1]} : vector<16x96xf32> to vector<16x32xf32>
    %c0_9 = arith.constant 0 : index
    %c0_10 = arith.constant 0 : index
    %14 = vector.load %arg5[%c0_9, %c0_10] : memref<32x32xf32, #tpu.memory_space<vmem>>, vector<32x32xf32>
    %c0_11 = arith.constant 0 : index
    %c0_12 = arith.constant 0 : index
    %15 = vector.load %arg6[%c0_11, %c0_12] : memref<1x32xf32, #tpu.memory_space<vmem>>, vector<1x32xf32>
    %cst_13 = arith.constant 0.000000e+00 : f32
    %16 = vector.broadcast %cst_13 : f32 to vector<16x32xf32>
    %17 = vector.extract_strided_slice %11 {offsets = [0, 0], sizes = [16, 8], strides = [1, 1]} : vector<16x32xf32> to vector<16x8xf32>
    %18 = vector.extract_strided_slice %12 {offsets = [0, 0], sizes = [16, 8], strides = [1, 1]} : vector<16x32xf32> to vector<16x8xf32>
    %19 = vector.extract_strided_slice %13 {offsets = [0, 0], sizes = [16, 8], strides = [1, 1]} : vector<16x32xf32> to vector<16x8xf32>
    %20 = arith.truncf %17 : vector<16x8xf32> to vector<16x8xbf16>
    %21 = arith.truncf %18 : vector<16x8xf32> to vector<16x8xbf16>
    %cst_14 = arith.constant dense<0.000000e+00> : vector<16x16xf32>
    %22 = tpu.matmul %20, %21, %cst_14 {dimension_numbers = #tpu.dot_dimension_numbers<[1], [1], [0], [0], [0, 0, 1, 0], [], []>} : vector<16x8xbf16>, vector<16x8xbf16>, vector<16x16xf32> -> vector<16x16xf32>
    %cst_15 = arith.constant 0.353553385 : f32
    %23 = vector.broadcast %cst_15 : f32 to vector<16x16xf32>
    %24 = arith.mulf %22, %23 : vector<16x16xf32>
    %cst_16 = arith.constant dense<0xFF800000> : vector<16xf32>
    %25 = vector.multi_reduction <maximumf>, %24, %cst_16 [1] : vector<16x16xf32> to vector<16xf32>
    %26 = vector.shape_cast %25 : vector<16xf32> to vector<16x1xf32>
    %27 = vector.broadcast %26 : vector<16x1xf32> to vector<16x16xf32>
    %28 = arith.subf %24, %27 : vector<16x16xf32>
    %29 = math.exp %28 : vector<16x16xf32>
    %cst_17 = arith.constant dense<0.000000e+00> : vector<16xf32>
    %30 = vector.multi_reduction <add>, %29, %cst_17 [1] : vector<16x16xf32> to vector<16xf32>
    %31 = vector.shape_cast %30 : vector<16xf32> to vector<16x1xf32>
    %32 = tpu.reciprocal %31 {approx = true} : vector<16x1xf32> -> vector<16x1xf32>
    %33 = vector.broadcast %32 : vector<16x1xf32> to vector<16x16xf32>
    %34 = arith.mulf %29, %33 : vector<16x16xf32>
    %35 = arith.truncf %34 : vector<16x16xf32> to vector<16x16xbf16>
    %36 = arith.truncf %19 : vector<16x8xf32> to vector<16x8xbf16>
    %cst_18 = arith.constant dense<0.000000e+00> : vector<16x8xf32>
    %37 = tpu.matmul %35, %36, %cst_18 {dimension_numbers = #tpu.dot_dimension_numbers<[1], [0], [0], [1], [0, 0, 1, 1], [], []>} : vector<16x16xbf16>, vector<16x8xbf16>, vector<16x8xf32> -> vector<16x8xf32>
    %38 = vector.extract_strided_slice %14 {offsets = [0, 0], sizes = [8, 32], strides = [1, 1]} : vector<32x32xf32> to vector<8x32xf32>
    %39 = arith.truncf %37 : vector<16x8xf32> to vector<16x8xbf16>
    %40 = arith.truncf %38 : vector<8x32xf32> to vector<8x32xbf16>
    %cst_19 = arith.constant dense<0.000000e+00> : vector<16x32xf32>
    %41 = tpu.matmul %39, %40, %cst_19 {dimension_numbers = #tpu.dot_dimension_numbers<[1], [0], [0], [1], [0, 0, 1, 1], [], []>} : vector<16x8xbf16>, vector<8x32xbf16>, vector<16x32xf32> -> vector<16x32xf32>
    %42 = arith.addf %16, %41 : vector<16x32xf32>
    %43 = vector.extract_strided_slice %11 {offsets = [0, 8], sizes = [16, 8], strides = [1, 1]} : vector<16x32xf32> to vector<16x8xf32>
    %44 = vector.extract_strided_slice %12 {offsets = [0, 8], sizes = [16, 8], strides = [1, 1]} : vector<16x32xf32> to vector<16x8xf32>
    %45 = vector.extract_strided_slice %13 {offsets = [0, 8], sizes = [16, 8], strides = [1, 1]} : vector<16x32xf32> to vector<16x8xf32>
    %46 = arith.truncf %43 : vector<16x8xf32> to vector<16x8xbf16>
    %47 = arith.truncf %44 : vector<16x8xf32> to vector<16x8xbf16>
    %cst_20 = arith.constant dense<0.000000e+00> : vector<16x16xf32>
    %48 = tpu.matmul %46, %47, %cst_20 {dimension_numbers = #tpu.dot_dimension_numbers<[1], [1], [0], [0], [0, 0, 1, 0], [], []>} : vector<16x8xbf16>, vector<16x8xbf16>, vector<16x16xf32> -> vector<16x16xf32>
    %cst_21 = arith.constant 0.353553385 : f32
    %49 = vector.broadcast %cst_21 : f32 to vector<16x16xf32>
    %50 = arith.mulf %48, %49 : vector<16x16xf32>
    %cst_22 = arith.constant dense<0xFF800000> : vector<16xf32>
    %51 = vector.multi_reduction <maximumf>, %50, %cst_22 [1] : vector<16x16xf32> to vector<16xf32>
    %52 = vector.shape_cast %51 : vector<16xf32> to vector<16x1xf32>
    %53 = vector.broadcast %52 : vector<16x1xf32> to vector<16x16xf32>
    %54 = arith.subf %50, %53 : vector<16x16xf32>
    %55 = math.exp %54 : vector<16x16xf32>
    %cst_23 = arith.constant dense<0.000000e+00> : vector<16xf32>
    %56 = vector.multi_reduction <add>, %55, %cst_23 [1] : vector<16x16xf32> to vector<16xf32>
    %57 = vector.shape_cast %56 : vector<16xf32> to vector<16x1xf32>
    %58 = tpu.reciprocal %57 {approx = true} : vector<16x1xf32> -> vector<16x1xf32>
    %59 = vector.broadcast %58 : vector<16x1xf32> to vector<16x16xf32>
    %60 = arith.mulf %55, %59 : vector<16x16xf32>
    %61 = arith.truncf %60 : vector<16x16xf32> to vector<16x16xbf16>
    %62 = arith.truncf %45 : vector<16x8xf32> to vector<16x8xbf16>
    %cst_24 = arith.constant dense<0.000000e+00> : vector<16x8xf32>
    %63 = tpu.matmul %61, %62, %cst_24 {dimension_numbers = #tpu.dot_dimension_numbers<[1], [0], [0], [1], [0, 0, 1, 1], [], []>} : vector<16x16xbf16>, vector<16x8xbf16>, vector<16x8xf32> -> vector<16x8xf32>
    %64 = vector.extract_strided_slice %14 {offsets = [8, 0], sizes = [8, 32], strides = [1, 1]} : vector<32x32xf32> to vector<8x32xf32>
    %65 = arith.truncf %63 : vector<16x8xf32> to vector<16x8xbf16>
    %66 = arith.truncf %64 : vector<8x32xf32> to vector<8x32xbf16>
    %cst_25 = arith.constant dense<0.000000e+00> : vector<16x32xf32>
    %67 = tpu.matmul %65, %66, %cst_25 {dimension_numbers = #tpu.dot_dimension_numbers<[1], [0], [0], [1], [0, 0, 1, 1], [], []>} : vector<16x8xbf16>, vector<8x32xbf16>, vector<16x32xf32> -> vector<16x32xf32>
    %68 = arith.addf %42, %67 : vector<16x32xf32>
    %69 = vector.extract_strided_slice %11 {offsets = [0, 16], sizes = [16, 8], strides = [1, 1]} : vector<16x32xf32> to vector<16x8xf32>
    %70 = vector.extract_strided_slice %12 {offsets = [0, 16], sizes = [16, 8], strides = [1, 1]} : vector<16x32xf32> to vector<16x8xf32>
    %71 = vector.extract_strided_slice %13 {offsets = [0, 16], sizes = [16, 8], strides = [1, 1]} : vector<16x32xf32> to vector<16x8xf32>
    %72 = arith.truncf %69 : vector<16x8xf32> to vector<16x8xbf16>
    %73 = arith.truncf %70 : vector<16x8xf32> to vector<16x8xbf16>
    %cst_26 = arith.constant dense<0.000000e+00> : vector<16x16xf32>
    %74 = tpu.matmul %72, %73, %cst_26 {dimension_numbers = #tpu.dot_dimension_numbers<[1], [1], [0], [0], [0, 0, 1, 0], [], []>} : vector<16x8xbf16>, vector<16x8xbf16>, vector<16x16xf32> -> vector<16x16xf32>
    %cst_27 = arith.constant 0.353553385 : f32
    %75 = vector.broadcast %cst_27 : f32 to vector<16x16xf32>
    %76 = arith.mulf %74, %75 : vector<16x16xf32>
    %cst_28 = arith.constant dense<0xFF800000> : vector<16xf32>
    %77 = vector.multi_reduction <maximumf>, %76, %cst_28 [1] : vector<16x16xf32> to vector<16xf32>
    %78 = vector.shape_cast %77 : vector<16xf32> to vector<16x1xf32>
    %79 = vector.broadcast %78 : vector<16x1xf32> to vector<16x16xf32>
    %80 = arith.subf %76, %79 : vector<16x16xf32>
    %81 = math.exp %80 : vector<16x16xf32>
    %cst_29 = arith.constant dense<0.000000e+00> : vector<16xf32>
    %82 = vector.multi_reduction <add>, %81, %cst_29 [1] : vector<16x16xf32> to vector<16xf32>
    %83 = vector.shape_cast %82 : vector<16xf32> to vector<16x1xf32>
    %84 = tpu.reciprocal %83 {approx = true} : vector<16x1xf32> -> vector<16x1xf32>
    %85 = vector.broadcast %84 : vector<16x1xf32> to vector<16x16xf32>
    %86 = arith.mulf %81, %85 : vector<16x16xf32>
    %87 = arith.truncf %86 : vector<16x16xf32> to vector<16x16xbf16>
    %88 = arith.truncf %71 : vector<16x8xf32> to vector<16x8xbf16>
    %cst_30 = arith.constant dense<0.000000e+00> : vector<16x8xf32>
    %89 = tpu.matmul %87, %88, %cst_30 {dimension_numbers = #tpu.dot_dimension_numbers<[1], [0], [0], [1], [0, 0, 1, 1], [], []>} : vector<16x16xbf16>, vector<16x8xbf16>, vector<16x8xf32> -> vector<16x8xf32>
    %90 = vector.extract_strided_slice %14 {offsets = [16, 0], sizes = [8, 32], strides = [1, 1]} : vector<32x32xf32> to vector<8x32xf32>
    %91 = arith.truncf %89 : vector<16x8xf32> to vector<16x8xbf16>
    %92 = arith.truncf %90 : vector<8x32xf32> to vector<8x32xbf16>
    %cst_31 = arith.constant dense<0.000000e+00> : vector<16x32xf32>
    %93 = tpu.matmul %91, %92, %cst_31 {dimension_numbers = #tpu.dot_dimension_numbers<[1], [0], [0], [1], [0, 0, 1, 1], [], []>} : vector<16x8xbf16>, vector<8x32xbf16>, vector<16x32xf32> -> vector<16x32xf32>
    %94 = arith.addf %68, %93 : vector<16x32xf32>
    %95 = vector.extract_strided_slice %11 {offsets = [0, 24], sizes = [16, 8], strides = [1, 1]} : vector<16x32xf32> to vector<16x8xf32>
    %96 = vector.extract_strided_slice %12 {offsets = [0, 24], sizes = [16, 8], strides = [1, 1]} : vector<16x32xf32> to vector<16x8xf32>
    %97 = vector.extract_strided_slice %13 {offsets = [0, 24], sizes = [16, 8], strides = [1, 1]} : vector<16x32xf32> to vector<16x8xf32>
    %98 = arith.truncf %95 : vector<16x8xf32> to vector<16x8xbf16>
    %99 = arith.truncf %96 : vector<16x8xf32> to vector<16x8xbf16>
    %cst_32 = arith.constant dense<0.000000e+00> : vector<16x16xf32>
    %100 = tpu.matmul %98, %99, %cst_32 {dimension_numbers = #tpu.dot_dimension_numbers<[1], [1], [0], [0], [0, 0, 1, 0], [], []>} : vector<16x8xbf16>, vector<16x8xbf16>, vector<16x16xf32> -> vector<16x16xf32>
    %cst_33 = arith.constant 0.353553385 : f32
    %101 = vector.broadcast %cst_33 : f32 to vector<16x16xf32>
    %102 = arith.mulf %100, %101 : vector<16x16xf32>
    %cst_34 = arith.constant dense<0xFF800000> : vector<16xf32>
    %103 = vector.multi_reduction <maximumf>, %102, %cst_34 [1] : vector<16x16xf32> to vector<16xf32>
    %104 = vector.shape_cast %103 : vector<16xf32> to vector<16x1xf32>
    %105 = vector.broadcast %104 : vector<16x1xf32> to vector<16x16xf32>
    %106 = arith.subf %102, %105 : vector<16x16xf32>
    %107 = math.exp %106 : vector<16x16xf32>
    %cst_35 = arith.constant dense<0.000000e+00> : vector<16xf32>
    %108 = vector.multi_reduction <add>, %107, %cst_35 [1] : vector<16x16xf32> to vector<16xf32>
    %109 = vector.shape_cast %108 : vector<16xf32> to vector<16x1xf32>
    %110 = tpu.reciprocal %109 {approx = true} : vector<16x1xf32> -> vector<16x1xf32>
    %111 = vector.broadcast %110 : vector<16x1xf32> to vector<16x16xf32>
    %112 = arith.mulf %107, %111 : vector<16x16xf32>
    %113 = arith.truncf %112 : vector<16x16xf32> to vector<16x16xbf16>
    %114 = arith.truncf %97 : vector<16x8xf32> to vector<16x8xbf16>
    %cst_36 = arith.constant dense<0.000000e+00> : vector<16x8xf32>
    %115 = tpu.matmul %113, %114, %cst_36 {dimension_numbers = #tpu.dot_dimension_numbers<[1], [0], [0], [1], [0, 0, 1, 1], [], []>} : vector<16x16xbf16>, vector<16x8xbf16>, vector<16x8xf32> -> vector<16x8xf32>
    %116 = vector.extract_strided_slice %14 {offsets = [24, 0], sizes = [8, 32], strides = [1, 1]} : vector<32x32xf32> to vector<8x32xf32>
    %117 = arith.truncf %115 : vector<16x8xf32> to vector<16x8xbf16>
    %118 = arith.truncf %116 : vector<8x32xf32> to vector<8x32xbf16>
    %cst_37 = arith.constant dense<0.000000e+00> : vector<16x32xf32>
    %119 = tpu.matmul %117, %118, %cst_37 {dimension_numbers = #tpu.dot_dimension_numbers<[1], [0], [0], [1], [0, 0, 1, 1], [], []>} : vector<16x8xbf16>, vector<8x32xbf16>, vector<16x32xf32> -> vector<16x32xf32>
    %120 = arith.addf %94, %119 : vector<16x32xf32>
    %121 = vector.broadcast %15 : vector<1x32xf32> to vector<16x32xf32>
    %122 = arith.addf %120, %121 : vector<16x32xf32>
    %123 = arith.addf %122, %1 : vector<16x32xf32>
    %c0_38 = arith.constant 0 : index
    %c0_39 = arith.constant 0 : index
    %124 = vector.load %arg7[%c0_38, %c0_39] : memref<1x32xf32, #tpu.memory_space<vmem>>, vector<1x32xf32>
    %c0_40 = arith.constant 0 : index
    %c0_41 = arith.constant 0 : index
    %125 = vector.load %arg8[%c0_40, %c0_41] : memref<1x32xf32, #tpu.memory_space<vmem>>, vector<1x32xf32>
    %cst_42 = arith.constant dense<0.000000e+00> : vector<16xf32>
    %126 = vector.multi_reduction <add>, %123, %cst_42 [1] : vector<16x32xf32> to vector<16xf32>
    %127 = vector.shape_cast %126 : vector<16xf32> to vector<16x1xf32>
    %cst_43 = arith.constant 3.200000e+01 : f32
    %128 = vector.broadcast %cst_43 : f32 to vector<16x1xf32>
    %129 = arith.divf %127, %128 : vector<16x1xf32>
    %130 = vector.broadcast %129 : vector<16x1xf32> to vector<16x32xf32>
    %131 = arith.subf %123, %130 : vector<16x32xf32>
    %132 = arith.mulf %131, %131 : vector<16x32xf32>
    %cst_44 = arith.constant dense<0.000000e+00> : vector<16xf32>
    %133 = vector.multi_reduction <add>, %132, %cst_44 [1] : vector<16x32xf32> to vector<16xf32>
    %134 = vector.shape_cast %133 : vector<16xf32> to vector<16x1xf32>
    %cst_45 = arith.constant 3.200000e+01 : f32
    %135 = vector.broadcast %cst_45 : f32 to vector<16x1xf32>
    %136 = arith.divf %134, %135 : vector<16x1xf32>
    %cst_46 = arith.constant 9.99999974E-6 : f32
    %137 = vector.broadcast %cst_46 : f32 to vector<16x1xf32>
    %138 = arith.addf %136, %137 : vector<16x1xf32>
    %139 = math.rsqrt %138 : vector<16x1xf32>
    %140 = vector.broadcast %139 : vector<16x1xf32> to vector<16x32xf32>
    %141 = arith.mulf %131, %140 : vector<16x32xf32>
    %142 = vector.broadcast %124 : vector<1x32xf32> to vector<16x32xf32>
    %143 = arith.mulf %141, %142 : vector<16x32xf32>
    %144 = vector.broadcast %125 : vector<1x32xf32> to vector<16x32xf32>
    %145 = arith.addf %143, %144 : vector<16x32xf32>
    %c0_47 = arith.constant 0 : index
    %c0_48 = arith.constant 0 : index
    %146 = vector.load %arg9[%c0_47, %c0_48] : memref<32x32xf32, #tpu.memory_space<vmem>>, vector<32x32xf32>
    %147 = arith.truncf %145 : vector<16x32xf32> to vector<16x32xbf16>
    %148 = arith.truncf %146 : vector<32x32xf32> to vector<32x32xbf16>
    %cst_49 = arith.constant dense<0.000000e+00> : vector<16x32xf32>
    %149 = tpu.matmul %147, %148, %cst_49 {dimension_numbers = #tpu.dot_dimension_numbers<[1], [0], [0], [1], [0, 0, 1, 1], [], []>} : vector<16x32xbf16>, vector<32x32xbf16>, vector<16x32xf32> -> vector<16x32xf32>
    %c0_50 = arith.constant 0 : index
    %c0_51 = arith.constant 0 : index
    %150 = vector.load %arg10[%c0_50, %c0_51] : memref<1x32xf32, #tpu.memory_space<vmem>>, vector<1x32xf32>
    %151 = vector.broadcast %150 : vector<1x32xf32> to vector<16x32xf32>
    %152 = arith.addf %149, %151 : vector<16x32xf32>
    %c0_52 = arith.constant 0 : index
    %c0_53 = arith.constant 0 : index
    %153 = vector.load %arg11[%c0_52, %c0_53] : memref<32x64xf32, #tpu.memory_space<vmem>>, vector<32x64xf32>
    %154 = arith.truncf %3 : vector<16x32xf32> to vector<16x32xbf16>
    %155 = arith.truncf %153 : vector<32x64xf32> to vector<32x64xbf16>
    %cst_54 = arith.constant dense<0.000000e+00> : vector<16x64xf32>
    %156 = tpu.matmul %154, %155, %cst_54 {dimension_numbers = #tpu.dot_dimension_numbers<[1], [0], [0], [1], [0, 0, 1, 1], [], []>} : vector<16x32xbf16>, vector<32x64xbf16>, vector<16x64xf32> -> vector<16x64xf32>
    %c0_55 = arith.constant 0 : index
    %c0_56 = arith.constant 0 : index
    %157 = vector.load %arg12[%c0_55, %c0_56] : memref<1x64xf32, #tpu.memory_space<vmem>>, vector<1x64xf32>
    %158 = vector.broadcast %157 : vector<1x64xf32> to vector<16x64xf32>
    %159 = arith.addf %156, %158 : vector<16x64xf32>
    %160 = vector.extract_strided_slice %159 {offsets = [0, 0], sizes = [16, 32], strides = [1, 1]} : vector<16x64xf32> to vector<16x32xf32>
    %161 = vector.extract_strided_slice %159 {offsets = [0, 32], sizes = [16, 32], strides = [1, 1]} : vector<16x64xf32> to vector<16x32xf32>
    %c0_57 = arith.constant 0 : index
    %c0_58 = arith.constant 0 : index
    %162 = vector.load %arg13[%c0_57, %c0_58] : memref<32x32xf32, #tpu.memory_space<vmem>>, vector<32x32xf32>
    %c0_59 = arith.constant 0 : index
    %c0_60 = arith.constant 0 : index
    %163 = vector.load %arg14[%c0_59, %c0_60] : memref<1x32xf32, #tpu.memory_space<vmem>>, vector<1x32xf32>
    %cst_61 = arith.constant 0.000000e+00 : f32
    %164 = vector.broadcast %cst_61 : f32 to vector<16x32xf32>
    %165 = vector.extract_strided_slice %152 {offsets = [0, 0], sizes = [16, 8], strides = [1, 1]} : vector<16x32xf32> to vector<16x8xf32>
    %166 = vector.extract_strided_slice %160 {offsets = [0, 0], sizes = [16, 8], strides = [1, 1]} : vector<16x32xf32> to vector<16x8xf32>
    %167 = vector.extract_strided_slice %161 {offsets = [0, 0], sizes = [16, 8], strides = [1, 1]} : vector<16x32xf32> to vector<16x8xf32>
    %168 = arith.truncf %165 : vector<16x8xf32> to vector<16x8xbf16>
    %169 = arith.truncf %166 : vector<16x8xf32> to vector<16x8xbf16>
    %cst_62 = arith.constant dense<0.000000e+00> : vector<16x16xf32>
    %170 = tpu.matmul %168, %169, %cst_62 {dimension_numbers = #tpu.dot_dimension_numbers<[1], [1], [0], [0], [0, 0, 1, 0], [], []>} : vector<16x8xbf16>, vector<16x8xbf16>, vector<16x16xf32> -> vector<16x16xf32>
    %cst_63 = arith.constant 0.353553385 : f32
    %171 = vector.broadcast %cst_63 : f32 to vector<16x16xf32>
    %172 = arith.mulf %170, %171 : vector<16x16xf32>
    %cst_64 = arith.constant dense<0xFF800000> : vector<16xf32>
    %173 = vector.multi_reduction <maximumf>, %172, %cst_64 [1] : vector<16x16xf32> to vector<16xf32>
    %174 = vector.shape_cast %173 : vector<16xf32> to vector<16x1xf32>
    %175 = vector.broadcast %174 : vector<16x1xf32> to vector<16x16xf32>
    %176 = arith.subf %172, %175 : vector<16x16xf32>
    %177 = math.exp %176 : vector<16x16xf32>
    %cst_65 = arith.constant dense<0.000000e+00> : vector<16xf32>
    %178 = vector.multi_reduction <add>, %177, %cst_65 [1] : vector<16x16xf32> to vector<16xf32>
    %179 = vector.shape_cast %178 : vector<16xf32> to vector<16x1xf32>
    %180 = tpu.reciprocal %179 {approx = true} : vector<16x1xf32> -> vector<16x1xf32>
    %181 = vector.broadcast %180 : vector<16x1xf32> to vector<16x16xf32>
    %182 = arith.mulf %177, %181 : vector<16x16xf32>
    %183 = arith.truncf %182 : vector<16x16xf32> to vector<16x16xbf16>
    %184 = arith.truncf %167 : vector<16x8xf32> to vector<16x8xbf16>
    %cst_66 = arith.constant dense<0.000000e+00> : vector<16x8xf32>
    %185 = tpu.matmul %183, %184, %cst_66 {dimension_numbers = #tpu.dot_dimension_numbers<[1], [0], [0], [1], [0, 0, 1, 1], [], []>} : vector<16x16xbf16>, vector<16x8xbf16>, vector<16x8xf32> -> vector<16x8xf32>
    %186 = vector.extract_strided_slice %162 {offsets = [0, 0], sizes = [8, 32], strides = [1, 1]} : vector<32x32xf32> to vector<8x32xf32>
    %187 = arith.truncf %185 : vector<16x8xf32> to vector<16x8xbf16>
    %188 = arith.truncf %186 : vector<8x32xf32> to vector<8x32xbf16>
    %cst_67 = arith.constant dense<0.000000e+00> : vector<16x32xf32>
    %189 = tpu.matmul %187, %188, %cst_67 {dimension_numbers = #tpu.dot_dimension_numbers<[1], [0], [0], [1], [0, 0, 1, 1], [], []>} : vector<16x8xbf16>, vector<8x32xbf16>, vector<16x32xf32> -> vector<16x32xf32>
    %190 = arith.addf %164, %189 : vector<16x32xf32>
    %191 = vector.extract_strided_slice %152 {offsets = [0, 8], sizes = [16, 8], strides = [1, 1]} : vector<16x32xf32> to vector<16x8xf32>
    %192 = vector.extract_strided_slice %160 {offsets = [0, 8], sizes = [16, 8], strides = [1, 1]} : vector<16x32xf32> to vector<16x8xf32>
    %193 = vector.extract_strided_slice %161 {offsets = [0, 8], sizes = [16, 8], strides = [1, 1]} : vector<16x32xf32> to vector<16x8xf32>
    %194 = arith.truncf %191 : vector<16x8xf32> to vector<16x8xbf16>
    %195 = arith.truncf %192 : vector<16x8xf32> to vector<16x8xbf16>
    %cst_68 = arith.constant dense<0.000000e+00> : vector<16x16xf32>
    %196 = tpu.matmul %194, %195, %cst_68 {dimension_numbers = #tpu.dot_dimension_numbers<[1], [1], [0], [0], [0, 0, 1, 0], [], []>} : vector<16x8xbf16>, vector<16x8xbf16>, vector<16x16xf32> -> vector<16x16xf32>
    %cst_69 = arith.constant 0.353553385 : f32
    %197 = vector.broadcast %cst_69 : f32 to vector<16x16xf32>
    %198 = arith.mulf %196, %197 : vector<16x16xf32>
    %cst_70 = arith.constant dense<0xFF800000> : vector<16xf32>
    %199 = vector.multi_reduction <maximumf>, %198, %cst_70 [1] : vector<16x16xf32> to vector<16xf32>
    %200 = vector.shape_cast %199 : vector<16xf32> to vector<16x1xf32>
    %201 = vector.broadcast %200 : vector<16x1xf32> to vector<16x16xf32>
    %202 = arith.subf %198, %201 : vector<16x16xf32>
    %203 = math.exp %202 : vector<16x16xf32>
    %cst_71 = arith.constant dense<0.000000e+00> : vector<16xf32>
    %204 = vector.multi_reduction <add>, %203, %cst_71 [1] : vector<16x16xf32> to vector<16xf32>
    %205 = vector.shape_cast %204 : vector<16xf32> to vector<16x1xf32>
    %206 = tpu.reciprocal %205 {approx = true} : vector<16x1xf32> -> vector<16x1xf32>
    %207 = vector.broadcast %206 : vector<16x1xf32> to vector<16x16xf32>
    %208 = arith.mulf %203, %207 : vector<16x16xf32>
    %209 = arith.truncf %208 : vector<16x16xf32> to vector<16x16xbf16>
    %210 = arith.truncf %193 : vector<16x8xf32> to vector<16x8xbf16>
    %cst_72 = arith.constant dense<0.000000e+00> : vector<16x8xf32>
    %211 = tpu.matmul %209, %210, %cst_72 {dimension_numbers = #tpu.dot_dimension_numbers<[1], [0], [0], [1], [0, 0, 1, 1], [], []>} : vector<16x16xbf16>, vector<16x8xbf16>, vector<16x8xf32> -> vector<16x8xf32>
    %212 = vector.extract_strided_slice %162 {offsets = [8, 0], sizes = [8, 32], strides = [1, 1]} : vector<32x32xf32> to vector<8x32xf32>
    %213 = arith.truncf %211 : vector<16x8xf32> to vector<16x8xbf16>
    %214 = arith.truncf %212 : vector<8x32xf32> to vector<8x32xbf16>
    %cst_73 = arith.constant dense<0.000000e+00> : vector<16x32xf32>
    %215 = tpu.matmul %213, %214, %cst_73 {dimension_numbers = #tpu.dot_dimension_numbers<[1], [0], [0], [1], [0, 0, 1, 1], [], []>} : vector<16x8xbf16>, vector<8x32xbf16>, vector<16x32xf32> -> vector<16x32xf32>
    %216 = arith.addf %190, %215 : vector<16x32xf32>
    %217 = vector.extract_strided_slice %152 {offsets = [0, 16], sizes = [16, 8], strides = [1, 1]} : vector<16x32xf32> to vector<16x8xf32>
    %218 = vector.extract_strided_slice %160 {offsets = [0, 16], sizes = [16, 8], strides = [1, 1]} : vector<16x32xf32> to vector<16x8xf32>
    %219 = vector.extract_strided_slice %161 {offsets = [0, 16], sizes = [16, 8], strides = [1, 1]} : vector<16x32xf32> to vector<16x8xf32>
    %220 = arith.truncf %217 : vector<16x8xf32> to vector<16x8xbf16>
    %221 = arith.truncf %218 : vector<16x8xf32> to vector<16x8xbf16>
    %cst_74 = arith.constant dense<0.000000e+00> : vector<16x16xf32>
    %222 = tpu.matmul %220, %221, %cst_74 {dimension_numbers = #tpu.dot_dimension_numbers<[1], [1], [0], [0], [0, 0, 1, 0], [], []>} : vector<16x8xbf16>, vector<16x8xbf16>, vector<16x16xf32> -> vector<16x16xf32>
    %cst_75 = arith.constant 0.353553385 : f32
    %223 = vector.broadcast %cst_75 : f32 to vector<16x16xf32>
    %224 = arith.mulf %222, %223 : vector<16x16xf32>
    %cst_76 = arith.constant dense<0xFF800000> : vector<16xf32>
    %225 = vector.multi_reduction <maximumf>, %224, %cst_76 [1] : vector<16x16xf32> to vector<16xf32>
    %226 = vector.shape_cast %225 : vector<16xf32> to vector<16x1xf32>
    %227 = vector.broadcast %226 : vector<16x1xf32> to vector<16x16xf32>
    %228 = arith.subf %224, %227 : vector<16x16xf32>
    %229 = math.exp %228 : vector<16x16xf32>
    %cst_77 = arith.constant dense<0.000000e+00> : vector<16xf32>
    %230 = vector.multi_reduction <add>, %229, %cst_77 [1] : vector<16x16xf32> to vector<16xf32>
    %231 = vector.shape_cast %230 : vector<16xf32> to vector<16x1xf32>
    %232 = tpu.reciprocal %231 {approx = true} : vector<16x1xf32> -> vector<16x1xf32>
    %233 = vector.broadcast %232 : vector<16x1xf32> to vector<16x16xf32>
    %234 = arith.mulf %229, %233 : vector<16x16xf32>
    %235 = arith.truncf %234 : vector<16x16xf32> to vector<16x16xbf16>
    %236 = arith.truncf %219 : vector<16x8xf32> to vector<16x8xbf16>
    %cst_78 = arith.constant dense<0.000000e+00> : vector<16x8xf32>
    %237 = tpu.matmul %235, %236, %cst_78 {dimension_numbers = #tpu.dot_dimension_numbers<[1], [0], [0], [1], [0, 0, 1, 1], [], []>} : vector<16x16xbf16>, vector<16x8xbf16>, vector<16x8xf32> -> vector<16x8xf32>
    %238 = vector.extract_strided_slice %162 {offsets = [16, 0], sizes = [8, 32], strides = [1, 1]} : vector<32x32xf32> to vector<8x32xf32>
    %239 = arith.truncf %237 : vector<16x8xf32> to vector<16x8xbf16>
    %240 = arith.truncf %238 : vector<8x32xf32> to vector<8x32xbf16>
    %cst_79 = arith.constant dense<0.000000e+00> : vector<16x32xf32>
    %241 = tpu.matmul %239, %240, %cst_79 {dimension_numbers = #tpu.dot_dimension_numbers<[1], [0], [0], [1], [0, 0, 1, 1], [], []>} : vector<16x8xbf16>, vector<8x32xbf16>, vector<16x32xf32> -> vector<16x32xf32>
    %242 = arith.addf %216, %241 : vector<16x32xf32>
    %243 = vector.extract_strided_slice %152 {offsets = [0, 24], sizes = [16, 8], strides = [1, 1]} : vector<16x32xf32> to vector<16x8xf32>
    %244 = vector.extract_strided_slice %160 {offsets = [0, 24], sizes = [16, 8], strides = [1, 1]} : vector<16x32xf32> to vector<16x8xf32>
    %245 = vector.extract_strided_slice %161 {offsets = [0, 24], sizes = [16, 8], strides = [1, 1]} : vector<16x32xf32> to vector<16x8xf32>
    %246 = arith.truncf %243 : vector<16x8xf32> to vector<16x8xbf16>
    %247 = arith.truncf %244 : vector<16x8xf32> to vector<16x8xbf16>
    %cst_80 = arith.constant dense<0.000000e+00> : vector<16x16xf32>
    %248 = tpu.matmul %246, %247, %cst_80 {dimension_numbers = #tpu.dot_dimension_numbers<[1], [1], [0], [0], [0, 0, 1, 0], [], []>} : vector<16x8xbf16>, vector<16x8xbf16>, vector<16x16xf32> -> vector<16x16xf32>
    %cst_81 = arith.constant 0.353553385 : f32
    %249 = vector.broadcast %cst_81 : f32 to vector<16x16xf32>
    %250 = arith.mulf %248, %249 : vector<16x16xf32>
    %cst_82 = arith.constant dense<0xFF800000> : vector<16xf32>
    %251 = vector.multi_reduction <maximumf>, %250, %cst_82 [1] : vector<16x16xf32> to vector<16xf32>
    %252 = vector.shape_cast %251 : vector<16xf32> to vector<16x1xf32>
    %253 = vector.broadcast %252 : vector<16x1xf32> to vector<16x16xf32>
    %254 = arith.subf %250, %253 : vector<16x16xf32>
    %255 = math.exp %254 : vector<16x16xf32>
    %cst_83 = arith.constant dense<0.000000e+00> : vector<16xf32>
    %256 = vector.multi_reduction <add>, %255, %cst_83 [1] : vector<16x16xf32> to vector<16xf32>
    %257 = vector.shape_cast %256 : vector<16xf32> to vector<16x1xf32>
    %258 = tpu.reciprocal %257 {approx = true} : vector<16x1xf32> -> vector<16x1xf32>
    %259 = vector.broadcast %258 : vector<16x1xf32> to vector<16x16xf32>
    %260 = arith.mulf %255, %259 : vector<16x16xf32>
    %261 = arith.truncf %260 : vector<16x16xf32> to vector<16x16xbf16>
    %262 = arith.truncf %245 : vector<16x8xf32> to vector<16x8xbf16>
    %cst_84 = arith.constant dense<0.000000e+00> : vector<16x8xf32>
    %263 = tpu.matmul %261, %262, %cst_84 {dimension_numbers = #tpu.dot_dimension_numbers<[1], [0], [0], [1], [0, 0, 1, 1], [], []>} : vector<16x16xbf16>, vector<16x8xbf16>, vector<16x8xf32> -> vector<16x8xf32>
    %264 = vector.extract_strided_slice %162 {offsets = [24, 0], sizes = [8, 32], strides = [1, 1]} : vector<32x32xf32> to vector<8x32xf32>
    %265 = arith.truncf %263 : vector<16x8xf32> to vector<16x8xbf16>
    %266 = arith.truncf %264 : vector<8x32xf32> to vector<8x32xbf16>
    %cst_85 = arith.constant dense<0.000000e+00> : vector<16x32xf32>
    %267 = tpu.matmul %265, %266, %cst_85 {dimension_numbers = #tpu.dot_dimension_numbers<[1], [0], [0], [1], [0, 0, 1, 1], [], []>} : vector<16x8xbf16>, vector<8x32xbf16>, vector<16x32xf32> -> vector<16x32xf32>
    %268 = arith.addf %242, %267 : vector<16x32xf32>
    %269 = vector.broadcast %163 : vector<1x32xf32> to vector<16x32xf32>
    %270 = arith.addf %268, %269 : vector<16x32xf32>
    %271 = arith.addf %270, %145 : vector<16x32xf32>
    %c0_86 = arith.constant 0 : index
    %c0_87 = arith.constant 0 : index
    %272 = vector.load %arg15[%c0_86, %c0_87] : memref<1x32xf32, #tpu.memory_space<vmem>>, vector<1x32xf32>
    %c0_88 = arith.constant 0 : index
    %c0_89 = arith.constant 0 : index
    %273 = vector.load %arg16[%c0_88, %c0_89] : memref<1x32xf32, #tpu.memory_space<vmem>>, vector<1x32xf32>
    %cst_90 = arith.constant dense<0.000000e+00> : vector<16xf32>
    %274 = vector.multi_reduction <add>, %271, %cst_90 [1] : vector<16x32xf32> to vector<16xf32>
    %275 = vector.shape_cast %274 : vector<16xf32> to vector<16x1xf32>
    %cst_91 = arith.constant 3.200000e+01 : f32
    %276 = vector.broadcast %cst_91 : f32 to vector<16x1xf32>
    %277 = arith.divf %275, %276 : vector<16x1xf32>
    %278 = vector.broadcast %277 : vector<16x1xf32> to vector<16x32xf32>
    %279 = arith.subf %271, %278 : vector<16x32xf32>
    %280 = arith.mulf %279, %279 : vector<16x32xf32>
    %cst_92 = arith.constant dense<0.000000e+00> : vector<16xf32>
    %281 = vector.multi_reduction <add>, %280, %cst_92 [1] : vector<16x32xf32> to vector<16xf32>
    %282 = vector.shape_cast %281 : vector<16xf32> to vector<16x1xf32>
    %cst_93 = arith.constant 3.200000e+01 : f32
    %283 = vector.broadcast %cst_93 : f32 to vector<16x1xf32>
    %284 = arith.divf %282, %283 : vector<16x1xf32>
    %cst_94 = arith.constant 9.99999974E-6 : f32
    %285 = vector.broadcast %cst_94 : f32 to vector<16x1xf32>
    %286 = arith.addf %284, %285 : vector<16x1xf32>
    %287 = math.rsqrt %286 : vector<16x1xf32>
    %288 = vector.broadcast %287 : vector<16x1xf32> to vector<16x32xf32>
    %289 = arith.mulf %279, %288 : vector<16x32xf32>
    %290 = vector.broadcast %272 : vector<1x32xf32> to vector<16x32xf32>
    %291 = arith.mulf %289, %290 : vector<16x32xf32>
    %292 = vector.broadcast %273 : vector<1x32xf32> to vector<16x32xf32>
    %293 = arith.addf %291, %292 : vector<16x32xf32>
    %c0_95 = arith.constant 0 : index
    %c0_96 = arith.constant 0 : index
    %294 = vector.load %arg17[%c0_95, %c0_96] : memref<32x2048xf32, #tpu.memory_space<vmem>>, vector<32x2048xf32>
    %295 = arith.truncf %293 : vector<16x32xf32> to vector<16x32xbf16>
    %296 = arith.truncf %294 : vector<32x2048xf32> to vector<32x2048xbf16>
    %cst_97 = arith.constant dense<0.000000e+00> : vector<16x2048xf32>
    %297 = tpu.matmul %295, %296, %cst_97 {dimension_numbers = #tpu.dot_dimension_numbers<[1], [0], [0], [1], [0, 0, 1, 1], [], []>} : vector<16x32xbf16>, vector<32x2048xbf16>, vector<16x2048xf32> -> vector<16x2048xf32>
    %c0_98 = arith.constant 0 : index
    %c0_99 = arith.constant 0 : index
    %298 = vector.load %arg18[%c0_98, %c0_99] : memref<1x2048xf32, #tpu.memory_space<vmem>>, vector<1x2048xf32>
    %299 = vector.broadcast %298 : vector<1x2048xf32> to vector<16x2048xf32>
    %300 = arith.addf %297, %299 : vector<16x2048xf32>
    %cst_100 = arith.constant 0.000000e+00 : f32
    %301 = vector.broadcast %cst_100 : f32 to vector<16x2048xf32>
    %302 = arith.maximumf %300, %301 : vector<16x2048xf32>
    %c0_101 = arith.constant 0 : index
    %c0_102 = arith.constant 0 : index
    %303 = vector.load %arg19[%c0_101, %c0_102] : memref<2048x32xf32, #tpu.memory_space<vmem>>, vector<2048x32xf32>
    %304 = arith.truncf %302 : vector<16x2048xf32> to vector<16x2048xbf16>
    %305 = arith.truncf %303 : vector<2048x32xf32> to vector<2048x32xbf16>
    %cst_103 = arith.constant dense<0.000000e+00> : vector<16x32xf32>
    %306 = tpu.matmul %304, %305, %cst_103 {dimension_numbers = #tpu.dot_dimension_numbers<[1], [0], [0], [1], [0, 0, 1, 1], [], []>} : vector<16x2048xbf16>, vector<2048x32xbf16>, vector<16x32xf32> -> vector<16x32xf32>
    %c0_104 = arith.constant 0 : index
    %c0_105 = arith.constant 0 : index
    %307 = vector.load %arg20[%c0_104, %c0_105] : memref<1x32xf32, #tpu.memory_space<vmem>>, vector<1x32xf32>
    %308 = vector.broadcast %307 : vector<1x32xf32> to vector<16x32xf32>
    %309 = arith.addf %306, %308 : vector<16x32xf32>
    %310 = arith.addf %309, %293 : vector<16x32xf32>
    %c0_106 = arith.constant 0 : index
    %c0_107 = arith.constant 0 : index
    %311 = vector.load %arg21[%c0_106, %c0_107] : memref<1x32xf32, #tpu.memory_space<vmem>>, vector<1x32xf32>
    %c0_108 = arith.constant 0 : index
    %c0_109 = arith.constant 0 : index
    %312 = vector.load %arg22[%c0_108, %c0_109] : memref<1x32xf32, #tpu.memory_space<vmem>>, vector<1x32xf32>
    %cst_110 = arith.constant dense<0.000000e+00> : vector<16xf32>
    %313 = vector.multi_reduction <add>, %310, %cst_110 [1] : vector<16x32xf32> to vector<16xf32>
    %314 = vector.shape_cast %313 : vector<16xf32> to vector<16x1xf32>
    %cst_111 = arith.constant 3.200000e+01 : f32
    %315 = vector.broadcast %cst_111 : f32 to vector<16x1xf32>
    %316 = arith.divf %314, %315 : vector<16x1xf32>
    %317 = vector.broadcast %316 : vector<16x1xf32> to vector<16x32xf32>
    %318 = arith.subf %310, %317 : vector<16x32xf32>
    %319 = arith.mulf %318, %318 : vector<16x32xf32>
    %cst_112 = arith.constant dense<0.000000e+00> : vector<16xf32>
    %320 = vector.multi_reduction <add>, %319, %cst_112 [1] : vector<16x32xf32> to vector<16xf32>
    %321 = vector.shape_cast %320 : vector<16xf32> to vector<16x1xf32>
    %cst_113 = arith.constant 3.200000e+01 : f32
    %322 = vector.broadcast %cst_113 : f32 to vector<16x1xf32>
    %323 = arith.divf %321, %322 : vector<16x1xf32>
    %cst_114 = arith.constant 9.99999974E-6 : f32
    %324 = vector.broadcast %cst_114 : f32 to vector<16x1xf32>
    %325 = arith.addf %323, %324 : vector<16x1xf32>
    %326 = math.rsqrt %325 : vector<16x1xf32>
    %327 = vector.broadcast %326 : vector<16x1xf32> to vector<16x32xf32>
    %328 = arith.mulf %318, %327 : vector<16x32xf32>
    %329 = vector.broadcast %311 : vector<1x32xf32> to vector<16x32xf32>
    %330 = arith.mulf %328, %329 : vector<16x32xf32>
    %331 = vector.broadcast %312 : vector<1x32xf32> to vector<16x32xf32>
    %332 = arith.addf %330, %331 : vector<16x32xf32>
    %c0_115 = arith.constant 0 : index
    %c0_116 = arith.constant 0 : index
    %c0_117 = arith.constant 0 : index
    %333 = vector.load %arg23[%c0_115, %c0_116, %c0_117] : memref<1x16x32xf32, #tpu.memory_space<vmem>>, vector<1x16x32xf32>
    %334 = vector.shape_cast %333 : vector<1x16x32xf32> to vector<16x32xf32>
    %335 = vector.shape_cast %332 : vector<16x32xf32> to vector<1x16x32xf32>
    tpu.vector_store %arg23[%c0_115, %c0_116, %c0_117], %335 {strides = array<i32>} : memref<1x16x32xf32, #tpu.memory_space<vmem>>, vector<1x16x32xf32>,
    return
  }
  func.func @transform_0(%arg0: i32) -> (i32, i32, i32) {
    %c0_i32 = arith.constant 0 : i32
    %c0_i32_0 = arith.constant 0 : i32
    %c0_i32_1 = arith.constant 0 : i32
    return %arg0, %c0_i32, %c0_i32_0 : i32, i32, i32
  }
  func.func @transform_1(%arg0: i32) -> (i32, i32, i32) {
    %c0_i32 = arith.constant 0 : i32
    %c0_i32_0 = arith.constant 0 : i32
    %c0_i32_1 = arith.constant 0 : i32
    return %arg0, %c0_i32, %c0_i32_0 : i32, i32, i32
  }
  func.func @transform_2(%arg0: i32) -> (i32, i32) {
    %c0_i32 = arith.constant 0 : i32
    %c0_i32_0 = arith.constant 0 : i32
    %c0_i32_1 = arith.constant 0 : i32
    return %c0_i32, %c0_i32_0 : i32, i32
  }
  func.func @transform_3(%arg0: i32) -> (i32, i32) {
    %c0_i32 = arith.constant 0 : i32
    %c0_i32_0 = arith.constant 0 : i32
    %c0_i32_1 = arith.constant 0 : i32
    return %c0_i32, %c0_i32_0 : i32, i32
  }
  func.func @transform_4(%arg0: i32) -> (i32, i32) {
    %c0_i32 = arith.constant 0 : i32
    %c0_i32_0 = arith.constant 0 : i32
    %c0_i32_1 = arith.constant 0 : i32
    return %c0_i32, %c0_i32_0 : i32, i32
  }
  func.func @transform_5(%arg0: i32) -> (i32, i32) {
    %c0_i32 = arith.constant 0 : i32
    %c0_i32_0 = arith.constant 0 : i32
    %c0_i32_1 = arith.constant 0 : i32
    return %c0_i32, %c0_i32_0 : i32, i32
  }
  func.func @transform_6(%arg0: i32) -> (i32, i32) {
    %c0_i32 = arith.constant 0 : i32
    %c0_i32_0 = arith.constant 0 : i32
    %c0_i32_1 = arith.constant 0 : i32
    return %c0_i32, %c0_i32_0 : i32, i32
  }
  func.func @transform_7(%arg0: i32) -> (i32, i32) {
    %c0_i32 = arith.constant 0 : i32
    %c0_i32_0 = arith.constant 0 : i32
    %c0_i32_1 = arith.constant 0 : i32
    return %c0_i32, %c0_i32_0 : i32, i32
  }
  func.func @transform_8(%arg0: i32) -> (i32, i32) {
    %c0_i32 = arith.constant 0 : i32
    %c0_i32_0 = arith.constant 0 : i32
    %c0_i32_1 = arith.constant 0 : i32
    return %c0_i32, %c0_i32_0 : i32, i32
  }
  func.func @transform_9(%arg0: i32) -> (i32, i32) {
    %c0_i32 = arith.constant 0 : i32
    %c0_i32_0 = arith.constant 0 : i32
    %c0_i32_1 = arith.constant 0 : i32
    return %c0_i32, %c0_i32_0 : i32, i32
  }
  func.func @transform_10(%arg0: i32) -> (i32, i32) {
    %c0_i32 = arith.constant 0 : i32
    %c0_i32_0 = arith.constant 0 : i32
    %c0_i32_1 = arith.constant 0 : i32
    return %c0_i32, %c0_i32_0 : i32, i32
  }
  func.func @transform_11(%arg0: i32) -> (i32, i32) {
    %c0_i32 = arith.constant 0 : i32
    %c0_i32_0 = arith.constant 0 : i32
    %c0_i32_1 = arith.constant 0 : i32
    return %c0_i32, %c0_i32_0 : i32, i32
  }
  func.func @transform_12(%arg0: i32) -> (i32, i32) {
    %c0_i32 = arith.constant 0 : i32
    %c0_i32_0 = arith.constant 0 : i32
    %c0_i32_1 = arith.constant 0 : i32
    return %c0_i32, %c0_i32_0 : i32, i32
  }
  func.func @transform_13(%arg0: i32) -> (i32, i32) {
    %c0_i32 = arith.constant 0 : i32
    %c0_i32_0 = arith.constant 0 : i32
    %c0_i32_1 = arith.constant 0 : i32
    return %c0_i32, %c0_i32_0 : i32, i32
  }
  func.func @transform_14(%arg0: i32) -> (i32, i32) {
    %c0_i32 = arith.constant 0 : i32
    %c0_i32_0 = arith.constant 0 : i32
    %c0_i32_1 = arith.constant 0 : i32
    return %c0_i32, %c0_i32_0 : i32, i32
  }
  func.func @transform_15(%arg0: i32) -> (i32, i32) {
    %c0_i32 = arith.constant 0 : i32
    %c0_i32_0 = arith.constant 0 : i32
    %c0_i32_1 = arith.constant 0 : i32
    return %c0_i32, %c0_i32_0 : i32, i32
  }
  func.func @transform_16(%arg0: i32) -> (i32, i32) {
    %c0_i32 = arith.constant 0 : i32
    %c0_i32_0 = arith.constant 0 : i32
    %c0_i32_1 = arith.constant 0 : i32
    return %c0_i32, %c0_i32_0 : i32, i32
  }
  func.func @transform_17(%arg0: i32) -> (i32, i32) {
    %c0_i32 = arith.constant 0 : i32
    %c0_i32_0 = arith.constant 0 : i32
    %c0_i32_1 = arith.constant 0 : i32
    return %c0_i32, %c0_i32_0 : i32, i32
  }
  func.func @transform_18(%arg0: i32) -> (i32, i32) {
    %c0_i32 = arith.constant 0 : i32
    %c0_i32_0 = arith.constant 0 : i32
    %c0_i32_1 = arith.constant 0 : i32
    return %c0_i32, %c0_i32_0 : i32, i32
  }
  func.func @transform_19(%arg0: i32) -> (i32, i32) {
    %c0_i32 = arith.constant 0 : i32
    %c0_i32_0 = arith.constant 0 : i32
    %c0_i32_1 = arith.constant 0 : i32
    return %c0_i32, %c0_i32_0 : i32, i32
  }
  func.func @transform_20(%arg0: i32) -> (i32, i32) {
    %c0_i32 = arith.constant 0 : i32
    %c0_i32_0 = arith.constant 0 : i32
    %c0_i32_1 = arith.constant 0 : i32
    return %c0_i32, %c0_i32_0 : i32, i32
  }
  func.func @transform_21(%arg0: i32) -> (i32, i32) {
    %c0_i32 = arith.constant 0 : i32
    %c0_i32_0 = arith.constant 0 : i32
    %c0_i32_1 = arith.constant 0 : i32
    return %c0_i32, %c0_i32_0 : i32, i32
  }
  func.func @transform_22(%arg0: i32) -> (i32, i32, i32) {
    %c0_i32 = arith.constant 0 : i32
    %c0_i32_0 = arith.constant 0 : i32
    %c0_i32_1 = arith.constant 0 : i32
    return %arg0, %c0_i32, %c0_i32_0 : i32, i32, i32
  }
}

module attributes {stable_mosaic.version = 11 : i64} {
  func.func @_head_kernel(%arg0: i32, %arg1: memref<1x16x32xf32, #tpu.memory_space<vmem>>, %arg2: memref<32x2xf32, #tpu.memory_space<vmem>>, %arg3: memref<1x2xf32, #tpu.memory_space<vmem>>, %arg4: memref<1x16x2xf32, #tpu.memory_space<vmem>>) attributes {dimension_semantics = [#tpu.dimension_semantics<parallel>], iteration_bounds = array<i64: 2>, scalar_prefetch = 0 : i64, scratch_operands = 0 : i64, tpu.core_type = #tpu.core_type<tc>, window_params = [{transform_indices = @transform_0, window_bounds = array<i64: 1, 16, 32>}, {pipeline_mode = #tpu.pipeline_mode<synchronous>, transform_indices = @transform_1, window_bounds = array<i64: 32, 2>}, {pipeline_mode = #tpu.pipeline_mode<synchronous>, transform_indices = @transform_2, window_bounds = array<i64: 1, 2>}, {transform_indices = @transform_3, window_bounds = array<i64: 1, 16, 2>}]} {
    %c0 = arith.constant 0 : index
    %c0_0 = arith.constant 0 : index
    %c0_1 = arith.constant 0 : index
    %0 = vector.load %arg1[%c0, %c0_0, %c0_1] : memref<1x16x32xf32, #tpu.memory_space<vmem>>, vector<1x16x32xf32>
    %1 = vector.shape_cast %0 : vector<1x16x32xf32> to vector<16x32xf32>
    %c0_2 = arith.constant 0 : index
    %c0_3 = arith.constant 0 : index
    %2 = vector.load %arg2[%c0_2, %c0_3] : memref<32x2xf32, #tpu.memory_space<vmem>>, vector<32x2xf32>
    %3 = arith.truncf %1 : vector<16x32xf32> to vector<16x32xbf16>
    %4 = arith.truncf %2 : vector<32x2xf32> to vector<32x2xbf16>
    %cst = arith.constant dense<0.000000e+00> : vector<16x2xf32>
    %5 = tpu.matmul %3, %4, %cst {dimension_numbers = #tpu.dot_dimension_numbers<[1], [0], [0], [1], [0, 0, 1, 1], [], []>} : vector<16x32xbf16>, vector<32x2xbf16>, vector<16x2xf32> -> vector<16x2xf32>
    %c0_4 = arith.constant 0 : index
    %c0_5 = arith.constant 0 : index
    %6 = vector.load %arg3[%c0_4, %c0_5] : memref<1x2xf32, #tpu.memory_space<vmem>>, vector<1x2xf32>
    %7 = vector.broadcast %6 : vector<1x2xf32> to vector<16x2xf32>
    %8 = arith.addf %5, %7 : vector<16x2xf32>
    %9 = math.tanh %8 : vector<16x2xf32>
    %c0_6 = arith.constant 0 : index
    %c0_7 = arith.constant 0 : index
    %c0_8 = arith.constant 0 : index
    %10 = vector.load %arg4[%c0_6, %c0_7, %c0_8] : memref<1x16x2xf32, #tpu.memory_space<vmem>>, vector<1x16x2xf32>
    %11 = vector.shape_cast %10 : vector<1x16x2xf32> to vector<16x2xf32>
    %12 = vector.shape_cast %9 : vector<16x2xf32> to vector<1x16x2xf32>
    tpu.vector_store %arg4[%c0_6, %c0_7, %c0_8], %12 {strides = array<i32>} : memref<1x16x2xf32, #tpu.memory_space<vmem>>, vector<1x16x2xf32>,
    return
  }
  func.func @transform_0(%arg0: i32) -> (i32, i32, i32) {
    %c0_i32 = arith.constant 0 : i32
    %c0_i32_0 = arith.constant 0 : i32
    %c0_i32_1 = arith.constant 0 : i32
    return %arg0, %c0_i32, %c0_i32_0 : i32, i32, i32
  }
  func.func @transform_1(%arg0: i32) -> (i32, i32) {
    %c0_i32 = arith.constant 0 : i32
    %c0_i32_0 = arith.constant 0 : i32
    %c0_i32_1 = arith.constant 0 : i32
    return %c0_i32, %c0_i32_0 : i32, i32
  }
  func.func @transform_2(%arg0: i32) -> (i32, i32) {
    %c0_i32 = arith.constant 0 : i32
    %c0_i32_0 = arith.constant 0 : i32
    %c0_i32_1 = arith.constant 0 : i32
    return %c0_i32, %c0_i32_0 : i32, i32
  }
  func.func @transform_3(%arg0: i32) -> (i32, i32, i32) {
    %c0_i32 = arith.constant 0 : i32
    %c0_i32_0 = arith.constant 0 : i32
    %c0_i32_1 = arith.constant 0 : i32
    return %arg0, %c0_i32, %c0_i32_0 : i32, i32, i32
  }
}

</mosaic_0001>

<llo_original>
// kernel: vit_forward.7
$region0: #{vit_forward.7}
  #allocation0 [shape = 'u32[]', space=smem, size = 0x4, offset = 0x4, fixed_abs, tag = 'smem constant byte address 0x4 - core index']
  #allocation1 [shape = 'u32[72,128]{1,0:T(1,128)}', space=vmem, size = 0x9000, scoped, tag = 'internal scratch']
  %s0 = inlined_call_operand.vmem [shape: f32[2,16,16], index: 0, kind: input, shape index: {}]
  %s1 = inlined_call_operand.vmem [shape: f32[16,32], index: 1, kind: input, shape index: {}]
  %s2 = inlined_call_operand.vmem [shape: f32[1,32], index: 2, kind: input, shape index: {}]
  %s3 = inlined_call_operand.vmem [shape: f32[1,16,32], index: 3, kind: input, shape index: {}]
  %s4 = inlined_call_operand.vmem [shape: f32[2,16,32], index: 4, kind: output, shape index: {}]
  %s5 = sld [smem:[#allocation0]]
  $region49: #{vit_forward.7} parent=0
    _
  %s7 = ssub.s32 1, %s5
  %s8 = scalar_select 0, %s7, %s5
  loop: start=0, step=1, limit=4
  $region2: #{vit_forward.7} parent=0 // loop_pre_header
    _
  $region3: #{vit_forward.7} parent=0 // loop_header
    %s10 = sphi 0, %s14
    %p11 = scmp.ge.s32.totalorder %s10, 4
    %s20 = sphi 0, %s22
    %s23 = sphi 0, %s20
    %s24 = sphi 0, %s23
    %s40 = sphi 0, %s24
    %s44 = sphi 0, %s44
    %s46 = sphi 0, %s44
    %s47 = sphi 0, %s46
    %s61 = sphi 0, %s47
    %s65 = sphi 0, %s65
    %s67 = sphi 0, %s65
    %s68 = sphi 0, %s67
    %s82 = sphi 0, %s68
    %s86 = sphi 0, %s86
    %s88 = sphi 0, %s86
    %s89 = sphi 0, %s88
    %s103 = sphi 0, %s89
    %s109 = sphi 0, %s111
    %s112 = sphi 0, %s109
    %s113 = sphi 0, %s112
    %s129 = sphi 0, %s113
  $region4: #{vit_forward.7} parent=0 // loop_header_branch
    %13 = sbr.rel (%p11) target = $region8
  $region5: #{vit_forward.7} parent=0 // loop_body
    %s15 = ssub.s32 %s10, 1
    %s16 = ssub.s32 %s10, 2
    %s17 = sadd.s32 %s10, 1
    %s18 = ssub.s32 %s10, %s17
    %p19 = scmp.eq.s32.totalorder %s18, 0
    %s21 = sadd.s32 %s20, 1
    %s22 = scalar_select %p19, %s20, %s21
    %p25 = pneg %p19
    %p26 = scmp.eq.s32.totalorder %s10, 1
    %p27 = por %p25, %p26
    %p28 = scmp.ne.s32.totalorder %s20, %s23
    %p29 = scmp.eq.s32.totalorder %s10, 0
    %p30 = por %p28, %p29
    %p31 = scmp.ne.s32.totalorder %s20, %s23
    %p32 = scmp.eq.s32.totalorder %s15, 1
    %p33 = por %p31, %p32
    %p34 = scmp.ne.s32.totalorder %s23, %s24
    %p35 = scmp.eq.s32.totalorder %s15, 0
    %p36 = por %p34, %p35
    %p37 = scmp.ne.s32.totalorder %s23, %s24
    %p38 = scmp.eq.s32.totalorder %s16, 1
    %p39 = por %p37, %p38
    %p41 = scmp.ne.s32.totalorder %s24, %s40
    %p42 = scmp.eq.s32.totalorder %s16, 0
    %p43 = por %p41, %p42
    %s45 = sadd.s32 %s44, 1
    %p48 = scmp.eq.s32.totalorder %s10, 1
    %p49 = scmp.ne.s32.totalorder %s44, %s46
    %p50 = scmp.eq.s32.totalorder %s10, 0
    %p51 = por %p49, %p50
    %p52 = scmp.ne.s32.totalorder %s44, %s46
    %p53 = scmp.eq.s32.totalorder %s15, 1
    %p54 = por %p52, %p53
    %p55 = scmp.ne.s32.totalorder %s46, %s47
    %p56 = scmp.eq.s32.totalorder %s15, 0
    %p57 = por %p55, %p56
    %p58 = scmp.ne.s32.totalorder %s46, %s47
    %p59 = scmp.eq.s32.totalorder %s16, 1
    %p60 = por %p58, %p59
    %p62 = scmp.ne.s32.totalorder %s47, %s61
    %p63 = scmp.eq.s32.totalorder %s16, 0
    %p64 = por %p62, %p63
    %s66 = sadd.s32 %s65, 1
    %p69 = scmp.eq.s32.totalorder %s10, 1
    %p70 = scmp.ne.s32.totalorder %s65, %s67
    %p71 = scmp.eq.s32.totalorder %s10, 0
    %p72 = por %p70, %p71
    %p73 = scmp.ne.s32.totalorder %s65, %s67
    %p74 = scmp.eq.s32.totalorder %s15, 1
    %p75 = por %p73, %p74
    %p76 = scmp.ne.s32.totalorder %s67, %s68
    %p77 = scmp.eq.s32.totalorder %s15, 0
    %p78 = por %p76, %p77
    %p79 = scmp.ne.s32.totalorder %s67, %s68
    %p80 = scmp.eq.s32.totalorder %s16, 1
    %p81 = por %p79, %p80
    %p83 = scmp.ne.s32.totalorder %s68, %s82
    %p84 = scmp.eq.s32.totalorder %s16, 0
    %p85 = por %p83, %p84
    %s87 = sadd.s32 %s86, 1
    %p90 = scmp.eq.s32.totalorder %s10, 1
    %p91 = scmp.ne.s32.totalorder %s86, %s88
    %p92 = scmp.eq.s32.totalorder %s10, 0
    %p93 = por %p91, %p92
    %p94 = scmp.ne.s32.totalorder %s86, %s88
    %p95 = scmp.eq.s32.totalorder %s15, 1
    %p96 = por %p94, %p95
    %p97 = scmp.ne.s32.totalorder %s88, %s89
    %p98 = scmp.eq.s32.totalorder %s15, 0
    %p99 = por %p97, %p98
    %p100 = scmp.ne.s32.totalorder %s88, %s89
    %p101 = scmp.eq.s32.totalorder %s16, 1
    %p102 = por %p100, %p101
    %p104 = scmp.ne.s32.totalorder %s89, %s103
    %p105 = scmp.eq.s32.totalorder %s16, 0
    %p106 = por %p104, %p105
    %s107 = ssub.s32 %s10, %s17
    %p108 = scmp.eq.s32.totalorder %s107, 0
    %s110 = sadd.s32 %s109, 1
    %s111 = scalar_select %p108, %s109, %s110
    %p114 = pneg %p108
    %p115 = scmp.eq.s32.totalorder %s10, 1
    %p116 = por %p114, %p115
    %p117 = scmp.ne.s32.totalorder %s109, %s112
    %p118 = scmp.eq.s32.totalorder %s10, 0
    %p119 = por %p117, %p118
    %p120 = scmp.ne.s32.totalorder %s109, %s112
    %p121 = scmp.eq.s32.totalorder %s15, 1
    %p122 = por %p120, %p121
    %p123 = scmp.ne.s32.totalorder %s112, %s113
    %p124 = scmp.eq.s32.totalorder %s15, 0
    %p125 = por %p123, %p124
    %p126 = scmp.ne.s32.totalorder %s112, %s113
    %p127 = scmp.eq.s32.totalorder %s16, 1
    %p128 = por %p126, %p127
    %p130 = scmp.ne.s32.totalorder %s113, %s129
    %p131 = scmp.eq.s32.totalorder %s16, 0
    %p132 = por %p130, %p131
    %p133 = scmp.le.s32.totalorder 1, %s10
    %p134 = scmp.lt.s32.totalorder %s10, 3
    %p135 = pnand %p133, %p134
    %p136 = pneg %p135
    // Predicated region
    $region9: #{vit_forward.7} parent=5 // pred_check
      _
    $region10: #{vit_forward.7} parent=5 // pred_check_branch
      %138 = sbr.rel (%p135) target = $region12
    $region11: #{vit_forward.7} parent=5 // pred_region
      %s139 = ssub.s32 %s10, 1
      // Predicated region
      $region13: #{vit_forward.7} parent=11 // pred_check
        %p140 = pneg %p57
      $region14: #{vit_forward.7} parent=11 // pred_check_branch
        %142 = sbr.rel (%p140) target = $region16
      $region15: #{vit_forward.7} parent=11 // pred_region
        _
      $region16: #{vit_forward.7} parent=11 // pred_fallthru
        _
      // Predicated region
      $region17: #{vit_forward.7} parent=11 // pred_check
        %p143 = pneg %p78
      $region18: #{vit_forward.7} parent=11 // pred_check_branch
        %145 = sbr.rel (%p143) target = $region20
      $region19: #{vit_forward.7} parent=11 // pred_region
        _
      $region20: #{vit_forward.7} parent=11 // pred_fallthru
        _
      // Predicated region
      $region21: #{vit_forward.7} parent=11 // pred_check
        %p146 = pneg %p99
      $region22: #{vit_forward.7} parent=11 // pred_check_branch
        %148 = sbr.rel (%p146) target = $region24
      $region23: #{vit_forward.7} parent=11 // pred_region
        _
      $region24: #{vit_forward.7} parent=11 // pred_fallthru
        _
    $region12: #{vit_forward.7} parent=5 // pred_fallthru
      _
    %p149 = scmp.lt.s32.totalorder %s10, 2
    // Predicated region
    $region25: #{vit_forward.7} parent=5 // pred_check
      %p150 = pneg %p149
    $region26: #{vit_forward.7} parent=5 // pred_check_branch
      %152 = sbr.rel (%p150) target = $region28
    $region27: #{vit_forward.7} parent=5 // pred_region
      // Predicated region
      $region29: #{vit_forward.7} parent=27 // pred_check
        %p153 = pneg %p30
      $region30: #{vit_forward.7} parent=27 // pred_check_branch
        %155 = sbr.rel (%p153) target = $region32
      $region31: #{vit_forward.7} parent=27 // pred_region
        %p156 = scmp.lt.s32.totalorder %s10, 1
        %s157 = scalar_select %p156, %s10, 1
        %s158 = smul.addr %s157, 2
        %s159 = smul.addr %s158, 8
        %s160 = scalar_lea.vmem %s0, %s159
      $region32: #{vit_forward.7} parent=27 // pred_fallthru
        _
    $region28: #{vit_forward.7} parent=5 // pred_fallthru
      _
    %p161 = scmp.le.s32.totalorder 1, %s10
    %p162 = scmp.lt.s32.totalorder %s10, 3
    %p163 = pnand %p161, %p162
    %p164 = pneg %p163
    // Predicated region
    $region33: #{vit_forward.7} parent=5 // pred_check
      _
    $region34: #{vit_forward.7} parent=5 // pred_check_branch
      %166 = sbr.rel (%p163) target = $region36
    $region35: #{vit_forward.7} parent=5 // pred_region
      %s167 = ssub.s32 %s10, 1
      %p168 = scmp.lt.s32.totalorder %s15, 1
      %s169 = scalar_select %p168, %s15, 1
      %s170 = smul.addr %s169, 2
      %s171 = smul.addr %s170, 8
      %s172 = scalar_lea.vmem %s0, %s171
      %p173 = pneg %p36
      %p174 = pneg %p33
      %p175 = pneg %p57
      %p176 = pneg %p54
      %p177 = pneg %p78
      %p178 = pneg %p75
      %p179 = pneg %p99
      %p180 = pneg %p96
      %p181 = pneg %p125
      %p182 = pneg %p122
      %p183 = scmp.lt.s32.totalorder %s15, 1
      %s184 = scalar_select %p183, %s15, 1
      %s185 = smul.addr %s184, 2
      %s186 = smul.addr %s185, 8
      %s187 = scalar_lea.vmem %s4, %s186
      %p188 = scmp.lt.s32.totalorder %s15, 1
      %s189 = scalar_select %p188, %s15, 1
      %s190 = smul.addr %s189, 2
      %s191 = smul.addr %s190, 8
      %s192 = scalar_lea.vmem %s0, %s191
      %p193 = scmp.lt.s32.totalorder %s15, 1
      %s194 = scalar_select %p193, %s15, 1
      %s195 = smul.addr %s194, 2
      %s196 = smul.addr %s195, 8
      %s197 = scalar_lea.vmem %s4, %s196
      %v199 = vld [vmem:[%s192] sm:$0xff]
      %v200 = vld [vmem:[%s192 + $0x8] sm:$0xff]
      %v201 = vld [vmem:[%s1] sm:$0xff]
      %v202 = vld [vmem:[%s1 + $0x8] sm:$0xff]
      %v203 = vpack.c.bf16 %v200, %v199
      %v204 = vpack.c.bf16 %v202, %v201
      %v205 = vld [vmem:[%s2] sm:$0x1]
      %v207 = vperm.slane %v205, 0
      %vm209 = vcmask 130048
      %v211 = vsel %vm209, %v203, 0
      %213 = vmatpush.bf16.msra.mxu0 0
      %214 = vmatpush.bf16.msra.mxu0 0
      %215 = vmatpush.bf16.msra.mxu0 0
      %216 = vmatpush.bf16.msra.mxu0 0
      %217 = vmatpush.bf16.msra.mxu0 0
      %218 = vmatpush.bf16.msra.mxu0 0
      %219 = vmatpush.bf16.msra.mxu0 0
      %220 = vmatpush.bf16.msra.mxu0 %v204
      %221 = vmatmul.bf16.gmra.mxu0 %v211
      %v222 = vpop.f32.mrf.mxu0
      %v223 = vadd.f32 %v207, %v222
      %v224 = vpop.f32.mrf.mxu0
      %v225 = vadd.f32 %v207, %v224
      %226 = vdwg.mxu0
      %v227 = vld [vmem:[%s3] sm:$0xff]
      %v228 = vld [vmem:[%s3 + $0x8] sm:$0xff]
      %v229 = vadd.f32 %v223, %v227
      %v230 = vadd.f32 %v225, %v228
      %vm231 = vcmask 261120
      %232 = vst.msk [vmem:[%s197] sm:$0xff] %vm231, %v229
      %233 = vst.msk [vmem:[%s197 + $0x8] sm:$0xff] %vm231, %v230
      %p234 = scmp.lt.s32.totalorder %s15, 1
      %s235 = scalar_select %p234, %s15, 1
      %s236 = smul.addr %s235, 2
      %s237 = smul.addr %s236, 8
      %s238 = scalar_lea.vmem %s4, %s237
      // Predicated region
      $region37: #{vit_forward.7} parent=35 // pred_check
        %p239 = pneg %p122
      $region38: #{vit_forward.7} parent=35 // pred_check_branch
        %241 = sbr.rel (%p239) target = $region40
      $region39: #{vit_forward.7} parent=35 // pred_region
        _
      $region40: #{vit_forward.7} parent=35 // pred_fallthru
        _
    $region36: #{vit_forward.7} parent=5 // pred_fallthru
      _
    %p242 = scmp.le.s32.totalorder 2, %s10
    // Predicated region
    $region41: #{vit_forward.7} parent=5 // pred_check
      %p243 = pneg %p242
    $region42: #{vit_forward.7} parent=5 // pred_check_branch
      %245 = sbr.rel (%p243) target = $region44
    $region43: #{vit_forward.7} parent=5 // pred_region
      %s246 = ssub.s32 %s10, 2
      // Predicated region
      $region45: #{vit_forward.7} parent=43 // pred_check
        %p247 = pneg %p128
      $region46: #{vit_forward.7} parent=43 // pred_check_branch
        %249 = sbr.rel (%p247) target = $region48
      $region47: #{vit_forward.7} parent=43 // pred_region
        %p250 = scmp.lt.s32.totalorder %s16, 1
        %s251 = scalar_select %p250, %s16, 1
        %s252 = smul.addr %s251, 2
        %s253 = smul.addr %s252, 8
        %s254 = scalar_lea.vmem %s4, %s253
      $region48: #{vit_forward.7} parent=43 // pred_fallthru
        _
    $region44: #{vit_forward.7} parent=5 // pred_fallthru
      _
  $region6: #{vit_forward.7} parent=0 // loop_footer
    %s14 = sadd.s32 1, %s10
  $region7: #{vit_forward.7} parent=0 // loop_footer_branch
    %9 = sbr.rel target = $region3
  $region8: #{vit_forward.7} parent=0 // loop_exit
    _

// kernel: vit_forward.13
$region0: #{vit_forward.13}
  #allocation0 [shape = 'u32[]', space=smem, size = 0x4, offset = 0x4, fixed_abs, tag = 'smem constant byte address 0x4 - core index']
  #allocation1 [shape = 'u32[72,128]{1,0:T(1,128)}', space=vmem, size = 0x9000, scoped, tag = 'internal scratch']
  %s0 = inlined_call_operand.vmem [shape: f32[2,16,32], index: 0, kind: input, shape index: {}]
  %s1 = inlined_call_operand.vmem [shape: f32[32,2], index: 1, kind: input, shape index: {}]
  %s2 = inlined_call_operand.vmem [shape: f32[1,2], index: 2, kind: input, shape index: {}]
  %s3 = inlined_call_operand.vmem [shape: f32[2,16,2], index: 3, kind: output, shape index: {}]
  %s4 = sld [smem:[#allocation0]]
  $region45: #{vit_forward.13} parent=0
    _
  %s6 = ssub.s32 1, %s4
  %s7 = scalar_select 0, %s6, %s4
  loop: start=0, step=1, limit=4
  $region2: #{vit_forward.13} parent=0 // loop_pre_header
    _
  $region3: #{vit_forward.13} parent=0 // loop_header
    %s9 = sphi 0, %s13
    %p10 = scmp.ge.s32.totalorder %s9, 4
    %s19 = sphi 0, %s21
    %s22 = sphi 0, %s19
    %s23 = sphi 0, %s22
    %s39 = sphi 0, %s23
    %s43 = sphi 0, %s43
    %s45 = sphi 0, %s43
    %s46 = sphi 0, %s45
    %s60 = sphi 0, %s46
    %s64 = sphi 0, %s64
    %s66 = sphi 0, %s64
    %s67 = sphi 0, %s66
    %s81 = sphi 0, %s67
    %s87 = sphi 0, %s89
    %s90 = sphi 0, %s87
    %s91 = sphi 0, %s90
    %s107 = sphi 0, %s91
  $region4: #{vit_forward.13} parent=0 // loop_header_branch
    %12 = sbr.rel (%p10) target = $region8
  $region5: #{vit_forward.13} parent=0 // loop_body
    %s14 = ssub.s32 %s9, 1
    %s15 = ssub.s32 %s9, 2
    %s16 = sadd.s32 %s9, 1
    %s17 = ssub.s32 %s9, %s16
    %p18 = scmp.eq.s32.totalorder %s17, 0
    %s20 = sadd.s32 %s19, 1
    %s21 = scalar_select %p18, %s19, %s20
    %p24 = pneg %p18
    %p25 = scmp.eq.s32.totalorder %s9, 1
    %p26 = por %p24, %p25
    %p27 = scmp.ne.s32.totalorder %s19, %s22
    %p28 = scmp.eq.s32.totalorder %s9, 0
    %p29 = por %p27, %p28
    %p30 = scmp.ne.s32.totalorder %s19, %s22
    %p31 = scmp.eq.s32.totalorder %s14, 1
    %p32 = por %p30, %p31
    %p33 = scmp.ne.s32.totalorder %s22, %s23
    %p34 = scmp.eq.s32.totalorder %s14, 0
    %p35 = por %p33, %p34
    %p36 = scmp.ne.s32.totalorder %s22, %s23
    %p37 = scmp.eq.s32.totalorder %s15, 1
    %p38 = por %p36, %p37
    %p40 = scmp.ne.s32.totalorder %s23, %s39
    %p41 = scmp.eq.s32.totalorder %s15, 0
    %p42 = por %p40, %p41
    %s44 = sadd.s32 %s43, 1
    %p47 = scmp.eq.s32.totalorder %s9, 1
    %p48 = scmp.ne.s32.totalorder %s43, %s45
    %p49 = scmp.eq.s32.totalorder %s9, 0
    %p50 = por %p48, %p49
    %p51 = scmp.ne.s32.totalorder %s43, %s45
    %p52 = scmp.eq.s32.totalorder %s14, 1
    %p53 = por %p51, %p52
    %p54 = scmp.ne.s32.totalorder %s45, %s46
    %p55 = scmp.eq.s32.totalorder %s14, 0
    %p56 = por %p54, %p55
    %p57 = scmp.ne.s32.totalorder %s45, %s46
    %p58 = scmp.eq.s32.totalorder %s15, 1
    %p59 = por %p57, %p58
    %p61 = scmp.ne.s32.totalorder %s46, %s60
    %p62 = scmp.eq.s32.totalorder %s15, 0
    %p63 = por %p61, %p62
    %s65 = sadd.s32 %s64, 1
    %p68 = scmp.eq.s32.totalorder %s9, 1
    %p69 = scmp.ne.s32.totalorder %s64, %s66
    %p70 = scmp.eq.s32.totalorder %s9, 0
    %p71 = por %p69, %p70
    %p72 = scmp.ne.s32.totalorder %s64, %s66
    %p73 = scmp.eq.s32.totalorder %s14, 1
    %p74 = por %p72, %p73
    %p75 = scmp.ne.s32.totalorder %s66, %s67
    %p76 = scmp.eq.s32.totalorder %s14, 0
    %p77 = por %p75, %p76
    %p78 = scmp.ne.s32.totalorder %s66, %s67
    %p79 = scmp.eq.s32.totalorder %s15, 1
    %p80 = por %p78, %p79
    %p82 = scmp.ne.s32.totalorder %s67, %s81
    %p83 = scmp.eq.s32.totalorder %s15, 0
    %p84 = por %p82, %p83
    %s85 = ssub.s32 %s9, %s16
    %p86 = scmp.eq.s32.totalorder %s85, 0
    %s88 = sadd.s32 %s87, 1
    %s89 = scalar_select %p86, %s87, %s88
    %p92 = pneg %p86
    %p93 = scmp.eq.s32.totalorder %s9, 1
    %p94 = por %p92, %p93
    %p95 = scmp.ne.s32.totalorder %s87, %s90
    %p96 = scmp.eq.s32.totalorder %s9, 0
    %p97 = por %p95, %p96
    %p98 = scmp.ne.s32.totalorder %s87, %s90
    %p99 = scmp.eq.s32.totalorder %s14, 1
    %p100 = por %p98, %p99
    %p101 = scmp.ne.s32.totalorder %s90, %s91
    %p102 = scmp.eq.s32.totalorder %s14, 0
    %p103 = por %p101, %p102
    %p104 = scmp.ne.s32.totalorder %s90, %s91
    %p105 = scmp.eq.s32.totalorder %s15, 1
    %p106 = por %p104, %p105
    %p108 = scmp.ne.s32.totalorder %s91, %s107
    %p109 = scmp.eq.s32.totalorder %s15, 0
    %p110 = por %p108, %p109
    %p111 = scmp.le.s32.totalorder 1, %s9
    %p112 = scmp.lt.s32.totalorder %s9, 3
    %p113 = pnand %p111, %p112
    %p114 = pneg %p113
    // Predicated region
    $region9: #{vit_forward.13} parent=5 // pred_check
      _
    $region10: #{vit_forward.13} parent=5 // pred_check_branch
      %116 = sbr.rel (%p113) target = $region12
    $region11: #{vit_forward.13} parent=5 // pred_region
      %s117 = ssub.s32 %s9, 1
      // Predicated region
      $region13: #{vit_forward.13} parent=11 // pred_check
        %p118 = pneg %p56
      $region14: #{vit_forward.13} parent=11 // pred_check_branch
        %120 = sbr.rel (%p118) target = $region16
      $region15: #{vit_forward.13} parent=11 // pred_region
        _
      $region16: #{vit_forward.13} parent=11 // pred_fallthru
        _
      // Predicated region
      $region17: #{vit_forward.13} parent=11 // pred_check
        %p121 = pneg %p77
      $region18: #{vit_forward.13} parent=11 // pred_check_branch
        %123 = sbr.rel (%p121) target = $region20
      $region19: #{vit_forward.13} parent=11 // pred_region
        _
      $region20: #{vit_forward.13} parent=11 // pred_fallthru
        _
    $region12: #{vit_forward.13} parent=5 // pred_fallthru
      _
    %p124 = scmp.lt.s32.totalorder %s9, 2
    // Predicated region
    $region21: #{vit_forward.13} parent=5 // pred_check
      %p125 = pneg %p124
    $region22: #{vit_forward.13} parent=5 // pred_check_branch
      %127 = sbr.rel (%p125) target = $region24
    $region23: #{vit_forward.13} parent=5 // pred_region
      // Predicated region
      $region25: #{vit_forward.13} parent=23 // pred_check
        %p128 = pneg %p29
      $region26: #{vit_forward.13} parent=23 // pred_check_branch
        %130 = sbr.rel (%p128) target = $region28
      $region27: #{vit_forward.13} parent=23 // pred_region
        %p131 = scmp.lt.s32.totalorder %s9, 1
        %s132 = scalar_select %p131, %s9, 1
        %s133 = smul.addr %s132, 2
        %s134 = smul.addr %s133, 8
        %s135 = scalar_lea.vmem %s0, %s134
      $region28: #{vit_forward.13} parent=23 // pred_fallthru
        _
    $region24: #{vit_forward.13} parent=5 // pred_fallthru
      _
    %p136 = scmp.le.s32.totalorder 1, %s9
    %p137 = scmp.lt.s32.totalorder %s9, 3
    %p138 = pnand %p136, %p137
    %p139 = pneg %p138
    // Predicated region
    $region29: #{vit_forward.13} parent=5 // pred_check
      _
    $region30: #{vit_forward.13} parent=5 // pred_check_branch
      %141 = sbr.rel (%p138) target = $region32
    $region31: #{vit_forward.13} parent=5 // pred_region
      %s142 = ssub.s32 %s9, 1
      %p143 = scmp.lt.s32.totalorder %s14, 1
      %s144 = scalar_select %p143, %s14, 1
      %s145 = smul.addr %s144, 2
      %s146 = smul.addr %s145, 8
      %s147 = scalar_lea.vmem %s0, %s146
      %p148 = pneg %p35
      %p149 = pneg %p32
      %p150 = pneg %p56
      %p151 = pneg %p53
      %p152 = pneg %p77
      %p153 = pneg %p74
      %p154 = pneg %p103
      %p155 = pneg %p100
      %p156 = scmp.lt.s32.totalorder %s14, 1
      %s157 = scalar_select %p156, %s14, 1
      %s158 = smul.addr %s157, 2
      %s159 = smul.addr %s158, 8
      %s160 = scalar_lea.vmem %s3, %s159
      %p161 = scmp.lt.s32.totalorder %s14, 1
      %s162 = scalar_select %p161, %s14, 1
      %s163 = smul.addr %s162, 2
      %s164 = smul.addr %s163, 8
      %s165 = scalar_lea.vmem %s0, %s164
      %p166 = scmp.lt.s32.totalorder %s14, 1
      %s167 = scalar_select %p166, %s14, 1
      %s168 = smul.addr %s167, 2
      %s169 = smul.addr %s168, 8
      %s170 = scalar_lea.vmem %s3, %s169
      %v172 = vld [vmem:[%s165] sm:$0xff]
      %v173 = vld [vmem:[%s165 + $0x8] sm:$0xff]
      %v174 = vld [vmem:[%s1] sm:$0xff]
      %v175 = vld [vmem:[%s1 + $0x8] sm:$0xff]
      %v176 = vld [vmem:[%s1 + $0x10] sm:$0xff]
      %v177 = vld [vmem:[%s1 + $0x18] sm:$0xff]
      %v178 = vpack.c.bf16 %v173, %v172
      %v179 = vpack.c.bf16 %v175, %v174
      %v180 = vpack.c.bf16 %v177, %v176
      %v181 = vld [vmem:[%s2] sm:$0x1]
      %v183 = vperm.slane %v181, 0
      %vm185 = vcmask 261120
      %v187 = vsel %vm185, %v178, 0
      %189 = vmatpush.bf16.msra.mxu0 0
      %190 = vmatpush.bf16.msra.mxu0 0
      %191 = vmatpush.bf16.msra.mxu0 0
      %192 = vmatpush.bf16.msra.mxu0 0
      %193 = vmatpush.bf16.msra.mxu0 0
      %194 = vmatpush.bf16.msra.mxu0 0
      %195 = vmatpush.bf16.msra.mxu0 %v180
      %196 = vmatpush.bf16.msra.mxu0 %v179
      %197 = vmatmul.bf16.gmra.mxu0 %v187
      %v198 = vpop.f32.mrf.mxu0
      %v199 = vadd.f32 %v183, %v198
      %v200 = vpop.f32.mrf.mxu0
      %v201 = vadd.f32 %v183, %v200
      %202 = vdwg.mxu0
      %v203 = vtanh.pop %v199
      %v204 = vtanh.pop %v201
      %vm205 = vcmask 15360
      %206 = vst.msk [vmem:[%s170] sm:$0xff] %vm205, %v203
      %207 = vst.msk [vmem:[%s170 + $0x8] sm:$0xff] %vm205, %v204
      %p208 = scmp.lt.s32.totalorder %s14, 1
      %s209 = scalar_select %p208, %s14, 1
      %s210 = smul.addr %s209, 2
      %s211 = smul.addr %s210, 8
      %s212 = scalar_lea.vmem %s3, %s211
      // Predicated region
      $region33: #{vit_forward.13} parent=31 // pred_check
        %p213 = pneg %p100
      $region34: #{vit_forward.13} parent=31 // pred_check_branch
        %215 = sbr.rel (%p213) target = $region36
      $region35: #{vit_forward.13} parent=31 // pred_region
        _
      $region36: #{vit_forward.13} parent=31 // pred_fallthru
        _
    $region32: #{vit_forward.13} parent=5 // pred_fallthru
      _
    %p216 = scmp.le.s32.totalorder 2, %s9
    // Predicated region
    $region37: #{vit_forward.13} parent=5 // pred_check
      %p217 = pneg %p216
    $region38: #{vit_forward.13} parent=5 // pred_check_branch
      %219 = sbr.rel (%p217) target = $region40
    $region39: #{vit_forward.13} parent=5 // pred_region
      %s220 = ssub.s32 %s9, 2
      // Predicated region
      $region41: #{vit_forward.13} parent=39 // pred_check
        %p221 = pneg %p106
      $region42: #{vit_forward.13} parent=39 // pred_check_branch
        %223 = sbr.rel (%p221) target = $region44
      $region43: #{vit_forward.13} parent=39 // pred_region
        %p224 = scmp.lt.s32.totalorder %s15, 1
        %s225 = scalar_select %p224, %s15, 1
        %s226 = smul.addr %s225, 2
        %s227 = smul.addr %s226, 8
        %s228 = scalar_lea.vmem %s3, %s227
      $region44: #{vit_forward.13} parent=39 // pred_fallthru
        _
    $region40: #{vit_forward.13} parent=5 // pred_fallthru
      _
  $region6: #{vit_forward.13} parent=0 // loop_footer
    %s13 = sadd.s32 1, %s9
  $region7: #{vit_forward.13} parent=0 // loop_footer_branch
    %8 = sbr.rel target = $region3
  $region8: #{vit_forward.13} parent=0 // loop_exit
    _

// kernel: vit_forward.9
$region0: #{vit_forward.9}
  #allocation0 [shape = 'u32[]', space=smem, size = 0x4, offset = 0x4, fixed_abs, tag = 'smem constant byte address 0x4 - core index']
  #allocation1 [shape = 'u32[72,128]{1,0:T(1,128)}', space=vmem, size = 0x9000, scoped, tag = 'internal scratch']
  %s0 = inlined_call_operand.vmem [shape: f32[2,16,32], index: 0, kind: input, shape index: {}]
  %s1 = inlined_call_operand.vmem [shape: f32[32,96], index: 1, kind: input, shape index: {}]
  %s2 = inlined_call_operand.vmem [shape: f32[1,96], index: 2, kind: input, shape index: {}]
  %s3 = inlined_call_operand.vmem [shape: f32[32,32], index: 3, kind: input, shape index: {}]
  %s4 = inlined_call_operand.vmem [shape: f32[1,32], index: 4, kind: input, shape index: {}]
  %s5 = inlined_call_operand.vmem [shape: f32[1,32], index: 5, kind: input, shape index: {}]
  %s6 = inlined_call_operand.vmem [shape: f32[1,32], index: 6, kind: input, shape index: {}]
  %s7 = inlined_call_operand.vmem [shape: f32[32,2048], index: 7, kind: input, shape index: {}]
  %s8 = inlined_call_operand.vmem [shape: f32[1,2048], index: 8, kind: input, shape index: {}]
  %s9 = inlined_call_operand.vmem [shape: f32[2048,32], index: 9, kind: input, shape index: {}]
  %s10 = inlined_call_operand.vmem [shape: f32[1,32], index: 10, kind: input, shape index: {}]
  %s11 = inlined_call_operand.vmem [shape: f32[1,32], index: 11, kind: input, shape index: {}]
  %s12 = inlined_call_operand.vmem [shape: f32[1,32], index: 12, kind: input, shape index: {}]
  %s13 = inlined_call_operand.vmem [shape: f32[2,16,32], index: 13, kind: output, shape index: {}]
  %s14 = sld [smem:[#allocation0]]
  $region85: #{vit_forward.9} parent=0
    _
  %s16 = ssub.s32 1, %s14
  %s17 = scalar_select 0, %s16, %s14
  loop: start=0, step=1, limit=4
  $region2: #{vit_forward.9} parent=0 // loop_pre_header
    _
  $region3: #{vit_forward.9} parent=0 // loop_header
    %s19 = sphi 0, %s23
    %p20 = scmp.ge.s32.totalorder %s19, 4
    %s29 = sphi 0, %s31
    %s32 = sphi 0, %s29
    %s33 = sphi 0, %s32
    %s49 = sphi 0, %s33
    %s53 = sphi 0, %s53
    %s55 = sphi 0, %s53
    %s56 = sphi 0, %s55
    %s70 = sphi 0, %s56
    %s74 = sphi 0, %s74
    %s76 = sphi 0, %s74
    %s77 = sphi 0, %s76
    %s91 = sphi 0, %s77
    %s95 = sphi 0, %s95
    %s97 = sphi 0, %s95
    %s98 = sphi 0, %s97
    %s112 = sphi 0, %s98
    %s116 = sphi 0, %s116
    %s118 = sphi 0, %s116
    %s119 = sphi 0, %s118
    %s133 = sphi 0, %s119
    %s137 = sphi 0, %s137
    %s139 = sphi 0, %s137
    %s140 = sphi 0, %s139
    %s154 = sphi 0, %s140
    %s158 = sphi 0, %s158
    %s160 = sphi 0, %s158
    %s161 = sphi 0, %s160
    %s175 = sphi 0, %s161
    %s179 = sphi 0, %s179
    %s181 = sphi 0, %s179
    %s182 = sphi 0, %s181
    %s196 = sphi 0, %s182
    %s200 = sphi 0, %s200
    %s202 = sphi 0, %s200
    %s203 = sphi 0, %s202
    %s217 = sphi 0, %s203
    %s221 = sphi 0, %s221
    %s223 = sphi 0, %s221
    %s224 = sphi 0, %s223
    %s238 = sphi 0, %s224
    %s242 = sphi 0, %s242
    %s244 = sphi 0, %s242
    %s245 = sphi 0, %s244
    %s259 = sphi 0, %s245
    %s263 = sphi 0, %s263
    %s265 = sphi 0, %s263
    %s266 = sphi 0, %s265
    %s280 = sphi 0, %s266
    %s284 = sphi 0, %s284
    %s286 = sphi 0, %s284
    %s287 = sphi 0, %s286
    %s301 = sphi 0, %s287
    %s307 = sphi 0, %s309
    %s310 = sphi 0, %s307
    %s311 = sphi 0, %s310
    %s327 = sphi 0, %s311
  $region4: #{vit_forward.9} parent=0 // loop_header_branch
    %22 = sbr.rel (%p20) target = $region8
  $region5: #{vit_forward.9} parent=0 // loop_body
    %s24 = ssub.s32 %s19, 1
    %s25 = ssub.s32 %s19, 2
    %s26 = sadd.s32 %s19, 1
    %s27 = ssub.s32 %s19, %s26
    %p28 = scmp.eq.s32.totalorder %s27, 0
    %s30 = sadd.s32 %s29, 1
    %s31 = scalar_select %p28, %s29, %s30
    %p34 = pneg %p28
    %p35 = scmp.eq.s32.totalorder %s19, 1
    %p36 = por %p34, %p35
    %p37 = scmp.ne.s32.totalorder %s29, %s32
    %p38 = scmp.eq.s32.totalorder %s19, 0
    %p39 = por %p37, %p38
    %p40 = scmp.ne.s32.totalorder %s29, %s32
    %p41 = scmp.eq.s32.totalorder %s24, 1
    %p42 = por %p40, %p41
    %p43 = scmp.ne.s32.totalorder %s32, %s33
    %p44 = scmp.eq.s32.totalorder %s24, 0
    %p45 = por %p43, %p44
    %p46 = scmp.ne.s32.totalorder %s32, %s33
    %p47 = scmp.eq.s32.totalorder %s25, 1
    %p48 = por %p46, %p47
    %p50 = scmp.ne.s32.totalorder %s33, %s49
    %p51 = scmp.eq.s32.totalorder %s25, 0
    %p52 = por %p50, %p51
    %s54 = sadd.s32 %s53, 1
    %p57 = scmp.eq.s32.totalorder %s19, 1
    %p58 = scmp.ne.s32.totalorder %s53, %s55
    %p59 = scmp.eq.s32.totalorder %s19, 0
    %p60 = por %p58, %p59
    %p61 = scmp.ne.s32.totalorder %s53, %s55
    %p62 = scmp.eq.s32.totalorder %s24, 1
    %p63 = por %p61, %p62
    %p64 = scmp.ne.s32.totalorder %s55, %s56
    %p65 = scmp.eq.s32.totalorder %s24, 0
    %p66 = por %p64, %p65
    %p67 = scmp.ne.s32.totalorder %s55, %s56
    %p68 = scmp.eq.s32.totalorder %s25, 1
    %p69 = por %p67, %p68
    %p71 = scmp.ne.s32.totalorder %s56, %s70
    %p72 = scmp.eq.s32.totalorder %s25, 0
    %p73 = por %p71, %p72
    %s75 = sadd.s32 %s74, 1
    %p78 = scmp.eq.s32.totalorder %s19, 1
    %p79 = scmp.ne.s32.totalorder %s74, %s76
    %p80 = scmp.eq.s32.totalorder %s19, 0
    %p81 = por %p79, %p80
    %p82 = scmp.ne.s32.totalorder %s74, %s76
    %p83 = scmp.eq.s32.totalorder %s24, 1
    %p84 = por %p82, %p83
    %p85 = scmp.ne.s32.totalorder %s76, %s77
    %p86 = scmp.eq.s32.totalorder %s24, 0
    %p87 = por %p85, %p86
    %p88 = scmp.ne.s32.totalorder %s76, %s77
    %p89 = scmp.eq.s32.totalorder %s25, 1
    %p90 = por %p88, %p89
    %p92 = scmp.ne.s32.totalorder %s77, %s91
    %p93 = scmp.eq.s32.totalorder %s25, 0
    %p94 = por %p92, %p93
    %s96 = sadd.s32 %s95, 1
    %p99 = scmp.eq.s32.totalorder %s19, 1
    %p100 = scmp.ne.s32.totalorder %s95, %s97
    %p101 = scmp.eq.s32.totalorder %s19, 0
    %p102 = por %p100, %p101
    %p103 = scmp.ne.s32.totalorder %s95, %s97
    %p104 = scmp.eq.s32.totalorder %s24, 1
    %p105 = por %p103, %p104
    %p106 = scmp.ne.s32.totalorder %s97, %s98
    %p107 = scmp.eq.s32.totalorder %s24, 0
    %p108 = por %p106, %p107
    %p109 = scmp.ne.s32.totalorder %s97, %s98
    %p110 = scmp.eq.s32.totalorder %s25, 1
    %p111 = por %p109, %p110
    %p113 = scmp.ne.s32.totalorder %s98, %s112
    %p114 = scmp.eq.s32.totalorder %s25, 0
    %p115 = por %p113, %p114
    %s117 = sadd.s32 %s116, 1
    %p120 = scmp.eq.s32.totalorder %s19, 1
    %p121 = scmp.ne.s32.totalorder %s116, %s118
    %p122 = scmp.eq.s32.totalorder %s19, 0
    %p123 = por %p121, %p122
    %p124 = scmp.ne.s32.totalorder %s116, %s118
    %p125 = scmp.eq.s32.totalorder %s24, 1
    %p126 = por %p124, %p125
    %p127 = scmp.ne.s32.totalorder %s118, %s119
    %p128 = scmp.eq.s32.totalorder %s24, 0
    %p129 = por %p127, %p128
    %p130 = scmp.ne.s32.totalorder %s118, %s119
    %p131 = scmp.eq.s32.totalorder %s25, 1
    %p132 = por %p130, %p131
    %p134 = scmp.ne.s32.totalorder %s119, %s133
    %p135 = scmp.eq.s32.totalorder %s25, 0
    %p136 = por %p134, %p135
    %s138 = sadd.s32 %s137, 1
    %p141 = scmp.eq.s32.totalorder %s19, 1
    %p142 = scmp.ne.s32.totalorder %s137, %s139
    %p143 = scmp.eq.s32.totalorder %s19, 0
    %p144 = por %p142, %p143
    %p145 = scmp.ne.s32.totalorder %s137, %s139
    %p146 = scmp.eq.s32.totalorder %s24, 1
    %p147 = por %p145, %p146
    %p148 = scmp.ne.s32.totalorder %s139, %s140
    %p149 = scmp.eq.s32.totalorder %s24, 0
    %p150 = por %p148, %p149
    %p151 = scmp.ne.s32.totalorder %s139, %s140
    %p152 = scmp.eq.s32.totalorder %s25, 1
    %p153 = por %p151, %p152
    %p155 = scmp.ne.s32.totalorder %s140, %s154
    %p156 = scmp.eq.s32.totalorder %s25, 0
    %p157 = por %p155, %p156
    %s159 = sadd.s32 %s158, 1
    %p162 = scmp.eq.s32.totalorder %s19, 1
    %p163 = scmp.ne.s32.totalorder %s158, %s160
    %p164 = scmp.eq.s32.totalorder %s19, 0
    %p165 = por %p163, %p164
    %p166 = scmp.ne.s32.totalorder %s158, %s160
    %p167 = scmp.eq.s32.totalorder %s24, 1
    %p168 = por %p166, %p167
    %p169 = scmp.ne.s32.totalorder %s160, %s161
    %p170 = scmp.eq.s32.totalorder %s24, 0
    %p171 = por %p169, %p170
    %p172 = scmp.ne.s32.totalorder %s160, %s161
    %p173 = scmp.eq.s32.totalorder %s25, 1
    %p174 = por %p172, %p173
    %p176 = scmp.ne.s32.totalorder %s161, %s175
    %p177 = scmp.eq.s32.totalorder %s25, 0
    %p178 = por %p176, %p177
    %s180 = sadd.s32 %s179, 1
    %p183 = scmp.eq.s32.totalorder %s19, 1
    %p184 = scmp.ne.s32.totalorder %s179, %s181
    %p185 = scmp.eq.s32.totalorder %s19, 0
    %p186 = por %p184, %p185
    %p187 = scmp.ne.s32.totalorder %s179, %s181
    %p188 = scmp.eq.s32.totalorder %s24, 1
    %p189 = por %p187, %p188
    %p190 = scmp.ne.s32.totalorder %s181, %s182
    %p191 = scmp.eq.s32.totalorder %s24, 0
    %p192 = por %p190, %p191
    %p193 = scmp.ne.s32.totalorder %s181, %s182
    %p194 = scmp.eq.s32.totalorder %s25, 1
    %p195 = por %p193, %p194
    %p197 = scmp.ne.s32.totalorder %s182, %s196
    %p198 = scmp.eq.s32.totalorder %s25, 0
    %p199 = por %p197, %p198
    %s201 = sadd.s32 %s200, 1
    %p204 = scmp.eq.s32.totalorder %s19, 1
    %p205 = scmp.ne.s32.totalorder %s200, %s202
    %p206 = scmp.eq.s32.totalorder %s19, 0
    %p207 = por %p205, %p206
    %p208 = scmp.ne.s32.totalorder %s200, %s202
    %p209 = scmp.eq.s32.totalorder %s24, 1
    %p210 = por %p208, %p209
    %p211 = scmp.ne.s32.totalorder %s202, %s203
    %p212 = scmp.eq.s32.totalorder %s24, 0
    %p213 = por %p211, %p212
    %p214 = scmp.ne.s32.totalorder %s202, %s203
    %p215 = scmp.eq.s32.totalorder %s25, 1
    %p216 = por %p214, %p215
    %p218 = scmp.ne.s32.totalorder %s203, %s217
    %p219 = scmp.eq.s32.totalorder %s25, 0
    %p220 = por %p218, %p219
    %s222 = sadd.s32 %s221, 1
    %p225 = scmp.eq.s32.totalorder %s19, 1
    %p226 = scmp.ne.s32.totalorder %s221, %s223
    %p227 = scmp.eq.s32.totalorder %s19, 0
    %p228 = por %p226, %p227
    %p229 = scmp.ne.s32.totalorder %s221, %s223
    %p230 = scmp.eq.s32.totalorder %s24, 1
    %p231 = por %p229, %p230
    %p232 = scmp.ne.s32.totalorder %s223, %s224
    %p233 = scmp.eq.s32.totalorder %s24, 0
    %p234 = por %p232, %p233
    %p235 = scmp.ne.s32.totalorder %s223, %s224
    %p236 = scmp.eq.s32.totalorder %s25, 1
    %p237 = por %p235, %p236
    %p239 = scmp.ne.s32.totalorder %s224, %s238
    %p240 = scmp.eq.s32.totalorder %s25, 0
    %p241 = por %p239, %p240
    %s243 = sadd.s32 %s242, 1
    %p246 = scmp.eq.s32.totalorder %s19, 1
    %p247 = scmp.ne.s32.totalorder %s242, %s244
    %p248 = scmp.eq.s32.totalorder %s19, 0
    %p249 = por %p247, %p248
    %p250 = scmp.ne.s32.totalorder %s242, %s244
    %p251 = scmp.eq.s32.totalorder %s24, 1
    %p252 = por %p250, %p251
    %p253 = scmp.ne.s32.totalorder %s244, %s245
    %p254 = scmp.eq.s32.totalorder %s24, 0
    %p255 = por %p253, %p254
    %p256 = scmp.ne.s32.totalorder %s244, %s245
    %p257 = scmp.eq.s32.totalorder %s25, 1
    %p258 = por %p256, %p257
    %p260 = scmp.ne.s32.totalorder %s245, %s259
    %p261 = scmp.eq.s32.totalorder %s25, 0
    %p262 = por %p260, %p261
    %s264 = sadd.s32 %s263, 1
    %p267 = scmp.eq.s32.totalorder %s19, 1
    %p268 = scmp.ne.s32.totalorder %s263, %s265
    %p269 = scmp.eq.s32.totalorder %s19, 0
    %p270 = por %p268, %p269
    %p271 = scmp.ne.s32.totalorder %s263, %s265
    %p272 = scmp.eq.s32.totalorder %s24, 1
    %p273 = por %p271, %p272
    %p274 = scmp.ne.s32.totalorder %s265, %s266
    %p275 = scmp.eq.s32.totalorder %s24, 0
    %p276 = por %p274, %p275
    %p277 = scmp.ne.s32.totalorder %s265, %s266
    %p278 = scmp.eq.s32.totalorder %s25, 1
    %p279 = por %p277, %p278
    %p281 = scmp.ne.s32.totalorder %s266, %s280
    %p282 = scmp.eq.s32.totalorder %s25, 0
    %p283 = por %p281, %p282
    %s285 = sadd.s32 %s284, 1
    %p288 = scmp.eq.s32.totalorder %s19, 1
    %p289 = scmp.ne.s32.totalorder %s284, %s286
    %p290 = scmp.eq.s32.totalorder %s19, 0
    %p291 = por %p289, %p290
    %p292 = scmp.ne.s32.totalorder %s284, %s286
    %p293 = scmp.eq.s32.totalorder %s24, 1
    %p294 = por %p292, %p293
    %p295 = scmp.ne.s32.totalorder %s286, %s287
    %p296 = scmp.eq.s32.totalorder %s24, 0
    %p297 = por %p295, %p296
    %p298 = scmp.ne.s32.totalorder %s286, %s287
    %p299 = scmp.eq.s32.totalorder %s25, 1
    %p300 = por %p298, %p299
    %p302 = scmp.ne.s32.totalorder %s287, %s301
    %p303 = scmp.eq.s32.totalorder %s25, 0
    %p304 = por %p302, %p303
    %s305 = ssub.s32 %s19, %s26
    %p306 = scmp.eq.s32.totalorder %s305, 0
    %s308 = sadd.s32 %s307, 1
    %s309 = scalar_select %p306, %s307, %s308
    %p312 = pneg %p306
    %p313 = scmp.eq.s32.totalorder %s19, 1
    %p314 = por %p312, %p313
    %p315 = scmp.ne.s32.totalorder %s307, %s310
    %p316 = scmp.eq.s32.totalorder %s19, 0
    %p317 = por %p315, %p316
    %p318 = scmp.ne.s32.totalorder %s307, %s310
    %p319 = scmp.eq.s32.totalorder %s24, 1
    %p320 = por %p318, %p319
    %p321 = scmp.ne.s32.totalorder %s310, %s311
    %p322 = scmp.eq.s32.totalorder %s24, 0
    %p323 = por %p321, %p322
    %p324 = scmp.ne.s32.totalorder %s310, %s311
    %p325 = scmp.eq.s32.totalorder %s25, 1
    %p326 = por %p324, %p325
    %p328 = scmp.ne.s32.totalorder %s311, %s327
    %p329 = scmp.eq.s32.totalorder %s25, 0
    %p330 = por %p328, %p329
    %p331 = scmp.le.s32.totalorder 1, %s19
    %p332 = scmp.lt.s32.totalorder %s19, 3
    %p333 = pnand %p331, %p332
    %p334 = pneg %p333
    // Predicated region
    $region9: #{vit_forward.9} parent=5 // pred_check
      _
    $region10: #{vit_forward.9} parent=5 // pred_check_branch
      %336 = sbr.rel (%p333) target = $region12
    $region11: #{vit_forward.9} parent=5 // pred_region
      %s337 = ssub.s32 %s19, 1
      // Predicated region
      $region13: #{vit_forward.9} parent=11 // pred_check
        %p338 = pneg %p66
      $region14: #{vit_forward.9} parent=11 // pred_check_branch
        %340 = sbr.rel (%p338) target = $region16
      $region15: #{vit_forward.9} parent=11 // pred_region
        _
      $region16: #{vit_forward.9} parent=11 // pred_fallthru
        _
      // Predicated region
      $region17: #{vit_forward.9} parent=11 // pred_check
        %p341 = pneg %p87
      $region18: #{vit_forward.9} parent=11 // pred_check_branch
        %343 = sbr.rel (%p341) target = $region20
      $region19: #{vit_forward.9} parent=11 // pred_region
        _
      $region20: #{vit_forward.9} parent=11 // pred_fallthru
        _
      // Predicated region
      $region21: #{vit_forward.9} parent=11 // pred_check
        %p344 = pneg %p108
      $region22: #{vit_forward.9} parent=11 // pred_check_branch
        %346 = sbr.rel (%p344) target = $region24
      $region23: #{vit_forward.9} parent=11 // pred_region
        _
      $region24: #{vit_forward.9} parent=11 // pred_fallthru
        _
      // Predicated region
      $region25: #{vit_forward.9} parent=11 // pred_check
        %p347 = pneg %p129
      $region26: #{vit_forward.9} parent=11 // pred_check_branch
        %349 = sbr.rel (%p347) target = $region28
      $region27: #{vit_forward.9} parent=11 // pred_region
        _
      $region28: #{vit_forward.9} parent=11 // pred_fallthru
        _
      // Predicated region
      $region29: #{vit_forward.9} parent=11 // pred_check
        %p350 = pneg %p150
      $region30: #{vit_forward.9} parent=11 // pred_check_branch
        %352 = sbr.rel (%p350) target = $region32
      $region31: #{vit_forward.9} parent=11 // pred_region
        _
      $region32: #{vit_forward.9} parent=11 // pred_fallthru
        _
      // Predicated region
      $region33: #{vit_forward.9} parent=11 // pred_check
        %p353 = pneg %p171
      $region34: #{vit_forward.9} parent=11 // pred_check_branch
        %355 = sbr.rel (%p353) target = $region36
      $region35: #{vit_forward.9} parent=11 // pred_region
        _
      $region36: #{vit_forward.9} parent=11 // pred_fallthru
        _
      // Predicated region
      $region37: #{vit_forward.9} parent=11 // pred_check
        %p356 = pneg %p192
      $region38: #{vit_forward.9} parent=11 // pred_check_branch
        %358 = sbr.rel (%p356) target = $region40
      $region39: #{vit_forward.9} parent=11 // pred_region
        _
      $region40: #{vit_forward.9} parent=11 // pred_fallthru
        _
      // Predicated region
      $region41: #{vit_forward.9} parent=11 // pred_check
        %p359 = pneg %p213
      $region42: #{vit_forward.9} parent=11 // pred_check_branch
        %361 = sbr.rel (%p359) target = $region44
      $region43: #{vit_forward.9} parent=11 // pred_region
        _
      $region44: #{vit_forward.9} parent=11 // pred_fallthru
        _
      // Predicated region
      $region45: #{vit_forward.9} parent=11 // pred_check
        %p362 = pneg %p234
      $region46: #{vit_forward.9} parent=11 // pred_check_branch
        %364 = sbr.rel (%p362) target = $region48
      $region47: #{vit_forward.9} parent=11 // pred_region
        _
      $region48: #{vit_forward.9} parent=11 // pred_fallthru
        _
      // Predicated region
      $region49: #{vit_forward.9} parent=11 // pred_check
        %p365 = pneg %p255
      $region50: #{vit_forward.9} parent=11 // pred_check_branch
        %367 = sbr.rel (%p365) target = $region52
      $region51: #{vit_forward.9} parent=11 // pred_region
        _
      $region52: #{vit_forward.9} parent=11 // pred_fallthru
        _
      // Predicated region
      $region53: #{vit_forward.9} parent=11 // pred_check
        %p368 = pneg %p276
      $region54: #{vit_forward.9} parent=11 // pred_check_branch
        %370 = sbr.rel (%p368) target = $region56
      $region55: #{vit_forward.9} parent=11 // pred_region
        _
      $region56: #{vit_forward.9} parent=11 // pred_fallthru
        _
      // Predicated region
      $region57: #{vit_forward.9} parent=11 // pred_check
        %p371 = pneg %p297
      $region58: #{vit_forward.9} parent=11 // pred_check_branch
        %373 = sbr.rel (%p371) target = $region60
      $region59: #{vit_forward.9} parent=11 // pred_region
        _
      $region60: #{vit_forward.9} parent=11 // pred_fallthru
        _
    $region12: #{vit_forward.9} parent=5 // pred_fallthru
      _
    %p374 = scmp.lt.s32.totalorder %s19, 2
    // Predicated region
    $region61: #{vit_forward.9} parent=5 // pred_check
      %p375 = pneg %p374
    $region62: #{vit_forward.9} parent=5 // pred_check_branch
      %377 = sbr.rel (%p375) target = $region64
    $region63: #{vit_forward.9} parent=5 // pred_region
      // Predicated region
      $region65: #{vit_forward.9} parent=63 // pred_check
        %p378 = pneg %p39
      $region66: #{vit_forward.9} parent=63 // pred_check_branch
        %380 = sbr.rel (%p378) target = $region68
      $region67: #{vit_forward.9} parent=63 // pred_region
        %p381 = scmp.lt.s32.totalorder %s19, 1
        %s382 = scalar_select %p381, %s19, 1
        %s383 = smul.addr %s382, 2
        %s384 = smul.addr %s383, 8
        %s385 = scalar_lea.vmem %s0, %s384
      $region68: #{vit_forward.9} parent=63 // pred_fallthru
        _
    $region64: #{vit_forward.9} parent=5 // pred_fallthru
      _
    %p386 = scmp.le.s32.totalorder 1, %s19
    %p387 = scmp.lt.s32.totalorder %s19, 3
    %p388 = pnand %p386, %p387
    %p389 = pneg %p388
    // Predicated region
    $region69: #{vit_forward.9} parent=5 // pred_check
      _
    $region70: #{vit_forward.9} parent=5 // pred_check_branch
      %391 = sbr.rel (%p388) target = $region72
    $region71: #{vit_forward.9} parent=5 // pred_region
      %s392 = ssub.s32 %s19, 1
      %p393 = scmp.lt.s32.totalorder %s24, 1
      %s394 = scalar_select %p393, %s24, 1
      %s395 = smul.addr %s394, 2
      %s396 = smul.addr %s395, 8
      %s397 = scalar_lea.vmem %s0, %s396
      %p398 = pneg %p45
      %p399 = pneg %p42
      %p400 = pneg %p66
      %p401 = pneg %p63
      %p402 = pneg %p87
      %p403 = pneg %p84
      %p404 = pneg %p108
      %p405 = pneg %p105
      %p406 = pneg %p129
      %p407 = pneg %p126
      %p408 = pneg %p150
      %p409 = pneg %p147
      %p410 = pneg %p171
      %p411 = pneg %p168
      %p412 = pneg %p192
      %p413 = pneg %p189
      %p414 = pneg %p213
      %p415 = pneg %p210
      %p416 = pneg %p234
      %p417 = pneg %p231
      %p418 = pneg %p255
      %p419 = pneg %p252
      %p420 = pneg %p276
      %p421 = pneg %p273
      %p422 = pneg %p297
      %p423 = pneg %p294
      %p424 = pneg %p323
      %p425 = pneg %p320
      %p426 = scmp.lt.s32.totalorder %s24, 1
      %s427 = scalar_select %p426, %s24, 1
      %s428 = smul.addr %s427, 2
      %s429 = smul.addr %s428, 8
      %s430 = scalar_lea.vmem %s13, %s429
      %p431 = scmp.lt.s32.totalorder %s24, 1
      %s432 = scalar_select %p431, %s24, 1
      %s433 = smul.addr %s432, 2
      %s434 = smul.addr %s433, 8
      %s435 = scalar_lea.vmem %s0, %s434
      %p436 = scmp.lt.s32.totalorder %s24, 1
      %s437 = scalar_select %p436, %s24, 1
      %s438 = smul.addr %s437, 2
      %s439 = smul.addr %s438, 8
      %s440 = scalar_lea.vmem %s13, %s439
      %v442 = vld [vmem:[%s435] sm:$0xff]
      %v443 = vld [vmem:[%s435 + $0x8] sm:$0xff]
      %v444 = vld [vmem:[%s1] sm:$0xff]
      %v445 = vld [vmem:[%s1 + $0x8] sm:$0xff]
      %v446 = vld [vmem:[%s1 + $0x10] sm:$0xff]
      %v447 = vld [vmem:[%s1 + $0x18] sm:$0xff]
      %v448 = vpack.c.bf16 %v443, %v442
      %v449 = vpack.c.bf16 %v445, %v444
      %v450 = vpack.c.bf16 %v447, %v446
      %v451 = vld [vmem:[%s2] sm:$0x1]
      %v453 = vperm.slane %v451, 0
      %vm455 = vcmask 261120
      %v457 = vsel %vm455, %v448, 0
      %459 = vmatpush.bf16.msra.mxu0 0
      %460 = vmatpush.bf16.msra.mxu0 0
      %461 = vmatpush.bf16.msra.mxu0 0
      %462 = vmatpush.bf16.msra.mxu0 0
      %463 = vmatpush.bf16.msra.mxu0 0
      %464 = vmatpush.bf16.msra.mxu0 0
      %465 = vmatpush.bf16.msra.mxu0 %v450
      %466 = vmatpush.bf16.msra.mxu0 %v449
      %467 = vmatmul.bf16.gmra.mxu0 %v457
      %v468 = vpop.f32.mrf.mxu0
      %v469 = vadd.f32 %v453, %v468
      %v470 = vpop.f32.mrf.mxu0
      %v471 = vadd.f32 %v453, %v470
      %472 = vdwg.mxu0
      %v473 = vld [vmem:[%s3] sm:$0xff]
      %v474 = vld [vmem:[%s3 + $0x8] sm:$0xff]
      %v475 = vld [vmem:[%s3 + $0x10] sm:$0xff]
      %v476 = vld [vmem:[%s3 + $0x18] sm:$0xff]
      %v477 = vld [vmem:[%s4] sm:$0x1]
      %v478 = vpack.c.bf16 %v471, %v469
      %480 = vrot.lane.b32.xlu0 %v478, 96
      %v481 = vpop.permute.xlu0 %480
      %vm482 = vcmask 64512
      %v484 = vsel %vm482, %v478, 0
      %v487 = vsel %vm482, %v481, 0
      %489 = vmatpush.bf16.xpose.msra.mxu0 0
      %490 = vmatpush.bf16.xpose.msra.mxu0 0
      %491 = vmatpush.bf16.xpose.msra.mxu0 0
      %492 = vmatpush.bf16.xpose.msra.mxu0 0
      %493 = vmatpush.bf16.xpose.msra.mxu0 0
      %494 = vmatpush.bf16.xpose.msra.mxu0 0
      %495 = vmatpush.bf16.xpose.msra.mxu0 0
      %496 = vmatpush.bf16.xpose.msra.mxu0 %v487
      %497 = vmatmul.bf16.gmra.mxu0 %v484
      %v498 = vpop.f32.mrf.mxu0
      %v499 = vadd.f32 0.0, %v498
      %v500 = vpop.f32.mrf.mxu0
      %v501 = vadd.f32 0.0, %v500
      %502 = vdwg.mxu0
      %v503 = vmul.f32 %v499, 0.35355338
      %v504 = vmul.f32 %v501, 0.35355338
      %vm505 = vcmask 130048
      %v506 = vsel %vm505, %v503, -inf
      %507 = vmax.xlane.f32.xlu0 %v506
      %v508 = vpop.xlane.xlu0 %507
      %v509 = vsel %vm505, %v504, -inf
      %510 = vmax.xlane.f32.xlu0 %v509
      %v511 = vpop.xlane.xlu0 %510
      %v512 = vsub.f32 %v503, %v508
      %v513 = vsub.f32 %v504, %v511
      %v514 = vmul.f32 %v512, 1.442695
      %v515 = vpow.pop %v514
      %v516 = vmul.f32 %v513, 1.442695
      %v517 = vpow.pop %v516
      %v518 = vsel %vm505, %v515, 0.0
      %519 = vadd.xlane.f32.xlu0 %v518
      %v520 = vpop.xlane.xlu0 %519
      %v521 = vsel %vm505, %v517, 0.0
      %522 = vadd.xlane.f32.xlu0 %v521
      %v523 = vpop.xlane.xlu0 %522
      %v524 = vrcp.pop %v520
      %v525 = vrcp.pop %v523
      %v526 = vmul.f32 %v515, %v524
      %v527 = vmul.f32 %v517, %v525
      %v528 = vpack.c.bf16 %v527, %v526
      %529 = vrot.lane.b32.xlu0 %v478, 64
      %v530 = vpop.permute.xlu0 %529
      %v533 = vsel %vm505, %v528, 0
      %535 = vmatpush.bf16.msra.mxu0 0
      %536 = vmatpush.bf16.msra.mxu0 0
      %537 = vmatpush.bf16.msra.mxu0 0
      %538 = vmatpush.bf16.msra.mxu0 0
      %539 = vmatpush.bf16.msra.mxu0 0
      %540 = vmatpush.bf16.msra.mxu0 0
      %541 = vmatpush.bf16.msra.mxu0 0
      %542 = vmatpush.bf16.msra.mxu0 %v530
      %543 = vmatmul.bf16.gmra.mxu0 %v533
      %v544 = vpop.f32.mrf.mxu0
      %v545 = vadd.f32 0.0, %v544
      %v546 = vpop.f32.mrf.mxu0
      %v547 = vadd.f32 0.0, %v546
      %548 = vdwg.mxu0
      %v549 = vpack.c.bf16 %v547, %v545
      %v550 = vpack.c.bf16 %v473, %v473
      %551 = vrot.lane.b32.xlu0 %v478, 120
      %v552 = vpop.permute.xlu0 %551
      %553 = vrot.lane.b32.xlu0 %v478, 88
      %v554 = vpop.permute.xlu0 %553
      %v556 = vsel %vm482, %v552, 0
      %v559 = vsel %vm482, %v554, 0
      %561 = vmatpush.bf16.xpose.msra.mxu0 0
      %562 = vmatpush.bf16.xpose.msra.mxu0 0
      %563 = vmatpush.bf16.xpose.msra.mxu0 0
      %564 = vmatpush.bf16.xpose.msra.mxu0 0
      %565 = vmatpush.bf16.xpose.msra.mxu0 0
      %566 = vmatpush.bf16.xpose.msra.mxu0 0
      %567 = vmatpush.bf16.xpose.msra.mxu0 0
      %568 = vmatpush.bf16.xpose.msra.mxu0 %v559
      %569 = vmatmul.bf16.gmra.mxu0 %v556
      %v570 = vpop.f32.mrf.mxu0
      %v571 = vadd.f32 0.0, %v570
      %v572 = vpop.f32.mrf.mxu0
      %v573 = vadd.f32 0.0, %v572
      %574 = vdwg.mxu0
      %v575 = vmul.f32 %v571, 0.35355338
      %v576 = vmul.f32 %v573, 0.35355338
      %v577 = vsel %vm505, %v575, -inf
      %578 = vmax.xlane.f32.xlu0 %v577
      %v579 = vpop.xlane.xlu0 %578
      %v580 = vsel %vm505, %v576, -inf
      %581 = vmax.xlane.f32.xlu0 %v580
      %v582 = vpop.xlane.xlu0 %581
      %v583 = vsub.f32 %v575, %v579
      %v584 = vsub.f32 %v576, %v582
      %v585 = vmul.f32 %v583, 1.442695
      %v586 = vpow.pop %v585
      %v587 = vmul.f32 %v584, 1.442695
      %v588 = vpow.pop %v587
      %v589 = vsel %vm505, %v586, 0.0
      %590 = vadd.xlane.f32.xlu0 %v589
      %v591 = vpop.xlane.xlu0 %590
      %v592 = vsel %vm505, %v588, 0.0
      %593 = vadd.xlane.f32.xlu0 %v592
      %v594 = vpop.xlane.xlu0 %593
      %v595 = vrcp.pop %v591
      %v596 = vrcp.pop %v594
      %v597 = vmul.f32 %v586, %v595
      %v598 = vmul.f32 %v588, %v596
      %v599 = vpack.c.bf16 %v598, %v597
      %600 = vrot.lane.b32.xlu0 %v478, 56
      %v601 = vpop.permute.xlu0 %600
      %v604 = vsel %vm505, %v599, 0
      %606 = vmatpush.bf16.msra.mxu0 0
      %607 = vmatpush.bf16.msra.mxu0 0
      %608 = vmatpush.bf16.msra.mxu0 0
      %609 = vmatpush.bf16.msra.mxu0 0
      %610 = vmatpush.bf16.msra.mxu0 0
      %611 = vmatpush.bf16.msra.mxu0 0
      %612 = vmatpush.bf16.msra.mxu0 0
      %613 = vmatpush.bf16.msra.mxu0 %v601
      %614 = vmatmul.bf16.gmra.mxu0 %v604
      %v615 = vpop.f32.mrf.mxu0
      %v616 = vadd.f32 0.0, %v615
      %v617 = vpop.f32.mrf.mxu0
      %v618 = vadd.f32 0.0, %v617
      %619 = vdwg.mxu0
      %v620 = vpack.c.bf16 %v618, %v616
      %v621 = vpack.c.bf16 %v474, %v474
      %v623 = vsel %vm482, %v620, 0
      %vm625 = vcmask 1043456
      %v627 = vsel %vm625, %v621, 0
      %629 = vmatpush.bf16.msra.mxu0 0
      %630 = vmatpush.bf16.msra.mxu0 0
      %631 = vmatpush.bf16.msra.mxu0 0
      %632 = vmatpush.bf16.msra.mxu0 0
      %633 = vmatpush.bf16.msra.mxu0 0
      %634 = vmatpush.bf16.msra.mxu0 0
      %635 = vmatpush.bf16.msra.mxu0 0
      %636 = vmatpush.bf16.msra.mxu0 %v627
      %637 = vmatmul.bf16.gmra.mxu0 %v623
      %v638 = vpop.f32.mrf.mxu0
      %v639 = vadd.f32 0.0, %v638
      %v640 = vpop.f32.mrf.mxu0
      %v641 = vadd.f32 0.0, %v640
      %642 = vdwg.mxu0
      %v644 = vsel %vm482, %v549, 0
      %v647 = vsel %vm625, %v550, 0
      %649 = vmatpush.bf16.msra.mxu0 0
      %650 = vmatpush.bf16.msra.mxu0 0
      %651 = vmatpush.bf16.msra.mxu0 0
      %652 = vmatpush.bf16.msra.mxu0 0
      %653 = vmatpush.bf16.msra.mxu0 0
      %654 = vmatpush.bf16.msra.mxu0 0
      %655 = vmatpush.bf16.msra.mxu0 0
      %656 = vmatpush.bf16.msra.mxu0 %v647
      %657 = vmatmul.bf16.gmra.mxu0 %v644
      %v658 = vpop.f32.mrf.mxu0
      %v659 = vadd.f32 %v639, %v658
      %v660 = vpop.f32.mrf.mxu0
      %v661 = vadd.f32 %v641, %v660
      %662 = vdwg.mxu0
      %663 = vrot.lane.b32.xlu0 %v478, 112
      %v664 = vpop.permute.xlu0 %663
      %665 = vrot.lane.b32.xlu0 %v478, 80
      %v666 = vpop.permute.xlu0 %665
      %v668 = vsel %vm482, %v664, 0
      %v671 = vsel %vm482, %v666, 0
      %673 = vmatpush.bf16.xpose.msra.mxu0 0
      %674 = vmatpush.bf16.xpose.msra.mxu0 0
      %675 = vmatpush.bf16.xpose.msra.mxu0 0
      %676 = vmatpush.bf16.xpose.msra.mxu0 0
      %677 = vmatpush.bf16.xpose.msra.mxu0 0
      %678 = vmatpush.bf16.xpose.msra.mxu0 0
      %679 = vmatpush.bf16.xpose.msra.mxu0 0
      %680 = vmatpush.bf16.xpose.msra.mxu0 %v671
      %681 = vmatmul.bf16.gmra.mxu0 %v668
      %v682 = vpop.f32.mrf.mxu0
      %v683 = vadd.f32 0.0, %v682
      %v684 = vpop.f32.mrf.mxu0
      %v685 = vadd.f32 0.0, %v684
      %686 = vdwg.mxu0
      %v687 = vmul.f32 %v683, 0.35355338
      %v688 = vmul.f32 %v685, 0.35355338
      %v689 = vsel %vm505, %v687, -inf
      %690 = vmax.xlane.f32.xlu0 %v689
      %v691 = vpop.xlane.xlu0 %690
      %v692 = vsel %vm505, %v688, -inf
      %693 = vmax.xlane.f32.xlu0 %v692
      %v694 = vpop.xlane.xlu0 %693
      %v695 = vsub.f32 %v687, %v691
      %v696 = vsub.f32 %v688, %v694
      %v697 = vmul.f32 %v695, 1.442695
      %v698 = vpow.pop %v697
      %v699 = vmul.f32 %v696, 1.442695
      %v700 = vpow.pop %v699
      %v701 = vsel %vm505, %v698, 0.0
      %702 = vadd.xlane.f32.xlu0 %v701
      %v703 = vpop.xlane.xlu0 %702
      %v704 = vsel %vm505, %v700, 0.0
      %705 = vadd.xlane.f32.xlu0 %v704
      %v706 = vpop.xlane.xlu0 %705
      %v707 = vrcp.pop %v703
      %v708 = vrcp.pop %v706
      %v709 = vmul.f32 %v698, %v707
      %v710 = vmul.f32 %v700, %v708
      %v711 = vpack.c.bf16 %v710, %v709
      %712 = vrot.lane.b32.xlu0 %v478, 48
      %v713 = vpop.permute.xlu0 %712
      %v716 = vsel %vm505, %v711, 0
      %718 = vmatpush.bf16.msra.mxu0 0
      %719 = vmatpush.bf16.msra.mxu0 0
      %720 = vmatpush.bf16.msra.mxu0 0
      %721 = vmatpush.bf16.msra.mxu0 0
      %722 = vmatpush.bf16.msra.mxu0 0
      %723 = vmatpush.bf16.msra.mxu0 0
      %724 = vmatpush.bf16.msra.mxu0 0
      %725 = vmatpush.bf16.msra.mxu0 %v713
      %726 = vmatmul.bf16.gmra.mxu0 %v716
      %v727 = vpop.f32.mrf.mxu0
      %v728 = vadd.f32 0.0, %v727
      %v729 = vpop.f32.mrf.mxu0
      %v730 = vadd.f32 0.0, %v729
      %731 = vdwg.mxu0
      %v732 = vpack.c.bf16 %v730, %v728
      %v733 = vpack.c.bf16 %v475, %v475
      %v735 = vsel %vm482, %v732, 0
      %v738 = vsel %vm625, %v733, 0
      %740 = vmatpush.bf16.msra.mxu0 0
      %741 = vmatpush.bf16.msra.mxu0 0
      %742 = vmatpush.bf16.msra.mxu0 0
      %743 = vmatpush.bf16.msra.mxu0 0
      %744 = vmatpush.bf16.msra.mxu0 0
      %745 = vmatpush.bf16.msra.mxu0 0
      %746 = vmatpush.bf16.msra.mxu0 0
      %747 = vmatpush.bf16.msra.mxu0 %v738
      %748 = vmatmul.bf16.gmra.mxu0 %v735
      %v749 = vpop.f32.mrf.mxu0
      %v750 = vadd.f32 0.0, %v749
      %v751 = vpop.f32.mrf.mxu0
      %v752 = vadd.f32 0.0, %v751
      %753 = vdwg.mxu0
      %v754 = vadd.f32 %v659, %v750
      %v755 = vadd.f32 %v661, %v752
      %756 = vrot.lane.b32.xlu0 %v478, 104
      %v757 = vpop.permute.xlu0 %756
      %758 = vrot.lane.b32.xlu0 %v478, 72
      %v759 = vpop.permute.xlu0 %758
      %v761 = vsel %vm482, %v757, 0
      %v764 = vsel %vm482, %v759, 0
      %766 = vmatpush.bf16.xpose.msra.mxu0 0
      %767 = vmatpush.bf16.xpose.msra.mxu0 0
      %768 = vmatpush.bf16.xpose.msra.mxu0 0
      %769 = vmatpush.bf16.xpose.msra.mxu0 0
      %770 = vmatpush.bf16.xpose.msra.mxu0 0
      %771 = vmatpush.bf16.xpose.msra.mxu0 0
      %772 = vmatpush.bf16.xpose.msra.mxu0 0
      %773 = vmatpush.bf16.xpose.msra.mxu0 %v764
      %774 = vmatmul.bf16.gmra.mxu0 %v761
      %v775 = vpop.f32.mrf.mxu0
      %v776 = vadd.f32 0.0, %v775
      %v777 = vpop.f32.mrf.mxu0
      %v778 = vadd.f32 0.0, %v777
      %779 = vdwg.mxu0
      %v780 = vmul.f32 %v776, 0.35355338
      %v781 = vmul.f32 %v778, 0.35355338
      %v782 = vsel %vm505, %v780, -inf
      %783 = vmax.xlane.f32.xlu0 %v782
      %v784 = vpop.xlane.xlu0 %783
      %v785 = vsel %vm505, %v781, -inf
      %786 = vmax.xlane.f32.xlu0 %v785
      %v787 = vpop.xlane.xlu0 %786
      %v788 = vsub.f32 %v780, %v784
      %v789 = vsub.f32 %v781, %v787
      %v790 = vmul.f32 %v788, 1.442695
      %v791 = vpow.pop %v790
      %v792 = vmul.f32 %v789, 1.442695
      %v793 = vpow.pop %v792
      %v794 = vsel %vm505, %v791, 0.0
      %795 = vadd.xlane.f32.xlu0 %v794
      %v796 = vpop.xlane.xlu0 %795
      %v797 = vsel %vm505, %v793, 0.0
      %798 = vadd.xlane.f32.xlu0 %v797
      %v799 = vpop.xlane.xlu0 %798
      %v800 = vrcp.pop %v796
      %v801 = vrcp.pop %v799
      %v802 = vmul.f32 %v791, %v800
      %v803 = vmul.f32 %v793, %v801
      %v804 = vpack.c.bf16 %v803, %v802
      %805 = vrot.lane.b32.xlu0 %v478, 40
      %v806 = vpop.permute.xlu0 %805
      %v809 = vsel %vm505, %v804, 0
      %811 = vmatpush.bf16.msra.mxu0 0
      %812 = vmatpush.bf16.msra.mxu0 0
      %813 = vmatpush.bf16.msra.mxu0 0
      %814 = vmatpush.bf16.msra.mxu0 0
      %815 = vmatpush.bf16.msra.mxu0 0
      %816 = vmatpush.bf16.msra.mxu0 0
      %817 = vmatpush.bf16.msra.mxu0 0
      %818 = vmatpush.bf16.msra.mxu0 %v806
      %819 = vmatmul.bf16.gmra.mxu0 %v809
      %v820 = vpop.f32.mrf.mxu0
      %v821 = vadd.f32 0.0, %v820
      %v822 = vpop.f32.mrf.mxu0
      %v823 = vadd.f32 0.0, %v822
      %824 = vdwg.mxu0
      %v825 = vpack.c.bf16 %v823, %v821
      %v826 = vpack.c.bf16 %v476, %v476
      %v828 = vsel %vm482, %v825, 0
      %v831 = vsel %vm625, %v826, 0
      %833 = vmatpush.bf16.msra.mxu0 0
      %834 = vmatpush.bf16.msra.mxu0 0
      %835 = vmatpush.bf16.msra.mxu0 0
      %836 = vmatpush.bf16.msra.mxu0 0
      %837 = vmatpush.bf16.msra.mxu0 0
      %838 = vmatpush.bf16.msra.mxu0 0
      %839 = vmatpush.bf16.msra.mxu0 0
      %840 = vmatpush.bf16.msra.mxu0 %v831
      %841 = vmatmul.bf16.gmra.mxu0 %v828
      %v842 = vpop.f32.mrf.mxu0
      %v843 = vadd.f32 0.0, %v842
      %v844 = vpop.f32.mrf.mxu0
      %v845 = vadd.f32 0.0, %v844
      %846 = vdwg.mxu0
      %v847 = vadd.f32 %v754, %v843
      %v848 = vadd.f32 %v755, %v845
      %v850 = vperm.slane %v477, 0
      %v852 = vadd.f32 %v847, %v850
      %v853 = vadd.f32 %v848, %v850
      %v854 = vadd.f32 %v852, %v442
      %v855 = vadd.f32 %v853, %v443
      %v856 = vld [vmem:[%s5] sm:$0x1]
      %v857 = vld [vmem:[%s6] sm:$0x1]
      %v858 = vsel %vm455, %v854, 0.0
      %859 = vadd.xlane.f32.xlu0 %v858
      %v860 = vpop.xlane.xlu0 %859
      %v861 = vsel %vm455, %v855, 0.0
      %862 = vadd.xlane.f32.xlu0 %v861
      %v863 = vpop.xlane.xlu0 %862
      %v864 = vrcp.pop 32.0
      %v865 = vmul.f32 32.0, %v864
      %v866 = vsub.f32 1.0, %v865
      %v867 = vmul.f32 %v864, %v866
      %v868 = vadd.f32 %v864, %v867
      %vm869 = vweird.f32 %v864
      %v870 = vsel %vm869, %v864, %v868
      %v871 = vmul.f32 %v860, %v870
      %v872 = vmul.f32 %v863, %v870
      %v873 = vsub.f32 %v854, %v871
      %v874 = vsub.f32 %v855, %v872
      %v875 = vmul.f32 %v873, %v873
      %v876 = vmul.f32 %v874, %v874
      %v877 = vsel %vm455, %v875, 0.0
      %878 = vadd.xlane.f32.xlu0 %v877
      %v879 = vpop.xlane.xlu0 %878
      %v880 = vsel %vm455, %v876, 0.0
      %881 = vadd.xlane.f32.xlu0 %v880
      %v882 = vpop.xlane.xlu0 %881
      %v883 = vmul.f32 %v879, %v870
      %v884 = vmul.f32 %v882, %v870
      %v885 = vadd.f32 %v883, 1e-05
      %v886 = vadd.f32 %v884, 1e-05
      %v887 = vrsqrt.pop %v885
      %v888 = vmul.f32 %v887, %v885
      %v889 = vmul.f32 %v888, %v887
      %v890 = vmul.f32 0.5, %v889
      %v891 = vsub.f32 1.5, %v890
      %v892 = vmul.f32 %v887, %v891
      %vm893 = vweird.f32 %v885
      %vm894 = vweird.f32 %v887
      %vm895 = vmor %vm893, %vm894
      %v896 = vsel %vm895, %v887, %v892
      %v897 = vrsqrt.pop %v886
      %v898 = vmul.f32 %v897, %v886
      %v899 = vmul.f32 %v898, %v897
      %v900 = vmul.f32 0.5, %v899
      %v901 = vsub.f32 1.5, %v900
      %v902 = vmul.f32 %v897, %v901
      %vm903 = vweird.f32 %v886
      %vm904 = vweird.f32 %v897
      %vm905 = vmor %vm903, %vm904
      %v906 = vsel %vm905, %v897, %v902
      %v907 = vmul.f32 %v873, %v896
      %v908 = vmul.f32 %v874, %v906
      %v910 = vperm.slane %v856, 0
      %v912 = vmul.f32 %v907, %v910
      %v913 = vmul.f32 %v908, %v910
      %v915 = vperm.slane %v857, 0
      %v917 = vadd.f32 %v912, %v915
      %v918 = vadd.f32 %v913, %v915
      %v919 = vld [vmem:[%s7] sm:$0xff]
      %v920 = vld [vmem:[%s7 + $0x8] sm:$0xff]
      %v921 = vld [vmem:[%s7 + $0x10] sm:$0xff]
      %v922 = vld [vmem:[%s7 + $0x18] sm:$0xff]
      %v923 = vld [vmem:[%s7 + $0x20] sm:$0xff]
      %v924 = vld [vmem:[%s7 + $0x28] sm:$0xff]
      %v925 = vld [vmem:[%s7 + $0x30] sm:$0xff]
      %v926 = vld [vmem:[%s7 + $0x38] sm:$0xff]
      %v927 = vld [vmem:[%s7 + $0x40] sm:$0xff]
      %v928 = vld [vmem:[%s7 + $0x48] sm:$0xff]
      %v929 = vld [vmem:[%s7 + $0x50] sm:$0xff]
      %v930 = vld [vmem:[%s7 + $0x58] sm:$0xff]
      %v931 = vld [vmem:[%s7 + $0x60] sm:$0xff]
      %v932 = vld [vmem:[%s7 + $0x68] sm:$0xff]
      %v933 = vld [vmem:[%s7 + $0x70] sm:$0xff]
      %v934 = vld [vmem:[%s7 + $0x78] sm:$0xff]
      %v935 = vld [vmem:[%s7 + $0x80] sm:$0xff]
      %v936 = vld [vmem:[%s7 + $0x88] sm:$0xff]
      %v937 = vld [vmem:[%s7 + $0x90] sm:$0xff]
      %v938 = vld [vmem:[%s7 + $0x98] sm:$0xff]
      %v939 = vld [vmem:[%s7 + $0xa0] sm:$0xff]
      %v940 = vld [vmem:[%s7 + $0xa8] sm:$0xff]
      %v941 = vld [vmem:[%s7 + $0xb0] sm:$0xff]
      %v942 = vld [vmem:[%s7 + $0xb8] sm:$0xff]
      %v943 = vld [vmem:[%s7 + $0xc0] sm:$0xff]
      %v944 = vld [vmem:[%s7 + $0xc8] sm:$0xff]
      %v945 = vld [vmem:[%s7 + $0xd0] sm:$0xff]
      %v946 = vld [vmem:[%s7 + $0xd8] sm:$0xff]
      %v947 = vld [vmem:[%s7 + $0xe0] sm:$0xff]
      %v948 = vld [vmem:[%s7 + $0xe8] sm:$0xff]
      %v949 = vld [vmem:[%s7 + $0xf0] sm:$0xff]
      %v950 = vld [vmem:[%s7 + $0xf8] sm:$0xff]
      %v951 = vld [vmem:[%s7 + $0x100] sm:$0xff]
      %v952 = vld [vmem:[%s7 + $0x108] sm:$0xff]
      %v953 = vld [vmem:[%s7 + $0x110] sm:$0xff]
      %v954 = vld [vmem:[%s7 + $0x118] sm:$0xff]
      %v955 = vld [vmem:[%s7 + $0x120] sm:$0xff]
      %v956 = vld [vmem:[%s7 + $0x128] sm:$0xff]
      %v957 = vld [vmem:[%s7 + $0x130] sm:$0xff]
      %v958 = vld [vmem:[%s7 + $0x138] sm:$0xff]
      %v959 = vld [vmem:[%s7 + $0x140] sm:$0xff]
      %v960 = vld [vmem:[%s7 + $0x148] sm:$0xff]
      %v961 = vld [vmem:[%s7 + $0x150] sm:$0xff]
      %v962 = vld [vmem:[%s7 + $0x158] sm:$0xff]
      %v963 = vld [vmem:[%s7 + $0x160] sm:$0xff]
      %v964 = vld [vmem:[%s7 + $0x168] sm:$0xff]
      %v965 = vld [vmem:[%s7 + $0x170] sm:$0xff]
      %v966 = vld [vmem:[%s7 + $0x178] sm:$0xff]
      %v967 = vld [vmem:[%s7 + $0x180] sm:$0xff]
      %v968 = vld [vmem:[%s7 + $0x188] sm:$0xff]
      %v969 = vld [vmem:[%s7 + $0x190] sm:$0xff]
      %v970 = vld [vmem:[%s7 + $0x198] sm:$0xff]
      %v971 = vld [vmem:[%s7 + $0x1a0] sm:$0xff]
      %v972 = vld [vmem:[%s7 + $0x1a8] sm:$0xff]
      %v973 = vld [vmem:[%s7 + $0x1b0] sm:$0xff]
      %v974 = vld [vmem:[%s7 + $0x1b8] sm:$0xff]
      %v975 = vld [vmem:[%s7 + $0x1c0] sm:$0xff]
      %v976 = vld [vmem:[%s7 + $0x1c8] sm:$0xff]
      %v977 = vld [vmem:[%s7 + $0x1d0] sm:$0xff]
      %v978 = vld [vmem:[%s7 + $0x1d8] sm:$0xff]
      %v979 = vld [vmem:[%s7 + $0x1e0] sm:$0xff]
      %v980 = vld [vmem:[%s7 + $0x1e8] sm:$0xff]
      %v981 = vld [vmem:[%s7 + $0x1f0] sm:$0xff]
      %v982 = vld [vmem:[%s7 + $0x1f8] sm:$0xff]
      %v983 = vpack.c.bf16 %v918, %v917
      %v984 = vpack.c.bf16 %v935, %v919
      %v985 = vpack.c.bf16 %v936, %v920
      %v986 = vpack.c.bf16 %v937, %v921
      %v987 = vpack.c.bf16 %v938, %v922
      %v988 = vpack.c.bf16 %v939, %v923
      %v989 = vpack.c.bf16 %v940, %v924
      %v990 = vpack.c.bf16 %v941, %v925
      %v991 = vpack.c.bf16 %v942, %v926
      %v992 = vpack.c.bf16 %v943, %v927
      %v993 = vpack.c.bf16 %v944, %v928
      %v994 = vpack.c.bf16 %v945, %v929
      %v995 = vpack.c.bf16 %v946, %v930
      %v996 = vpack.c.bf16 %v947, %v931
      %v997 = vpack.c.bf16 %v948, %v932
      %v998 = vpack.c.bf16 %v949, %v933
      %v999 = vpack.c.bf16 %v950, %v934
      %v1000 = vpack.c.bf16 %v967, %v951
      %v1001 = vpack.c.bf16 %v968, %v952
      %v1002 = vpack.c.bf16 %v969, %v953
      %v1003 = vpack.c.bf16 %v970, %v954
      %v1004 = vpack.c.bf16 %v971, %v955
      %v1005 = vpack.c.bf16 %v972, %v956
      %v1006 = vpack.c.bf16 %v973, %v957
      %v1007 = vpack.c.bf16 %v974, %v958
      %v1008 = vpack.c.bf16 %v975, %v959
      %v1009 = vpack.c.bf16 %v976, %v960
      %v1010 = vpack.c.bf16 %v977, %v961
      %v1011 = vpack.c.bf16 %v978, %v962
      %v1012 = vpack.c.bf16 %v979, %v963
      %v1013 = vpack.c.bf16 %v980, %v964
      %v1014 = vpack.c.bf16 %v981, %v965
      %v1015 = vpack.c.bf16 %v982, %v966
      %v1016 = vld [vmem:[%s8] sm:$0xff]
      %v1017 = vld [vmem:[%s8 + $0x8] sm:$0xff]
      %v1020 = vperm.slane %v1016, 0
      %v1021 = vperm.slane %v1016, 1
      %v1022 = vperm.slane %v1016, 2
      %v1023 = vperm.slane %v1016, 3
      %v1024 = vperm.slane %v1016, 4
      %v1025 = vperm.slane %v1016, 5
      %v1026 = vperm.slane %v1016, 6
      %v1027 = vperm.slane %v1016, 7
      %v1028 = vperm.slane %v1017, 0
      %v1029 = vperm.slane %v1017, 1
      %v1030 = vperm.slane %v1017, 2
      %v1031 = vperm.slane %v1017, 3
      %v1032 = vperm.slane %v1017, 4
      %v1033 = vperm.slane %v1017, 5
      %v1034 = vperm.slane %v1017, 6
      %v1035 = vperm.slane %v1017, 7
      %v1053 = vsel %vm455, %v983, 0
      %1055 = vmatpush.bf16.msra.mxu0 0
      %1056 = vmatpush.bf16.msra.mxu0 0
      %1057 = vmatpush.bf16.msra.mxu0 0
      %1058 = vmatpush.bf16.msra.mxu0 0
      %1059 = vmatpush.bf16.msra.mxu0 0
      %1060 = vmatpush.bf16.msra.mxu0 0
      %1061 = vmatpush.bf16.msra.mxu0 %v1000
      %1062 = vmatpush.bf16.msra.mxu0 %v984
      %1063 = vmatmul.bf16.gmra.mxu0 %v1053
      %v1064 = vpop.f32.mrf.mxu0
      %v1065 = vadd.f32 %v1020, %v1064
      %v1066 = vpop.f32.mrf.mxu0
      %v1067 = vadd.f32 %v1020, %v1066
      %1068 = vdwg.mxu0
      %1069 = vmatpush.bf16.msra.mxu0 0
      %1070 = vmatpush.bf16.msra.mxu0 0
      %1071 = vmatpush.bf16.msra.mxu0 0
      %1072 = vmatpush.bf16.msra.mxu0 0
      %1073 = vmatpush.bf16.msra.mxu0 0
      %1074 = vmatpush.bf16.msra.mxu0 0
      %1075 = vmatpush.bf16.msra.mxu0 %v1001
      %1076 = vmatpush.bf16.msra.mxu0 %v985
      %1077 = vmatmul.bf16.gmra.mxu0 %v1053
      %v1078 = vpop.f32.mrf.mxu0
      %v1079 = vadd.f32 %v1021, %v1078
      %v1080 = vpop.f32.mrf.mxu0
      %v1081 = vadd.f32 %v1021, %v1080
      %1082 = vdwg.mxu0
      %1083 = vmatpush.bf16.msra.mxu0 0
      %1084 = vmatpush.bf16.msra.mxu0 0
      %1085 = vmatpush.bf16.msra.mxu0 0
      %1086 = vmatpush.bf16.msra.mxu0 0
      %1087 = vmatpush.bf16.msra.mxu0 0
      %1088 = vmatpush.bf16.msra.mxu0 0
      %1089 = vmatpush.bf16.msra.mxu0 %v1002
      %1090 = vmatpush.bf16.msra.mxu0 %v986
      %1091 = vmatmul.bf16.gmra.mxu0 %v1053
      %v1092 = vpop.f32.mrf.mxu0
      %v1093 = vadd.f32 %v1022, %v1092
      %v1094 = vpop.f32.mrf.mxu0
      %v1095 = vadd.f32 %v1022, %v1094
      %1096 = vdwg.mxu0
      %1097 = vmatpush.bf16.msra.mxu0 0
      %1098 = vmatpush.bf16.msra.mxu0 0
      %1099 = vmatpush.bf16.msra.mxu0 0
      %1100 = vmatpush.bf16.msra.mxu0 0
      %1101 = vmatpush.bf16.msra.mxu0 0
      %1102 = vmatpush.bf16.msra.mxu0 0
      %1103 = vmatpush.bf16.msra.mxu0 %v1003
      %1104 = vmatpush.bf16.msra.mxu0 %v987
      %1105 = vmatmul.bf16.gmra.mxu0 %v1053
      %v1106 = vpop.f32.mrf.mxu0
      %v1107 = vadd.f32 %v1023, %v1106
      %v1108 = vpop.f32.mrf.mxu0
      %v1109 = vadd.f32 %v1023, %v1108
      %1110 = vdwg.mxu0
      %1111 = vmatpush.bf16.msra.mxu0 0
      %1112 = vmatpush.bf16.msra.mxu0 0
      %1113 = vmatpush.bf16.msra.mxu0 0
      %1114 = vmatpush.bf16.msra.mxu0 0
      %1115 = vmatpush.bf16.msra.mxu0 0
      %1116 = vmatpush.bf16.msra.mxu0 0
      %1117 = vmatpush.bf16.msra.mxu0 %v1004
      %1118 = vmatpush.bf16.msra.mxu0 %v988
      %1119 = vmatmul.bf16.gmra.mxu0 %v1053
      %v1120 = vpop.f32.mrf.mxu0
      %v1121 = vadd.f32 %v1024, %v1120
      %v1122 = vpop.f32.mrf.mxu0
      %v1123 = vadd.f32 %v1024, %v1122
      %1124 = vdwg.mxu0
      %1125 = vmatpush.bf16.msra.mxu0 0
      %1126 = vmatpush.bf16.msra.mxu0 0
      %1127 = vmatpush.bf16.msra.mxu0 0
      %1128 = vmatpush.bf16.msra.mxu0 0
      %1129 = vmatpush.bf16.msra.mxu0 0
      %1130 = vmatpush.bf16.msra.mxu0 0
      %1131 = vmatpush.bf16.msra.mxu0 %v1005
      %1132 = vmatpush.bf16.msra.mxu0 %v989
      %1133 = vmatmul.bf16.gmra.mxu0 %v1053
      %v1134 = vpop.f32.mrf.mxu0
      %v1135 = vadd.f32 %v1025, %v1134
      %v1136 = vpop.f32.mrf.mxu0
      %v1137 = vadd.f32 %v1025, %v1136
      %1138 = vdwg.mxu0
      %1139 = vmatpush.bf16.msra.mxu0 0
      %1140 = vmatpush.bf16.msra.mxu0 0
      %1141 = vmatpush.bf16.msra.mxu0 0
      %1142 = vmatpush.bf16.msra.mxu0 0
      %1143 = vmatpush.bf16.msra.mxu0 0
      %1144 = vmatpush.bf16.msra.mxu0 0
      %1145 = vmatpush.bf16.msra.mxu0 %v1006
      %1146 = vmatpush.bf16.msra.mxu0 %v990
      %1147 = vmatmul.bf16.gmra.mxu0 %v1053
      %v1148 = vpop.f32.mrf.mxu0
      %v1149 = vadd.f32 %v1026, %v1148
      %v1150 = vpop.f32.mrf.mxu0
      %v1151 = vadd.f32 %v1026, %v1150
      %1152 = vdwg.mxu0
      %1153 = vmatpush.bf16.msra.mxu0 0
      %1154 = vmatpush.bf16.msra.mxu0 0
      %1155 = vmatpush.bf16.msra.mxu0 0
      %1156 = vmatpush.bf16.msra.mxu0 0
      %1157 = vmatpush.bf16.msra.mxu0 0
      %1158 = vmatpush.bf16.msra.mxu0 0
      %1159 = vmatpush.bf16.msra.mxu0 %v1007
      %1160 = vmatpush.bf16.msra.mxu0 %v991
      %1161 = vmatmul.bf16.gmra.mxu0 %v1053
      %v1162 = vpop.f32.mrf.mxu0
      %v1163 = vadd.f32 %v1027, %v1162
      %v1164 = vpop.f32.mrf.mxu0
      %v1165 = vadd.f32 %v1027, %v1164
      %1166 = vdwg.mxu0
      %1167 = vmatpush.bf16.msra.mxu0 0
      %1168 = vmatpush.bf16.msra.mxu0 0
      %1169 = vmatpush.bf16.msra.mxu0 0
      %1170 = vmatpush.bf16.msra.mxu0 0
      %1171 = vmatpush.bf16.msra.mxu0 0
      %1172 = vmatpush.bf16.msra.mxu0 0
      %1173 = vmatpush.bf16.msra.mxu0 %v1008
      %1174 = vmatpush.bf16.msra.mxu0 %v992
      %1175 = vmatmul.bf16.gmra.mxu0 %v1053
      %v1176 = vpop.f32.mrf.mxu0
      %v1177 = vadd.f32 %v1028, %v1176
      %v1178 = vpop.f32.mrf.mxu0
      %v1179 = vadd.f32 %v1028, %v1178
      %1180 = vdwg.mxu0
      %1181 = vmatpush.bf16.msra.mxu0 0
      %1182 = vmatpush.bf16.msra.mxu0 0
      %1183 = vmatpush.bf16.msra.mxu0 0
      %1184 = vmatpush.bf16.msra.mxu0 0
      %1185 = vmatpush.bf16.msra.mxu0 0
      %1186 = vmatpush.bf16.msra.mxu0 0
      %1187 = vmatpush.bf16.msra.mxu0 %v1009
      %1188 = vmatpush.bf16.msra.mxu0 %v993
      %1189 = vmatmul.bf16.gmra.mxu0 %v1053
      %v1190 = vpop.f32.mrf.mxu0
      %v1191 = vadd.f32 %v1029, %v1190
      %v1192 = vpop.f32.mrf.mxu0
      %v1193 = vadd.f32 %v1029, %v1192
      %1194 = vdwg.mxu0
      %1195 = vmatpush.bf16.msra.mxu0 0
      %1196 = vmatpush.bf16.msra.mxu0 0
      %1197 = vmatpush.bf16.msra.mxu0 0
      %1198 = vmatpush.bf16.msra.mxu0 0
      %1199 = vmatpush.bf16.msra.mxu0 0
      %1200 = vmatpush.bf16.msra.mxu0 0
      %1201 = vmatpush.bf16.msra.mxu0 %v1010
      %1202 = vmatpush.bf16.msra.mxu0 %v994
      %1203 = vmatmul.bf16.gmra.mxu0 %v1053
      %v1204 = vpop.f32.mrf.mxu0
      %v1205 = vadd.f32 %v1030, %v1204
      %v1206 = vpop.f32.mrf.mxu0
      %v1207 = vadd.f32 %v1030, %v1206
      %1208 = vdwg.mxu0
      %1209 = vmatpush.bf16.msra.mxu0 0
      %1210 = vmatpush.bf16.msra.mxu0 0
      %1211 = vmatpush.bf16.msra.mxu0 0
      %1212 = vmatpush.bf16.msra.mxu0 0
      %1213 = vmatpush.bf16.msra.mxu0 0
      %1214 = vmatpush.bf16.msra.mxu0 0
      %1215 = vmatpush.bf16.msra.mxu0 %v1011
      %1216 = vmatpush.bf16.msra.mxu0 %v995
      %1217 = vmatmul.bf16.gmra.mxu0 %v1053
      %v1218 = vpop.f32.mrf.mxu0
      %v1219 = vadd.f32 %v1031, %v1218
      %v1220 = vpop.f32.mrf.mxu0
      %v1221 = vadd.f32 %v1031, %v1220
      %1222 = vdwg.mxu0
      %1223 = vmatpush.bf16.msra.mxu0 0
      %1224 = vmatpush.bf16.msra.mxu0 0
      %1225 = vmatpush.bf16.msra.mxu0 0
      %1226 = vmatpush.bf16.msra.mxu0 0
      %1227 = vmatpush.bf16.msra.mxu0 0
      %1228 = vmatpush.bf16.msra.mxu0 0
      %1229 = vmatpush.bf16.msra.mxu0 %v1012
      %1230 = vmatpush.bf16.msra.mxu0 %v996
      %1231 = vmatmul.bf16.gmra.mxu0 %v1053
      %v1232 = vpop.f32.mrf.mxu0
      %v1233 = vadd.f32 %v1032, %v1232
      %v1234 = vpop.f32.mrf.mxu0
      %v1235 = vadd.f32 %v1032, %v1234
      %1236 = vdwg.mxu0
      %1237 = vmatpush.bf16.msra.mxu0 0
      %1238 = vmatpush.bf16.msra.mxu0 0
      %1239 = vmatpush.bf16.msra.mxu0 0
      %1240 = vmatpush.bf16.msra.mxu0 0
      %1241 = vmatpush.bf16.msra.mxu0 0
      %1242 = vmatpush.bf16.msra.mxu0 0
      %1243 = vmatpush.bf16.msra.mxu0 %v1013
      %1244 = vmatpush.bf16.msra.mxu0 %v997
      %1245 = vmatmul.bf16.gmra.mxu0 %v1053
      %v1246 = vpop.f32.mrf.mxu0
      %v1247 = vadd.f32 %v1033, %v1246
      %v1248 = vpop.f32.mrf.mxu0
      %v1249 = vadd.f32 %v1033, %v1248
      %1250 = vdwg.mxu0
      %1251 = vmatpush.bf16.msra.mxu0 0
      %1252 = vmatpush.bf16.msra.mxu0 0
      %1253 = vmatpush.bf16.msra.mxu0 0
      %1254 = vmatpush.bf16.msra.mxu0 0
      %1255 = vmatpush.bf16.msra.mxu0 0
      %1256 = vmatpush.bf16.msra.mxu0 0
      %1257 = vmatpush.bf16.msra.mxu0 %v1014
      %1258 = vmatpush.bf16.msra.mxu0 %v998
      %1259 = vmatmul.bf16.gmra.mxu0 %v1053
      %v1260 = vpop.f32.mrf.mxu0
      %v1261 = vadd.f32 %v1034, %v1260
      %v1262 = vpop.f32.mrf.mxu0
      %v1263 = vadd.f32 %v1034, %v1262
      %1264 = vdwg.mxu0
      %1265 = vmatpush.bf16.msra.mxu0 0
      %1266 = vmatpush.bf16.msra.mxu0 0
      %1267 = vmatpush.bf16.msra.mxu0 0
      %1268 = vmatpush.bf16.msra.mxu0 0
      %1269 = vmatpush.bf16.msra.mxu0 0
      %1270 = vmatpush.bf16.msra.mxu0 0
      %1271 = vmatpush.bf16.msra.mxu0 %v1015
      %1272 = vmatpush.bf16.msra.mxu0 %v999
      %1273 = vmatmul.bf16.gmra.mxu0 %v1053
      %v1274 = vpop.f32.mrf.mxu0
      %v1275 = vadd.f32 %v1035, %v1274
      %v1276 = vpop.f32.mrf.mxu0
      %v1277 = vadd.f32 %v1035, %v1276
      %1278 = vdwg.mxu0
      %v1279 = vmax.f32 %v1065, 0.0
      %v1280 = vmax.f32 %v1079, 0.0
      %v1281 = vmax.f32 %v1093, 0.0
      %v1282 = vmax.f32 %v1107, 0.0
      %v1283 = vmax.f32 %v1121, 0.0
      %v1284 = vmax.f32 %v1135, 0.0
      %v1285 = vmax.f32 %v1149, 0.0
      %v1286 = vmax.f32 %v1163, 0.0
      %v1287 = vmax.f32 %v1177, 0.0
      %v1288 = vmax.f32 %v1191, 0.0
      %v1289 = vmax.f32 %v1205, 0.0
      %v1290 = vmax.f32 %v1219, 0.0
      %v1291 = vmax.f32 %v1233, 0.0
      %v1292 = vmax.f32 %v1247, 0.0
      %v1293 = vmax.f32 %v1261, 0.0
      %v1294 = vmax.f32 %v1275, 0.0
      %v1295 = vmax.f32 %v1067, 0.0
      %v1296 = vmax.f32 %v1081, 0.0
      %v1297 = vmax.f32 %v1095, 0.0
      %v1298 = vmax.f32 %v1109, 0.0
      %v1299 = vmax.f32 %v1123, 0.0
      %v1300 = vmax.f32 %v1137, 0.0
      %v1301 = vmax.f32 %v1151, 0.0
      %v1302 = vmax.f32 %v1165, 0.0
      %v1303 = vmax.f32 %v1179, 0.0
      %v1304 = vmax.f32 %v1193, 0.0
      %v1305 = vmax.f32 %v1207, 0.0
      %v1306 = vmax.f32 %v1221, 0.0
      %v1307 = vmax.f32 %v1235, 0.0
      %v1308 = vmax.f32 %v1249, 0.0
      %v1309 = vmax.f32 %v1263, 0.0
      %v1310 = vmax.f32 %v1277, 0.0
      %v1311 = vld [vmem:[%s9] sm:$0xff]
      %v1312 = vld [vmem:[%s9 + $0x8] sm:$0xff]
      %v1313 = vld [vmem:[%s9 + $0x10] sm:$0xff]
      %v1314 = vld [vmem:[%s9 + $0x18] sm:$0xff]
      %v1315 = vld [vmem:[%s9 + $0x20] sm:$0xff]
      %v1316 = vld [vmem:[%s9 + $0x28] sm:$0xff]
      %v1317 = vld [vmem:[%s9 + $0x30] sm:$0xff]
      %v1318 = vld [vmem:[%s9 + $0x38] sm:$0xff]
      %v1319 = vld [vmem:[%s9 + $0x40] sm:$0xff]
      %v1320 = vld [vmem:[%s9 + $0x48] sm:$0xff]
      %v1321 = vld [vmem:[%s9 + $0x50] sm:$0xff]
      %v1322 = vld [vmem:[%s9 + $0x58] sm:$0xff]
      %v1323 = vld [vmem:[%s9 + $0x60] sm:$0xff]
      %v1324 = vld [vmem:[%s9 + $0x68] sm:$0xff]
      %v1325 = vld [vmem:[%s9 + $0x70] sm:$0xff]
      %v1326 = vld [vmem:[%s9 + $0x78] sm:$0xff]
      %v1327 = vld [vmem:[%s9 + $0x80] sm:$0xff]
      %v1328 = vld [vmem:[%s9 + $0x88] sm:$0xff]
      %v1329 = vld [vmem:[%s9 + $0x90] sm:$0xff]
      %v1330 = vld [vmem:[%s9 + $0x98] sm:$0xff]
      %v1331 = vld [vmem:[%s9 + $0xa0] sm:$0xff]
      %v1332 = vld [vmem:[%s9 + $0xa8] sm:$0xff]
      %v1333 = vld [vmem:[%s9 + $0xb0] sm:$0xff]
      %v1334 = vld [vmem:[%s9 + $0xb8] sm:$0xff]
      %v1335 = vld [vmem:[%s9 + $0xc0] sm:$0xff]
      %v1336 = vld [vmem:[%s9 + $0xc8] sm:$0xff]
      %v1337 = vld [vmem:[%s9 + $0xd0] sm:$0xff]
      %v1338 = vld [vmem:[%s9 + $0xd8] sm:$0xff]
      %v1339 = vld [vmem:[%s9 + $0xe0] sm:$0xff]
      %v1340 = vld [vmem:[%s9 + $0xe8] sm:$0xff]
      %v1341 = vld [vmem:[%s9 + $0xf0] sm:$0xff]
      %v1342 = vld [vmem:[%s9 + $0xf8] sm:$0xff]
      %v1343 = vld [vmem:[%s9 + $0x100] sm:$0xff]
      %v1344 = vld [vmem:[%s9 + $0x108] sm:$0xff]
      %v1345 = vld [vmem:[%s9 + $0x110] sm:$0xff]
      %v1346 = vld [vmem:[%s9 + $0x118] sm:$0xff]
      %v1347 = vld [vmem:[%s9 + $0x120] sm:$0xff]
      %v1348 = vld [vmem:[%s9 + $0x128] sm:$0xff]
      %v1349 = vld [vmem:[%s9 + $0x130] sm:$0xff]
      %v1350 = vld [vmem:[%s9 + $0x138] sm:$0xff]
      %v1351 = vld [vmem:[%s9 + $0x140] sm:$0xff]
      %v1352 = vld [vmem:[%s9 + $0x148] sm:$0xff]
      %v1353 = vld [vmem:[%s9 + $0x150] sm:$0xff]
      %v1354 = vld [vmem:[%s9 + $0x158] sm:$0xff]
      %v1355 = vld [vmem:[%s9 + $0x160] sm:$0xff]
      %v1356 = vld [vmem:[%s9 + $0x168] sm:$0xff]
      %v1357 = vld [vmem:[%s9 + $0x170] sm:$0xff]
      %v1358 = vld [vmem:[%s9 + $0x178] sm:$0xff]
      %v1359 = vld [vmem:[%s9 + $0x180] sm:$0xff]
      %v1360 = vld [vmem:[%s9 + $0x188] sm:$0xff]
      %v1361 = vld [vmem:[%s9 + $0x190] sm:$0xff]
      %v1362 = vld [vmem:[%s9 + $0x198] sm:$0xff]
      %v1363 = vld [vmem:[%s9 + $0x1a0] sm:$0xff]
      %v1364 = vld [vmem:[%s9 + $0x1a8] sm:$0xff]
      %v1365 = vld [vmem:[%s9 + $0x1b0] sm:$0xff]
      %v1366 = vld [vmem:[%s9 + $0x1b8] sm:$0xff]
      %v1367 = vld [vmem:[%s9 + $0x1c0] sm:$0xff]
      %v1368 = vld [vmem:[%s9 + $0x1c8] sm:$0xff]
      %v1369 = vld [vmem:[%s9 + $0x1d0] sm:$0xff]
      %v1370 = vld [vmem:[%s9 + $0x1d8] sm:$0xff]
      %v1371 = vld [vmem:[%s9 + $0x1e0] sm:$0xff]
      %v1372 = vld [vmem:[%s9 + $0x1e8] sm:$0xff]
      %v1373 = vld [vmem:[%s9 + $0x1f0] sm:$0xff]
      %v1374 = vld [vmem:[%s9 + $0x1f8] sm:$0xff]
      %v1375 = vld [vmem:[%s9 + $0x200] sm:$0xff]
      %v1376 = vld [vmem:[%s9 + $0x208] sm:$0xff]
      %v1377 = vld [vmem:[%s9 + $0x210] sm:$0xff]
      %v1378 = vld [vmem:[%s9 + $0x218] sm:$0xff]
      %v1379 = vld [vmem:[%s9 + $0x220] sm:$0xff]
      %v1380 = vld [vmem:[%s9 + $0x228] sm:$0xff]
      %v1381 = vld [vmem:[%s9 + $0x230] sm:$0xff]
      %v1382 = vld [vmem:[%s9 + $0x238] sm:$0xff]
      %v1383 = vld [vmem:[%s9 + $0x240] sm:$0xff]
      %v1384 = vld [vmem:[%s9 + $0x248] sm:$0xff]
      %v1385 = vld [vmem:[%s9 + $0x250] sm:$0xff]
      %v1386 = vld [vmem:[%s9 + $0x258] sm:$0xff]
      %v1387 = vld [vmem:[%s9 + $0x260] sm:$0xff]
      %v1388 = vld [vmem:[%s9 + $0x268] sm:$0xff]
      %v1389 = vld [vmem:[%s9 + $0x270] sm:$0xff]
      %v1390 = vld [vmem:[%s9 + $0x278] sm:$0xff]
      %v1391 = vld [vmem:[%s9 + $0x280] sm:$0xff]
      %v1392 = vld [vmem:[%s9 + $0x288] sm:$0xff]
      %v1393 = vld [vmem:[%s9 + $0x290] sm:$0xff]
      %v1394 = vld [vmem:[%s9 + $0x298] sm:$0xff]
      %v1395 = vld [vmem:[%s9 + $0x2a0] sm:$0xff]
      %v1396 = vld [vmem:[%s9 + $0x2a8] sm:$0xff]
      %v1397 = vld [vmem:[%s9 + $0x2b0] sm:$0xff]
      %v1398 = vld [vmem:[%s9 + $0x2b8] sm:$0xff]
      %v1399 = vld [vmem:[%s9 + $0x2c0] sm:$0xff]
      %v1400 = vld [vmem:[%s9 + $0x2c8] sm:$0xff]
      %v1401 = vld [vmem:[%s9 + $0x2d0] sm:$0xff]
      %v1402 = vld [vmem:[%s9 + $0x2d8] sm:$0xff]
      %v1403 = vld [vmem:[%s9 + $0x2e0] sm:$0xff]
      %v1404 = vld [vmem:[%s9 + $0x2e8] sm:$0xff]
      %v1405 = vld [vmem:[%s9 + $0x2f0] sm:$0xff]
      %v1406 = vld [vmem:[%s9 + $0x2f8] sm:$0xff]
      %v1407 = vld [vmem:[%s9 + $0x300] sm:$0xff]
      %v1408 = vld [vmem:[%s9 + $0x308] sm:$0xff]
      %v1409 = vld [vmem:[%s9 + $0x310] sm:$0xff]
      %v1410 = vld [vmem:[%s9 + $0x318] sm:$0xff]
      %v1411 = vld [vmem:[%s9 + $0x320] sm:$0xff]
      %v1412 = vld [vmem:[%s9 + $0x328] sm:$0xff]
      %v1413 = vld [vmem:[%s9 + $0x330] sm:$0xff]
      %v1414 = vld [vmem:[%s9 + $0x338] sm:$0xff]
      %v1415 = vld [vmem:[%s9 + $0x340] sm:$0xff]
      %v1416 = vld [vmem:[%s9 + $0x348] sm:$0xff]
      %v1417 = vld [vmem:[%s9 + $0x350] sm:$0xff]
      %v1418 = vld [vmem:[%s9 + $0x358] sm:$0xff]
      %v1419 = vld [vmem:[%s9 + $0x360] sm:$0xff]
      %v1420 = vld [vmem:[%s9 + $0x368] sm:$0xff]
      %v1421 = vld [vmem:[%s9 + $0x370] sm:$0xff]
      %v1422 = vld [vmem:[%s9 + $0x378] sm:$0xff]
      %v1423 = vld [vmem:[%s9 + $0x380] sm:$0xff]
      %v1424 = vld [vmem:[%s9 + $0x388] sm:$0xff]
      %v1425 = vld [vmem:[%s9 + $0x390] sm:$0xff]
      %v1426 = vld [vmem:[%s9 + $0x398] sm:$0xff]
      %v1427 = vld [vmem:[%s9 + $0x3a0] sm:$0xff]
      %v1428 = vld [vmem:[%s9 + $0x3a8] sm:$0xff]
      %v1429 = vld [vmem:[%s9 + $0x3b0] sm:$0xff]
      %v1430 = vld [vmem:[%s9 + $0x3b8] sm:$0xff]
      %v1431 = vld [vmem:[%s9 + $0x3c0] sm:$0xff]
      %v1432 = vld [vmem:[%s9 + $0x3c8] sm:$0xff]
      %v1433 = vld [vmem:[%s9 + $0x3d0] sm:$0xff]
      %v1434 = vld [vmem:[%s9 + $0x3d8] sm:$0xff]
      %v1435 = vld [vmem:[%s9 + $0x3e0] sm:$0xff]
      %v1436 = vld [vmem:[%s9 + $0x3e8] sm:$0xff]
      %v1437 = vld [vmem:[%s9 + $0x3f0] sm:$0xff]
      %v1438 = vld [vmem:[%s9 + $0x3f8] sm:$0xff]
      %v1439 = vld [vmem:[%s9 + $0x400] sm:$0xff]
      %v1440 = vld [vmem:[%s9 + $0x408] sm:$0xff]
      %v1441 = vld [vmem:[%s9 + $0x410] sm:$0xff]
      %v1442 = vld [vmem:[%s9 + $0x418] sm:$0xff]
      %v1443 = vld [vmem:[%s9 + $0x420] sm:$0xff]
      %v1444 = vld [vmem:[%s9 + $0x428] sm:$0xff]
      %v1445 = vld [vmem:[%s9 + $0x430] sm:$0xff]
      %v1446 = vld [vmem:[%s9 + $0x438] sm:$0xff]
      %v1447 = vld [vmem:[%s9 + $0x440] sm:$0xff]
      %v1448 = vld [vmem:[%s9 + $0x448] sm:$0xff]
      %v1449 = vld [vmem:[%s9 + $0x450] sm:$0xff]
      %v1450 = vld [vmem:[%s9 + $0x458] sm:$0xff]
      %v1451 = vld [vmem:[%s9 + $0x460] sm:$0xff]
      %v1452 = vld [vmem:[%s9 + $0x468] sm:$0xff]
      %v1453 = vld [vmem:[%s9 + $0x470] sm:$0xff]
      %v1454 = vld [vmem:[%s9 + $0x478] sm:$0xff]
      %v1455 = vld [vmem:[%s9 + $0x480] sm:$0xff]
      %v1456 = vld [vmem:[%s9 + $0x488] sm:$0xff]
      %v1457 = vld [vmem:[%s9 + $0x490] sm:$0xff]
      %v1458 = vld [vmem:[%s9 + $0x498] sm:$0xff]
      %v1459 = vld [vmem:[%s9 + $0x4a0] sm:$0xff]
      %v1460 = vld [vmem:[%s9 + $0x4a8] sm:$0xff]
      %v1461 = vld [vmem:[%s9 + $0x4b0] sm:$0xff]
      %v1462 = vld [vmem:[%s9 + $0x4b8] sm:$0xff]
      %v1463 = vld [vmem:[%s9 + $0x4c0] sm:$0xff]
      %v1464 = vld [vmem:[%s9 + $0x4c8] sm:$0xff]
      %v1465 = vld [vmem:[%s9 + $0x4d0] sm:$0xff]
      %v1466 = vld [vmem:[%s9 + $0x4d8] sm:$0xff]
      %v1467 = vld [vmem:[%s9 + $0x4e0] sm:$0xff]
      %v1468 = vld [vmem:[%s9 + $0x4e8] sm:$0xff]
      %v1469 = vld [vmem:[%s9 + $0x4f0] sm:$0xff]
      %v1470 = vld [vmem:[%s9 + $0x4f8] sm:$0xff]
      %v1471 = vld [vmem:[%s9 + $0x500] sm:$0xff]
      %v1472 = vld [vmem:[%s9 + $0x508] sm:$0xff]
      %v1473 = vld [vmem:[%s9 + $0x510] sm:$0xff]
      %v1474 = vld [vmem:[%s9 + $0x518] sm:$0xff]
      %v1475 = vld [vmem:[%s9 + $0x520] sm:$0xff]
      %v1476 = vld [vmem:[%s9 + $0x528] sm:$0xff]
      %v1477 = vld [vmem:[%s9 + $0x530] sm:$0xff]
      %v1478 = vld [vmem:[%s9 + $0x538] sm:$0xff]
      %v1479 = vld [vmem:[%s9 + $0x540] sm:$0xff]
      %v1480 = vld [vmem:[%s9 + $0x548] sm:$0xff]
      %v1481 = vld [vmem:[%s9 + $0x550] sm:$0xff]
      %v1482 = vld [vmem:[%s9 + $0x558] sm:$0xff]
      %v1483 = vld [vmem:[%s9 + $0x560] sm:$0xff]
      %v1484 = vld [vmem:[%s9 + $0x568] sm:$0xff]
      %v1485 = vld [vmem:[%s9 + $0x570] sm:$0xff]
      %v1486 = vld [vmem:[%s9 + $0x578] sm:$0xff]
      %v1487 = vld [vmem:[%s9 + $0x580] sm:$0xff]
      %v1488 = vld [vmem:[%s9 + $0x588] sm:$0xff]
      %v1489 = vld [vmem:[%s9 + $0x590] sm:$0xff]
      %v1490 = vld [vmem:[%s9 + $0x598] sm:$0xff]
      %v1491 = vld [vmem:[%s9 + $0x5a0] sm:$0xff]
      %v1492 = vld [vmem:[%s9 + $0x5a8] sm:$0xff]
      %v1493 = vld [vmem:[%s9 + $0x5b0] sm:$0xff]
      %v1494 = vld [vmem:[%s9 + $0x5b8] sm:$0xff]
      %v1495 = vld [vmem:[%s9 + $0x5c0] sm:$0xff]
      %v1496 = vld [vmem:[%s9 + $0x5c8] sm:$0xff]
      %v1497 = vld [vmem:[%s9 + $0x5d0] sm:$0xff]
      %v1498 = vld [vmem:[%s9 + $0x5d8] sm:$0xff]
      %v1499 = vld [vmem:[%s9 + $0x5e0] sm:$0xff]
      %v1500 = vld [vmem:[%s9 + $0x5e8] sm:$0xff]
      %v1501 = vld [vmem:[%s9 + $0x5f0] sm:$0xff]
      %v1502 = vld [vmem:[%s9 + $0x5f8] sm:$0xff]
      %v1503 = vld [vmem:[%s9 + $0x600] sm:$0xff]
      %v1504 = vld [vmem:[%s9 + $0x608] sm:$0xff]
      %v1505 = vld [vmem:[%s9 + $0x610] sm:$0xff]
      %v1506 = vld [vmem:[%s9 + $0x618] sm:$0xff]
      %v1507 = vld [vmem:[%s9 + $0x620] sm:$0xff]
      %v1508 = vld [vmem:[%s9 + $0x628] sm:$0xff]
      %v1509 = vld [vmem:[%s9 + $0x630] sm:$0xff]
      %v1510 = vld [vmem:[%s9 + $0x638] sm:$0xff]
      %v1511 = vld [vmem:[%s9 + $0x640] sm:$0xff]
      %v1512 = vld [vmem:[%s9 + $0x648] sm:$0xff]
      %v1513 = vld [vmem:[%s9 + $0x650] sm:$0xff]
      %v1514 = vld [vmem:[%s9 + $0x658] sm:$0xff]
      %v1515 = vld [vmem:[%s9 + $0x660] sm:$0xff]
      %v1516 = vld [vmem:[%s9 + $0x668] sm:$0xff]
      %v1517 = vld [vmem:[%s9 + $0x670] sm:$0xff]
      %v1518 = vld [vmem:[%s9 + $0x678] sm:$0xff]
      %v1519 = vld [vmem:[%s9 + $0x680] sm:$0xff]
      %v1520 = vld [vmem:[%s9 + $0x688] sm:$0xff]
      %v1521 = vld [vmem:[%s9 + $0x690] sm:$0xff]
      %v1522 = vld [vmem:[%s9 + $0x698] sm:$0xff]
      %v1523 = vld [vmem:[%s9 + $0x6a0] sm:$0xff]
      %v1524 = vld [vmem:[%s9 + $0x6a8] sm:$0xff]
      %v1525 = vld [vmem:[%s9 + $0x6b0] sm:$0xff]
      %v1526 = vld [vmem:[%s9 + $0x6b8] sm:$0xff]
      %v1527 = vld [vmem:[%s9 + $0x6c0] sm:$0xff]
      %v1528 = vld [vmem:[%s9 + $0x6c8] sm:$0xff]
      %v1529 = vld [vmem:[%s9 + $0x6d0] sm:$0xff]
      %v1530 = vld [vmem:[%s9 + $0x6d8] sm:$0xff]
      %v1531 = vld [vmem:[%s9 + $0x6e0] sm:$0xff]
      %v1532 = vld [vmem:[%s9 + $0x6e8] sm:$0xff]
      %v1533 = vld [vmem:[%s9 + $0x6f0] sm:$0xff]
      %v1534 = vld [vmem:[%s9 + $0x6f8] sm:$0xff]
      %v1535 = vld [vmem:[%s9 + $0x700] sm:$0xff]
      %v1536 = vld [vmem:[%s9 + $0x708] sm:$0xff]
      %v1537 = vld [vmem:[%s9 + $0x710] sm:$0xff]
      %v1538 = vld [vmem:[%s9 + $0x718] sm:$0xff]
      %v1539 = vld [vmem:[%s9 + $0x720] sm:$0xff]
      %v1540 = vld [vmem:[%s9 + $0x728] sm:$0xff]
      %v1541 = vld [vmem:[%s9 + $0x730] sm:$0xff]
      %v1542 = vld [vmem:[%s9 + $0x738] sm:$0xff]
      %v1543 = vld [vmem:[%s9 + $0x740] sm:$0xff]
      %v1544 = vld [vmem:[%s9 + $0x748] sm:$0xff]
      %v1545 = vld [vmem:[%s9 + $0x750] sm:$0xff]
      %v1546 = vld [vmem:[%s9 + $0x758] sm:$0xff]
      %v1547 = vld [vmem:[%s9 + $0x760] sm:$0xff]
      %v1548 = vld [vmem:[%s9 + $0x768] sm:$0xff]
      %v1549 = vld [vmem:[%s9 + $0x770] sm:$0xff]
      %v1550 = vld [vmem:[%s9 + $0x778] sm:$0xff]
      %v1551 = vld [vmem:[%s9 + $0x780] sm:$0xff]
      %v1552 = vld [vmem:[%s9 + $0x788] sm:$0xff]
      %v1553 = vld [vmem:[%s9 + $0x790] sm:$0xff]
      %v1554 = vld [vmem:[%s9 + $0x798] sm:$0xff]
      %v1555 = vld [vmem:[%s9 + $0x7a0] sm:$0xff]
      %v1556 = vld [vmem:[%s9 + $0x7a8] sm:$0xff]
      %v1557 = vld [vmem:[%s9 + $0x7b0] sm:$0xff]
      %v1558 = vld [vmem:[%s9 + $0x7b8] sm:$0xff]
      %v1559 = vld [vmem:[%s9 + $0x7c0] sm:$0xff]
      %v1560 = vld [vmem:[%s9 + $0x7c8] sm:$0xff]
      %v1561 = vld [vmem:[%s9 + $0x7d0] sm:$0xff]
      %v1562 = vld [vmem:[%s9 + $0x7d8] sm:$0xff]
      %v1563 = vld [vmem:[%s9 + $0x7e0] sm:$0xff]
      %v1564 = vld [vmem:[%s9 + $0x7e8] sm:$0xff]
      %v1565 = vld [vmem:[%s9 + $0x7f0] sm:$0xff]
      %v1566 = vld [vmem:[%s9 + $0x7f8] sm:$0xff]
      %v1567 = vpack.c.bf16 %v1295, %v1279
      %v1568 = vpack.c.bf16 %v1296, %v1280
      %v1569 = vpack.c.bf16 %v1297, %v1281
      %v1570 = vpack.c.bf16 %v1298, %v1282
      %v1571 = vpack.c.bf16 %v1299, %v1283
      %v1572 = vpack.c.bf16 %v1300, %v1284
      %v1573 = vpack.c.bf16 %v1301, %v1285
      %v1574 = vpack.c.bf16 %v1302, %v1286
      %v1575 = vpack.c.bf16 %v1303, %v1287
      %v1576 = vpack.c.bf16 %v1304, %v1288
      %v1577 = vpack.c.bf16 %v1305, %v1289
      %v1578 = vpack.c.bf16 %v1306, %v1290
      %v1579 = vpack.c.bf16 %v1307, %v1291
      %v1580 = vpack.c.bf16 %v1308, %v1292
      %v1581 = vpack.c.bf16 %v1309, %v1293
      %v1582 = vpack.c.bf16 %v1310, %v1294
      %v1583 = vpack.c.bf16 %v1312, %v1311
      %v1584 = vpack.c.bf16 %v1314, %v1313
      %v1585 = vpack.c.bf16 %v1316, %v1315
      %v1586 = vpack.c.bf16 %v1318, %v1317
      %v1587 = vpack.c.bf16 %v1320, %v1319
      %v1588 = vpack.c.bf16 %v1322, %v1321
      %v1589 = vpack.c.bf16 %v1324, %v1323
      %v1590 = vpack.c.bf16 %v1326, %v1325
      %v1591 = vpack.c.bf16 %v1328, %v1327
      %v1592 = vpack.c.bf16 %v1330, %v1329
      %v1593 = vpack.c.bf16 %v1332, %v1331
      %v1594 = vpack.c.bf16 %v1334, %v1333
      %v1595 = vpack.c.bf16 %v1336, %v1335
      %v1596 = vpack.c.bf16 %v1338, %v1337
      %v1597 = vpack.c.bf16 %v1340, %v1339
      %v1598 = vpack.c.bf16 %v1342, %v1341
      %v1599 = vpack.c.bf16 %v1344, %v1343
      %v1600 = vpack.c.bf16 %v1346, %v1345
      %v1601 = vpack.c.bf16 %v1348, %v1347
      %v1602 = vpack.c.bf16 %v1350, %v1349
      %v1603 = vpack.c.bf16 %v1352, %v1351
      %v1604 = vpack.c.bf16 %v1354, %v1353
      %v1605 = vpack.c.bf16 %v1356, %v1355
      %v1606 = vpack.c.bf16 %v1358, %v1357
      %v1607 = vpack.c.bf16 %v1360, %v1359
      %v1608 = vpack.c.bf16 %v1362, %v1361
      %v1609 = vpack.c.bf16 %v1364, %v1363
      %v1610 = vpack.c.bf16 %v1366, %v1365
      %v1611 = vpack.c.bf16 %v1368, %v1367
      %v1612 = vpack.c.bf16 %v1370, %v1369
      %v1613 = vpack.c.bf16 %v1372, %v1371
      %v1614 = vpack.c.bf16 %v1374, %v1373
      %v1615 = vpack.c.bf16 %v1376, %v1375
      %v1616 = vpack.c.bf16 %v1378, %v1377
      %v1617 = vpack.c.bf16 %v1380, %v1379
      %v1618 = vpack.c.bf16 %v1382, %v1381
      %v1619 = vpack.c.bf16 %v1384, %v1383
      %v1620 = vpack.c.bf16 %v1386, %v1385
      %v1621 = vpack.c.bf16 %v1388, %v1387
      %v1622 = vpack.c.bf16 %v1390, %v1389
      %v1623 = vpack.c.bf16 %v1392, %v1391
      %v1624 = vpack.c.bf16 %v1394, %v1393
      %v1625 = vpack.c.bf16 %v1396, %v1395
      %v1626 = vpack.c.bf16 %v1398, %v1397
      %v1627 = vpack.c.bf16 %v1400, %v1399
      %v1628 = vpack.c.bf16 %v1402, %v1401
      %v1629 = vpack.c.bf16 %v1404, %v1403
      %v1630 = vpack.c.bf16 %v1406, %v1405
      %v1631 = vpack.c.bf16 %v1408, %v1407
      %v1632 = vpack.c.bf16 %v1410, %v1409
      %v1633 = vpack.c.bf16 %v1412, %v1411
      %v1634 = vpack.c.bf16 %v1414, %v1413
      %v1635 = vpack.c.bf16 %v1416, %v1415
      %v1636 = vpack.c.bf16 %v1418, %v1417
      %v1637 = vpack.c.bf16 %v1420, %v1419
      %v1638 = vpack.c.bf16 %v1422, %v1421
      %v1639 = vpack.c.bf16 %v1424, %v1423
      %v1640 = vpack.c.bf16 %v1426, %v1425
      %v1641 = vpack.c.bf16 %v1428, %v1427
      %v1642 = vpack.c.bf16 %v1430, %v1429
      %v1643 = vpack.c.bf16 %v1432, %v1431
      %v1644 = vpack.c.bf16 %v1434, %v1433
      %v1645 = vpack.c.bf16 %v1436, %v1435
      %v1646 = vpack.c.bf16 %v1438, %v1437
      %v1647 = vpack.c.bf16 %v1440, %v1439
      %v1648 = vpack.c.bf16 %v1442, %v1441
      %v1649 = vpack.c.bf16 %v1444, %v1443
      %v1650 = vpack.c.bf16 %v1446, %v1445
      %v1651 = vpack.c.bf16 %v1448, %v1447
      %v1652 = vpack.c.bf16 %v1450, %v1449
      %v1653 = vpack.c.bf16 %v1452, %v1451
      %v1654 = vpack.c.bf16 %v1454, %v1453
      %v1655 = vpack.c.bf16 %v1456, %v1455
      %v1656 = vpack.c.bf16 %v1458, %v1457
      %v1657 = vpack.c.bf16 %v1460, %v1459
      %v1658 = vpack.c.bf16 %v1462, %v1461
      %v1659 = vpack.c.bf16 %v1464, %v1463
      %v1660 = vpack.c.bf16 %v1466, %v1465
      %v1661 = vpack.c.bf16 %v1468, %v1467
      %v1662 = vpack.c.bf16 %v1470, %v1469
      %v1663 = vpack.c.bf16 %v1472, %v1471
      %v1664 = vpack.c.bf16 %v1474, %v1473
      %v1665 = vpack.c.bf16 %v1476, %v1475
      %v1666 = vpack.c.bf16 %v1478, %v1477
      %v1667 = vpack.c.bf16 %v1480, %v1479
      %v1668 = vpack.c.bf16 %v1482, %v1481
      %v1669 = vpack.c.bf16 %v1484, %v1483
      %v1670 = vpack.c.bf16 %v1486, %v1485
      %v1671 = vpack.c.bf16 %v1488, %v1487
      %v1672 = vpack.c.bf16 %v1490, %v1489
      %v1673 = vpack.c.bf16 %v1492, %v1491
      %v1674 = vpack.c.bf16 %v1494, %v1493
      %v1675 = vpack.c.bf16 %v1496, %v1495
      %v1676 = vpack.c.bf16 %v1498, %v1497
      %v1677 = vpack.c.bf16 %v1500, %v1499
      %v1678 = vpack.c.bf16 %v1502, %v1501
      %v1679 = vpack.c.bf16 %v1504, %v1503
      %v1680 = vpack.c.bf16 %v1506, %v1505
      %v1681 = vpack.c.bf16 %v1508, %v1507
      %v1682 = vpack.c.bf16 %v1510, %v1509
      %v1683 = vpack.c.bf16 %v1512, %v1511
      %v1684 = vpack.c.bf16 %v1514, %v1513
      %v1685 = vpack.c.bf16 %v1516, %v1515
      %v1686 = vpack.c.bf16 %v1518, %v1517
      %v1687 = vpack.c.bf16 %v1520, %v1519
      %v1688 = vpack.c.bf16 %v1522, %v1521
      %v1689 = vpack.c.bf16 %v1524, %v1523
      %v1690 = vpack.c.bf16 %v1526, %v1525
      %v1691 = vpack.c.bf16 %v1528, %v1527
      %v1692 = vpack.c.bf16 %v1530, %v1529
      %v1693 = vpack.c.bf16 %v1532, %v1531
      %v1694 = vpack.c.bf16 %v1534, %v1533
      %v1695 = vpack.c.bf16 %v1536, %v1535
      %v1696 = vpack.c.bf16 %v1538, %v1537
      %v1697 = vpack.c.bf16 %v1540, %v1539
      %v1698 = vpack.c.bf16 %v1542, %v1541
      %v1699 = vpack.c.bf16 %v1544, %v1543
      %v1700 = vpack.c.bf16 %v1546, %v1545
      %v1701 = vpack.c.bf16 %v1548, %v1547
      %v1702 = vpack.c.bf16 %v1550, %v1549
      %v1703 = vpack.c.bf16 %v1552, %v1551
      %v1704 = vpack.c.bf16 %v1554, %v1553
      %v1705 = vpack.c.bf16 %v1556, %v1555
      %v1706 = vpack.c.bf16 %v1558, %v1557
      %v1707 = vpack.c.bf16 %v1560, %v1559
      %v1708 = vpack.c.bf16 %v1562, %v1561
      %v1709 = vpack.c.bf16 %v1564, %v1563
      %v1710 = vpack.c.bf16 %v1566, %v1565
      %v1711 = vld [vmem:[%s10] sm:$0x1]
      %v1713 = vperm.slane %v1711, 0
      %1715 = vmatpush.bf16.msra.mxu0 %v1590
      %1716 = vmatpush.bf16.msra.mxu0 %v1589
      %1717 = vmatpush.bf16.msra.mxu0 %v1588
      %1718 = vmatpush.bf16.msra.mxu0 %v1587
      %1719 = vmatpush.bf16.msra.mxu0 %v1586
      %1720 = vmatpush.bf16.msra.mxu0 %v1585
      %1721 = vmatpush.bf16.msra.mxu0 %v1584
      %1722 = vmatpush.bf16.msra.mxu0 %v1583
      %1723 = vmatmul.bf16.gmra.mxu0 %v1567
      %v1724 = vpop.f32.mrf.mxu0
      %v1725 = vadd.f32 %v1713, %v1724
      %v1726 = vpop.f32.mrf.mxu0
      %v1727 = vadd.f32 %v1713, %v1726
      %1728 = vdwg.mxu0
      %1729 = vmatpush.bf16.msra.mxu0 %v1598
      %1730 = vmatpush.bf16.msra.mxu0 %v1597
      %1731 = vmatpush.bf16.msra.mxu0 %v1596
      %1732 = vmatpush.bf16.msra.mxu0 %v1595
      %1733 = vmatpush.bf16.msra.mxu0 %v1594
      %1734 = vmatpush.bf16.msra.mxu0 %v1593
      %1735 = vmatpush.bf16.msra.mxu0 %v1592
      %1736 = vmatpush.bf16.msra.mxu0 %v1591
      %1737 = vmatmul.bf16.gmra.mxu0 %v1568
      %v1738 = vpop.f32.mrf.mxu0
      %v1739 = vadd.f32 %v1725, %v1738
      %v1740 = vpop.f32.mrf.mxu0
      %v1741 = vadd.f32 %v1727, %v1740
      %1742 = vdwg.mxu0
      %1743 = vmatpush.bf16.msra.mxu0 %v1606
      %1744 = vmatpush.bf16.msra.mxu0 %v1605
      %1745 = vmatpush.bf16.msra.mxu0 %v1604
      %1746 = vmatpush.bf16.msra.mxu0 %v1603
      %1747 = vmatpush.bf16.msra.mxu0 %v1602
      %1748 = vmatpush.bf16.msra.mxu0 %v1601
      %1749 = vmatpush.bf16.msra.mxu0 %v1600
      %1750 = vmatpush.bf16.msra.mxu0 %v1599
      %1751 = vmatmul.bf16.gmra.mxu0 %v1569
      %v1752 = vpop.f32.mrf.mxu0
      %v1753 = vadd.f32 %v1739, %v1752
      %v1754 = vpop.f32.mrf.mxu0
      %v1755 = vadd.f32 %v1741, %v1754
      %1756 = vdwg.mxu0
      %1757 = vmatpush.bf16.msra.mxu0 %v1614
      %1758 = vmatpush.bf16.msra.mxu0 %v1613
      %1759 = vmatpush.bf16.msra.mxu0 %v1612
      %1760 = vmatpush.bf16.msra.mxu0 %v1611
      %1761 = vmatpush.bf16.msra.mxu0 %v1610
      %1762 = vmatpush.bf16.msra.mxu0 %v1609
      %1763 = vmatpush.bf16.msra.mxu0 %v1608
      %1764 = vmatpush.bf16.msra.mxu0 %v1607
      %1765 = vmatmul.bf16.gmra.mxu0 %v1570
      %v1766 = vpop.f32.mrf.mxu0
      %v1767 = vadd.f32 %v1753, %v1766
      %v1768 = vpop.f32.mrf.mxu0
      %v1769 = vadd.f32 %v1755, %v1768
      %1770 = vdwg.mxu0
      %1771 = vmatpush.bf16.msra.mxu0 %v1622
      %1772 = vmatpush.bf16.msra.mxu0 %v1621
      %1773 = vmatpush.bf16.msra.mxu0 %v1620
      %1774 = vmatpush.bf16.msra.mxu0 %v1619
      %1775 = vmatpush.bf16.msra.mxu0 %v1618
      %1776 = vmatpush.bf16.msra.mxu0 %v1617
      %1777 = vmatpush.bf16.msra.mxu0 %v1616
      %1778 = vmatpush.bf16.msra.mxu0 %v1615
      %1779 = vmatmul.bf16.gmra.mxu0 %v1571
      %v1780 = vpop.f32.mrf.mxu0
      %v1781 = vadd.f32 %v1767, %v1780
      %v1782 = vpop.f32.mrf.mxu0
      %v1783 = vadd.f32 %v1769, %v1782
      %1784 = vdwg.mxu0
      %1785 = vmatpush.bf16.msra.mxu0 %v1630
      %1786 = vmatpush.bf16.msra.mxu0 %v1629
      %1787 = vmatpush.bf16.msra.mxu0 %v1628
      %1788 = vmatpush.bf16.msra.mxu0 %v1627
      %1789 = vmatpush.bf16.msra.mxu0 %v1626
      %1790 = vmatpush.bf16.msra.mxu0 %v1625
      %1791 = vmatpush.bf16.msra.mxu0 %v1624
      %1792 = vmatpush.bf16.msra.mxu0 %v1623
      %1793 = vmatmul.bf16.gmra.mxu0 %v1572
      %v1794 = vpop.f32.mrf.mxu0
      %v1795 = vadd.f32 %v1781, %v1794
      %v1796 = vpop.f32.mrf.mxu0
      %v1797 = vadd.f32 %v1783, %v1796
      %1798 = vdwg.mxu0
      %1799 = vmatpush.bf16.msra.mxu0 %v1638
      %1800 = vmatpush.bf16.msra.mxu0 %v1637
      %1801 = vmatpush.bf16.msra.mxu0 %v1636
      %1802 = vmatpush.bf16.msra.mxu0 %v1635
      %1803 = vmatpush.bf16.msra.mxu0 %v1634
      %1804 = vmatpush.bf16.msra.mxu0 %v1633
      %1805 = vmatpush.bf16.msra.mxu0 %v1632
      %1806 = vmatpush.bf16.msra.mxu0 %v1631
      %1807 = vmatmul.bf16.gmra.mxu0 %v1573
      %v1808 = vpop.f32.mrf.mxu0
      %v1809 = vadd.f32 %v1795, %v1808
      %v1810 = vpop.f32.mrf.mxu0
      %v1811 = vadd.f32 %v1797, %v1810
      %1812 = vdwg.mxu0
      %1813 = vmatpush.bf16.msra.mxu0 %v1646
      %1814 = vmatpush.bf16.msra.mxu0 %v1645
      %1815 = vmatpush.bf16.msra.mxu0 %v1644
      %1816 = vmatpush.bf16.msra.mxu0 %v1643
      %1817 = vmatpush.bf16.msra.mxu0 %v1642
      %1818 = vmatpush.bf16.msra.mxu0 %v1641
      %1819 = vmatpush.bf16.msra.mxu0 %v1640
      %1820 = vmatpush.bf16.msra.mxu0 %v1639
      %1821 = vmatmul.bf16.gmra.mxu0 %v1574
      %v1822 = vpop.f32.mrf.mxu0
      %v1823 = vadd.f32 %v1809, %v1822
      %v1824 = vpop.f32.mrf.mxu0
      %v1825 = vadd.f32 %v1811, %v1824
      %1826 = vdwg.mxu0
      %1827 = vmatpush.bf16.msra.mxu0 %v1654
      %1828 = vmatpush.bf16.msra.mxu0 %v1653
      %1829 = vmatpush.bf16.msra.mxu0 %v1652
      %1830 = vmatpush.bf16.msra.mxu0 %v1651
      %1831 = vmatpush.bf16.msra.mxu0 %v1650
      %1832 = vmatpush.bf16.msra.mxu0 %v1649
      %1833 = vmatpush.bf16.msra.mxu0 %v1648
      %1834 = vmatpush.bf16.msra.mxu0 %v1647
      %1835 = vmatmul.bf16.gmra.mxu0 %v1575
      %v1836 = vpop.f32.mrf.mxu0
      %v1837 = vadd.f32 %v1823, %v1836
      %v1838 = vpop.f32.mrf.mxu0
      %v1839 = vadd.f32 %v1825, %v1838
      %1840 = vdwg.mxu0
      %1841 = vmatpush.bf16.msra.mxu0 %v1662
      %1842 = vmatpush.bf16.msra.mxu0 %v1661
      %1843 = vmatpush.bf16.msra.mxu0 %v1660
      %1844 = vmatpush.bf16.msra.mxu0 %v1659
      %1845 = vmatpush.bf16.msra.mxu0 %v1658
      %1846 = vmatpush.bf16.msra.mxu0 %v1657
      %1847 = vmatpush.bf16.msra.mxu0 %v1656
      %1848 = vmatpush.bf16.msra.mxu0 %v1655
      %1849 = vmatmul.bf16.gmra.mxu0 %v1576
      %v1850 = vpop.f32.mrf.mxu0
      %v1851 = vadd.f32 %v1837, %v1850
      %v1852 = vpop.f32.mrf.mxu0
      %v1853 = vadd.f32 %v1839, %v1852
      %1854 = vdwg.mxu0
      %1855 = vmatpush.bf16.msra.mxu0 %v1670
      %1856 = vmatpush.bf16.msra.mxu0 %v1669
      %1857 = vmatpush.bf16.msra.mxu0 %v1668
      %1858 = vmatpush.bf16.msra.mxu0 %v1667
      %1859 = vmatpush.bf16.msra.mxu0 %v1666
      %1860 = vmatpush.bf16.msra.mxu0 %v1665
      %1861 = vmatpush.bf16.msra.mxu0 %v1664
      %1862 = vmatpush.bf16.msra.mxu0 %v1663
      %1863 = vmatmul.bf16.gmra.mxu0 %v1577
      %v1864 = vpop.f32.mrf.mxu0
      %v1865 = vadd.f32 %v1851, %v1864
      %v1866 = vpop.f32.mrf.mxu0
      %v1867 = vadd.f32 %v1853, %v1866
      %1868 = vdwg.mxu0
      %1869 = vmatpush.bf16.msra.mxu0 %v1678
      %1870 = vmatpush.bf16.msra.mxu0 %v1677
      %1871 = vmatpush.bf16.msra.mxu0 %v1676
      %1872 = vmatpush.bf16.msra.mxu0 %v1675
      %1873 = vmatpush.bf16.msra.mxu0 %v1674
      %1874 = vmatpush.bf16.msra.mxu0 %v1673
      %1875 = vmatpush.bf16.msra.mxu0 %v1672
      %1876 = vmatpush.bf16.msra.mxu0 %v1671
      %1877 = vmatmul.bf16.gmra.mxu0 %v1578
      %v1878 = vpop.f32.mrf.mxu0
      %v1879 = vadd.f32 %v1865, %v1878
      %v1880 = vpop.f32.mrf.mxu0
      %v1881 = vadd.f32 %v1867, %v1880
      %1882 = vdwg.mxu0
      %1883 = vmatpush.bf16.msra.mxu0 %v1686
      %1884 = vmatpush.bf16.msra.mxu0 %v1685
      %1885 = vmatpush.bf16.msra.mxu0 %v1684
      %1886 = vmatpush.bf16.msra.mxu0 %v1683
      %1887 = vmatpush.bf16.msra.mxu0 %v1682
      %1888 = vmatpush.bf16.msra.mxu0 %v1681
      %1889 = vmatpush.bf16.msra.mxu0 %v1680
      %1890 = vmatpush.bf16.msra.mxu0 %v1679
      %1891 = vmatmul.bf16.gmra.mxu0 %v1579
      %v1892 = vpop.f32.mrf.mxu0
      %v1893 = vadd.f32 %v1879, %v1892
      %v1894 = vpop.f32.mrf.mxu0
      %v1895 = vadd.f32 %v1881, %v1894
      %1896 = vdwg.mxu0
      %1897 = vmatpush.bf16.msra.mxu0 %v1694
      %1898 = vmatpush.bf16.msra.mxu0 %v1693
      %1899 = vmatpush.bf16.msra.mxu0 %v1692
      %1900 = vmatpush.bf16.msra.mxu0 %v1691
      %1901 = vmatpush.bf16.msra.mxu0 %v1690
      %1902 = vmatpush.bf16.msra.mxu0 %v1689
      %1903 = vmatpush.bf16.msra.mxu0 %v1688
      %1904 = vmatpush.bf16.msra.mxu0 %v1687
      %1905 = vmatmul.bf16.gmra.mxu0 %v1580
      %v1906 = vpop.f32.mrf.mxu0
      %v1907 = vadd.f32 %v1893, %v1906
      %v1908 = vpop.f32.mrf.mxu0
      %v1909 = vadd.f32 %v1895, %v1908
      %1910 = vdwg.mxu0
      %1911 = vmatpush.bf16.msra.mxu0 %v1702
      %1912 = vmatpush.bf16.msra.mxu0 %v1701
      %1913 = vmatpush.bf16.msra.mxu0 %v1700
      %1914 = vmatpush.bf16.msra.mxu0 %v1699
      %1915 = vmatpush.bf16.msra.mxu0 %v1698
      %1916 = vmatpush.bf16.msra.mxu0 %v1697
      %1917 = vmatpush.bf16.msra.mxu0 %v1696
      %1918 = vmatpush.bf16.msra.mxu0 %v1695
      %1919 = vmatmul.bf16.gmra.mxu0 %v1581
      %v1920 = vpop.f32.mrf.mxu0
      %v1921 = vadd.f32 %v1907, %v1920
      %v1922 = vpop.f32.mrf.mxu0
      %v1923 = vadd.f32 %v1909, %v1922
      %1924 = vdwg.mxu0
      %1925 = vmatpush.bf16.msra.mxu0 %v1710
      %1926 = vmatpush.bf16.msra.mxu0 %v1709
      %1927 = vmatpush.bf16.msra.mxu0 %v1708
      %1928 = vmatpush.bf16.msra.mxu0 %v1707
      %1929 = vmatpush.bf16.msra.mxu0 %v1706
      %1930 = vmatpush.bf16.msra.mxu0 %v1705
      %1931 = vmatpush.bf16.msra.mxu0 %v1704
      %1932 = vmatpush.bf16.msra.mxu0 %v1703
      %1933 = vmatmul.bf16.gmra.mxu0 %v1582
      %v1934 = vpop.f32.mrf.mxu0
      %v1935 = vadd.f32 %v1921, %v1934
      %v1936 = vpop.f32.mrf.mxu0
      %v1937 = vadd.f32 %v1923, %v1936
      %1938 = vdwg.mxu0
      %v1939 = vadd.f32 %v1935, %v917
      %v1940 = vadd.f32 %v1937, %v918
      %v1941 = vld [vmem:[%s11] sm:$0x1]
      %v1942 = vld [vmem:[%s12] sm:$0x1]
      %v1943 = vsel %vm455, %v1939, 0.0
      %1944 = vadd.xlane.f32.xlu0 %v1943
      %v1945 = vpop.xlane.xlu0 %1944
      %v1946 = vsel %vm455, %v1940, 0.0
      %1947 = vadd.xlane.f32.xlu0 %v1946
      %v1948 = vpop.xlane.xlu0 %1947
      %v1949 = vmul.f32 %v1945, %v870
      %v1950 = vmul.f32 %v1948, %v870
      %v1951 = vsub.f32 %v1939, %v1949
      %v1952 = vsub.f32 %v1940, %v1950
      %v1953 = vmul.f32 %v1951, %v1951
      %v1954 = vmul.f32 %v1952, %v1952
      %v1955 = vsel %vm455, %v1953, 0.0
      %1956 = vadd.xlane.f32.xlu0 %v1955
      %v1957 = vpop.xlane.xlu0 %1956
      %v1958 = vsel %vm455, %v1954, 0.0
      %1959 = vadd.xlane.f32.xlu0 %v1958
      %v1960 = vpop.xlane.xlu0 %1959
      %v1961 = vmul.f32 %v1957, %v870
      %v1962 = vmul.f32 %v1960, %v870
      %v1963 = vadd.f32 %v1961, 1e-05
      %v1964 = vadd.f32 %v1962, 1e-05
      %v1965 = vrsqrt.pop %v1963
      %v1966 = vmul.f32 %v1965, %v1963
      %v1967 = vmul.f32 %v1966, %v1965
      %v1968 = vmul.f32 0.5, %v1967
      %v1969 = vsub.f32 1.5, %v1968
      %v1970 = vmul.f32 %v1965, %v1969
      %vm1971 = vweird.f32 %v1963
      %vm1972 = vweird.f32 %v1965
      %vm1973 = vmor %vm1971, %vm1972
      %v1974 = vsel %vm1973, %v1965, %v1970
      %v1975 = vrsqrt.pop %v1964
      %v1976 = vmul.f32 %v1975, %v1964
      %v1977 = vmul.f32 %v1976, %v1975
      %v1978 = vmul.f32 0.5, %v1977
      %v1979 = vsub.f32 1.5, %v1978
      %v1980 = vmul.f32 %v1975, %v1979
      %vm1981 = vweird.f32 %v1964
      %vm1982 = vweird.f32 %v1975
      %vm1983 = vmor %vm1981, %vm1982
      %v1984 = vsel %vm1983, %v1975, %v1980
      %v1985 = vmul.f32 %v1951, %v1974
      %v1986 = vmul.f32 %v1952, %v1984
      %v1988 = vperm.slane %v1941, 0
      %v1990 = vmul.f32 %v1985, %v1988
      %v1991 = vmul.f32 %v1986, %v1988
      %v1993 = vperm.slane %v1942, 0
      %v1995 = vadd.f32 %v1990, %v1993
      %v1996 = vadd.f32 %v1991, %v1993
      %1997 = vst.msk [vmem:[%s440] sm:$0xff] %vm455, %v1995
      %1998 = vst.msk [vmem:[%s440 + $0x8] sm:$0xff] %vm455, %v1996
      %p1999 = scmp.lt.s32.totalorder %s24, 1
      %s2000 = scalar_select %p1999, %s24, 1
      %s2001 = smul.addr %s2000, 2
      %s2002 = smul.addr %s2001, 8
      %s2003 = scalar_lea.vmem %s13, %s2002
      // Predicated region
      $region73: #{vit_forward.9} parent=71 // pred_check
        %p2004 = pneg %p320
      $region74: #{vit_forward.9} parent=71 // pred_check_branch
        %2006 = sbr.rel (%p2004) target = $region76
      $region75: #{vit_forward.9} parent=71 // pred_region
        _
      $region76: #{vit_forward.9} parent=71 // pred_fallthru
        _
    $region72: #{vit_forward.9} parent=5 // pred_fallthru
      _
    %p2007 = scmp.le.s32.totalorder 2, %s19
    // Predicated region
    $region77: #{vit_forward.9} parent=5 // pred_check
      %p2008 = pneg %p2007
    $region78: #{vit_forward.9} parent=5 // pred_check_branch
      %2010 = sbr.rel (%p2008) target = $region80
    $region79: #{vit_forward.9} parent=5 // pred_region
      %s2011 = ssub.s32 %s19, 2
      // Predicated region
      $region81: #{vit_forward.9} parent=79 // pred_check
        %p2012 = pneg %p326
      $region82: #{vit_forward.9} parent=79 // pred_check_branch
        %2014 = sbr.rel (%p2012) target = $region84
      $region83: #{vit_forward.9} parent=79 // pred_region
        %p2015 = scmp.lt.s32.totalorder %s25, 1
        %s2016 = scalar_select %p2015, %s25, 1
        %s2017 = smul.addr %s2016, 2
        %s2018 = smul.addr %s2017, 8
        %s2019 = scalar_lea.vmem %s13, %s2018
      $region84: #{vit_forward.9} parent=79 // pred_fallthru
        _
    $region80: #{vit_forward.9} parent=5 // pred_fallthru
      _
  $region6: #{vit_forward.9} parent=0 // loop_footer
    %s23 = sadd.s32 1, %s19
  $region7: #{vit_forward.9} parent=0 // loop_footer_branch
    %18 = sbr.rel target = $region3
  $region8: #{vit_forward.9} parent=0 // loop_exit
    _

// kernel: vit_forward.11
$region0: #{vit_forward.11}
  #allocation0 [shape = 'u32[]', space=smem, size = 0x4, offset = 0x4, fixed_abs, tag = 'smem constant byte address 0x4 - core index']
  #allocation1 [shape = 'u32[72,128]{1,0:T(1,128)}', space=vmem, size = 0x9000, scoped, tag = 'internal scratch']
  %s0 = inlined_call_operand.vmem [shape: f32[2,16,32], index: 0, kind: input, shape index: {}]
  %s1 = inlined_call_operand.vmem [shape: f32[2,16,32], index: 1, kind: input, shape index: {}]
  %s2 = inlined_call_operand.vmem [shape: f32[32,96], index: 2, kind: input, shape index: {}]
  %s3 = inlined_call_operand.vmem [shape: f32[1,96], index: 3, kind: input, shape index: {}]
  %s4 = inlined_call_operand.vmem [shape: f32[32,32], index: 4, kind: input, shape index: {}]
  %s5 = inlined_call_operand.vmem [shape: f32[1,32], index: 5, kind: input, shape index: {}]
  %s6 = inlined_call_operand.vmem [shape: f32[1,32], index: 6, kind: input, shape index: {}]
  %s7 = inlined_call_operand.vmem [shape: f32[1,32], index: 7, kind: input, shape index: {}]
  %s8 = inlined_call_operand.vmem [shape: f32[32,32], index: 8, kind: input, shape index: {}]
  %s9 = inlined_call_operand.vmem [shape: f32[1,32], index: 9, kind: input, shape index: {}]
  %s10 = inlined_call_operand.vmem [shape: f32[32,64], index: 10, kind: input, shape index: {}]
  %s11 = inlined_call_operand.vmem [shape: f32[1,64], index: 11, kind: input, shape index: {}]
  %s12 = inlined_call_operand.vmem [shape: f32[32,32], index: 12, kind: input, shape index: {}]
  %s13 = inlined_call_operand.vmem [shape: f32[1,32], index: 13, kind: input, shape index: {}]
  %s14 = inlined_call_operand.vmem [shape: f32[1,32], index: 14, kind: input, shape index: {}]
  %s15 = inlined_call_operand.vmem [shape: f32[1,32], index: 15, kind: input, shape index: {}]
  %s16 = inlined_call_operand.vmem [shape: f32[32,2048], index: 16, kind: input, shape index: {}]
  %s17 = inlined_call_operand.vmem [shape: f32[1,2048], index: 17, kind: input, shape index: {}]
  %s18 = inlined_call_operand.vmem [shape: f32[2048,32], index: 18, kind: input, shape index: {}]
  %s19 = inlined_call_operand.vmem [shape: f32[1,32], index: 19, kind: input, shape index: {}]
  %s20 = inlined_call_operand.vmem [shape: f32[1,32], index: 20, kind: input, shape index: {}]
  %s21 = inlined_call_operand.vmem [shape: f32[1,32], index: 21, kind: input, shape index: {}]
  %s22 = inlined_call_operand.vmem [shape: f32[2,16,32], index: 22, kind: output, shape index: {}]
  %s23 = sld [smem:[#allocation0]]
  $region121: #{vit_forward.11} parent=0
    _
  %s25 = ssub.s32 1, %s23
  %s26 = scalar_select 0, %s25, %s23
  loop: start=0, step=1, limit=4
  $region2: #{vit_forward.11} parent=0 // loop_pre_header
    _
  $region3: #{vit_forward.11} parent=0 // loop_header
    %s28 = sphi 0, %s32
    %p29 = scmp.ge.s32.totalorder %s28, 4
    %s38 = sphi 0, %s40
    %s41 = sphi 0, %s38
    %s42 = sphi 0, %s41
    %s58 = sphi 0, %s42
    %s64 = sphi 0, %s66
    %s67 = sphi 0, %s64
    %s68 = sphi 0, %s67
    %s84 = sphi 0, %s68
    %s88 = sphi 0, %s88
    %s90 = sphi 0, %s88
    %s91 = sphi 0, %s90
    %s105 = sphi 0, %s91
    %s109 = sphi 0, %s109
    %s111 = sphi 0, %s109
    %s112 = sphi 0, %s111
    %s126 = sphi 0, %s112
    %s130 = sphi 0, %s130
    %s132 = sphi 0, %s130
    %s133 = sphi 0, %s132
    %s147 = sphi 0, %s133
    %s151 = sphi 0, %s151
    %s153 = sphi 0, %s151
    %s154 = sphi 0, %s153
    %s168 = sphi 0, %s154
    %s172 = sphi 0, %s172
    %s174 = sphi 0, %s172
    %s175 = sphi 0, %s174
    %s189 = sphi 0, %s175
    %s193 = sphi 0, %s193
    %s195 = sphi 0, %s193
    %s196 = sphi 0, %s195
    %s210 = sphi 0, %s196
    %s214 = sphi 0, %s214
    %s216 = sphi 0, %s214
    %s217 = sphi 0, %s216
    %s231 = sphi 0, %s217
    %s235 = sphi 0, %s235
    %s237 = sphi 0, %s235
    %s238 = sphi 0, %s237
    %s252 = sphi 0, %s238
    %s256 = sphi 0, %s256
    %s258 = sphi 0, %s256
    %s259 = sphi 0, %s258
    %s273 = sphi 0, %s259
    %s277 = sphi 0, %s277
    %s279 = sphi 0, %s277
    %s280 = sphi 0, %s279
    %s294 = sphi 0, %s280
    %s298 = sphi 0, %s298
    %s300 = sphi 0, %s298
    %s301 = sphi 0, %s300
    %s315 = sphi 0, %s301
    %s319 = sphi 0, %s319
    %s321 = sphi 0, %s319
    %s322 = sphi 0, %s321
    %s336 = sphi 0, %s322
    %s340 = sphi 0, %s340
    %s342 = sphi 0, %s340
    %s343 = sphi 0, %s342
    %s357 = sphi 0, %s343
    %s361 = sphi 0, %s361
    %s363 = sphi 0, %s361
    %s364 = sphi 0, %s363
    %s378 = sphi 0, %s364
    %s382 = sphi 0, %s382
    %s384 = sphi 0, %s382
    %s385 = sphi 0, %s384
    %s399 = sphi 0, %s385
    %s403 = sphi 0, %s403
    %s405 = sphi 0, %s403
    %s406 = sphi 0, %s405
    %s420 = sphi 0, %s406
    %s424 = sphi 0, %s424
    %s426 = sphi 0, %s424
    %s427 = sphi 0, %s426
    %s441 = sphi 0, %s427
    %s445 = sphi 0, %s445
    %s447 = sphi 0, %s445
    %s448 = sphi 0, %s447
    %s462 = sphi 0, %s448
    %s466 = sphi 0, %s466
    %s468 = sphi 0, %s466
    %s469 = sphi 0, %s468
    %s483 = sphi 0, %s469
    %s487 = sphi 0, %s487
    %s489 = sphi 0, %s487
    %s490 = sphi 0, %s489
    %s504 = sphi 0, %s490
    %s510 = sphi 0, %s512
    %s513 = sphi 0, %s510
    %s514 = sphi 0, %s513
    %s530 = sphi 0, %s514
  $region4: #{vit_forward.11} parent=0 // loop_header_branch
    %31 = sbr.rel (%p29) target = $region8
  $region5: #{vit_forward.11} parent=0 // loop_body
    %s33 = ssub.s32 %s28, 1
    %s34 = ssub.s32 %s28, 2
    %s35 = sadd.s32 %s28, 1
    %s36 = ssub.s32 %s28, %s35
    %p37 = scmp.eq.s32.totalorder %s36, 0
    %s39 = sadd.s32 %s38, 1
    %s40 = scalar_select %p37, %s38, %s39
    %p43 = pneg %p37
    %p44 = scmp.eq.s32.totalorder %s28, 1
    %p45 = por %p43, %p44
    %p46 = scmp.ne.s32.totalorder %s38, %s41
    %p47 = scmp.eq.s32.totalorder %s28, 0
    %p48 = por %p46, %p47
    %p49 = scmp.ne.s32.totalorder %s38, %s41
    %p50 = scmp.eq.s32.totalorder %s33, 1
    %p51 = por %p49, %p50
    %p52 = scmp.ne.s32.totalorder %s41, %s42
    %p53 = scmp.eq.s32.totalorder %s33, 0
    %p54 = por %p52, %p53
    %p55 = scmp.ne.s32.totalorder %s41, %s42
    %p56 = scmp.eq.s32.totalorder %s34, 1
    %p57 = por %p55, %p56
    %p59 = scmp.ne.s32.totalorder %s42, %s58
    %p60 = scmp.eq.s32.totalorder %s34, 0
    %p61 = por %p59, %p60
    %s62 = ssub.s32 %s28, %s35
    %p63 = scmp.eq.s32.totalorder %s62, 0
    %s65 = sadd.s32 %s64, 1
    %s66 = scalar_select %p63, %s64, %s65
    %p69 = pneg %p63
    %p70 = scmp.eq.s32.totalorder %s28, 1
    %p71 = por %p69, %p70
    %p72 = scmp.ne.s32.totalorder %s64, %s67
    %p73 = scmp.eq.s32.totalorder %s28, 0
    %p74 = por %p72, %p73
    %p75 = scmp.ne.s32.totalorder %s64, %s67
    %p76 = scmp.eq.s32.totalorder %s33, 1
    %p77 = por %p75, %p76
    %p78 = scmp.ne.s32.totalorder %s67, %s68
    %p79 = scmp.eq.s32.totalorder %s33, 0
    %p80 = por %p78, %p79
    %p81 = scmp.ne.s32.totalorder %s67, %s68
    %p82 = scmp.eq.s32.totalorder %s34, 1
    %p83 = por %p81, %p82
    %p85 = scmp.ne.s32.totalorder %s68, %s84
    %p86 = scmp.eq.s32.totalorder %s34, 0
    %p87 = por %p85, %p86
    %s89 = sadd.s32 %s88, 1
    %p92 = scmp.eq.s32.totalorder %s28, 1
    %p93 = scmp.ne.s32.totalorder %s88, %s90
    %p94 = scmp.eq.s32.totalorder %s28, 0
    %p95 = por %p93, %p94
    %p96 = scmp.ne.s32.totalorder %s88, %s90
    %p97 = scmp.eq.s32.totalorder %s33, 1
    %p98 = por %p96, %p97
    %p99 = scmp.ne.s32.totalorder %s90, %s91
    %p100 = scmp.eq.s32.totalorder %s33, 0
    %p101 = por %p99, %p100
    %p102 = scmp.ne.s32.totalorder %s90, %s91
    %p103 = scmp.eq.s32.totalorder %s34, 1
    %p104 = por %p102, %p103
    %p106 = scmp.ne.s32.totalorder %s91, %s105
    %p107 = scmp.eq.s32.totalorder %s34, 0
    %p108 = por %p106, %p107
    %s110 = sadd.s32 %s109, 1
    %p113 = scmp.eq.s32.totalorder %s28, 1
    %p114 = scmp.ne.s32.totalorder %s109, %s111
    %p115 = scmp.eq.s32.totalorder %s28, 0
    %p116 = por %p114, %p115
    %p117 = scmp.ne.s32.totalorder %s109, %s111
    %p118 = scmp.eq.s32.totalorder %s33, 1
    %p119 = por %p117, %p118
    %p120 = scmp.ne.s32.totalorder %s111, %s112
    %p121 = scmp.eq.s32.totalorder %s33, 0
    %p122 = por %p120, %p121
    %p123 = scmp.ne.s32.totalorder %s111, %s112
    %p124 = scmp.eq.s32.totalorder %s34, 1
    %p125 = por %p123, %p124
    %p127 = scmp.ne.s32.totalorder %s112, %s126
    %p128 = scmp.eq.s32.totalorder %s34, 0
    %p129 = por %p127, %p128
    %s131 = sadd.s32 %s130, 1
    %p134 = scmp.eq.s32.totalorder %s28, 1
    %p135 = scmp.ne.s32.totalorder %s130, %s132
    %p136 = scmp.eq.s32.totalorder %s28, 0
    %p137 = por %p135, %p136
    %p138 = scmp.ne.s32.totalorder %s130, %s132
    %p139 = scmp.eq.s32.totalorder %s33, 1
    %p140 = por %p138, %p139
    %p141 = scmp.ne.s32.totalorder %s132, %s133
    %p142 = scmp.eq.s32.totalorder %s33, 0
    %p143 = por %p141, %p142
    %p144 = scmp.ne.s32.totalorder %s132, %s133
    %p145 = scmp.eq.s32.totalorder %s34, 1
    %p146 = por %p144, %p145
    %p148 = scmp.ne.s32.totalorder %s133, %s147
    %p149 = scmp.eq.s32.totalorder %s34, 0
    %p150 = por %p148, %p149
    %s152 = sadd.s32 %s151, 1
    %p155 = scmp.eq.s32.totalorder %s28, 1
    %p156 = scmp.ne.s32.totalorder %s151, %s153
    %p157 = scmp.eq.s32.totalorder %s28, 0
    %p158 = por %p156, %p157
    %p159 = scmp.ne.s32.totalorder %s151, %s153
    %p160 = scmp.eq.s32.totalorder %s33, 1
    %p161 = por %p159, %p160
    %p162 = scmp.ne.s32.totalorder %s153, %s154
    %p163 = scmp.eq.s32.totalorder %s33, 0
    %p164 = por %p162, %p163
    %p165 = scmp.ne.s32.totalorder %s153, %s154
    %p166 = scmp.eq.s32.totalorder %s34, 1
    %p167 = por %p165, %p166
    %p169 = scmp.ne.s32.totalorder %s154, %s168
    %p170 = scmp.eq.s32.totalorder %s34, 0
    %p171 = por %p169, %p170
    %s173 = sadd.s32 %s172, 1
    %p176 = scmp.eq.s32.totalorder %s28, 1
    %p177 = scmp.ne.s32.totalorder %s172, %s174
    %p178 = scmp.eq.s32.totalorder %s28, 0
    %p179 = por %p177, %p178
    %p180 = scmp.ne.s32.totalorder %s172, %s174
    %p181 = scmp.eq.s32.totalorder %s33, 1
    %p182 = por %p180, %p181
    %p183 = scmp.ne.s32.totalorder %s174, %s175
    %p184 = scmp.eq.s32.totalorder %s33, 0
    %p185 = por %p183, %p184
    %p186 = scmp.ne.s32.totalorder %s174, %s175
    %p187 = scmp.eq.s32.totalorder %s34, 1
    %p188 = por %p186, %p187
    %p190 = scmp.ne.s32.totalorder %s175, %s189
    %p191 = scmp.eq.s32.totalorder %s34, 0
    %p192 = por %p190, %p191
    %s194 = sadd.s32 %s193, 1
    %p197 = scmp.eq.s32.totalorder %s28, 1
    %p198 = scmp.ne.s32.totalorder %s193, %s195
    %p199 = scmp.eq.s32.totalorder %s28, 0
    %p200 = por %p198, %p199
    %p201 = scmp.ne.s32.totalorder %s193, %s195
    %p202 = scmp.eq.s32.totalorder %s33, 1
    %p203 = por %p201, %p202
    %p204 = scmp.ne.s32.totalorder %s195, %s196
    %p205 = scmp.eq.s32.totalorder %s33, 0
    %p206 = por %p204, %p205
    %p207 = scmp.ne.s32.totalorder %s195, %s196
    %p208 = scmp.eq.s32.totalorder %s34, 1
    %p209 = por %p207, %p208
    %p211 = scmp.ne.s32.totalorder %s196, %s210
    %p212 = scmp.eq.s32.totalorder %s34, 0
    %p213 = por %p211, %p212
    %s215 = sadd.s32 %s214, 1
    %p218 = scmp.eq.s32.totalorder %s28, 1
    %p219 = scmp.ne.s32.totalorder %s214, %s216
    %p220 = scmp.eq.s32.totalorder %s28, 0
    %p221 = por %p219, %p220
    %p222 = scmp.ne.s32.totalorder %s214, %s216
    %p223 = scmp.eq.s32.totalorder %s33, 1
    %p224 = por %p222, %p223
    %p225 = scmp.ne.s32.totalorder %s216, %s217
    %p226 = scmp.eq.s32.totalorder %s33, 0
    %p227 = por %p225, %p226
    %p228 = scmp.ne.s32.totalorder %s216, %s217
    %p229 = scmp.eq.s32.totalorder %s34, 1
    %p230 = por %p228, %p229
    %p232 = scmp.ne.s32.totalorder %s217, %s231
    %p233 = scmp.eq.s32.totalorder %s34, 0
    %p234 = por %p232, %p233
    %s236 = sadd.s32 %s235, 1
    %p239 = scmp.eq.s32.totalorder %s28, 1
    %p240 = scmp.ne.s32.totalorder %s235, %s237
    %p241 = scmp.eq.s32.totalorder %s28, 0
    %p242 = por %p240, %p241
    %p243 = scmp.ne.s32.totalorder %s235, %s237
    %p244 = scmp.eq.s32.totalorder %s33, 1
    %p245 = por %p243, %p244
    %p246 = scmp.ne.s32.totalorder %s237, %s238
    %p247 = scmp.eq.s32.totalorder %s33, 0
    %p248 = por %p246, %p247
    %p249 = scmp.ne.s32.totalorder %s237, %s238
    %p250 = scmp.eq.s32.totalorder %s34, 1
    %p251 = por %p249, %p250
    %p253 = scmp.ne.s32.totalorder %s238, %s252
    %p254 = scmp.eq.s32.totalorder %s34, 0
    %p255 = por %p253, %p254
    %s257 = sadd.s32 %s256, 1
    %p260 = scmp.eq.s32.totalorder %s28, 1
    %p261 = scmp.ne.s32.totalorder %s256, %s258
    %p262 = scmp.eq.s32.totalorder %s28, 0
    %p263 = por %p261, %p262
    %p264 = scmp.ne.s32.totalorder %s256, %s258
    %p265 = scmp.eq.s32.totalorder %s33, 1
    %p266 = por %p264, %p265
    %p267 = scmp.ne.s32.totalorder %s258, %s259
    %p268 = scmp.eq.s32.totalorder %s33, 0
    %p269 = por %p267, %p268
    %p270 = scmp.ne.s32.totalorder %s258, %s259
    %p271 = scmp.eq.s32.totalorder %s34, 1
    %p272 = por %p270, %p271
    %p274 = scmp.ne.s32.totalorder %s259, %s273
    %p275 = scmp.eq.s32.totalorder %s34, 0
    %p276 = por %p274, %p275
    %s278 = sadd.s32 %s277, 1
    %p281 = scmp.eq.s32.totalorder %s28, 1
    %p282 = scmp.ne.s32.totalorder %s277, %s279
    %p283 = scmp.eq.s32.totalorder %s28, 0
    %p284 = por %p282, %p283
    %p285 = scmp.ne.s32.totalorder %s277, %s279
    %p286 = scmp.eq.s32.totalorder %s33, 1
    %p287 = por %p285, %p286
    %p288 = scmp.ne.s32.totalorder %s279, %s280
    %p289 = scmp.eq.s32.totalorder %s33, 0
    %p290 = por %p288, %p289
    %p291 = scmp.ne.s32.totalorder %s279, %s280
    %p292 = scmp.eq.s32.totalorder %s34, 1
    %p293 = por %p291, %p292
    %p295 = scmp.ne.s32.totalorder %s280, %s294
    %p296 = scmp.eq.s32.totalorder %s34, 0
    %p297 = por %p295, %p296
    %s299 = sadd.s32 %s298, 1
    %p302 = scmp.eq.s32.totalorder %s28, 1
    %p303 = scmp.ne.s32.totalorder %s298, %s300
    %p304 = scmp.eq.s32.totalorder %s28, 0
    %p305 = por %p303, %p304
    %p306 = scmp.ne.s32.totalorder %s298, %s300
    %p307 = scmp.eq.s32.totalorder %s33, 1
    %p308 = por %p306, %p307
    %p309 = scmp.ne.s32.totalorder %s300, %s301
    %p310 = scmp.eq.s32.totalorder %s33, 0
    %p311 = por %p309, %p310
    %p312 = scmp.ne.s32.totalorder %s300, %s301
    %p313 = scmp.eq.s32.totalorder %s34, 1
    %p314 = por %p312, %p313
    %p316 = scmp.ne.s32.totalorder %s301, %s315
    %p317 = scmp.eq.s32.totalorder %s34, 0
    %p318 = por %p316, %p317
    %s320 = sadd.s32 %s319, 1
    %p323 = scmp.eq.s32.totalorder %s28, 1
    %p324 = scmp.ne.s32.totalorder %s319, %s321
    %p325 = scmp.eq.s32.totalorder %s28, 0
    %p326 = por %p324, %p325
    %p327 = scmp.ne.s32.totalorder %s319, %s321
    %p328 = scmp.eq.s32.totalorder %s33, 1
    %p329 = por %p327, %p328
    %p330 = scmp.ne.s32.totalorder %s321, %s322
    %p331 = scmp.eq.s32.totalorder %s33, 0
    %p332 = por %p330, %p331
    %p333 = scmp.ne.s32.totalorder %s321, %s322
    %p334 = scmp.eq.s32.totalorder %s34, 1
    %p335 = por %p333, %p334
    %p337 = scmp.ne.s32.totalorder %s322, %s336
    %p338 = scmp.eq.s32.totalorder %s34, 0
    %p339 = por %p337, %p338
    %s341 = sadd.s32 %s340, 1
    %p344 = scmp.eq.s32.totalorder %s28, 1
    %p345 = scmp.ne.s32.totalorder %s340, %s342
    %p346 = scmp.eq.s32.totalorder %s28, 0
    %p347 = por %p345, %p346
    %p348 = scmp.ne.s32.totalorder %s340, %s342
    %p349 = scmp.eq.s32.totalorder %s33, 1
    %p350 = por %p348, %p349
    %p351 = scmp.ne.s32.totalorder %s342, %s343
    %p352 = scmp.eq.s32.totalorder %s33, 0
    %p353 = por %p351, %p352
    %p354 = scmp.ne.s32.totalorder %s342, %s343
    %p355 = scmp.eq.s32.totalorder %s34, 1
    %p356 = por %p354, %p355
    %p358 = scmp.ne.s32.totalorder %s343, %s357
    %p359 = scmp.eq.s32.totalorder %s34, 0
    %p360 = por %p358, %p359
    %s362 = sadd.s32 %s361, 1
    %p365 = scmp.eq.s32.totalorder %s28, 1
    %p366 = scmp.ne.s32.totalorder %s361, %s363
    %p367 = scmp.eq.s32.totalorder %s28, 0
    %p368 = por %p366, %p367
    %p369 = scmp.ne.s32.totalorder %s361, %s363
    %p370 = scmp.eq.s32.totalorder %s33, 1
    %p371 = por %p369, %p370
    %p372 = scmp.ne.s32.totalorder %s363, %s364
    %p373 = scmp.eq.s32.totalorder %s33, 0
    %p374 = por %p372, %p373
    %p375 = scmp.ne.s32.totalorder %s363, %s364
    %p376 = scmp.eq.s32.totalorder %s34, 1
    %p377 = por %p375, %p376
    %p379 = scmp.ne.s32.totalorder %s364, %s378
    %p380 = scmp.eq.s32.totalorder %s34, 0
    %p381 = por %p379, %p380
    %s383 = sadd.s32 %s382, 1
    %p386 = scmp.eq.s32.totalorder %s28, 1
    %p387 = scmp.ne.s32.totalorder %s382, %s384
    %p388 = scmp.eq.s32.totalorder %s28, 0
    %p389 = por %p387, %p388
    %p390 = scmp.ne.s32.totalorder %s382, %s384
    %p391 = scmp.eq.s32.totalorder %s33, 1
    %p392 = por %p390, %p391
    %p393 = scmp.ne.s32.totalorder %s384, %s385
    %p394 = scmp.eq.s32.totalorder %s33, 0
    %p395 = por %p393, %p394
    %p396 = scmp.ne.s32.totalorder %s384, %s385
    %p397 = scmp.eq.s32.totalorder %s34, 1
    %p398 = por %p396, %p397
    %p400 = scmp.ne.s32.totalorder %s385, %s399
    %p401 = scmp.eq.s32.totalorder %s34, 0
    %p402 = por %p400, %p401
    %s404 = sadd.s32 %s403, 1
    %p407 = scmp.eq.s32.totalorder %s28, 1
    %p408 = scmp.ne.s32.totalorder %s403, %s405
    %p409 = scmp.eq.s32.totalorder %s28, 0
    %p410 = por %p408, %p409
    %p411 = scmp.ne.s32.totalorder %s403, %s405
    %p412 = scmp.eq.s32.totalorder %s33, 1
    %p413 = por %p411, %p412
    %p414 = scmp.ne.s32.totalorder %s405, %s406
    %p415 = scmp.eq.s32.totalorder %s33, 0
    %p416 = por %p414, %p415
    %p417 = scmp.ne.s32.totalorder %s405, %s406
    %p418 = scmp.eq.s32.totalorder %s34, 1
    %p419 = por %p417, %p418
    %p421 = scmp.ne.s32.totalorder %s406, %s420
    %p422 = scmp.eq.s32.totalorder %s34, 0
    %p423 = por %p421, %p422
    %s425 = sadd.s32 %s424, 1
    %p428 = scmp.eq.s32.totalorder %s28, 1
    %p429 = scmp.ne.s32.totalorder %s424, %s426
    %p430 = scmp.eq.s32.totalorder %s28, 0
    %p431 = por %p429, %p430
    %p432 = scmp.ne.s32.totalorder %s424, %s426
    %p433 = scmp.eq.s32.totalorder %s33, 1
    %p434 = por %p432, %p433
    %p435 = scmp.ne.s32.totalorder %s426, %s427
    %p436 = scmp.eq.s32.totalorder %s33, 0
    %p437 = por %p435, %p436
    %p438 = scmp.ne.s32.totalorder %s426, %s427
    %p439 = scmp.eq.s32.totalorder %s34, 1
    %p440 = por %p438, %p439
    %p442 = scmp.ne.s32.totalorder %s427, %s441
    %p443 = scmp.eq.s32.totalorder %s34, 0
    %p444 = por %p442, %p443
    %s446 = sadd.s32 %s445, 1
    %p449 = scmp.eq.s32.totalorder %s28, 1
    %p450 = scmp.ne.s32.totalorder %s445, %s447
    %p451 = scmp.eq.s32.totalorder %s28, 0
    %p452 = por %p450, %p451
    %p453 = scmp.ne.s32.totalorder %s445, %s447
    %p454 = scmp.eq.s32.totalorder %s33, 1
    %p455 = por %p453, %p454
    %p456 = scmp.ne.s32.totalorder %s447, %s448
    %p457 = scmp.eq.s32.totalorder %s33, 0
    %p458 = por %p456, %p457
    %p459 = scmp.ne.s32.totalorder %s447, %s448
    %p460 = scmp.eq.s32.totalorder %s34, 1
    %p461 = por %p459, %p460
    %p463 = scmp.ne.s32.totalorder %s448, %s462
    %p464 = scmp.eq.s32.totalorder %s34, 0
    %p465 = por %p463, %p464
    %s467 = sadd.s32 %s466, 1
    %p470 = scmp.eq.s32.totalorder %s28, 1
    %p471 = scmp.ne.s32.totalorder %s466, %s468
    %p472 = scmp.eq.s32.totalorder %s28, 0
    %p473 = por %p471, %p472
    %p474 = scmp.ne.s32.totalorder %s466, %s468
    %p475 = scmp.eq.s32.totalorder %s33, 1
    %p476 = por %p474, %p475
    %p477 = scmp.ne.s32.totalorder %s468, %s469
    %p478 = scmp.eq.s32.totalorder %s33, 0
    %p479 = por %p477, %p478
    %p480 = scmp.ne.s32.totalorder %s468, %s469
    %p481 = scmp.eq.s32.totalorder %s34, 1
    %p482 = por %p480, %p481
    %p484 = scmp.ne.s32.totalorder %s469, %s483
    %p485 = scmp.eq.s32.totalorder %s34, 0
    %p486 = por %p484, %p485
    %s488 = sadd.s32 %s487, 1
    %p491 = scmp.eq.s32.totalorder %s28, 1
    %p492 = scmp.ne.s32.totalorder %s487, %s489
    %p493 = scmp.eq.s32.totalorder %s28, 0
    %p494 = por %p492, %p493
    %p495 = scmp.ne.s32.totalorder %s487, %s489
    %p496 = scmp.eq.s32.totalorder %s33, 1
    %p497 = por %p495, %p496
    %p498 = scmp.ne.s32.totalorder %s489, %s490
    %p499 = scmp.eq.s32.totalorder %s33, 0
    %p500 = por %p498, %p499
    %p501 = scmp.ne.s32.totalorder %s489, %s490
    %p502 = scmp.eq.s32.totalorder %s34, 1
    %p503 = por %p501, %p502
    %p505 = scmp.ne.s32.totalorder %s490, %s504
    %p506 = scmp.eq.s32.totalorder %s34, 0
    %p507 = por %p505, %p506
    %s508 = ssub.s32 %s28, %s35
    %p509 = scmp.eq.s32.totalorder %s508, 0
    %s511 = sadd.s32 %s510, 1
    %s512 = scalar_select %p509, %s510, %s511
    %p515 = pneg %p509
    %p516 = scmp.eq.s32.totalorder %s28, 1
    %p517 = por %p515, %p516
    %p518 = scmp.ne.s32.totalorder %s510, %s513
    %p519 = scmp.eq.s32.totalorder %s28, 0
    %p520 = por %p518, %p519
    %p521 = scmp.ne.s32.totalorder %s510, %s513
    %p522 = scmp.eq.s32.totalorder %s33, 1
    %p523 = por %p521, %p522
    %p524 = scmp.ne.s32.totalorder %s513, %s514
    %p525 = scmp.eq.s32.totalorder %s33, 0
    %p526 = por %p524, %p525
    %p527 = scmp.ne.s32.totalorder %s513, %s514
    %p528 = scmp.eq.s32.totalorder %s34, 1
    %p529 = por %p527, %p528
    %p531 = scmp.ne.s32.totalorder %s514, %s530
    %p532 = scmp.eq.s32.totalorder %s34, 0
    %p533 = por %p531, %p532
    %p534 = scmp.le.s32.totalorder 1, %s28
    %p535 = scmp.lt.s32.totalorder %s28, 3
    %p536 = pnand %p534, %p535
    %p537 = pneg %p536
    // Predicated region
    $region9: #{vit_forward.11} parent=5 // pred_check
      _
    $region10: #{vit_forward.11} parent=5 // pred_check_branch
      %539 = sbr.rel (%p536) target = $region12
    $region11: #{vit_forward.11} parent=5 // pred_region
      %s540 = ssub.s32 %s28, 1
      // Predicated region
      $region13: #{vit_forward.11} parent=11 // pred_check
        %p541 = pneg %p101
      $region14: #{vit_forward.11} parent=11 // pred_check_branch
        %543 = sbr.rel (%p541) target = $region16
      $region15: #{vit_forward.11} parent=11 // pred_region
        _
      $region16: #{vit_forward.11} parent=11 // pred_fallthru
        _
      // Predicated region
      $region17: #{vit_forward.11} parent=11 // pred_check
        %p544 = pneg %p122
      $region18: #{vit_forward.11} parent=11 // pred_check_branch
        %546 = sbr.rel (%p544) target = $region20
      $region19: #{vit_forward.11} parent=11 // pred_region
        _
      $region20: #{vit_forward.11} parent=11 // pred_fallthru
        _
      // Predicated region
      $region21: #{vit_forward.11} parent=11 // pred_check
        %p547 = pneg %p143
      $region22: #{vit_forward.11} parent=11 // pred_check_branch
        %549 = sbr.rel (%p547) target = $region24
      $region23: #{vit_forward.11} parent=11 // pred_region
        _
      $region24: #{vit_forward.11} parent=11 // pred_fallthru
        _
      // Predicated region
      $region25: #{vit_forward.11} parent=11 // pred_check
        %p550 = pneg %p164
      $region26: #{vit_forward.11} parent=11 // pred_check_branch
        %552 = sbr.rel (%p550) target = $region28
      $region27: #{vit_forward.11} parent=11 // pred_region
        _
      $region28: #{vit_forward.11} parent=11 // pred_fallthru
        _
      // Predicated region
      $region29: #{vit_forward.11} parent=11 // pred_check
        %p553 = pneg %p185
      $region30: #{vit_forward.11} parent=11 // pred_check_branch
        %555 = sbr.rel (%p553) target = $region32
      $region31: #{vit_forward.11} parent=11 // pred_region
        _
      $region32: #{vit_forward.11} parent=11 // pred_fallthru
        _
      // Predicated region
      $region33: #{vit_forward.11} parent=11 // pred_check
        %p556 = pneg %p206
      $region34: #{vit_forward.11} parent=11 // pred_check_branch
        %558 = sbr.rel (%p556) target = $region36
      $region35: #{vit_forward.11} parent=11 // pred_region
        _
      $region36: #{vit_forward.11} parent=11 // pred_fallthru
        _
      // Predicated region
      $region37: #{vit_forward.11} parent=11 // pred_check
        %p559 = pneg %p227
      $region38: #{vit_forward.11} parent=11 // pred_check_branch
        %561 = sbr.rel (%p559) target = $region40
      $region39: #{vit_forward.11} parent=11 // pred_region
        _
      $region40: #{vit_forward.11} parent=11 // pred_fallthru
        _
      // Predicated region
      $region41: #{vit_forward.11} parent=11 // pred_check
        %p562 = pneg %p248
      $region42: #{vit_forward.11} parent=11 // pred_check_branch
        %564 = sbr.rel (%p562) target = $region44
      $region43: #{vit_forward.11} parent=11 // pred_region
        _
      $region44: #{vit_forward.11} parent=11 // pred_fallthru
        _
      // Predicated region
      $region45: #{vit_forward.11} parent=11 // pred_check
        %p565 = pneg %p269
      $region46: #{vit_forward.11} parent=11 // pred_check_branch
        %567 = sbr.rel (%p565) target = $region48
      $region47: #{vit_forward.11} parent=11 // pred_region
        _
      $region48: #{vit_forward.11} parent=11 // pred_fallthru
        _
      // Predicated region
      $region49: #{vit_forward.11} parent=11 // pred_check
        %p568 = pneg %p290
      $region50: #{vit_forward.11} parent=11 // pred_check_branch
        %570 = sbr.rel (%p568) target = $region52
      $region51: #{vit_forward.11} parent=11 // pred_region
        _
      $region52: #{vit_forward.11} parent=11 // pred_fallthru
        _
      // Predicated region
      $region53: #{vit_forward.11} parent=11 // pred_check
        %p571 = pneg %p311
      $region54: #{vit_forward.11} parent=11 // pred_check_branch
        %573 = sbr.rel (%p571) target = $region56
      $region55: #{vit_forward.11} parent=11 // pred_region
        _
      $region56: #{vit_forward.11} parent=11 // pred_fallthru
        _
      // Predicated region
      $region57: #{vit_forward.11} parent=11 // pred_check
        %p574 = pneg %p332
      $region58: #{vit_forward.11} parent=11 // pred_check_branch
        %576 = sbr.rel (%p574) target = $region60
      $region59: #{vit_forward.11} parent=11 // pred_region
        _
      $region60: #{vit_forward.11} parent=11 // pred_fallthru
        _
      // Predicated region
      $region61: #{vit_forward.11} parent=11 // pred_check
        %p577 = pneg %p353
      $region62: #{vit_forward.11} parent=11 // pred_check_branch
        %579 = sbr.rel (%p577) target = $region64
      $region63: #{vit_forward.11} parent=11 // pred_region
        _
      $region64: #{vit_forward.11} parent=11 // pred_fallthru
        _
      // Predicated region
      $region65: #{vit_forward.11} parent=11 // pred_check
        %p580 = pneg %p374
      $region66: #{vit_forward.11} parent=11 // pred_check_branch
        %582 = sbr.rel (%p580) target = $region68
      $region67: #{vit_forward.11} parent=11 // pred_region
        _
      $region68: #{vit_forward.11} parent=11 // pred_fallthru
        _
      // Predicated region
      $region69: #{vit_forward.11} parent=11 // pred_check
        %p583 = pneg %p395
      $region70: #{vit_forward.11} parent=11 // pred_check_branch
        %585 = sbr.rel (%p583) target = $region72
      $region71: #{vit_forward.11} parent=11 // pred_region
        _
      $region72: #{vit_forward.11} parent=11 // pred_fallthru
        _
      // Predicated region
      $region73: #{vit_forward.11} parent=11 // pred_check
        %p586 = pneg %p416
      $region74: #{vit_forward.11} parent=11 // pred_check_branch
        %588 = sbr.rel (%p586) target = $region76
      $region75: #{vit_forward.11} parent=11 // pred_region
        _
      $region76: #{vit_forward.11} parent=11 // pred_fallthru
        _
      // Predicated region
      $region77: #{vit_forward.11} parent=11 // pred_check
        %p589 = pneg %p437
      $region78: #{vit_forward.11} parent=11 // pred_check_branch
        %591 = sbr.rel (%p589) target = $region80
      $region79: #{vit_forward.11} parent=11 // pred_region
        _
      $region80: #{vit_forward.11} parent=11 // pred_fallthru
        _
      // Predicated region
      $region81: #{vit_forward.11} parent=11 // pred_check
        %p592 = pneg %p458
      $region82: #{vit_forward.11} parent=11 // pred_check_branch
        %594 = sbr.rel (%p592) target = $region84
      $region83: #{vit_forward.11} parent=11 // pred_region
        _
      $region84: #{vit_forward.11} parent=11 // pred_fallthru
        _
      // Predicated region
      $region85: #{vit_forward.11} parent=11 // pred_check
        %p595 = pneg %p479
      $region86: #{vit_forward.11} parent=11 // pred_check_branch
        %597 = sbr.rel (%p595) target = $region88
      $region87: #{vit_forward.11} parent=11 // pred_region
        _
      $region88: #{vit_forward.11} parent=11 // pred_fallthru
        _
      // Predicated region
      $region89: #{vit_forward.11} parent=11 // pred_check
        %p598 = pneg %p500
      $region90: #{vit_forward.11} parent=11 // pred_check_branch
        %600 = sbr.rel (%p598) target = $region92
      $region91: #{vit_forward.11} parent=11 // pred_region
        _
      $region92: #{vit_forward.11} parent=11 // pred_fallthru
        _
    $region12: #{vit_forward.11} parent=5 // pred_fallthru
      _
    %p601 = scmp.lt.s32.totalorder %s28, 2
    // Predicated region
    $region93: #{vit_forward.11} parent=5 // pred_check
      %p602 = pneg %p601
    $region94: #{vit_forward.11} parent=5 // pred_check_branch
      %604 = sbr.rel (%p602) target = $region96
    $region95: #{vit_forward.11} parent=5 // pred_region
      // Predicated region
      $region97: #{vit_forward.11} parent=95 // pred_check
        %p605 = pneg %p48
      $region98: #{vit_forward.11} parent=95 // pred_check_branch
        %607 = sbr.rel (%p605) target = $region100
      $region99: #{vit_forward.11} parent=95 // pred_region
        %p608 = scmp.lt.s32.totalorder %s28, 1
        %s609 = scalar_select %p608, %s28, 1
        %s610 = smul.addr %s609, 2
        %s611 = smul.addr %s610, 8
        %s612 = scalar_lea.vmem %s0, %s611
      $region100: #{vit_forward.11} parent=95 // pred_fallthru
        _
      // Predicated region
      $region101: #{vit_forward.11} parent=95 // pred_check
        %p613 = pneg %p74
      $region102: #{vit_forward.11} parent=95 // pred_check_branch
        %615 = sbr.rel (%p613) target = $region104
      $region103: #{vit_forward.11} parent=95 // pred_region
        %p616 = scmp.lt.s32.totalorder %s28, 1
        %s617 = scalar_select %p616, %s28, 1
        %s618 = smul.addr %s617, 2
        %s619 = smul.addr %s618, 8
        %s620 = scalar_lea.vmem %s1, %s619
      $region104: #{vit_forward.11} parent=95 // pred_fallthru
        _
    $region96: #{vit_forward.11} parent=5 // pred_fallthru
      _
    %p621 = scmp.le.s32.totalorder 1, %s28
    %p622 = scmp.lt.s32.totalorder %s28, 3
    %p623 = pnand %p621, %p622
    %p624 = pneg %p623
    // Predicated region
    $region105: #{vit_forward.11} parent=5 // pred_check
      _
    $region106: #{vit_forward.11} parent=5 // pred_check_branch
      %626 = sbr.rel (%p623) target = $region108
    $region107: #{vit_forward.11} parent=5 // pred_region
      %s627 = ssub.s32 %s28, 1
      %p628 = scmp.lt.s32.totalorder %s33, 1
      %s629 = scalar_select %p628, %s33, 1
      %s630 = smul.addr %s629, 2
      %s631 = smul.addr %s630, 8
      %s632 = scalar_lea.vmem %s0, %s631
      %p633 = pneg %p54
      %p634 = pneg %p51
      %p635 = scmp.lt.s32.totalorder %s33, 1
      %s636 = scalar_select %p635, %s33, 1
      %s637 = smul.addr %s636, 2
      %s638 = smul.addr %s637, 8
      %s639 = scalar_lea.vmem %s1, %s638
      %p640 = pneg %p80
      %p641 = pneg %p77
      %p642 = pneg %p101
      %p643 = pneg %p98
      %p644 = pneg %p122
      %p645 = pneg %p119
      %p646 = pneg %p143
      %p647 = pneg %p140
      %p648 = pneg %p164
      %p649 = pneg %p161
      %p650 = pneg %p185
      %p651 = pneg %p182
      %p652 = pneg %p206
      %p653 = pneg %p203
      %p654 = pneg %p227
      %p655 = pneg %p224
      %p656 = pneg %p248
      %p657 = pneg %p245
      %p658 = pneg %p269
      %p659 = pneg %p266
      %p660 = pneg %p290
      %p661 = pneg %p287
      %p662 = pneg %p311
      %p663 = pneg %p308
      %p664 = pneg %p332
      %p665 = pneg %p329
      %p666 = pneg %p353
      %p667 = pneg %p350
      %p668 = pneg %p374
      %p669 = pneg %p371
      %p670 = pneg %p395
      %p671 = pneg %p392
      %p672 = pneg %p416
      %p673 = pneg %p413
      %p674 = pneg %p437
      %p675 = pneg %p434
      %p676 = pneg %p458
      %p677 = pneg %p455
      %p678 = pneg %p479
      %p679 = pneg %p476
      %p680 = pneg %p500
      %p681 = pneg %p497
      %p682 = pneg %p526
      %p683 = pneg %p523
      %p684 = scmp.lt.s32.totalorder %s33, 1
      %s685 = scalar_select %p684, %s33, 1
      %s686 = smul.addr %s685, 2
      %s687 = smul.addr %s686, 8
      %s688 = scalar_lea.vmem %s22, %s687
      %p689 = scmp.lt.s32.totalorder %s33, 1
      %s690 = scalar_select %p689, %s33, 1
      %s691 = smul.addr %s690, 2
      %s692 = smul.addr %s691, 8
      %s693 = scalar_lea.vmem %s0, %s692
      %p694 = scmp.lt.s32.totalorder %s33, 1
      %s695 = scalar_select %p694, %s33, 1
      %s696 = smul.addr %s695, 2
      %s697 = smul.addr %s696, 8
      %s698 = scalar_lea.vmem %s1, %s697
      %p699 = scmp.lt.s32.totalorder %s33, 1
      %s700 = scalar_select %p699, %s33, 1
      %s701 = smul.addr %s700, 2
      %s702 = smul.addr %s701, 8
      %s703 = scalar_lea.vmem %s22, %s702
      %v705 = vld [vmem:[%s693] sm:$0xff]
      %v706 = vld [vmem:[%s693 + $0x8] sm:$0xff]
      %v707 = vld [vmem:[%s698] sm:$0xff]
      %v708 = vld [vmem:[%s698 + $0x8] sm:$0xff]
      %v709 = vld [vmem:[%s2] sm:$0xff]
      %v710 = vld [vmem:[%s2 + $0x8] sm:$0xff]
      %v711 = vld [vmem:[%s2 + $0x10] sm:$0xff]
      %v712 = vld [vmem:[%s2 + $0x18] sm:$0xff]
      %v713 = vpack.c.bf16 %v706, %v705
      %v714 = vpack.c.bf16 %v710, %v709
      %v715 = vpack.c.bf16 %v712, %v711
      %v716 = vld [vmem:[%s3] sm:$0x1]
      %v718 = vperm.slane %v716, 0
      %vm720 = vcmask 261120
      %v722 = vsel %vm720, %v713, 0
      %724 = vmatpush.bf16.msra.mxu0 0
      %725 = vmatpush.bf16.msra.mxu0 0
      %726 = vmatpush.bf16.msra.mxu0 0
      %727 = vmatpush.bf16.msra.mxu0 0
      %728 = vmatpush.bf16.msra.mxu0 0
      %729 = vmatpush.bf16.msra.mxu0 0
      %730 = vmatpush.bf16.msra.mxu0 %v715
      %731 = vmatpush.bf16.msra.mxu0 %v714
      %732 = vmatmul.bf16.gmra.mxu0 %v722
      %v733 = vpop.f32.mrf.mxu0
      %v734 = vadd.f32 %v718, %v733
      %v735 = vpop.f32.mrf.mxu0
      %v736 = vadd.f32 %v718, %v735
      %737 = vdwg.mxu0
      %v738 = vld [vmem:[%s4] sm:$0xff]
      %v739 = vld [vmem:[%s4 + $0x8] sm:$0xff]
      %v740 = vld [vmem:[%s4 + $0x10] sm:$0xff]
      %v741 = vld [vmem:[%s4 + $0x18] sm:$0xff]
      %v742 = vld [vmem:[%s5] sm:$0x1]
      %v743 = vpack.c.bf16 %v736, %v734
      %745 = vrot.lane.b32.xlu0 %v743, 96
      %v746 = vpop.permute.xlu0 %745
      %vm747 = vcmask 64512
      %v749 = vsel %vm747, %v743, 0
      %v752 = vsel %vm747, %v746, 0
      %754 = vmatpush.bf16.xpose.msra.mxu0 0
      %755 = vmatpush.bf16.xpose.msra.mxu0 0
      %756 = vmatpush.bf16.xpose.msra.mxu0 0
      %757 = vmatpush.bf16.xpose.msra.mxu0 0
      %758 = vmatpush.bf16.xpose.msra.mxu0 0
      %759 = vmatpush.bf16.xpose.msra.mxu0 0
      %760 = vmatpush.bf16.xpose.msra.mxu0 0
      %761 = vmatpush.bf16.xpose.msra.mxu0 %v752
      %762 = vmatmul.bf16.gmra.mxu0 %v749
      %v763 = vpop.f32.mrf.mxu0
      %v764 = vadd.f32 0.0, %v763
      %v765 = vpop.f32.mrf.mxu0
      %v766 = vadd.f32 0.0, %v765
      %767 = vdwg.mxu0
      %v768 = vmul.f32 %v764, 0.35355338
      %v769 = vmul.f32 %v766, 0.35355338
      %vm770 = vcmask 130048
      %v771 = vsel %vm770, %v768, -inf
      %772 = vmax.xlane.f32.xlu0 %v771
      %v773 = vpop.xlane.xlu0 %772
      %v774 = vsel %vm770, %v769, -inf
      %775 = vmax.xlane.f32.xlu0 %v774
      %v776 = vpop.xlane.xlu0 %775
      %v777 = vsub.f32 %v768, %v773
      %v778 = vsub.f32 %v769, %v776
      %v779 = vmul.f32 %v777, 1.442695
      %v780 = vpow.pop %v779
      %v781 = vmul.f32 %v778, 1.442695
      %v782 = vpow.pop %v781
      %v783 = vsel %vm770, %v780, 0.0
      %784 = vadd.xlane.f32.xlu0 %v783
      %v785 = vpop.xlane.xlu0 %784
      %v786 = vsel %vm770, %v782, 0.0
      %787 = vadd.xlane.f32.xlu0 %v786
      %v788 = vpop.xlane.xlu0 %787
      %v789 = vrcp.pop %v785
      %v790 = vrcp.pop %v788
      %v791 = vmul.f32 %v780, %v789
      %v792 = vmul.f32 %v782, %v790
      %v793 = vpack.c.bf16 %v792, %v791
      %794 = vrot.lane.b32.xlu0 %v743, 64
      %v795 = vpop.permute.xlu0 %794
      %v798 = vsel %vm770, %v793, 0
      %800 = vmatpush.bf16.msra.mxu0 0
      %801 = vmatpush.bf16.msra.mxu0 0
      %802 = vmatpush.bf16.msra.mxu0 0
      %803 = vmatpush.bf16.msra.mxu0 0
      %804 = vmatpush.bf16.msra.mxu0 0
      %805 = vmatpush.bf16.msra.mxu0 0
      %806 = vmatpush.bf16.msra.mxu0 0
      %807 = vmatpush.bf16.msra.mxu0 %v795
      %808 = vmatmul.bf16.gmra.mxu0 %v798
      %v809 = vpop.f32.mrf.mxu0
      %v810 = vadd.f32 0.0, %v809
      %v811 = vpop.f32.mrf.mxu0
      %v812 = vadd.f32 0.0, %v811
      %813 = vdwg.mxu0
      %v814 = vpack.c.bf16 %v812, %v810
      %v815 = vpack.c.bf16 %v738, %v738
      %816 = vrot.lane.b32.xlu0 %v743, 120
      %v817 = vpop.permute.xlu0 %816
      %818 = vrot.lane.b32.xlu0 %v743, 88
      %v819 = vpop.permute.xlu0 %818
      %v821 = vsel %vm747, %v817, 0
      %v824 = vsel %vm747, %v819, 0
      %826 = vmatpush.bf16.xpose.msra.mxu0 0
      %827 = vmatpush.bf16.xpose.msra.mxu0 0
      %828 = vmatpush.bf16.xpose.msra.mxu0 0
      %829 = vmatpush.bf16.xpose.msra.mxu0 0
      %830 = vmatpush.bf16.xpose.msra.mxu0 0
      %831 = vmatpush.bf16.xpose.msra.mxu0 0
      %832 = vmatpush.bf16.xpose.msra.mxu0 0
      %833 = vmatpush.bf16.xpose.msra.mxu0 %v824
      %834 = vmatmul.bf16.gmra.mxu0 %v821
      %v835 = vpop.f32.mrf.mxu0
      %v836 = vadd.f32 0.0, %v835
      %v837 = vpop.f32.mrf.mxu0
      %v838 = vadd.f32 0.0, %v837
      %839 = vdwg.mxu0
      %v840 = vmul.f32 %v836, 0.35355338
      %v841 = vmul.f32 %v838, 0.35355338
      %v842 = vsel %vm770, %v840, -inf
      %843 = vmax.xlane.f32.xlu0 %v842
      %v844 = vpop.xlane.xlu0 %843
      %v845 = vsel %vm770, %v841, -inf
      %846 = vmax.xlane.f32.xlu0 %v845
      %v847 = vpop.xlane.xlu0 %846
      %v848 = vsub.f32 %v840, %v844
      %v849 = vsub.f32 %v841, %v847
      %v850 = vmul.f32 %v848, 1.442695
      %v851 = vpow.pop %v850
      %v852 = vmul.f32 %v849, 1.442695
      %v853 = vpow.pop %v852
      %v854 = vsel %vm770, %v851, 0.0
      %855 = vadd.xlane.f32.xlu0 %v854
      %v856 = vpop.xlane.xlu0 %855
      %v857 = vsel %vm770, %v853, 0.0
      %858 = vadd.xlane.f32.xlu0 %v857
      %v859 = vpop.xlane.xlu0 %858
      %v860 = vrcp.pop %v856
      %v861 = vrcp.pop %v859
      %v862 = vmul.f32 %v851, %v860
      %v863 = vmul.f32 %v853, %v861
      %v864 = vpack.c.bf16 %v863, %v862
      %865 = vrot.lane.b32.xlu0 %v743, 56
      %v866 = vpop.permute.xlu0 %865
      %v869 = vsel %vm770, %v864, 0
      %871 = vmatpush.bf16.msra.mxu0 0
      %872 = vmatpush.bf16.msra.mxu0 0
      %873 = vmatpush.bf16.msra.mxu0 0
      %874 = vmatpush.bf16.msra.mxu0 0
      %875 = vmatpush.bf16.msra.mxu0 0
      %876 = vmatpush.bf16.msra.mxu0 0
      %877 = vmatpush.bf16.msra.mxu0 0
      %878 = vmatpush.bf16.msra.mxu0 %v866
      %879 = vmatmul.bf16.gmra.mxu0 %v869
      %v880 = vpop.f32.mrf.mxu0
      %v881 = vadd.f32 0.0, %v880
      %v882 = vpop.f32.mrf.mxu0
      %v883 = vadd.f32 0.0, %v882
      %884 = vdwg.mxu0
      %v885 = vpack.c.bf16 %v883, %v881
      %v886 = vpack.c.bf16 %v739, %v739
      %v888 = vsel %vm747, %v885, 0
      %vm890 = vcmask 1043456
      %v892 = vsel %vm890, %v886, 0
      %894 = vmatpush.bf16.msra.mxu0 0
      %895 = vmatpush.bf16.msra.mxu0 0
      %896 = vmatpush.bf16.msra.mxu0 0
      %897 = vmatpush.bf16.msra.mxu0 0
      %898 = vmatpush.bf16.msra.mxu0 0
      %899 = vmatpush.bf16.msra.mxu0 0
      %900 = vmatpush.bf16.msra.mxu0 0
      %901 = vmatpush.bf16.msra.mxu0 %v892
      %902 = vmatmul.bf16.gmra.mxu0 %v888
      %v903 = vpop.f32.mrf.mxu0
      %v904 = vadd.f32 0.0, %v903
      %v905 = vpop.f32.mrf.mxu0
      %v906 = vadd.f32 0.0, %v905
      %907 = vdwg.mxu0
      %v909 = vsel %vm747, %v814, 0
      %v912 = vsel %vm890, %v815, 0
      %914 = vmatpush.bf16.msra.mxu0 0
      %915 = vmatpush.bf16.msra.mxu0 0
      %916 = vmatpush.bf16.msra.mxu0 0
      %917 = vmatpush.bf16.msra.mxu0 0
      %918 = vmatpush.bf16.msra.mxu0 0
      %919 = vmatpush.bf16.msra.mxu0 0
      %920 = vmatpush.bf16.msra.mxu0 0
      %921 = vmatpush.bf16.msra.mxu0 %v912
      %922 = vmatmul.bf16.gmra.mxu0 %v909
      %v923 = vpop.f32.mrf.mxu0
      %v924 = vadd.f32 %v904, %v923
      %v925 = vpop.f32.mrf.mxu0
      %v926 = vadd.f32 %v906, %v925
      %927 = vdwg.mxu0
      %928 = vrot.lane.b32.xlu0 %v743, 112
      %v929 = vpop.permute.xlu0 %928
      %930 = vrot.lane.b32.xlu0 %v743, 80
      %v931 = vpop.permute.xlu0 %930
      %v933 = vsel %vm747, %v929, 0
      %v936 = vsel %vm747, %v931, 0
      %938 = vmatpush.bf16.xpose.msra.mxu0 0
      %939 = vmatpush.bf16.xpose.msra.mxu0 0
      %940 = vmatpush.bf16.xpose.msra.mxu0 0
      %941 = vmatpush.bf16.xpose.msra.mxu0 0
      %942 = vmatpush.bf16.xpose.msra.mxu0 0
      %943 = vmatpush.bf16.xpose.msra.mxu0 0
      %944 = vmatpush.bf16.xpose.msra.mxu0 0
      %945 = vmatpush.bf16.xpose.msra.mxu0 %v936
      %946 = vmatmul.bf16.gmra.mxu0 %v933
      %v947 = vpop.f32.mrf.mxu0
      %v948 = vadd.f32 0.0, %v947
      %v949 = vpop.f32.mrf.mxu0
      %v950 = vadd.f32 0.0, %v949
      %951 = vdwg.mxu0
      %v952 = vmul.f32 %v948, 0.35355338
      %v953 = vmul.f32 %v950, 0.35355338
      %v954 = vsel %vm770, %v952, -inf
      %955 = vmax.xlane.f32.xlu0 %v954
      %v956 = vpop.xlane.xlu0 %955
      %v957 = vsel %vm770, %v953, -inf
      %958 = vmax.xlane.f32.xlu0 %v957
      %v959 = vpop.xlane.xlu0 %958
      %v960 = vsub.f32 %v952, %v956
      %v961 = vsub.f32 %v953, %v959
      %v962 = vmul.f32 %v960, 1.442695
      %v963 = vpow.pop %v962
      %v964 = vmul.f32 %v961, 1.442695
      %v965 = vpow.pop %v964
      %v966 = vsel %vm770, %v963, 0.0
      %967 = vadd.xlane.f32.xlu0 %v966
      %v968 = vpop.xlane.xlu0 %967
      %v969 = vsel %vm770, %v965, 0.0
      %970 = vadd.xlane.f32.xlu0 %v969
      %v971 = vpop.xlane.xlu0 %970
      %v972 = vrcp.pop %v968
      %v973 = vrcp.pop %v971
      %v974 = vmul.f32 %v963, %v972
      %v975 = vmul.f32 %v965, %v973
      %v976 = vpack.c.bf16 %v975, %v974
      %977 = vrot.lane.b32.xlu0 %v743, 48
      %v978 = vpop.permute.xlu0 %977
      %v981 = vsel %vm770, %v976, 0
      %983 = vmatpush.bf16.msra.mxu0 0
      %984 = vmatpush.bf16.msra.mxu0 0
      %985 = vmatpush.bf16.msra.mxu0 0
      %986 = vmatpush.bf16.msra.mxu0 0
      %987 = vmatpush.bf16.msra.mxu0 0
      %988 = vmatpush.bf16.msra.mxu0 0
      %989 = vmatpush.bf16.msra.mxu0 0
      %990 = vmatpush.bf16.msra.mxu0 %v978
      %991 = vmatmul.bf16.gmra.mxu0 %v981
      %v992 = vpop.f32.mrf.mxu0
      %v993 = vadd.f32 0.0, %v992
      %v994 = vpop.f32.mrf.mxu0
      %v995 = vadd.f32 0.0, %v994
      %996 = vdwg.mxu0
      %v997 = vpack.c.bf16 %v995, %v993
      %v998 = vpack.c.bf16 %v740, %v740
      %v1000 = vsel %vm747, %v997, 0
      %v1003 = vsel %vm890, %v998, 0
      %1005 = vmatpush.bf16.msra.mxu0 0
      %1006 = vmatpush.bf16.msra.mxu0 0
      %1007 = vmatpush.bf16.msra.mxu0 0
      %1008 = vmatpush.bf16.msra.mxu0 0
      %1009 = vmatpush.bf16.msra.mxu0 0
      %1010 = vmatpush.bf16.msra.mxu0 0
      %1011 = vmatpush.bf16.msra.mxu0 0
      %1012 = vmatpush.bf16.msra.mxu0 %v1003
      %1013 = vmatmul.bf16.gmra.mxu0 %v1000
      %v1014 = vpop.f32.mrf.mxu0
      %v1015 = vadd.f32 0.0, %v1014
      %v1016 = vpop.f32.mrf.mxu0
      %v1017 = vadd.f32 0.0, %v1016
      %1018 = vdwg.mxu0
      %v1019 = vadd.f32 %v924, %v1015
      %v1020 = vadd.f32 %v926, %v1017
      %1021 = vrot.lane.b32.xlu0 %v743, 104
      %v1022 = vpop.permute.xlu0 %1021
      %1023 = vrot.lane.b32.xlu0 %v743, 72
      %v1024 = vpop.permute.xlu0 %1023
      %v1026 = vsel %vm747, %v1022, 0
      %v1029 = vsel %vm747, %v1024, 0
      %1031 = vmatpush.bf16.xpose.msra.mxu0 0
      %1032 = vmatpush.bf16.xpose.msra.mxu0 0
      %1033 = vmatpush.bf16.xpose.msra.mxu0 0
      %1034 = vmatpush.bf16.xpose.msra.mxu0 0
      %1035 = vmatpush.bf16.xpose.msra.mxu0 0
      %1036 = vmatpush.bf16.xpose.msra.mxu0 0
      %1037 = vmatpush.bf16.xpose.msra.mxu0 0
      %1038 = vmatpush.bf16.xpose.msra.mxu0 %v1029
      %1039 = vmatmul.bf16.gmra.mxu0 %v1026
      %v1040 = vpop.f32.mrf.mxu0
      %v1041 = vadd.f32 0.0, %v1040
      %v1042 = vpop.f32.mrf.mxu0
      %v1043 = vadd.f32 0.0, %v1042
      %1044 = vdwg.mxu0
      %v1045 = vmul.f32 %v1041, 0.35355338
      %v1046 = vmul.f32 %v1043, 0.35355338
      %v1047 = vsel %vm770, %v1045, -inf
      %1048 = vmax.xlane.f32.xlu0 %v1047
      %v1049 = vpop.xlane.xlu0 %1048
      %v1050 = vsel %vm770, %v1046, -inf
      %1051 = vmax.xlane.f32.xlu0 %v1050
      %v1052 = vpop.xlane.xlu0 %1051
      %v1053 = vsub.f32 %v1045, %v1049
      %v1054 = vsub.f32 %v1046, %v1052
      %v1055 = vmul.f32 %v1053, 1.442695
      %v1056 = vpow.pop %v1055
      %v1057 = vmul.f32 %v1054, 1.442695
      %v1058 = vpow.pop %v1057
      %v1059 = vsel %vm770, %v1056, 0.0
      %1060 = vadd.xlane.f32.xlu0 %v1059
      %v1061 = vpop.xlane.xlu0 %1060
      %v1062 = vsel %vm770, %v1058, 0.0
      %1063 = vadd.xlane.f32.xlu0 %v1062
      %v1064 = vpop.xlane.xlu0 %1063
      %v1065 = vrcp.pop %v1061
      %v1066 = vrcp.pop %v1064
      %v1067 = vmul.f32 %v1056, %v1065
      %v1068 = vmul.f32 %v1058, %v1066
      %v1069 = vpack.c.bf16 %v1068, %v1067
      %1070 = vrot.lane.b32.xlu0 %v743, 40
      %v1071 = vpop.permute.xlu0 %1070
      %v1074 = vsel %vm770, %v1069, 0
      %1076 = vmatpush.bf16.msra.mxu0 0
      %1077 = vmatpush.bf16.msra.mxu0 0
      %1078 = vmatpush.bf16.msra.mxu0 0
      %1079 = vmatpush.bf16.msra.mxu0 0
      %1080 = vmatpush.bf16.msra.mxu0 0
      %1081 = vmatpush.bf16.msra.mxu0 0
      %1082 = vmatpush.bf16.msra.mxu0 0
      %1083 = vmatpush.bf16.msra.mxu0 %v1071
      %1084 = vmatmul.bf16.gmra.mxu0 %v1074
      %v1085 = vpop.f32.mrf.mxu0
      %v1086 = vadd.f32 0.0, %v1085
      %v1087 = vpop.f32.mrf.mxu0
      %v1088 = vadd.f32 0.0, %v1087
      %1089 = vdwg.mxu0
      %v1090 = vpack.c.bf16 %v1088, %v1086
      %v1091 = vpack.c.bf16 %v741, %v741
      %v1093 = vsel %vm747, %v1090, 0
      %v1096 = vsel %vm890, %v1091, 0
      %1098 = vmatpush.bf16.msra.mxu0 0
      %1099 = vmatpush.bf16.msra.mxu0 0
      %1100 = vmatpush.bf16.msra.mxu0 0
      %1101 = vmatpush.bf16.msra.mxu0 0
      %1102 = vmatpush.bf16.msra.mxu0 0
      %1103 = vmatpush.bf16.msra.mxu0 0
      %1104 = vmatpush.bf16.msra.mxu0 0
      %1105 = vmatpush.bf16.msra.mxu0 %v1096
      %1106 = vmatmul.bf16.gmra.mxu0 %v1093
      %v1107 = vpop.f32.mrf.mxu0
      %v1108 = vadd.f32 0.0, %v1107
      %v1109 = vpop.f32.mrf.mxu0
      %v1110 = vadd.f32 0.0, %v1109
      %1111 = vdwg.mxu0
      %v1112 = vadd.f32 %v1019, %v1108
      %v1113 = vadd.f32 %v1020, %v1110
      %v1115 = vperm.slane %v742, 0
      %v1117 = vadd.f32 %v1112, %v1115
      %v1118 = vadd.f32 %v1113, %v1115
      %v1119 = vadd.f32 %v1117, %v705
      %v1120 = vadd.f32 %v1118, %v706
      %v1121 = vld [vmem:[%s6] sm:$0x1]
      %v1122 = vld [vmem:[%s7] sm:$0x1]
      %v1123 = vsel %vm720, %v1119, 0.0
      %1124 = vadd.xlane.f32.xlu0 %v1123
      %v1125 = vpop.xlane.xlu0 %1124
      %v1126 = vsel %vm720, %v1120, 0.0
      %1127 = vadd.xlane.f32.xlu0 %v1126
      %v1128 = vpop.xlane.xlu0 %1127
      %v1129 = vrcp.pop 32.0
      %v1130 = vmul.f32 32.0, %v1129
      %v1131 = vsub.f32 1.0, %v1130
      %v1132 = vmul.f32 %v1129, %v1131
      %v1133 = vadd.f32 %v1129, %v1132
      %vm1134 = vweird.f32 %v1129
      %v1135 = vsel %vm1134, %v1129, %v1133
      %v1136 = vmul.f32 %v1125, %v1135
      %v1137 = vmul.f32 %v1128, %v1135
      %v1138 = vsub.f32 %v1119, %v1136
      %v1139 = vsub.f32 %v1120, %v1137
      %v1140 = vmul.f32 %v1138, %v1138
      %v1141 = vmul.f32 %v1139, %v1139
      %v1142 = vsel %vm720, %v1140, 0.0
      %1143 = vadd.xlane.f32.xlu0 %v1142
      %v1144 = vpop.xlane.xlu0 %1143
      %v1145 = vsel %vm720, %v1141, 0.0
      %1146 = vadd.xlane.f32.xlu0 %v1145
      %v1147 = vpop.xlane.xlu0 %1146
      %v1148 = vmul.f32 %v1144, %v1135
      %v1149 = vmul.f32 %v1147, %v1135
      %v1150 = vadd.f32 %v1148, 1e-05
      %v1151 = vadd.f32 %v1149, 1e-05
      %v1152 = vrsqrt.pop %v1150
      %v1153 = vmul.f32 %v1152, %v1150
      %v1154 = vmul.f32 %v1153, %v1152
      %v1155 = vmul.f32 0.5, %v1154
      %v1156 = vsub.f32 1.5, %v1155
      %v1157 = vmul.f32 %v1152, %v1156
      %vm1158 = vweird.f32 %v1150
      %vm1159 = vweird.f32 %v1152
      %vm1160 = vmor %vm1158, %vm1159
      %v1161 = vsel %vm1160, %v1152, %v1157
      %v1162 = vrsqrt.pop %v1151
      %v1163 = vmul.f32 %v1162, %v1151
      %v1164 = vmul.f32 %v1163, %v1162
      %v1165 = vmul.f32 0.5, %v1164
      %v1166 = vsub.f32 1.5, %v1165
      %v1167 = vmul.f32 %v1162, %v1166
      %vm1168 = vweird.f32 %v1151
      %vm1169 = vweird.f32 %v1162
      %vm1170 = vmor %vm1168, %vm1169
      %v1171 = vsel %vm1170, %v1162, %v1167
      %v1172 = vmul.f32 %v1138, %v1161
      %v1173 = vmul.f32 %v1139, %v1171
      %v1175 = vperm.slane %v1121, 0
      %v1177 = vmul.f32 %v1172, %v1175
      %v1178 = vmul.f32 %v1173, %v1175
      %v1180 = vperm.slane %v1122, 0
      %v1182 = vadd.f32 %v1177, %v1180
      %v1183 = vadd.f32 %v1178, %v1180
      %v1184 = vld [vmem:[%s8] sm:$0xff]
      %v1185 = vld [vmem:[%s8 + $0x8] sm:$0xff]
      %v1186 = vld [vmem:[%s8 + $0x10] sm:$0xff]
      %v1187 = vld [vmem:[%s8 + $0x18] sm:$0xff]
      %v1188 = vpack.c.bf16 %v1183, %v1182
      %v1189 = vpack.c.bf16 %v1185, %v1184
      %v1190 = vpack.c.bf16 %v1187, %v1186
      %v1191 = vld [vmem:[%s9] sm:$0x1]
      %v1193 = vperm.slane %v1191, 0
      %v1196 = vsel %vm720, %v1188, 0
      %1198 = vmatpush.bf16.msra.mxu0 0
      %1199 = vmatpush.bf16.msra.mxu0 0
      %1200 = vmatpush.bf16.msra.mxu0 0
      %1201 = vmatpush.bf16.msra.mxu0 0
      %1202 = vmatpush.bf16.msra.mxu0 0
      %1203 = vmatpush.bf16.msra.mxu0 0
      %1204 = vmatpush.bf16.msra.mxu0 %v1190
      %1205 = vmatpush.bf16.msra.mxu0 %v1189
      %1206 = vmatmul.bf16.gmra.mxu0 %v1196
      %v1207 = vpop.f32.mrf.mxu0
      %v1208 = vadd.f32 %v1193, %v1207
      %v1209 = vpop.f32.mrf.mxu0
      %v1210 = vadd.f32 %v1193, %v1209
      %1211 = vdwg.mxu0
      %v1212 = vld [vmem:[%s10] sm:$0xff]
      %v1213 = vld [vmem:[%s10 + $0x8] sm:$0xff]
      %v1214 = vld [vmem:[%s10 + $0x10] sm:$0xff]
      %v1215 = vld [vmem:[%s10 + $0x18] sm:$0xff]
      %v1216 = vpack.c.bf16 %v708, %v707
      %v1217 = vpack.c.bf16 %v1213, %v1212
      %v1218 = vpack.c.bf16 %v1215, %v1214
      %v1219 = vld [vmem:[%s11] sm:$0x1]
      %v1221 = vperm.slane %v1219, 0
      %v1224 = vsel %vm720, %v1216, 0
      %1226 = vmatpush.bf16.msra.mxu0 0
      %1227 = vmatpush.bf16.msra.mxu0 0
      %1228 = vmatpush.bf16.msra.mxu0 0
      %1229 = vmatpush.bf16.msra.mxu0 0
      %1230 = vmatpush.bf16.msra.mxu0 0
      %1231 = vmatpush.bf16.msra.mxu0 0
      %1232 = vmatpush.bf16.msra.mxu0 %v1218
      %1233 = vmatpush.bf16.msra.mxu0 %v1217
      %1234 = vmatmul.bf16.gmra.mxu0 %v1224
      %v1235 = vpop.f32.mrf.mxu0
      %v1236 = vadd.f32 %v1221, %v1235
      %v1237 = vpop.f32.mrf.mxu0
      %v1238 = vadd.f32 %v1221, %v1237
      %1239 = vdwg.mxu0
      %v1240 = vld [vmem:[%s12] sm:$0xff]
      %v1241 = vld [vmem:[%s12 + $0x8] sm:$0xff]
      %v1242 = vld [vmem:[%s12 + $0x10] sm:$0xff]
      %v1243 = vld [vmem:[%s12 + $0x18] sm:$0xff]
      %v1244 = vld [vmem:[%s13] sm:$0x1]
      %v1245 = vpack.c.bf16 %v1210, %v1208
      %v1246 = vpack.c.bf16 %v1238, %v1236
      %v1248 = vsel %vm747, %v1245, 0
      %v1251 = vsel %vm747, %v1246, 0
      %1253 = vmatpush.bf16.xpose.msra.mxu0 0
      %1254 = vmatpush.bf16.xpose.msra.mxu0 0
      %1255 = vmatpush.bf16.xpose.msra.mxu0 0
      %1256 = vmatpush.bf16.xpose.msra.mxu0 0
      %1257 = vmatpush.bf16.xpose.msra.mxu0 0
      %1258 = vmatpush.bf16.xpose.msra.mxu0 0
      %1259 = vmatpush.bf16.xpose.msra.mxu0 0
      %1260 = vmatpush.bf16.xpose.msra.mxu0 %v1251
      %1261 = vmatmul.bf16.gmra.mxu0 %v1248
      %v1262 = vpop.f32.mrf.mxu0
      %v1263 = vadd.f32 0.0, %v1262
      %v1264 = vpop.f32.mrf.mxu0
      %v1265 = vadd.f32 0.0, %v1264
      %1266 = vdwg.mxu0
      %v1267 = vmul.f32 %v1263, 0.35355338
      %v1268 = vmul.f32 %v1265, 0.35355338
      %v1269 = vsel %vm770, %v1267, -inf
      %1270 = vmax.xlane.f32.xlu0 %v1269
      %v1271 = vpop.xlane.xlu0 %1270
      %v1272 = vsel %vm770, %v1268, -inf
      %1273 = vmax.xlane.f32.xlu0 %v1272
      %v1274 = vpop.xlane.xlu0 %1273
      %v1275 = vsub.f32 %v1267, %v1271
      %v1276 = vsub.f32 %v1268, %v1274
      %v1277 = vmul.f32 %v1275, 1.442695
      %v1278 = vpow.pop %v1277
      %v1279 = vmul.f32 %v1276, 1.442695
      %v1280 = vpow.pop %v1279
      %v1281 = vsel %vm770, %v1278, 0.0
      %1282 = vadd.xlane.f32.xlu0 %v1281
      %v1283 = vpop.xlane.xlu0 %1282
      %v1284 = vsel %vm770, %v1280, 0.0
      %1285 = vadd.xlane.f32.xlu0 %v1284
      %v1286 = vpop.xlane.xlu0 %1285
      %v1287 = vrcp.pop %v1283
      %v1288 = vrcp.pop %v1286
      %v1289 = vmul.f32 %v1278, %v1287
      %v1290 = vmul.f32 %v1280, %v1288
      %v1291 = vpack.c.bf16 %v1290, %v1289
      %1293 = vrot.lane.b32.xlu0 %v1246, 96
      %v1294 = vpop.permute.xlu0 %1293
      %v1297 = vsel %vm770, %v1291, 0
      %1299 = vmatpush.bf16.msra.mxu0 0
      %1300 = vmatpush.bf16.msra.mxu0 0
      %1301 = vmatpush.bf16.msra.mxu0 0
      %1302 = vmatpush.bf16.msra.mxu0 0
      %1303 = vmatpush.bf16.msra.mxu0 0
      %1304 = vmatpush.bf16.msra.mxu0 0
      %1305 = vmatpush.bf16.msra.mxu0 0
      %1306 = vmatpush.bf16.msra.mxu0 %v1294
      %1307 = vmatmul.bf16.gmra.mxu0 %v1297
      %v1308 = vpop.f32.mrf.mxu0
      %v1309 = vadd.f32 0.0, %v1308
      %v1310 = vpop.f32.mrf.mxu0
      %v1311 = vadd.f32 0.0, %v1310
      %1312 = vdwg.mxu0
      %v1313 = vpack.c.bf16 %v1311, %v1309
      %v1314 = vpack.c.bf16 %v1240, %v1240
      %1316 = vrot.lane.b32.xlu0 %v1245, 120
      %v1317 = vpop.permute.xlu0 %1316
      %1318 = vrot.lane.b32.xlu0 %v1246, 120
      %v1319 = vpop.permute.xlu0 %1318
      %v1321 = vsel %vm747, %v1317, 0
      %v1324 = vsel %vm747, %v1319, 0
      %1326 = vmatpush.bf16.xpose.msra.mxu0 0
      %1327 = vmatpush.bf16.xpose.msra.mxu0 0
      %1328 = vmatpush.bf16.xpose.msra.mxu0 0
      %1329 = vmatpush.bf16.xpose.msra.mxu0 0
      %1330 = vmatpush.bf16.xpose.msra.mxu0 0
      %1331 = vmatpush.bf16.xpose.msra.mxu0 0
      %1332 = vmatpush.bf16.xpose.msra.mxu0 0
      %1333 = vmatpush.bf16.xpose.msra.mxu0 %v1324
      %1334 = vmatmul.bf16.gmra.mxu0 %v1321
      %v1335 = vpop.f32.mrf.mxu0
      %v1336 = vadd.f32 0.0, %v1335
      %v1337 = vpop.f32.mrf.mxu0
      %v1338 = vadd.f32 0.0, %v1337
      %1339 = vdwg.mxu0
      %v1340 = vmul.f32 %v1336, 0.35355338
      %v1341 = vmul.f32 %v1338, 0.35355338
      %v1342 = vsel %vm770, %v1340, -inf
      %1343 = vmax.xlane.f32.xlu0 %v1342
      %v1344 = vpop.xlane.xlu0 %1343
      %v1345 = vsel %vm770, %v1341, -inf
      %1346 = vmax.xlane.f32.xlu0 %v1345
      %v1347 = vpop.xlane.xlu0 %1346
      %v1348 = vsub.f32 %v1340, %v1344
      %v1349 = vsub.f32 %v1341, %v1347
      %v1350 = vmul.f32 %v1348, 1.442695
      %v1351 = vpow.pop %v1350
      %v1352 = vmul.f32 %v1349, 1.442695
      %v1353 = vpow.pop %v1352
      %v1354 = vsel %vm770, %v1351, 0.0
      %1355 = vadd.xlane.f32.xlu0 %v1354
      %v1356 = vpop.xlane.xlu0 %1355
      %v1357 = vsel %vm770, %v1353, 0.0
      %1358 = vadd.xlane.f32.xlu0 %v1357
      %v1359 = vpop.xlane.xlu0 %1358
      %v1360 = vrcp.pop %v1356
      %v1361 = vrcp.pop %v1359
      %v1362 = vmul.f32 %v1351, %v1360
      %v1363 = vmul.f32 %v1353, %v1361
      %v1364 = vpack.c.bf16 %v1363, %v1362
      %1365 = vrot.lane.b32.xlu0 %v1246, 88
      %v1366 = vpop.permute.xlu0 %1365
      %v1369 = vsel %vm770, %v1364, 0
      %1371 = vmatpush.bf16.msra.mxu0 0
      %1372 = vmatpush.bf16.msra.mxu0 0
      %1373 = vmatpush.bf16.msra.mxu0 0
      %1374 = vmatpush.bf16.msra.mxu0 0
      %1375 = vmatpush.bf16.msra.mxu0 0
      %1376 = vmatpush.bf16.msra.mxu0 0
      %1377 = vmatpush.bf16.msra.mxu0 0
      %1378 = vmatpush.bf16.msra.mxu0 %v1366
      %1379 = vmatmul.bf16.gmra.mxu0 %v1369
      %v1380 = vpop.f32.mrf.mxu0
      %v1381 = vadd.f32 0.0, %v1380
      %v1382 = vpop.f32.mrf.mxu0
      %v1383 = vadd.f32 0.0, %v1382
      %1384 = vdwg.mxu0
      %v1385 = vpack.c.bf16 %v1383, %v1381
      %v1386 = vpack.c.bf16 %v1241, %v1241
      %v1388 = vsel %vm747, %v1385, 0
      %v1391 = vsel %vm890, %v1386, 0
      %1393 = vmatpush.bf16.msra.mxu0 0
      %1394 = vmatpush.bf16.msra.mxu0 0
      %1395 = vmatpush.bf16.msra.mxu0 0
      %1396 = vmatpush.bf16.msra.mxu0 0
      %1397 = vmatpush.bf16.msra.mxu0 0
      %1398 = vmatpush.bf16.msra.mxu0 0
      %1399 = vmatpush.bf16.msra.mxu0 0
      %1400 = vmatpush.bf16.msra.mxu0 %v1391
      %1401 = vmatmul.bf16.gmra.mxu0 %v1388
      %v1402 = vpop.f32.mrf.mxu0
      %v1403 = vadd.f32 0.0, %v1402
      %v1404 = vpop.f32.mrf.mxu0
      %v1405 = vadd.f32 0.0, %v1404
      %1406 = vdwg.mxu0
      %v1408 = vsel %vm747, %v1313, 0
      %v1411 = vsel %vm890, %v1314, 0
      %1413 = vmatpush.bf16.msra.mxu0 0
      %1414 = vmatpush.bf16.msra.mxu0 0
      %1415 = vmatpush.bf16.msra.mxu0 0
      %1416 = vmatpush.bf16.msra.mxu0 0
      %1417 = vmatpush.bf16.msra.mxu0 0
      %1418 = vmatpush.bf16.msra.mxu0 0
      %1419 = vmatpush.bf16.msra.mxu0 0
      %1420 = vmatpush.bf16.msra.mxu0 %v1411
      %1421 = vmatmul.bf16.gmra.mxu0 %v1408
      %v1422 = vpop.f32.mrf.mxu0
      %v1423 = vadd.f32 %v1403, %v1422
      %v1424 = vpop.f32.mrf.mxu0
      %v1425 = vadd.f32 %v1405, %v1424
      %1426 = vdwg.mxu0
      %1427 = vrot.lane.b32.xlu0 %v1245, 112
      %v1428 = vpop.permute.xlu0 %1427
      %1429 = vrot.lane.b32.xlu0 %v1246, 112
      %v1430 = vpop.permute.xlu0 %1429
      %v1432 = vsel %vm747, %v1428, 0
      %v1435 = vsel %vm747, %v1430, 0
      %1437 = vmatpush.bf16.xpose.msra.mxu0 0
      %1438 = vmatpush.bf16.xpose.msra.mxu0 0
      %1439 = vmatpush.bf16.xpose.msra.mxu0 0
      %1440 = vmatpush.bf16.xpose.msra.mxu0 0
      %1441 = vmatpush.bf16.xpose.msra.mxu0 0
      %1442 = vmatpush.bf16.xpose.msra.mxu0 0
      %1443 = vmatpush.bf16.xpose.msra.mxu0 0
      %1444 = vmatpush.bf16.xpose.msra.mxu0 %v1435
      %1445 = vmatmul.bf16.gmra.mxu0 %v1432
      %v1446 = vpop.f32.mrf.mxu0
      %v1447 = vadd.f32 0.0, %v1446
      %v1448 = vpop.f32.mrf.mxu0
      %v1449 = vadd.f32 0.0, %v1448
      %1450 = vdwg.mxu0
      %v1451 = vmul.f32 %v1447, 0.35355338
      %v1452 = vmul.f32 %v1449, 0.35355338
      %v1453 = vsel %vm770, %v1451, -inf
      %1454 = vmax.xlane.f32.xlu0 %v1453
      %v1455 = vpop.xlane.xlu0 %1454
      %v1456 = vsel %vm770, %v1452, -inf
      %1457 = vmax.xlane.f32.xlu0 %v1456
      %v1458 = vpop.xlane.xlu0 %1457
      %v1459 = vsub.f32 %v1451, %v1455
      %v1460 = vsub.f32 %v1452, %v1458
      %v1461 = vmul.f32 %v1459, 1.442695
      %v1462 = vpow.pop %v1461
      %v1463 = vmul.f32 %v1460, 1.442695
      %v1464 = vpow.pop %v1463
      %v1465 = vsel %vm770, %v1462, 0.0
      %1466 = vadd.xlane.f32.xlu0 %v1465
      %v1467 = vpop.xlane.xlu0 %1466
      %v1468 = vsel %vm770, %v1464, 0.0
      %1469 = vadd.xlane.f32.xlu0 %v1468
      %v1470 = vpop.xlane.xlu0 %1469
      %v1471 = vrcp.pop %v1467
      %v1472 = vrcp.pop %v1470
      %v1473 = vmul.f32 %v1462, %v1471
      %v1474 = vmul.f32 %v1464, %v1472
      %v1475 = vpack.c.bf16 %v1474, %v1473
      %1476 = vrot.lane.b32.xlu0 %v1246, 80
      %v1477 = vpop.permute.xlu0 %1476
      %v1480 = vsel %vm770, %v1475, 0
      %1482 = vmatpush.bf16.msra.mxu0 0
      %1483 = vmatpush.bf16.msra.mxu0 0
      %1484 = vmatpush.bf16.msra.mxu0 0
      %1485 = vmatpush.bf16.msra.mxu0 0
      %1486 = vmatpush.bf16.msra.mxu0 0
      %1487 = vmatpush.bf16.msra.mxu0 0
      %1488 = vmatpush.bf16.msra.mxu0 0
      %1489 = vmatpush.bf16.msra.mxu0 %v1477
      %1490 = vmatmul.bf16.gmra.mxu0 %v1480
      %v1491 = vpop.f32.mrf.mxu0
      %v1492 = vadd.f32 0.0, %v1491
      %v1493 = vpop.f32.mrf.mxu0
      %v1494 = vadd.f32 0.0, %v1493
      %1495 = vdwg.mxu0
      %v1496 = vpack.c.bf16 %v1494, %v1492
      %v1497 = vpack.c.bf16 %v1242, %v1242
      %v1499 = vsel %vm747, %v1496, 0
      %v1502 = vsel %vm890, %v1497, 0
      %1504 = vmatpush.bf16.msra.mxu0 0
      %1505 = vmatpush.bf16.msra.mxu0 0
      %1506 = vmatpush.bf16.msra.mxu0 0
      %1507 = vmatpush.bf16.msra.mxu0 0
      %1508 = vmatpush.bf16.msra.mxu0 0
      %1509 = vmatpush.bf16.msra.mxu0 0
      %1510 = vmatpush.bf16.msra.mxu0 0
      %1511 = vmatpush.bf16.msra.mxu0 %v1502
      %1512 = vmatmul.bf16.gmra.mxu0 %v1499
      %v1513 = vpop.f32.mrf.mxu0
      %v1514 = vadd.f32 0.0, %v1513
      %v1515 = vpop.f32.mrf.mxu0
      %v1516 = vadd.f32 0.0, %v1515
      %1517 = vdwg.mxu0
      %v1518 = vadd.f32 %v1423, %v1514
      %v1519 = vadd.f32 %v1425, %v1516
      %1520 = vrot.lane.b32.xlu0 %v1245, 104
      %v1521 = vpop.permute.xlu0 %1520
      %1522 = vrot.lane.b32.xlu0 %v1246, 104
      %v1523 = vpop.permute.xlu0 %1522
      %v1525 = vsel %vm747, %v1521, 0
      %v1528 = vsel %vm747, %v1523, 0
      %1530 = vmatpush.bf16.xpose.msra.mxu0 0
      %1531 = vmatpush.bf16.xpose.msra.mxu0 0
      %1532 = vmatpush.bf16.xpose.msra.mxu0 0
      %1533 = vmatpush.bf16.xpose.msra.mxu0 0
      %1534 = vmatpush.bf16.xpose.msra.mxu0 0
      %1535 = vmatpush.bf16.xpose.msra.mxu0 0
      %1536 = vmatpush.bf16.xpose.msra.mxu0 0
      %1537 = vmatpush.bf16.xpose.msra.mxu0 %v1528
      %1538 = vmatmul.bf16.gmra.mxu0 %v1525
      %v1539 = vpop.f32.mrf.mxu0
      %v1540 = vadd.f32 0.0, %v1539
      %v1541 = vpop.f32.mrf.mxu0
      %v1542 = vadd.f32 0.0, %v1541
      %1543 = vdwg.mxu0
      %v1544 = vmul.f32 %v1540, 0.35355338
      %v1545 = vmul.f32 %v1542, 0.35355338
      %v1546 = vsel %vm770, %v1544, -inf
      %1547 = vmax.xlane.f32.xlu0 %v1546
      %v1548 = vpop.xlane.xlu0 %1547
      %v1549 = vsel %vm770, %v1545, -inf
      %1550 = vmax.xlane.f32.xlu0 %v1549
      %v1551 = vpop.xlane.xlu0 %1550
      %v1552 = vsub.f32 %v1544, %v1548
      %v1553 = vsub.f32 %v1545, %v1551
      %v1554 = vmul.f32 %v1552, 1.442695
      %v1555 = vpow.pop %v1554
      %v1556 = vmul.f32 %v1553, 1.442695
      %v1557 = vpow.pop %v1556
      %v1558 = vsel %vm770, %v1555, 0.0
      %1559 = vadd.xlane.f32.xlu0 %v1558
      %v1560 = vpop.xlane.xlu0 %1559
      %v1561 = vsel %vm770, %v1557, 0.0
      %1562 = vadd.xlane.f32.xlu0 %v1561
      %v1563 = vpop.xlane.xlu0 %1562
      %v1564 = vrcp.pop %v1560
      %v1565 = vrcp.pop %v1563
      %v1566 = vmul.f32 %v1555, %v1564
      %v1567 = vmul.f32 %v1557, %v1565
      %v1568 = vpack.c.bf16 %v1567, %v1566
      %1569 = vrot.lane.b32.xlu0 %v1246, 72
      %v1570 = vpop.permute.xlu0 %1569
      %v1573 = vsel %vm770, %v1568, 0
      %1575 = vmatpush.bf16.msra.mxu0 0
      %1576 = vmatpush.bf16.msra.mxu0 0
      %1577 = vmatpush.bf16.msra.mxu0 0
      %1578 = vmatpush.bf16.msra.mxu0 0
      %1579 = vmatpush.bf16.msra.mxu0 0
      %1580 = vmatpush.bf16.msra.mxu0 0
      %1581 = vmatpush.bf16.msra.mxu0 0
      %1582 = vmatpush.bf16.msra.mxu0 %v1570
      %1583 = vmatmul.bf16.gmra.mxu0 %v1573
      %v1584 = vpop.f32.mrf.mxu0
      %v1585 = vadd.f32 0.0, %v1584
      %v1586 = vpop.f32.mrf.mxu0
      %v1587 = vadd.f32 0.0, %v1586
      %1588 = vdwg.mxu0
      %v1589 = vpack.c.bf16 %v1587, %v1585
      %v1590 = vpack.c.bf16 %v1243, %v1243
      %v1592 = vsel %vm747, %v1589, 0
      %v1595 = vsel %vm890, %v1590, 0
      %1597 = vmatpush.bf16.msra.mxu0 0
      %1598 = vmatpush.bf16.msra.mxu0 0
      %1599 = vmatpush.bf16.msra.mxu0 0
      %1600 = vmatpush.bf16.msra.mxu0 0
      %1601 = vmatpush.bf16.msra.mxu0 0
      %1602 = vmatpush.bf16.msra.mxu0 0
      %1603 = vmatpush.bf16.msra.mxu0 0
      %1604 = vmatpush.bf16.msra.mxu0 %v1595
      %1605 = vmatmul.bf16.gmra.mxu0 %v1592
      %v1606 = vpop.f32.mrf.mxu0
      %v1607 = vadd.f32 0.0, %v1606
      %v1608 = vpop.f32.mrf.mxu0
      %v1609 = vadd.f32 0.0, %v1608
      %1610 = vdwg.mxu0
      %v1611 = vadd.f32 %v1518, %v1607
      %v1612 = vadd.f32 %v1519, %v1609
      %v1614 = vperm.slane %v1244, 0
      %v1616 = vadd.f32 %v1611, %v1614
      %v1617 = vadd.f32 %v1612, %v1614
      %v1618 = vadd.f32 %v1616, %v1182
      %v1619 = vadd.f32 %v1617, %v1183
      %v1620 = vld [vmem:[%s14] sm:$0x1]
      %v1621 = vld [vmem:[%s15] sm:$0x1]
      %v1622 = vsel %vm720, %v1618, 0.0
      %1623 = vadd.xlane.f32.xlu0 %v1622
      %v1624 = vpop.xlane.xlu0 %1623
      %v1625 = vsel %vm720, %v1619, 0.0
      %1626 = vadd.xlane.f32.xlu0 %v1625
      %v1627 = vpop.xlane.xlu0 %1626
      %v1628 = vmul.f32 %v1624, %v1135
      %v1629 = vmul.f32 %v1627, %v1135
      %v1630 = vsub.f32 %v1618, %v1628
      %v1631 = vsub.f32 %v1619, %v1629
      %v1632 = vmul.f32 %v1630, %v1630
      %v1633 = vmul.f32 %v1631, %v1631
      %v1634 = vsel %vm720, %v1632, 0.0
      %1635 = vadd.xlane.f32.xlu0 %v1634
      %v1636 = vpop.xlane.xlu0 %1635
      %v1637 = vsel %vm720, %v1633, 0.0
      %1638 = vadd.xlane.f32.xlu0 %v1637
      %v1639 = vpop.xlane.xlu0 %1638
      %v1640 = vmul.f32 %v1636, %v1135
      %v1641 = vmul.f32 %v1639, %v1135
      %v1642 = vadd.f32 %v1640, 1e-05
      %v1643 = vadd.f32 %v1641, 1e-05
      %v1644 = vrsqrt.pop %v1642
      %v1645 = vmul.f32 %v1644, %v1642
      %v1646 = vmul.f32 %v1645, %v1644
      %v1647 = vmul.f32 0.5, %v1646
      %v1648 = vsub.f32 1.5, %v1647
      %v1649 = vmul.f32 %v1644, %v1648
      %vm1650 = vweird.f32 %v1642
      %vm1651 = vweird.f32 %v1644
      %vm1652 = vmor %vm1650, %vm1651
      %v1653 = vsel %vm1652, %v1644, %v1649
      %v1654 = vrsqrt.pop %v1643
      %v1655 = vmul.f32 %v1654, %v1643
      %v1656 = vmul.f32 %v1655, %v1654
      %v1657 = vmul.f32 0.5, %v1656
      %v1658 = vsub.f32 1.5, %v1657
      %v1659 = vmul.f32 %v1654, %v1658
      %vm1660 = vweird.f32 %v1643
      %vm1661 = vweird.f32 %v1654
      %vm1662 = vmor %vm1660, %vm1661
      %v1663 = vsel %vm1662, %v1654, %v1659
      %v1664 = vmul.f32 %v1630, %v1653
      %v1665 = vmul.f32 %v1631, %v1663
      %v1667 = vperm.slane %v1620, 0
      %v1669 = vmul.f32 %v1664, %v1667
      %v1670 = vmul.f32 %v1665, %v1667
      %v1672 = vperm.slane %v1621, 0
      %v1674 = vadd.f32 %v1669, %v1672
      %v1675 = vadd.f32 %v1670, %v1672
      %v1676 = vld [vmem:[%s16] sm:$0xff]
      %v1677 = vld [vmem:[%s16 + $0x8] sm:$0xff]
      %v1678 = vld [vmem:[%s16 + $0x10] sm:$0xff]
      %v1679 = vld [vmem:[%s16 + $0x18] sm:$0xff]
      %v1680 = vld [vmem:[%s16 + $0x20] sm:$0xff]
      %v1681 = vld [vmem:[%s16 + $0x28] sm:$0xff]
      %v1682 = vld [vmem:[%s16 + $0x30] sm:$0xff]
      %v1683 = vld [vmem:[%s16 + $0x38] sm:$0xff]
      %v1684 = vld [vmem:[%s16 + $0x40] sm:$0xff]
      %v1685 = vld [vmem:[%s16 + $0x48] sm:$0xff]
      %v1686 = vld [vmem:[%s16 + $0x50] sm:$0xff]
      %v1687 = vld [vmem:[%s16 + $0x58] sm:$0xff]
      %v1688 = vld [vmem:[%s16 + $0x60] sm:$0xff]
      %v1689 = vld [vmem:[%s16 + $0x68] sm:$0xff]
      %v1690 = vld [vmem:[%s16 + $0x70] sm:$0xff]
      %v1691 = vld [vmem:[%s16 + $0x78] sm:$0xff]
      %v1692 = vld [vmem:[%s16 + $0x80] sm:$0xff]
      %v1693 = vld [vmem:[%s16 + $0x88] sm:$0xff]
      %v1694 = vld [vmem:[%s16 + $0x90] sm:$0xff]
      %v1695 = vld [vmem:[%s16 + $0x98] sm:$0xff]
      %v1696 = vld [vmem:[%s16 + $0xa0] sm:$0xff]
      %v1697 = vld [vmem:[%s16 + $0xa8] sm:$0xff]
      %v1698 = vld [vmem:[%s16 + $0xb0] sm:$0xff]
      %v1699 = vld [vmem:[%s16 + $0xb8] sm:$0xff]
      %v1700 = vld [vmem:[%s16 + $0xc0] sm:$0xff]
      %v1701 = vld [vmem:[%s16 + $0xc8] sm:$0xff]
      %v1702 = vld [vmem:[%s16 + $0xd0] sm:$0xff]
      %v1703 = vld [vmem:[%s16 + $0xd8] sm:$0xff]
      %v1704 = vld [vmem:[%s16 + $0xe0] sm:$0xff]
      %v1705 = vld [vmem:[%s16 + $0xe8] sm:$0xff]
      %v1706 = vld [vmem:[%s16 + $0xf0] sm:$0xff]
      %v1707 = vld [vmem:[%s16 + $0xf8] sm:$0xff]
      %v1708 = vld [vmem:[%s16 + $0x100] sm:$0xff]
      %v1709 = vld [vmem:[%s16 + $0x108] sm:$0xff]
      %v1710 = vld [vmem:[%s16 + $0x110] sm:$0xff]
      %v1711 = vld [vmem:[%s16 + $0x118] sm:$0xff]
      %v1712 = vld [vmem:[%s16 + $0x120] sm:$0xff]
      %v1713 = vld [vmem:[%s16 + $0x128] sm:$0xff]
      %v1714 = vld [vmem:[%s16 + $0x130] sm:$0xff]
      %v1715 = vld [vmem:[%s16 + $0x138] sm:$0xff]
      %v1716 = vld [vmem:[%s16 + $0x140] sm:$0xff]
      %v1717 = vld [vmem:[%s16 + $0x148] sm:$0xff]
      %v1718 = vld [vmem:[%s16 + $0x150] sm:$0xff]
      %v1719 = vld [vmem:[%s16 + $0x158] sm:$0xff]
      %v1720 = vld [vmem:[%s16 + $0x160] sm:$0xff]
      %v1721 = vld [vmem:[%s16 + $0x168] sm:$0xff]
      %v1722 = vld [vmem:[%s16 + $0x170] sm:$0xff]
      %v1723 = vld [vmem:[%s16 + $0x178] sm:$0xff]
      %v1724 = vld [vmem:[%s16 + $0x180] sm:$0xff]
      %v1725 = vld [vmem:[%s16 + $0x188] sm:$0xff]
      %v1726 = vld [vmem:[%s16 + $0x190] sm:$0xff]
      %v1727 = vld [vmem:[%s16 + $0x198] sm:$0xff]
      %v1728 = vld [vmem:[%s16 + $0x1a0] sm:$0xff]
      %v1729 = vld [vmem:[%s16 + $0x1a8] sm:$0xff]
      %v1730 = vld [vmem:[%s16 + $0x1b0] sm:$0xff]
      %v1731 = vld [vmem:[%s16 + $0x1b8] sm:$0xff]
      %v1732 = vld [vmem:[%s16 + $0x1c0] sm:$0xff]
      %v1733 = vld [vmem:[%s16 + $0x1c8] sm:$0xff]
      %v1734 = vld [vmem:[%s16 + $0x1d0] sm:$0xff]
      %v1735 = vld [vmem:[%s16 + $0x1d8] sm:$0xff]
      %v1736 = vld [vmem:[%s16 + $0x1e0] sm:$0xff]
      %v1737 = vld [vmem:[%s16 + $0x1e8] sm:$0xff]
      %v1738 = vld [vmem:[%s16 + $0x1f0] sm:$0xff]
      %v1739 = vld [vmem:[%s16 + $0x1f8] sm:$0xff]
      %v1740 = vpack.c.bf16 %v1675, %v1674
      %v1741 = vpack.c.bf16 %v1692, %v1676
      %v1742 = vpack.c.bf16 %v1693, %v1677
      %v1743 = vpack.c.bf16 %v1694, %v1678
      %v1744 = vpack.c.bf16 %v1695, %v1679
      %v1745 = vpack.c.bf16 %v1696, %v1680
      %v1746 = vpack.c.bf16 %v1697, %v1681
      %v1747 = vpack.c.bf16 %v1698, %v1682
      %v1748 = vpack.c.bf16 %v1699, %v1683
      %v1749 = vpack.c.bf16 %v1700, %v1684
      %v1750 = vpack.c.bf16 %v1701, %v1685
      %v1751 = vpack.c.bf16 %v1702, %v1686
      %v1752 = vpack.c.bf16 %v1703, %v1687
      %v1753 = vpack.c.bf16 %v1704, %v1688
      %v1754 = vpack.c.bf16 %v1705, %v1689
      %v1755 = vpack.c.bf16 %v1706, %v1690
      %v1756 = vpack.c.bf16 %v1707, %v1691
      %v1757 = vpack.c.bf16 %v1724, %v1708
      %v1758 = vpack.c.bf16 %v1725, %v1709
      %v1759 = vpack.c.bf16 %v1726, %v1710
      %v1760 = vpack.c.bf16 %v1727, %v1711
      %v1761 = vpack.c.bf16 %v1728, %v1712
      %v1762 = vpack.c.bf16 %v1729, %v1713
      %v1763 = vpack.c.bf16 %v1730, %v1714
      %v1764 = vpack.c.bf16 %v1731, %v1715
      %v1765 = vpack.c.bf16 %v1732, %v1716
      %v1766 = vpack.c.bf16 %v1733, %v1717
      %v1767 = vpack.c.bf16 %v1734, %v1718
      %v1768 = vpack.c.bf16 %v1735, %v1719
      %v1769 = vpack.c.bf16 %v1736, %v1720
      %v1770 = vpack.c.bf16 %v1737, %v1721
      %v1771 = vpack.c.bf16 %v1738, %v1722
      %v1772 = vpack.c.bf16 %v1739, %v1723
      %v1773 = vld [vmem:[%s17] sm:$0xff]
      %v1774 = vld [vmem:[%s17 + $0x8] sm:$0xff]
      %v1777 = vperm.slane %v1773, 0
      %v1778 = vperm.slane %v1773, 1
      %v1779 = vperm.slane %v1773, 2
      %v1780 = vperm.slane %v1773, 3
      %v1781 = vperm.slane %v1773, 4
      %v1782 = vperm.slane %v1773, 5
      %v1783 = vperm.slane %v1773, 6
      %v1784 = vperm.slane %v1773, 7
      %v1785 = vperm.slane %v1774, 0
      %v1786 = vperm.slane %v1774, 1
      %v1787 = vperm.slane %v1774, 2
      %v1788 = vperm.slane %v1774, 3
      %v1789 = vperm.slane %v1774, 4
      %v1790 = vperm.slane %v1774, 5
      %v1791 = vperm.slane %v1774, 6
      %v1792 = vperm.slane %v1774, 7
      %v1810 = vsel %vm720, %v1740, 0
      %1812 = vmatpush.bf16.msra.mxu0 0
      %1813 = vmatpush.bf16.msra.mxu0 0
      %1814 = vmatpush.bf16.msra.mxu0 0
      %1815 = vmatpush.bf16.msra.mxu0 0
      %1816 = vmatpush.bf16.msra.mxu0 0
      %1817 = vmatpush.bf16.msra.mxu0 0
      %1818 = vmatpush.bf16.msra.mxu0 %v1757
      %1819 = vmatpush.bf16.msra.mxu0 %v1741
      %1820 = vmatmul.bf16.gmra.mxu0 %v1810
      %v1821 = vpop.f32.mrf.mxu0
      %v1822 = vadd.f32 %v1777, %v1821
      %v1823 = vpop.f32.mrf.mxu0
      %v1824 = vadd.f32 %v1777, %v1823
      %1825 = vdwg.mxu0
      %1826 = vmatpush.bf16.msra.mxu0 0
      %1827 = vmatpush.bf16.msra.mxu0 0
      %1828 = vmatpush.bf16.msra.mxu0 0
      %1829 = vmatpush.bf16.msra.mxu0 0
      %1830 = vmatpush.bf16.msra.mxu0 0
      %1831 = vmatpush.bf16.msra.mxu0 0
      %1832 = vmatpush.bf16.msra.mxu0 %v1758
      %1833 = vmatpush.bf16.msra.mxu0 %v1742
      %1834 = vmatmul.bf16.gmra.mxu0 %v1810
      %v1835 = vpop.f32.mrf.mxu0
      %v1836 = vadd.f32 %v1778, %v1835
      %v1837 = vpop.f32.mrf.mxu0
      %v1838 = vadd.f32 %v1778, %v1837
      %1839 = vdwg.mxu0
      %1840 = vmatpush.bf16.msra.mxu0 0
      %1841 = vmatpush.bf16.msra.mxu0 0
      %1842 = vmatpush.bf16.msra.mxu0 0
      %1843 = vmatpush.bf16.msra.mxu0 0
      %1844 = vmatpush.bf16.msra.mxu0 0
      %1845 = vmatpush.bf16.msra.mxu0 0
      %1846 = vmatpush.bf16.msra.mxu0 %v1759
      %1847 = vmatpush.bf16.msra.mxu0 %v1743
      %1848 = vmatmul.bf16.gmra.mxu0 %v1810
      %v1849 = vpop.f32.mrf.mxu0
      %v1850 = vadd.f32 %v1779, %v1849
      %v1851 = vpop.f32.mrf.mxu0
      %v1852 = vadd.f32 %v1779, %v1851
      %1853 = vdwg.mxu0
      %1854 = vmatpush.bf16.msra.mxu0 0
      %1855 = vmatpush.bf16.msra.mxu0 0
      %1856 = vmatpush.bf16.msra.mxu0 0
      %1857 = vmatpush.bf16.msra.mxu0 0
      %1858 = vmatpush.bf16.msra.mxu0 0
      %1859 = vmatpush.bf16.msra.mxu0 0
      %1860 = vmatpush.bf16.msra.mxu0 %v1760
      %1861 = vmatpush.bf16.msra.mxu0 %v1744
      %1862 = vmatmul.bf16.gmra.mxu0 %v1810
      %v1863 = vpop.f32.mrf.mxu0
      %v1864 = vadd.f32 %v1780, %v1863
      %v1865 = vpop.f32.mrf.mxu0
      %v1866 = vadd.f32 %v1780, %v1865
      %1867 = vdwg.mxu0
      %1868 = vmatpush.bf16.msra.mxu0 0
      %1869 = vmatpush.bf16.msra.mxu0 0
      %1870 = vmatpush.bf16.msra.mxu0 0
      %1871 = vmatpush.bf16.msra.mxu0 0
      %1872 = vmatpush.bf16.msra.mxu0 0
      %1873 = vmatpush.bf16.msra.mxu0 0
      %1874 = vmatpush.bf16.msra.mxu0 %v1761
      %1875 = vmatpush.bf16.msra.mxu0 %v1745
      %1876 = vmatmul.bf16.gmra.mxu0 %v1810
      %v1877 = vpop.f32.mrf.mxu0
      %v1878 = vadd.f32 %v1781, %v1877
      %v1879 = vpop.f32.mrf.mxu0
      %v1880 = vadd.f32 %v1781, %v1879
      %1881 = vdwg.mxu0
      %1882 = vmatpush.bf16.msra.mxu0 0
      %1883 = vmatpush.bf16.msra.mxu0 0
      %1884 = vmatpush.bf16.msra.mxu0 0
      %1885 = vmatpush.bf16.msra.mxu0 0
      %1886 = vmatpush.bf16.msra.mxu0 0
      %1887 = vmatpush.bf16.msra.mxu0 0
      %1888 = vmatpush.bf16.msra.mxu0 %v1762
      %1889 = vmatpush.bf16.msra.mxu0 %v1746
      %1890 = vmatmul.bf16.gmra.mxu0 %v1810
      %v1891 = vpop.f32.mrf.mxu0
      %v1892 = vadd.f32 %v1782, %v1891
      %v1893 = vpop.f32.mrf.mxu0
      %v1894 = vadd.f32 %v1782, %v1893
      %1895 = vdwg.mxu0
      %1896 = vmatpush.bf16.msra.mxu0 0
      %1897 = vmatpush.bf16.msra.mxu0 0
      %1898 = vmatpush.bf16.msra.mxu0 0
      %1899 = vmatpush.bf16.msra.mxu0 0
      %1900 = vmatpush.bf16.msra.mxu0 0
      %1901 = vmatpush.bf16.msra.mxu0 0
      %1902 = vmatpush.bf16.msra.mxu0 %v1763
      %1903 = vmatpush.bf16.msra.mxu0 %v1747
      %1904 = vmatmul.bf16.gmra.mxu0 %v1810
      %v1905 = vpop.f32.mrf.mxu0
      %v1906 = vadd.f32 %v1783, %v1905
      %v1907 = vpop.f32.mrf.mxu0
      %v1908 = vadd.f32 %v1783, %v1907
      %1909 = vdwg.mxu0
      %1910 = vmatpush.bf16.msra.mxu0 0
      %1911 = vmatpush.bf16.msra.mxu0 0
      %1912 = vmatpush.bf16.msra.mxu0 0
      %1913 = vmatpush.bf16.msra.mxu0 0
      %1914 = vmatpush.bf16.msra.mxu0 0
      %1915 = vmatpush.bf16.msra.mxu0 0
      %1916 = vmatpush.bf16.msra.mxu0 %v1764
      %1917 = vmatpush.bf16.msra.mxu0 %v1748
      %1918 = vmatmul.bf16.gmra.mxu0 %v1810
      %v1919 = vpop.f32.mrf.mxu0
      %v1920 = vadd.f32 %v1784, %v1919
      %v1921 = vpop.f32.mrf.mxu0
      %v1922 = vadd.f32 %v1784, %v1921
      %1923 = vdwg.mxu0
      %1924 = vmatpush.bf16.msra.mxu0 0
      %1925 = vmatpush.bf16.msra.mxu0 0
      %1926 = vmatpush.bf16.msra.mxu0 0
      %1927 = vmatpush.bf16.msra.mxu0 0
      %1928 = vmatpush.bf16.msra.mxu0 0
      %1929 = vmatpush.bf16.msra.mxu0 0
      %1930 = vmatpush.bf16.msra.mxu0 %v1765
      %1931 = vmatpush.bf16.msra.mxu0 %v1749
      %1932 = vmatmul.bf16.gmra.mxu0 %v1810
      %v1933 = vpop.f32.mrf.mxu0
      %v1934 = vadd.f32 %v1785, %v1933
      %v1935 = vpop.f32.mrf.mxu0
      %v1936 = vadd.f32 %v1785, %v1935
      %1937 = vdwg.mxu0
      %1938 = vmatpush.bf16.msra.mxu0 0
      %1939 = vmatpush.bf16.msra.mxu0 0
      %1940 = vmatpush.bf16.msra.mxu0 0
      %1941 = vmatpush.bf16.msra.mxu0 0
      %1942 = vmatpush.bf16.msra.mxu0 0
      %1943 = vmatpush.bf16.msra.mxu0 0
      %1944 = vmatpush.bf16.msra.mxu0 %v1766
      %1945 = vmatpush.bf16.msra.mxu0 %v1750
      %1946 = vmatmul.bf16.gmra.mxu0 %v1810
      %v1947 = vpop.f32.mrf.mxu0
      %v1948 = vadd.f32 %v1786, %v1947
      %v1949 = vpop.f32.mrf.mxu0
      %v1950 = vadd.f32 %v1786, %v1949
      %1951 = vdwg.mxu0
      %1952 = vmatpush.bf16.msra.mxu0 0
      %1953 = vmatpush.bf16.msra.mxu0 0
      %1954 = vmatpush.bf16.msra.mxu0 0
      %1955 = vmatpush.bf16.msra.mxu0 0
      %1956 = vmatpush.bf16.msra.mxu0 0
      %1957 = vmatpush.bf16.msra.mxu0 0
      %1958 = vmatpush.bf16.msra.mxu0 %v1767
      %1959 = vmatpush.bf16.msra.mxu0 %v1751
      %1960 = vmatmul.bf16.gmra.mxu0 %v1810
      %v1961 = vpop.f32.mrf.mxu0
      %v1962 = vadd.f32 %v1787, %v1961
      %v1963 = vpop.f32.mrf.mxu0
      %v1964 = vadd.f32 %v1787, %v1963
      %1965 = vdwg.mxu0
      %1966 = vmatpush.bf16.msra.mxu0 0
      %1967 = vmatpush.bf16.msra.mxu0 0
      %1968 = vmatpush.bf16.msra.mxu0 0
      %1969 = vmatpush.bf16.msra.mxu0 0
      %1970 = vmatpush.bf16.msra.mxu0 0
      %1971 = vmatpush.bf16.msra.mxu0 0
      %1972 = vmatpush.bf16.msra.mxu0 %v1768
      %1973 = vmatpush.bf16.msra.mxu0 %v1752
      %1974 = vmatmul.bf16.gmra.mxu0 %v1810
      %v1975 = vpop.f32.mrf.mxu0
      %v1976 = vadd.f32 %v1788, %v1975
      %v1977 = vpop.f32.mrf.mxu0
      %v1978 = vadd.f32 %v1788, %v1977
      %1979 = vdwg.mxu0
      %1980 = vmatpush.bf16.msra.mxu0 0
      %1981 = vmatpush.bf16.msra.mxu0 0
      %1982 = vmatpush.bf16.msra.mxu0 0
      %1983 = vmatpush.bf16.msra.mxu0 0
      %1984 = vmatpush.bf16.msra.mxu0 0
      %1985 = vmatpush.bf16.msra.mxu0 0
      %1986 = vmatpush.bf16.msra.mxu0 %v1769
      %1987 = vmatpush.bf16.msra.mxu0 %v1753
      %1988 = vmatmul.bf16.gmra.mxu0 %v1810
      %v1989 = vpop.f32.mrf.mxu0
      %v1990 = vadd.f32 %v1789, %v1989
      %v1991 = vpop.f32.mrf.mxu0
      %v1992 = vadd.f32 %v1789, %v1991
      %1993 = vdwg.mxu0
      %1994 = vmatpush.bf16.msra.mxu0 0
      %1995 = vmatpush.bf16.msra.mxu0 0
      %1996 = vmatpush.bf16.msra.mxu0 0
      %1997 = vmatpush.bf16.msra.mxu0 0
      %1998 = vmatpush.bf16.msra.mxu0 0
      %1999 = vmatpush.bf16.msra.mxu0 0
      %2000 = vmatpush.bf16.msra.mxu0 %v1770
      %2001 = vmatpush.bf16.msra.mxu0 %v1754
      %2002 = vmatmul.bf16.gmra.mxu0 %v1810
      %v2003 = vpop.f32.mrf.mxu0
      %v2004 = vadd.f32 %v1790, %v2003
      %v2005 = vpop.f32.mrf.mxu0
      %v2006 = vadd.f32 %v1790, %v2005
      %2007 = vdwg.mxu0
      %2008 = vmatpush.bf16.msra.mxu0 0
      %2009 = vmatpush.bf16.msra.mxu0 0
      %2010 = vmatpush.bf16.msra.mxu0 0
      %2011 = vmatpush.bf16.msra.mxu0 0
      %2012 = vmatpush.bf16.msra.mxu0 0
      %2013 = vmatpush.bf16.msra.mxu0 0
      %2014 = vmatpush.bf16.msra.mxu0 %v1771
      %2015 = vmatpush.bf16.msra.mxu0 %v1755
      %2016 = vmatmul.bf16.gmra.mxu0 %v1810
      %v2017 = vpop.f32.mrf.mxu0
      %v2018 = vadd.f32 %v1791, %v2017
      %v2019 = vpop.f32.mrf.mxu0
      %v2020 = vadd.f32 %v1791, %v2019
      %2021 = vdwg.mxu0
      %2022 = vmatpush.bf16.msra.mxu0 0
      %2023 = vmatpush.bf16.msra.mxu0 0
      %2024 = vmatpush.bf16.msra.mxu0 0
      %2025 = vmatpush.bf16.msra.mxu0 0
      %2026 = vmatpush.bf16.msra.mxu0 0
      %2027 = vmatpush.bf16.msra.mxu0 0
      %2028 = vmatpush.bf16.msra.mxu0 %v1772
      %2029 = vmatpush.bf16.msra.mxu0 %v1756
      %2030 = vmatmul.bf16.gmra.mxu0 %v1810
      %v2031 = vpop.f32.mrf.mxu0
      %v2032 = vadd.f32 %v1792, %v2031
      %v2033 = vpop.f32.mrf.mxu0
      %v2034 = vadd.f32 %v1792, %v2033
      %2035 = vdwg.mxu0
      %v2036 = vmax.f32 %v1822, 0.0
      %v2037 = vmax.f32 %v1836, 0.0
      %v2038 = vmax.f32 %v1850, 0.0
      %v2039 = vmax.f32 %v1864, 0.0
      %v2040 = vmax.f32 %v1878, 0.0
      %v2041 = vmax.f32 %v1892, 0.0
      %v2042 = vmax.f32 %v1906, 0.0
      %v2043 = vmax.f32 %v1920, 0.0
      %v2044 = vmax.f32 %v1934, 0.0
      %v2045 = vmax.f32 %v1948, 0.0
      %v2046 = vmax.f32 %v1962, 0.0
      %v2047 = vmax.f32 %v1976, 0.0
      %v2048 = vmax.f32 %v1990, 0.0
      %v2049 = vmax.f32 %v2004, 0.0
      %v2050 = vmax.f32 %v2018, 0.0
      %v2051 = vmax.f32 %v2032, 0.0
      %v2052 = vmax.f32 %v1824, 0.0
      %v2053 = vmax.f32 %v1838, 0.0
      %v2054 = vmax.f32 %v1852, 0.0
      %v2055 = vmax.f32 %v1866, 0.0
      %v2056 = vmax.f32 %v1880, 0.0
      %v2057 = vmax.f32 %v1894, 0.0
      %v2058 = vmax.f32 %v1908, 0.0
      %v2059 = vmax.f32 %v1922, 0.0
      %v2060 = vmax.f32 %v1936, 0.0
      %v2061 = vmax.f32 %v1950, 0.0
      %v2062 = vmax.f32 %v1964, 0.0
      %v2063 = vmax.f32 %v1978, 0.0
      %v2064 = vmax.f32 %v1992, 0.0
      %v2065 = vmax.f32 %v2006, 0.0
      %v2066 = vmax.f32 %v2020, 0.0
      %v2067 = vmax.f32 %v2034, 0.0
      %v2068 = vld [vmem:[%s18] sm:$0xff]
      %v2069 = vld [vmem:[%s18 + $0x8] sm:$0xff]
      %v2070 = vld [vmem:[%s18 + $0x10] sm:$0xff]
      %v2071 = vld [vmem:[%s18 + $0x18] sm:$0xff]
      %v2072 = vld [vmem:[%s18 + $0x20] sm:$0xff]
      %v2073 = vld [vmem:[%s18 + $0x28] sm:$0xff]
      %v2074 = vld [vmem:[%s18 + $0x30] sm:$0xff]
      %v2075 = vld [vmem:[%s18 + $0x38] sm:$0xff]
      %v2076 = vld [vmem:[%s18 + $0x40] sm:$0xff]
      %v2077 = vld [vmem:[%s18 + $0x48] sm:$0xff]
      %v2078 = vld [vmem:[%s18 + $0x50] sm:$0xff]
      %v2079 = vld [vmem:[%s18 + $0x58] sm:$0xff]
      %v2080 = vld [vmem:[%s18 + $0x60] sm:$0xff]
      %v2081 = vld [vmem:[%s18 + $0x68] sm:$0xff]
      %v2082 = vld [vmem:[%s18 + $0x70] sm:$0xff]
      %v2083 = vld [vmem:[%s18 + $0x78] sm:$0xff]
      %v2084 = vld [vmem:[%s18 + $0x80] sm:$0xff]
      %v2085 = vld [vmem:[%s18 + $0x88] sm:$0xff]
      %v2086 = vld [vmem:[%s18 + $0x90] sm:$0xff]
      %v2087 = vld [vmem:[%s18 + $0x98] sm:$0xff]
      %v2088 = vld [vmem:[%s18 + $0xa0] sm:$0xff]
      %v2089 = vld [vmem:[%s18 + $0xa8] sm:$0xff]
      %v2090 = vld [vmem:[%s18 + $0xb0] sm:$0xff]
      %v2091 = vld [vmem:[%s18 + $0xb8] sm:$0xff]
      %v2092 = vld [vmem:[%s18 + $0xc0] sm:$0xff]
      %v2093 = vld [vmem:[%s18 + $0xc8] sm:$0xff]
      %v2094 = vld [vmem:[%s18 + $0xd0] sm:$0xff]
      %v2095 = vld [vmem:[%s18 + $0xd8] sm:$0xff]
      %v2096 = vld [vmem:[%s18 + $0xe0] sm:$0xff]
      %v2097 = vld [vmem:[%s18 + $0xe8] sm:$0xff]
      %v2098 = vld [vmem:[%s18 + $0xf0] sm:$0xff]
      %v2099 = vld [vmem:[%s18 + $0xf8] sm:$0xff]
      %v2100 = vld [vmem:[%s18 + $0x100] sm:$0xff]
      %v2101 = vld [vmem:[%s18 + $0x108] sm:$0xff]
      %v2102 = vld [vmem:[%s18 + $0x110] sm:$0xff]
      %v2103 = vld [vmem:[%s18 + $0x118] sm:$0xff]
      %v2104 = vld [vmem:[%s18 + $0x120] sm:$0xff]
      %v2105 = vld [vmem:[%s18 + $0x128] sm:$0xff]
      %v2106 = vld [vmem:[%s18 + $0x130] sm:$0xff]
      %v2107 = vld [vmem:[%s18 + $0x138] sm:$0xff]
      %v2108 = vld [vmem:[%s18 + $0x140] sm:$0xff]
      %v2109 = vld [vmem:[%s18 + $0x148] sm:$0xff]
      %v2110 = vld [vmem:[%s18 + $0x150] sm:$0xff]
      %v2111 = vld [vmem:[%s18 + $0x158] sm:$0xff]
      %v2112 = vld [vmem:[%s18 + $0x160] sm:$0xff]
      %v2113 = vld [vmem:[%s18 + $0x168] sm:$0xff]
      %v2114 = vld [vmem:[%s18 + $0x170] sm:$0xff]
      %v2115 = vld [vmem:[%s18 + $0x178] sm:$0xff]
      %v2116 = vld [vmem:[%s18 + $0x180] sm:$0xff]
      %v2117 = vld [vmem:[%s18 + $0x188] sm:$0xff]
      %v2118 = vld [vmem:[%s18 + $0x190] sm:$0xff]
      %v2119 = vld [vmem:[%s18 + $0x198] sm:$0xff]
      %v2120 = vld [vmem:[%s18 + $0x1a0] sm:$0xff]
      %v2121 = vld [vmem:[%s18 + $0x1a8] sm:$0xff]
      %v2122 = vld [vmem:[%s18 + $0x1b0] sm:$0xff]
      %v2123 = vld [vmem:[%s18 + $0x1b8] sm:$0xff]
      %v2124 = vld [vmem:[%s18 + $0x1c0] sm:$0xff]
      %v2125 = vld [vmem:[%s18 + $0x1c8] sm:$0xff]
      %v2126 = vld [vmem:[%s18 + $0x1d0] sm:$0xff]
      %v2127 = vld [vmem:[%s18 + $0x1d8] sm:$0xff]
      %v2128 = vld [vmem:[%s18 + $0x1e0] sm:$0xff]
      %v2129 = vld [vmem:[%s18 + $0x1e8] sm:$0xff]
      %v2130 = vld [vmem:[%s18 + $0x1f0] sm:$0xff]
      %v2131 = vld [vmem:[%s18 + $0x1f8] sm:$0xff]
      %v2132 = vld [vmem:[%s18 + $0x200] sm:$0xff]
      %v2133 = vld [vmem:[%s18 + $0x208] sm:$0xff]
      %v2134 = vld [vmem:[%s18 + $0x210] sm:$0xff]
      %v2135 = vld [vmem:[%s18 + $0x218] sm:$0xff]
      %v2136 = vld [vmem:[%s18 + $0x220] sm:$0xff]
      %v2137 = vld [vmem:[%s18 + $0x228] sm:$0xff]
      %v2138 = vld [vmem:[%s18 + $0x230] sm:$0xff]
      %v2139 = vld [vmem:[%s18 + $0x238] sm:$0xff]
      %v2140 = vld [vmem:[%s18 + $0x240] sm:$0xff]
      %v2141 = vld [vmem:[%s18 + $0x248] sm:$0xff]
      %v2142 = vld [vmem:[%s18 + $0x250] sm:$0xff]
      %v2143 = vld [vmem:[%s18 + $0x258] sm:$0xff]
      %v2144 = vld [vmem:[%s18 + $0x260] sm:$0xff]
      %v2145 = vld [vmem:[%s18 + $0x268] sm:$0xff]
      %v2146 = vld [vmem:[%s18 + $0x270] sm:$0xff]
      %v2147 = vld [vmem:[%s18 + $0x278] sm:$0xff]
      %v2148 = vld [vmem:[%s18 + $0x280] sm:$0xff]
      %v2149 = vld [vmem:[%s18 + $0x288] sm:$0xff]
      %v2150 = vld [vmem:[%s18 + $0x290] sm:$0xff]
      %v2151 = vld [vmem:[%s18 + $0x298] sm:$0xff]
      %v2152 = vld [vmem:[%s18 + $0x2a0] sm:$0xff]
      %v2153 = vld [vmem:[%s18 + $0x2a8] sm:$0xff]
      %v2154 = vld [vmem:[%s18 + $0x2b0] sm:$0xff]
      %v2155 = vld [vmem:[%s18 + $0x2b8] sm:$0xff]
      %v2156 = vld [vmem:[%s18 + $0x2c0] sm:$0xff]
      %v2157 = vld [vmem:[%s18 + $0x2c8] sm:$0xff]
      %v2158 = vld [vmem:[%s18 + $0x2d0] sm:$0xff]
      %v2159 = vld [vmem:[%s18 + $0x2d8] sm:$0xff]
      %v2160 = vld [vmem:[%s18 + $0x2e0] sm:$0xff]
      %v2161 = vld [vmem:[%s18 + $0x2e8] sm:$0xff]
      %v2162 = vld [vmem:[%s18 + $0x2f0] sm:$0xff]
      %v2163 = vld [vmem:[%s18 + $0x2f8] sm:$0xff]
      %v2164 = vld [vmem:[%s18 + $0x300] sm:$0xff]
      %v2165 = vld [vmem:[%s18 + $0x308] sm:$0xff]
      %v2166 = vld [vmem:[%s18 + $0x310] sm:$0xff]
      %v2167 = vld [vmem:[%s18 + $0x318] sm:$0xff]
      %v2168 = vld [vmem:[%s18 + $0x320] sm:$0xff]
      %v2169 = vld [vmem:[%s18 + $0x328] sm:$0xff]
      %v2170 = vld [vmem:[%s18 + $0x330] sm:$0xff]
      %v2171 = vld [vmem:[%s18 + $0x338] sm:$0xff]
      %v2172 = vld [vmem:[%s18 + $0x340] sm:$0xff]
      %v2173 = vld [vmem:[%s18 + $0x348] sm:$0xff]
      %v2174 = vld [vmem:[%s18 + $0x350] sm:$0xff]
      %v2175 = vld [vmem:[%s18 + $0x358] sm:$0xff]
      %v2176 = vld [vmem:[%s18 + $0x360] sm:$0xff]
      %v2177 = vld [vmem:[%s18 + $0x368] sm:$0xff]
      %v2178 = vld [vmem:[%s18 + $0x370] sm:$0xff]
      %v2179 = vld [vmem:[%s18 + $0x378] sm:$0xff]
      %v2180 = vld [vmem:[%s18 + $0x380] sm:$0xff]
      %v2181 = vld [vmem:[%s18 + $0x388] sm:$0xff]
      %v2182 = vld [vmem:[%s18 + $0x390] sm:$0xff]
      %v2183 = vld [vmem:[%s18 + $0x398] sm:$0xff]
      %v2184 = vld [vmem:[%s18 + $0x3a0] sm:$0xff]
      %v2185 = vld [vmem:[%s18 + $0x3a8] sm:$0xff]
      %v2186 = vld [vmem:[%s18 + $0x3b0] sm:$0xff]
      %v2187 = vld [vmem:[%s18 + $0x3b8] sm:$0xff]
      %v2188 = vld [vmem:[%s18 + $0x3c0] sm:$0xff]
      %v2189 = vld [vmem:[%s18 + $0x3c8] sm:$0xff]
      %v2190 = vld [vmem:[%s18 + $0x3d0] sm:$0xff]
      %v2191 = vld [vmem:[%s18 + $0x3d8] sm:$0xff]
      %v2192 = vld [vmem:[%s18 + $0x3e0] sm:$0xff]
      %v2193 = vld [vmem:[%s18 + $0x3e8] sm:$0xff]
      %v2194 = vld [vmem:[%s18 + $0x3f0] sm:$0xff]
      %v2195 = vld [vmem:[%s18 + $0x3f8] sm:$0xff]
      %v2196 = vld [vmem:[%s18 + $0x400] sm:$0xff]
      %v2197 = vld [vmem:[%s18 + $0x408] sm:$0xff]
      %v2198 = vld [vmem:[%s18 + $0x410] sm:$0xff]
      %v2199 = vld [vmem:[%s18 + $0x418] sm:$0xff]
      %v2200 = vld [vmem:[%s18 + $0x420] sm:$0xff]
      %v2201 = vld [vmem:[%s18 + $0x428] sm:$0xff]
      %v2202 = vld [vmem:[%s18 + $0x430] sm:$0xff]
      %v2203 = vld [vmem:[%s18 + $0x438] sm:$0xff]
      %v2204 = vld [vmem:[%s18 + $0x440] sm:$0xff]
      %v2205 = vld [vmem:[%s18 + $0x448] sm:$0xff]
      %v2206 = vld [vmem:[%s18 + $0x450] sm:$0xff]
      %v2207 = vld [vmem:[%s18 + $0x458] sm:$0xff]
      %v2208 = vld [vmem:[%s18 + $0x460] sm:$0xff]
      %v2209 = vld [vmem:[%s18 + $0x468] sm:$0xff]
      %v2210 = vld [vmem:[%s18 + $0x470] sm:$0xff]
      %v2211 = vld [vmem:[%s18 + $0x478] sm:$0xff]
      %v2212 = vld [vmem:[%s18 + $0x480] sm:$0xff]
      %v2213 = vld [vmem:[%s18 + $0x488] sm:$0xff]
      %v2214 = vld [vmem:[%s18 + $0x490] sm:$0xff]
      %v2215 = vld [vmem:[%s18 + $0x498] sm:$0xff]
      %v2216 = vld [vmem:[%s18 + $0x4a0] sm:$0xff]
      %v2217 = vld [vmem:[%s18 + $0x4a8] sm:$0xff]
      %v2218 = vld [vmem:[%s18 + $0x4b0] sm:$0xff]
      %v2219 = vld [vmem:[%s18 + $0x4b8] sm:$0xff]
      %v2220 = vld [vmem:[%s18 + $0x4c0] sm:$0xff]
      %v2221 = vld [vmem:[%s18 + $0x4c8] sm:$0xff]
      %v2222 = vld [vmem:[%s18 + $0x4d0] sm:$0xff]
      %v2223 = vld [vmem:[%s18 + $0x4d8] sm:$0xff]
      %v2224 = vld [vmem:[%s18 + $0x4e0] sm:$0xff]
      %v2225 = vld [vmem:[%s18 + $0x4e8] sm:$0xff]
      %v2226 = vld [vmem:[%s18 + $0x4f0] sm:$0xff]
      %v2227 = vld [vmem:[%s18 + $0x4f8] sm:$0xff]
      %v2228 = vld [vmem:[%s18 + $0x500] sm:$0xff]
      %v2229 = vld [vmem:[%s18 + $0x508] sm:$0xff]
      %v2230 = vld [vmem:[%s18 + $0x510] sm:$0xff]
      %v2231 = vld [vmem:[%s18 + $0x518] sm:$0xff]
      %v2232 = vld [vmem:[%s18 + $0x520] sm:$0xff]
      %v2233 = vld [vmem:[%s18 + $0x528] sm:$0xff]
      %v2234 = vld [vmem:[%s18 + $0x530] sm:$0xff]
      %v2235 = vld [vmem:[%s18 + $0x538] sm:$0xff]
      %v2236 = vld [vmem:[%s18 + $0x540] sm:$0xff]
      %v2237 = vld [vmem:[%s18 + $0x548] sm:$0xff]
      %v2238 = vld [vmem:[%s18 + $0x550] sm:$0xff]
      %v2239 = vld [vmem:[%s18 + $0x558] sm:$0xff]
      %v2240 = vld [vmem:[%s18 + $0x560] sm:$0xff]
      %v2241 = vld [vmem:[%s18 + $0x568] sm:$0xff]
      %v2242 = vld [vmem:[%s18 + $0x570] sm:$0xff]
      %v2243 = vld [vmem:[%s18 + $0x578] sm:$0xff]
      %v2244 = vld [vmem:[%s18 + $0x580] sm:$0xff]
      %v2245 = vld [vmem:[%s18 + $0x588] sm:$0xff]
      %v2246 = vld [vmem:[%s18 + $0x590] sm:$0xff]
      %v2247 = vld [vmem:[%s18 + $0x598] sm:$0xff]
      %v2248 = vld [vmem:[%s18 + $0x5a0] sm:$0xff]
      %v2249 = vld [vmem:[%s18 + $0x5a8] sm:$0xff]
      %v2250 = vld [vmem:[%s18 + $0x5b0] sm:$0xff]
      %v2251 = vld [vmem:[%s18 + $0x5b8] sm:$0xff]
      %v2252 = vld [vmem:[%s18 + $0x5c0] sm:$0xff]
      %v2253 = vld [vmem:[%s18 + $0x5c8] sm:$0xff]
      %v2254 = vld [vmem:[%s18 + $0x5d0] sm:$0xff]
      %v2255 = vld [vmem:[%s18 + $0x5d8] sm:$0xff]
      %v2256 = vld [vmem:[%s18 + $0x5e0] sm:$0xff]
      %v2257 = vld [vmem:[%s18 + $0x5e8] sm:$0xff]
      %v2258 = vld [vmem:[%s18 + $0x5f0] sm:$0xff]
      %v2259 = vld [vmem:[%s18 + $0x5f8] sm:$0xff]
      %v2260 = vld [vmem:[%s18 + $0x600] sm:$0xff]
      %v2261 = vld [vmem:[%s18 + $0x608] sm:$0xff]
      %v2262 = vld [vmem:[%s18 + $0x610] sm:$0xff]
      %v2263 = vld [vmem:[%s18 + $0x618] sm:$0xff]
      %v2264 = vld [vmem:[%s18 + $0x620] sm:$0xff]
      %v2265 = vld [vmem:[%s18 + $0x628] sm:$0xff]
      %v2266 = vld [vmem:[%s18 + $0x630] sm:$0xff]
      %v2267 = vld [vmem:[%s18 + $0x638] sm:$0xff]
      %v2268 = vld [vmem:[%s18 + $0x640] sm:$0xff]
      %v2269 = vld [vmem:[%s18 + $0x648] sm:$0xff]
      %v2270 = vld [vmem:[%s18 + $0x650] sm:$0xff]
      %v2271 = vld [vmem:[%s18 + $0x658] sm:$0xff]
      %v2272 = vld [vmem:[%s18 + $0x660] sm:$0xff]
      %v2273 = vld [vmem:[%s18 + $0x668] sm:$0xff]
      %v2274 = vld [vmem:[%s18 + $0x670] sm:$0xff]
      %v2275 = vld [vmem:[%s18 + $0x678] sm:$0xff]
      %v2276 = vld [vmem:[%s18 + $0x680] sm:$0xff]
      %v2277 = vld [vmem:[%s18 + $0x688] sm:$0xff]
      %v2278 = vld [vmem:[%s18 + $0x690] sm:$0xff]
      %v2279 = vld [vmem:[%s18 + $0x698] sm:$0xff]
      %v2280 = vld [vmem:[%s18 + $0x6a0] sm:$0xff]
      %v2281 = vld [vmem:[%s18 + $0x6a8] sm:$0xff]
      %v2282 = vld [vmem:[%s18 + $0x6b0] sm:$0xff]
      %v2283 = vld [vmem:[%s18 + $0x6b8] sm:$0xff]
      %v2284 = vld [vmem:[%s18 + $0x6c0] sm:$0xff]
      %v2285 = vld [vmem:[%s18 + $0x6c8] sm:$0xff]
      %v2286 = vld [vmem:[%s18 + $0x6d0] sm:$0xff]
      %v2287 = vld [vmem:[%s18 + $0x6d8] sm:$0xff]
      %v2288 = vld [vmem:[%s18 + $0x6e0] sm:$0xff]
      %v2289 = vld [vmem:[%s18 + $0x6e8] sm:$0xff]
      %v2290 = vld [vmem:[%s18 + $0x6f0] sm:$0xff]
      %v2291 = vld [vmem:[%s18 + $0x6f8] sm:$0xff]
      %v2292 = vld [vmem:[%s18 + $0x700] sm:$0xff]
      %v2293 = vld [vmem:[%s18 + $0x708] sm:$0xff]
      %v2294 = vld [vmem:[%s18 + $0x710] sm:$0xff]
      %v2295 = vld [vmem:[%s18 + $0x718] sm:$0xff]
      %v2296 = vld [vmem:[%s18 + $0x720] sm:$0xff]
      %v2297 = vld [vmem:[%s18 + $0x728] sm:$0xff]
      %v2298 = vld [vmem:[%s18 + $0x730] sm:$0xff]
      %v2299 = vld [vmem:[%s18 + $0x738] sm:$0xff]
      %v2300 = vld [vmem:[%s18 + $0x740] sm:$0xff]
      %v2301 = vld [vmem:[%s18 + $0x748] sm:$0xff]
      %v2302 = vld [vmem:[%s18 + $0x750] sm:$0xff]
      %v2303 = vld [vmem:[%s18 + $0x758] sm:$0xff]
      %v2304 = vld [vmem:[%s18 + $0x760] sm:$0xff]
      %v2305 = vld [vmem:[%s18 + $0x768] sm:$0xff]
      %v2306 = vld [vmem:[%s18 + $0x770] sm:$0xff]
      %v2307 = vld [vmem:[%s18 + $0x778] sm:$0xff]
      %v2308 = vld [vmem:[%s18 + $0x780] sm:$0xff]
      %v2309 = vld [vmem:[%s18 + $0x788] sm:$0xff]
      %v2310 = vld [vmem:[%s18 + $0x790] sm:$0xff]
      %v2311 = vld [vmem:[%s18 + $0x798] sm:$0xff]
      %v2312 = vld [vmem:[%s18 + $0x7a0] sm:$0xff]
      %v2313 = vld [vmem:[%s18 + $0x7a8] sm:$0xff]
      %v2314 = vld [vmem:[%s18 + $0x7b0] sm:$0xff]
      %v2315 = vld [vmem:[%s18 + $0x7b8] sm:$0xff]
      %v2316 = vld [vmem:[%s18 + $0x7c0] sm:$0xff]
      %v2317 = vld [vmem:[%s18 + $0x7c8] sm:$0xff]
      %v2318 = vld [vmem:[%s18 + $0x7d0] sm:$0xff]
      %v2319 = vld [vmem:[%s18 + $0x7d8] sm:$0xff]
      %v2320 = vld [vmem:[%s18 + $0x7e0] sm:$0xff]
      %v2321 = vld [vmem:[%s18 + $0x7e8] sm:$0xff]
      %v2322 = vld [vmem:[%s18 + $0x7f0] sm:$0xff]
      %v2323 = vld [vmem:[%s18 + $0x7f8] sm:$0xff]
      %v2324 = vpack.c.bf16 %v2052, %v2036
      %v2325 = vpack.c.bf16 %v2053, %v2037
      %v2326 = vpack.c.bf16 %v2054, %v2038
      %v2327 = vpack.c.bf16 %v2055, %v2039
      %v2328 = vpack.c.bf16 %v2056, %v2040
      %v2329 = vpack.c.bf16 %v2057, %v2041
      %v2330 = vpack.c.bf16 %v2058, %v2042
      %v2331 = vpack.c.bf16 %v2059, %v2043
      %v2332 = vpack.c.bf16 %v2060, %v2044
      %v2333 = vpack.c.bf16 %v2061, %v2045
      %v2334 = vpack.c.bf16 %v2062, %v2046
      %v2335 = vpack.c.bf16 %v2063, %v2047
      %v2336 = vpack.c.bf16 %v2064, %v2048
      %v2337 = vpack.c.bf16 %v2065, %v2049
      %v2338 = vpack.c.bf16 %v2066, %v2050
      %v2339 = vpack.c.bf16 %v2067, %v2051
      %v2340 = vpack.c.bf16 %v2069, %v2068
      %v2341 = vpack.c.bf16 %v2071, %v2070
      %v2342 = vpack.c.bf16 %v2073, %v2072
      %v2343 = vpack.c.bf16 %v2075, %v2074
      %v2344 = vpack.c.bf16 %v2077, %v2076
      %v2345 = vpack.c.bf16 %v2079, %v2078
      %v2346 = vpack.c.bf16 %v2081, %v2080
      %v2347 = vpack.c.bf16 %v2083, %v2082
      %v2348 = vpack.c.bf16 %v2085, %v2084
      %v2349 = vpack.c.bf16 %v2087, %v2086
      %v2350 = vpack.c.bf16 %v2089, %v2088
      %v2351 = vpack.c.bf16 %v2091, %v2090
      %v2352 = vpack.c.bf16 %v2093, %v2092
      %v2353 = vpack.c.bf16 %v2095, %v2094
      %v2354 = vpack.c.bf16 %v2097, %v2096
      %v2355 = vpack.c.bf16 %v2099, %v2098
      %v2356 = vpack.c.bf16 %v2101, %v2100
      %v2357 = vpack.c.bf16 %v2103, %v2102
      %v2358 = vpack.c.bf16 %v2105, %v2104
      %v2359 = vpack.c.bf16 %v2107, %v2106
      %v2360 = vpack.c.bf16 %v2109, %v2108
      %v2361 = vpack.c.bf16 %v2111, %v2110
      %v2362 = vpack.c.bf16 %v2113, %v2112
      %v2363 = vpack.c.bf16 %v2115, %v2114
      %v2364 = vpack.c.bf16 %v2117, %v2116
      %v2365 = vpack.c.bf16 %v2119, %v2118
      %v2366 = vpack.c.bf16 %v2121, %v2120
      %v2367 = vpack.c.bf16 %v2123, %v2122
      %v2368 = vpack.c.bf16 %v2125, %v2124
      %v2369 = vpack.c.bf16 %v2127, %v2126
      %v2370 = vpack.c.bf16 %v2129, %v2128
      %v2371 = vpack.c.bf16 %v2131, %v2130
      %v2372 = vpack.c.bf16 %v2133, %v2132
      %v2373 = vpack.c.bf16 %v2135, %v2134
      %v2374 = vpack.c.bf16 %v2137, %v2136
      %v2375 = vpack.c.bf16 %v2139, %v2138
      %v2376 = vpack.c.bf16 %v2141, %v2140
      %v2377 = vpack.c.bf16 %v2143, %v2142
      %v2378 = vpack.c.bf16 %v2145, %v2144
      %v2379 = vpack.c.bf16 %v2147, %v2146
      %v2380 = vpack.c.bf16 %v2149, %v2148
      %v2381 = vpack.c.bf16 %v2151, %v2150
      %v2382 = vpack.c.bf16 %v2153, %v2152
      %v2383 = vpack.c.bf16 %v2155, %v2154
      %v2384 = vpack.c.bf16 %v2157, %v2156
      %v2385 = vpack.c.bf16 %v2159, %v2158
      %v2386 = vpack.c.bf16 %v2161, %v2160
      %v2387 = vpack.c.bf16 %v2163, %v2162
      %v2388 = vpack.c.bf16 %v2165, %v2164
      %v2389 = vpack.c.bf16 %v2167, %v2166
      %v2390 = vpack.c.bf16 %v2169, %v2168
      %v2391 = vpack.c.bf16 %v2171, %v2170
      %v2392 = vpack.c.bf16 %v2173, %v2172
      %v2393 = vpack.c.bf16 %v2175, %v2174
      %v2394 = vpack.c.bf16 %v2177, %v2176
      %v2395 = vpack.c.bf16 %v2179, %v2178
      %v2396 = vpack.c.bf16 %v2181, %v2180
      %v2397 = vpack.c.bf16 %v2183, %v2182
      %v2398 = vpack.c.bf16 %v2185, %v2184
      %v2399 = vpack.c.bf16 %v2187, %v2186
      %v2400 = vpack.c.bf16 %v2189, %v2188
      %v2401 = vpack.c.bf16 %v2191, %v2190
      %v2402 = vpack.c.bf16 %v2193, %v2192
      %v2403 = vpack.c.bf16 %v2195, %v2194
      %v2404 = vpack.c.bf16 %v2197, %v2196
      %v2405 = vpack.c.bf16 %v2199, %v2198
      %v2406 = vpack.c.bf16 %v2201, %v2200
      %v2407 = vpack.c.bf16 %v2203, %v2202
      %v2408 = vpack.c.bf16 %v2205, %v2204
      %v2409 = vpack.c.bf16 %v2207, %v2206
      %v2410 = vpack.c.bf16 %v2209, %v2208
      %v2411 = vpack.c.bf16 %v2211, %v2210
      %v2412 = vpack.c.bf16 %v2213, %v2212
      %v2413 = vpack.c.bf16 %v2215, %v2214
      %v2414 = vpack.c.bf16 %v2217, %v2216
      %v2415 = vpack.c.bf16 %v2219, %v2218
      %v2416 = vpack.c.bf16 %v2221, %v2220
      %v2417 = vpack.c.bf16 %v2223, %v2222
      %v2418 = vpack.c.bf16 %v2225, %v2224
      %v2419 = vpack.c.bf16 %v2227, %v2226
      %v2420 = vpack.c.bf16 %v2229, %v2228
      %v2421 = vpack.c.bf16 %v2231, %v2230
      %v2422 = vpack.c.bf16 %v2233, %v2232
      %v2423 = vpack.c.bf16 %v2235, %v2234
      %v2424 = vpack.c.bf16 %v2237, %v2236
      %v2425 = vpack.c.bf16 %v2239, %v2238
      %v2426 = vpack.c.bf16 %v2241, %v2240
      %v2427 = vpack.c.bf16 %v2243, %v2242
      %v2428 = vpack.c.bf16 %v2245, %v2244
      %v2429 = vpack.c.bf16 %v2247, %v2246
      %v2430 = vpack.c.bf16 %v2249, %v2248
      %v2431 = vpack.c.bf16 %v2251, %v2250
      %v2432 = vpack.c.bf16 %v2253, %v2252
      %v2433 = vpack.c.bf16 %v2255, %v2254
      %v2434 = vpack.c.bf16 %v2257, %v2256
      %v2435 = vpack.c.bf16 %v2259, %v2258
      %v2436 = vpack.c.bf16 %v2261, %v2260
      %v2437 = vpack.c.bf16 %v2263, %v2262
      %v2438 = vpack.c.bf16 %v2265, %v2264
      %v2439 = vpack.c.bf16 %v2267, %v2266
      %v2440 = vpack.c.bf16 %v2269, %v2268
      %v2441 = vpack.c.bf16 %v2271, %v2270
      %v2442 = vpack.c.bf16 %v2273, %v2272
      %v2443 = vpack.c.bf16 %v2275, %v2274
      %v2444 = vpack.c.bf16 %v2277, %v2276
      %v2445 = vpack.c.bf16 %v2279, %v2278
      %v2446 = vpack.c.bf16 %v2281, %v2280
      %v2447 = vpack.c.bf16 %v2283, %v2282
      %v2448 = vpack.c.bf16 %v2285, %v2284
      %v2449 = vpack.c.bf16 %v2287, %v2286
      %v2450 = vpack.c.bf16 %v2289, %v2288
      %v2451 = vpack.c.bf16 %v2291, %v2290
      %v2452 = vpack.c.bf16 %v2293, %v2292
      %v2453 = vpack.c.bf16 %v2295, %v2294
      %v2454 = vpack.c.bf16 %v2297, %v2296
      %v2455 = vpack.c.bf16 %v2299, %v2298
      %v2456 = vpack.c.bf16 %v2301, %v2300
      %v2457 = vpack.c.bf16 %v2303, %v2302
      %v2458 = vpack.c.bf16 %v2305, %v2304
      %v2459 = vpack.c.bf16 %v2307, %v2306
      %v2460 = vpack.c.bf16 %v2309, %v2308
      %v2461 = vpack.c.bf16 %v2311, %v2310
      %v2462 = vpack.c.bf16 %v2313, %v2312
      %v2463 = vpack.c.bf16 %v2315, %v2314
      %v2464 = vpack.c.bf16 %v2317, %v2316
      %v2465 = vpack.c.bf16 %v2319, %v2318
      %v2466 = vpack.c.bf16 %v2321, %v2320
      %v2467 = vpack.c.bf16 %v2323, %v2322
      %v2468 = vld [vmem:[%s19] sm:$0x1]
      %v2470 = vperm.slane %v2468, 0
      %2472 = vmatpush.bf16.msra.mxu0 %v2347
      %2473 = vmatpush.bf16.msra.mxu0 %v2346
      %2474 = vmatpush.bf16.msra.mxu0 %v2345
      %2475 = vmatpush.bf16.msra.mxu0 %v2344
      %2476 = vmatpush.bf16.msra.mxu0 %v2343
      %2477 = vmatpush.bf16.msra.mxu0 %v2342
      %2478 = vmatpush.bf16.msra.mxu0 %v2341
      %2479 = vmatpush.bf16.msra.mxu0 %v2340
      %2480 = vmatmul.bf16.gmra.mxu0 %v2324
      %v2481 = vpop.f32.mrf.mxu0
      %v2482 = vadd.f32 %v2470, %v2481
      %v2483 = vpop.f32.mrf.mxu0
      %v2484 = vadd.f32 %v2470, %v2483
      %2485 = vdwg.mxu0
      %2486 = vmatpush.bf16.msra.mxu0 %v2355
      %2487 = vmatpush.bf16.msra.mxu0 %v2354
      %2488 = vmatpush.bf16.msra.mxu0 %v2353
      %2489 = vmatpush.bf16.msra.mxu0 %v2352
      %2490 = vmatpush.bf16.msra.mxu0 %v2351
      %2491 = vmatpush.bf16.msra.mxu0 %v2350
      %2492 = vmatpush.bf16.msra.mxu0 %v2349
      %2493 = vmatpush.bf16.msra.mxu0 %v2348
      %2494 = vmatmul.bf16.gmra.mxu0 %v2325
      %v2495 = vpop.f32.mrf.mxu0
      %v2496 = vadd.f32 %v2482, %v2495
      %v2497 = vpop.f32.mrf.mxu0
      %v2498 = vadd.f32 %v2484, %v2497
      %2499 = vdwg.mxu0
      %2500 = vmatpush.bf16.msra.mxu0 %v2363
      %2501 = vmatpush.bf16.msra.mxu0 %v2362
      %2502 = vmatpush.bf16.msra.mxu0 %v2361
      %2503 = vmatpush.bf16.msra.mxu0 %v2360
      %2504 = vmatpush.bf16.msra.mxu0 %v2359
      %2505 = vmatpush.bf16.msra.mxu0 %v2358
      %2506 = vmatpush.bf16.msra.mxu0 %v2357
      %2507 = vmatpush.bf16.msra.mxu0 %v2356
      %2508 = vmatmul.bf16.gmra.mxu0 %v2326
      %v2509 = vpop.f32.mrf.mxu0
      %v2510 = vadd.f32 %v2496, %v2509
      %v2511 = vpop.f32.mrf.mxu0
      %v2512 = vadd.f32 %v2498, %v2511
      %2513 = vdwg.mxu0
      %2514 = vmatpush.bf16.msra.mxu0 %v2371
      %2515 = vmatpush.bf16.msra.mxu0 %v2370
      %2516 = vmatpush.bf16.msra.mxu0 %v2369
      %2517 = vmatpush.bf16.msra.mxu0 %v2368
      %2518 = vmatpush.bf16.msra.mxu0 %v2367
      %2519 = vmatpush.bf16.msra.mxu0 %v2366
      %2520 = vmatpush.bf16.msra.mxu0 %v2365
      %2521 = vmatpush.bf16.msra.mxu0 %v2364
      %2522 = vmatmul.bf16.gmra.mxu0 %v2327
      %v2523 = vpop.f32.mrf.mxu0
      %v2524 = vadd.f32 %v2510, %v2523
      %v2525 = vpop.f32.mrf.mxu0
      %v2526 = vadd.f32 %v2512, %v2525
      %2527 = vdwg.mxu0
      %2528 = vmatpush.bf16.msra.mxu0 %v2379
      %2529 = vmatpush.bf16.msra.mxu0 %v2378
      %2530 = vmatpush.bf16.msra.mxu0 %v2377
      %2531 = vmatpush.bf16.msra.mxu0 %v2376
      %2532 = vmatpush.bf16.msra.mxu0 %v2375
      %2533 = vmatpush.bf16.msra.mxu0 %v2374
      %2534 = vmatpush.bf16.msra.mxu0 %v2373
      %2535 = vmatpush.bf16.msra.mxu0 %v2372
      %2536 = vmatmul.bf16.gmra.mxu0 %v2328
      %v2537 = vpop.f32.mrf.mxu0
      %v2538 = vadd.f32 %v2524, %v2537
      %v2539 = vpop.f32.mrf.mxu0
      %v2540 = vadd.f32 %v2526, %v2539
      %2541 = vdwg.mxu0
      %2542 = vmatpush.bf16.msra.mxu0 %v2387
      %2543 = vmatpush.bf16.msra.mxu0 %v2386
      %2544 = vmatpush.bf16.msra.mxu0 %v2385
      %2545 = vmatpush.bf16.msra.mxu0 %v2384
      %2546 = vmatpush.bf16.msra.mxu0 %v2383
      %2547 = vmatpush.bf16.msra.mxu0 %v2382
      %2548 = vmatpush.bf16.msra.mxu0 %v2381
      %2549 = vmatpush.bf16.msra.mxu0 %v2380
      %2550 = vmatmul.bf16.gmra.mxu0 %v2329
      %v2551 = vpop.f32.mrf.mxu0
      %v2552 = vadd.f32 %v2538, %v2551
      %v2553 = vpop.f32.mrf.mxu0
      %v2554 = vadd.f32 %v2540, %v2553
      %2555 = vdwg.mxu0
      %2556 = vmatpush.bf16.msra.mxu0 %v2395
      %2557 = vmatpush.bf16.msra.mxu0 %v2394
      %2558 = vmatpush.bf16.msra.mxu0 %v2393
      %2559 = vmatpush.bf16.msra.mxu0 %v2392
      %2560 = vmatpush.bf16.msra.mxu0 %v2391
      %2561 = vmatpush.bf16.msra.mxu0 %v2390
      %2562 = vmatpush.bf16.msra.mxu0 %v2389
      %2563 = vmatpush.bf16.msra.mxu0 %v2388
      %2564 = vmatmul.bf16.gmra.mxu0 %v2330
      %v2565 = vpop.f32.mrf.mxu0
      %v2566 = vadd.f32 %v2552, %v2565
      %v2567 = vpop.f32.mrf.mxu0
      %v2568 = vadd.f32 %v2554, %v2567
      %2569 = vdwg.mxu0
      %2570 = vmatpush.bf16.msra.mxu0 %v2403
      %2571 = vmatpush.bf16.msra.mxu0 %v2402
      %2572 = vmatpush.bf16.msra.mxu0 %v2401
      %2573 = vmatpush.bf16.msra.mxu0 %v2400
      %2574 = vmatpush.bf16.msra.mxu0 %v2399
      %2575 = vmatpush.bf16.msra.mxu0 %v2398
      %2576 = vmatpush.bf16.msra.mxu0 %v2397
      %2577 = vmatpush.bf16.msra.mxu0 %v2396
      %2578 = vmatmul.bf16.gmra.mxu0 %v2331
      %v2579 = vpop.f32.mrf.mxu0
      %v2580 = vadd.f32 %v2566, %v2579
      %v2581 = vpop.f32.mrf.mxu0
      %v2582 = vadd.f32 %v2568, %v2581
      %2583 = vdwg.mxu0
      %2584 = vmatpush.bf16.msra.mxu0 %v2411
      %2585 = vmatpush.bf16.msra.mxu0 %v2410
      %2586 = vmatpush.bf16.msra.mxu0 %v2409
      %2587 = vmatpush.bf16.msra.mxu0 %v2408
      %2588 = vmatpush.bf16.msra.mxu0 %v2407
      %2589 = vmatpush.bf16.msra.mxu0 %v2406
      %2590 = vmatpush.bf16.msra.mxu0 %v2405
      %2591 = vmatpush.bf16.msra.mxu0 %v2404
      %2592 = vmatmul.bf16.gmra.mxu0 %v2332
      %v2593 = vpop.f32.mrf.mxu0
      %v2594 = vadd.f32 %v2580, %v2593
      %v2595 = vpop.f32.mrf.mxu0
      %v2596 = vadd.f32 %v2582, %v2595
      %2597 = vdwg.mxu0
      %2598 = vmatpush.bf16.msra.mxu0 %v2419
      %2599 = vmatpush.bf16.msra.mxu0 %v2418
      %2600 = vmatpush.bf16.msra.mxu0 %v2417
      %2601 = vmatpush.bf16.msra.mxu0 %v2416
      %2602 = vmatpush.bf16.msra.mxu0 %v2415
      %2603 = vmatpush.bf16.msra.mxu0 %v2414
      %2604 = vmatpush.bf16.msra.mxu0 %v2413
      %2605 = vmatpush.bf16.msra.mxu0 %v2412
      %2606 = vmatmul.bf16.gmra.mxu0 %v2333
      %v2607 = vpop.f32.mrf.mxu0
      %v2608 = vadd.f32 %v2594, %v2607
      %v2609 = vpop.f32.mrf.mxu0
      %v2610 = vadd.f32 %v2596, %v2609
      %2611 = vdwg.mxu0
      %2612 = vmatpush.bf16.msra.mxu0 %v2427
      %2613 = vmatpush.bf16.msra.mxu0 %v2426
      %2614 = vmatpush.bf16.msra.mxu0 %v2425
      %2615 = vmatpush.bf16.msra.mxu0 %v2424
      %2616 = vmatpush.bf16.msra.mxu0 %v2423
      %2617 = vmatpush.bf16.msra.mxu0 %v2422
      %2618 = vmatpush.bf16.msra.mxu0 %v2421
      %2619 = vmatpush.bf16.msra.mxu0 %v2420
      %2620 = vmatmul.bf16.gmra.mxu0 %v2334
      %v2621 = vpop.f32.mrf.mxu0
      %v2622 = vadd.f32 %v2608, %v2621
      %v2623 = vpop.f32.mrf.mxu0
      %v2624 = vadd.f32 %v2610, %v2623
      %2625 = vdwg.mxu0
      %2626 = vmatpush.bf16.msra.mxu0 %v2435
      %2627 = vmatpush.bf16.msra.mxu0 %v2434
      %2628 = vmatpush.bf16.msra.mxu0 %v2433
      %2629 = vmatpush.bf16.msra.mxu0 %v2432
      %2630 = vmatpush.bf16.msra.mxu0 %v2431
      %2631 = vmatpush.bf16.msra.mxu0 %v2430
      %2632 = vmatpush.bf16.msra.mxu0 %v2429
      %2633 = vmatpush.bf16.msra.mxu0 %v2428
      %2634 = vmatmul.bf16.gmra.mxu0 %v2335
      %v2635 = vpop.f32.mrf.mxu0
      %v2636 = vadd.f32 %v2622, %v2635
      %v2637 = vpop.f32.mrf.mxu0
      %v2638 = vadd.f32 %v2624, %v2637
      %2639 = vdwg.mxu0
      %2640 = vmatpush.bf16.msra.mxu0 %v2443
      %2641 = vmatpush.bf16.msra.mxu0 %v2442
      %2642 = vmatpush.bf16.msra.mxu0 %v2441
      %2643 = vmatpush.bf16.msra.mxu0 %v2440
      %2644 = vmatpush.bf16.msra.mxu0 %v2439
      %2645 = vmatpush.bf16.msra.mxu0 %v2438
      %2646 = vmatpush.bf16.msra.mxu0 %v2437
      %2647 = vmatpush.bf16.msra.mxu0 %v2436
      %2648 = vmatmul.bf16.gmra.mxu0 %v2336
      %v2649 = vpop.f32.mrf.mxu0
      %v2650 = vadd.f32 %v2636, %v2649
      %v2651 = vpop.f32.mrf.mxu0
      %v2652 = vadd.f32 %v2638, %v2651
      %2653 = vdwg.mxu0
      %2654 = vmatpush.bf16.msra.mxu0 %v2451
      %2655 = vmatpush.bf16.msra.mxu0 %v2450
      %2656 = vmatpush.bf16.msra.mxu0 %v2449
      %2657 = vmatpush.bf16.msra.mxu0 %v2448
      %2658 = vmatpush.bf16.msra.mxu0 %v2447
      %2659 = vmatpush.bf16.msra.mxu0 %v2446
      %2660 = vmatpush.bf16.msra.mxu0 %v2445
      %2661 = vmatpush.bf16.msra.mxu0 %v2444
      %2662 = vmatmul.bf16.gmra.mxu0 %v2337
      %v2663 = vpop.f32.mrf.mxu0
      %v2664 = vadd.f32 %v2650, %v2663
      %v2665 = vpop.f32.mrf.mxu0
      %v2666 = vadd.f32 %v2652, %v2665
      %2667 = vdwg.mxu0
      %2668 = vmatpush.bf16.msra.mxu0 %v2459
      %2669 = vmatpush.bf16.msra.mxu0 %v2458
      %2670 = vmatpush.bf16.msra.mxu0 %v2457
      %2671 = vmatpush.bf16.msra.mxu0 %v2456
      %2672 = vmatpush.bf16.msra.mxu0 %v2455
      %2673 = vmatpush.bf16.msra.mxu0 %v2454
      %2674 = vmatpush.bf16.msra.mxu0 %v2453
      %2675 = vmatpush.bf16.msra.mxu0 %v2452
      %2676 = vmatmul.bf16.gmra.mxu0 %v2338
      %v2677 = vpop.f32.mrf.mxu0
      %v2678 = vadd.f32 %v2664, %v2677
      %v2679 = vpop.f32.mrf.mxu0
      %v2680 = vadd.f32 %v2666, %v2679
      %2681 = vdwg.mxu0
      %2682 = vmatpush.bf16.msra.mxu0 %v2467
      %2683 = vmatpush.bf16.msra.mxu0 %v2466
      %2684 = vmatpush.bf16.msra.mxu0 %v2465
      %2685 = vmatpush.bf16.msra.mxu0 %v2464
      %2686 = vmatpush.bf16.msra.mxu0 %v2463
      %2687 = vmatpush.bf16.msra.mxu0 %v2462
      %2688 = vmatpush.bf16.msra.mxu0 %v2461
      %2689 = vmatpush.bf16.msra.mxu0 %v2460
      %2690 = vmatmul.bf16.gmra.mxu0 %v2339
      %v2691 = vpop.f32.mrf.mxu0
      %v2692 = vadd.f32 %v2678, %v2691
      %v2693 = vpop.f32.mrf.mxu0
      %v2694 = vadd.f32 %v2680, %v2693
      %2695 = vdwg.mxu0
      %v2696 = vadd.f32 %v2692, %v1674
      %v2697 = vadd.f32 %v2694, %v1675
      %v2698 = vld [vmem:[%s20] sm:$0x1]
      %v2699 = vld [vmem:[%s21] sm:$0x1]
      %v2700 = vsel %vm720, %v2696, 0.0
      %2701 = vadd.xlane.f32.xlu0 %v2700
      %v2702 = vpop.xlane.xlu0 %2701
      %v2703 = vsel %vm720, %v2697, 0.0
      %2704 = vadd.xlane.f32.xlu0 %v2703
      %v2705 = vpop.xlane.xlu0 %2704
      %v2706 = vmul.f32 %v2702, %v1135
      %v2707 = vmul.f32 %v2705, %v1135
      %v2708 = vsub.f32 %v2696, %v2706
      %v2709 = vsub.f32 %v2697, %v2707
      %v2710 = vmul.f32 %v2708, %v2708
      %v2711 = vmul.f32 %v2709, %v2709
      %v2712 = vsel %vm720, %v2710, 0.0
      %2713 = vadd.xlane.f32.xlu0 %v2712
      %v2714 = vpop.xlane.xlu0 %2713
      %v2715 = vsel %vm720, %v2711, 0.0
      %2716 = vadd.xlane.f32.xlu0 %v2715
      %v2717 = vpop.xlane.xlu0 %2716
      %v2718 = vmul.f32 %v2714, %v1135
      %v2719 = vmul.f32 %v2717, %v1135
      %v2720 = vadd.f32 %v2718, 1e-05
      %v2721 = vadd.f32 %v2719, 1e-05
      %v2722 = vrsqrt.pop %v2720
      %v2723 = vmul.f32 %v2722, %v2720
      %v2724 = vmul.f32 %v2723, %v2722
      %v2725 = vmul.f32 0.5, %v2724
      %v2726 = vsub.f32 1.5, %v2725
      %v2727 = vmul.f32 %v2722, %v2726
      %vm2728 = vweird.f32 %v2720
      %vm2729 = vweird.f32 %v2722
      %vm2730 = vmor %vm2728, %vm2729
      %v2731 = vsel %vm2730, %v2722, %v2727
      %v2732 = vrsqrt.pop %v2721
      %v2733 = vmul.f32 %v2732, %v2721
      %v2734 = vmul.f32 %v2733, %v2732
      %v2735 = vmul.f32 0.5, %v2734
      %v2736 = vsub.f32 1.5, %v2735
      %v2737 = vmul.f32 %v2732, %v2736
      %vm2738 = vweird.f32 %v2721
      %vm2739 = vweird.f32 %v2732
      %vm2740 = vmor %vm2738, %vm2739
      %v2741 = vsel %vm2740, %v2732, %v2737
      %v2742 = vmul.f32 %v2708, %v2731
      %v2743 = vmul.f32 %v2709, %v2741
      %v2745 = vperm.slane %v2698, 0
      %v2747 = vmul.f32 %v2742, %v2745
      %v2748 = vmul.f32 %v2743, %v2745
      %v2750 = vperm.slane %v2699, 0
      %v2752 = vadd.f32 %v2747, %v2750
      %v2753 = vadd.f32 %v2748, %v2750
      %2754 = vst.msk [vmem:[%s703] sm:$0xff] %vm720, %v2752
      %2755 = vst.msk [vmem:[%s703 + $0x8] sm:$0xff] %vm720, %v2753
      %p2756 = scmp.lt.s32.totalorder %s33, 1
      %s2757 = scalar_select %p2756, %s33, 1
      %s2758 = smul.addr %s2757, 2
      %s2759 = smul.addr %s2758, 8
      %s2760 = scalar_lea.vmem %s22, %s2759
      // Predicated region
      $region109: #{vit_forward.11} parent=107 // pred_check
        %p2761 = pneg %p523
      $region110: #{vit_forward.11} parent=107 // pred_check_branch
        %2763 = sbr.rel (%p2761) target = $region112
      $region111: #{vit_forward.11} parent=107 // pred_region
        _
      $region112: #{vit_forward.11} parent=107 // pred_fallthru
        _
    $region108: #{vit_forward.11} parent=5 // pred_fallthru
      _
    %p2764 = scmp.le.s32.totalorder 2, %s28
    // Predicated region
    $region113: #{vit_forward.11} parent=5 // pred_check
      %p2765 = pneg %p2764
    $region114: #{vit_forward.11} parent=5 // pred_check_branch
      %2767 = sbr.rel (%p2765) target = $region116
    $region115: #{vit_forward.11} parent=5 // pred_region
      %s2768 = ssub.s32 %s28, 2
      // Predicated region
      $region117: #{vit_forward.11} parent=115 // pred_check
        %p2769 = pneg %p529
      $region118: #{vit_forward.11} parent=115 // pred_check_branch
        %2771 = sbr.rel (%p2769) target = $region120
      $region119: #{vit_forward.11} parent=115 // pred_region
        %p2772 = scmp.lt.s32.totalorder %s34, 1
        %s2773 = scalar_select %p2772, %s34, 1
        %s2774 = smul.addr %s2773, 2
        %s2775 = smul.addr %s2774, 8
        %s2776 = scalar_lea.vmem %s22, %s2775
      $region120: #{vit_forward.11} parent=115 // pred_fallthru
        _
    $region116: #{vit_forward.11} parent=5 // pred_fallthru
      _
  $region6: #{vit_forward.11} parent=0 // loop_footer
    %s32 = sadd.s32 1, %s28
  $region7: #{vit_forward.11} parent=0 // loop_footer_branch
    %27 = sbr.rel target = $region3
  $region8: #{vit_forward.11} parent=0 // loop_exit
    _

</llo_original>
